<compile_context>
chip_gen: v7x
topology: tpu7x:2x2x1
jax: 0.10.0
libtpu: 0.0.40
codegen_flags: <defaults>
</compile_context>

<pallas_src>
from math import sqrt

import jax
import jax.numpy as jnp
import numpy as np
from jax import lax
from jax.experimental import pallas as pl
from jax.experimental.pallas import tpu as pltpu

EPS = 1e-5   # torch.nn.BatchNorm2d default
LANE = 128   # TPU lane width
SUB = 8      # TPU sublane width


# ------------------------------ small helpers --------------------------------

def _round_up(v, m):
    return ((v + m - 1) // m) * m


def _relu6(x):
    return jnp.clip(x, 0.0, 6.0)


def _bn_scale_bias(x2d, gamma, beta):
    """Single-pass training-mode BN on (M, C): per-channel (scale, bias)."""
    m = jnp.mean(x2d, axis=0, keepdims=True)
    m2 = jnp.mean(x2d * x2d, axis=0, keepdims=True)
    var = jnp.maximum(m2 - m * m, 0.0)           # biased batch variance
    scale = gamma * lax.rsqrt(var + EPS)
    bias = beta - m * scale
    return scale, bias


# --------------------------------- kernel ------------------------------------

def _make_kernel(N, H, W, Cin, hid_p, Cout, stride, expand, use_res, Wbuf):
    Hout = (H + 2 - 3) // stride + 1
    Wout = (W + 2 - 3) // stride + 1
    We = Wout + 1                         # even-plane width (stride-2 path)

    def kernel(*refs):
        x_ref = refs[0]
        i = 1
        if expand:
            w1_ref, g1_ref, b1_ref = refs[1:4]
            i = 4
        (wd_ref, g2_ref, b2_ref, w3_ref, g3_ref, b3_ref, out_ref) = refs[i:i + 7]
        pad_ref = refs[i + 7]
        deint_ref = refs[i + 8] if stride == 2 else None

        x = x_ref[...]                                   # (N, H, W, Cin) f32
        x2d = x.reshape(N * H * W, Cin)

        # ---- 1x1 expansion conv (bf16 MXU) + fused BN + ReLU6 ---------------
        if expand:
            h = jnp.dot(x2d.astype(jnp.bfloat16), w1_ref[...],
                        preferred_element_type=jnp.float32)
            s1, t1 = _bn_scale_bias(h, g1_ref[...], b1_ref[...])
            h = _relu6(h * s1 + t1)
        else:
            h = x2d                                      # hidden_dim == Cin

        # ---- depthwise 3x3 conv (pad=1, stride in {1,2}) + fused BN + ReLU6 -
        # bf16 scratch storage (f32 MAC).  Zero only the halo strips and the
        # sublane tail columns; interior gets h.
        zrow = jnp.zeros((N, 1, Wbuf, hid_p), jnp.bfloat16)
        pad_ref[:, 0:1, :, :] = zrow
        pad_ref[:, H + 1:H + 2, :, :] = zrow
        pad_ref[:, 1:H + 1, 0:1, :] = jnp.zeros((N, H, 1, hid_p), jnp.bfloat16)
        pad_ref[:, 1:H + 1, W + 1:Wbuf, :] = jnp.zeros(
            (N, H, Wbuf - W - 1, hid_p), jnp.bfloat16)
        pad_ref[:, 1:H + 1, 1:W + 1, :] = (
            h.reshape(N, H, W, hid_p).astype(jnp.bfloat16))

        wd = wd_ref[...]                                 # (9, hid_p) f32
        taps = [wd[k:k + 1, :].reshape(1, 1, 1, hid_p) for k in range(9)]

        if stride == 2:
            # One-shot even/odd column deinterleave: the only W-strided reads.
            # Columns of deint_ref beyond We+Wout are never read.
            deint_ref[:, :, 0:We, :] = pad_ref[:, :, pl.ds(0, We, 2), :]
            deint_ref[:, :, We:We + Wout, :] = pad_ref[:, :, pl.ds(1, Wout, 2), :]

            def patch(kh, kw):
                rows = pl.ds(kh, Hout, 2)                # major-axis stride: cheap
                if kw == 0:
                    return deint_ref[:, rows, pl.ds(0, Wout), :]
                if kw == 1:
                    return deint_ref[:, rows, pl.ds(We, Wout), :]
                return deint_ref[:, rows, pl.ds(1, Wout), :]
        else:
            def patch(kh, kw):
                return pad_ref[:, pl.ds(kh, Hout), pl.ds(kw, Wout), :]

        # Accumulator initialised from the first tap (saves a zero-fill + add).
        acc = patch(0, 0) * taps[0]                      # bf16 * f32 -> f32
        for kh in range(3):
            for kw in range(3):
                if kh == 0 and kw == 0:
                    continue
                acc = acc + patch(kh, kw) * taps[kh * 3 + kw]

        a2d = acc.reshape(N * Hout * Wout, hid_p)
        s2, t2 = _bn_scale_bias(a2d, g2_ref[...], b2_ref[...])
        a2d = _relu6(a2d * s2 + t2)

        # ---- 1x1 projection conv (bf16 MXU) + fused BN ----------------------
        y = jnp.dot(a2d.astype(jnp.bfloat16), w3_ref[...],
                    preferred_element_type=jnp.float32)
        s3, t3 = _bn_scale_bias(y, g3_ref[...], b3_ref[...])
        y = (y * s3 + t3).reshape(N, Hout, Wout, Cout)

        if use_res:
            y = y + x
        out_ref[...] = y

    return kernel


# ------------------------------ host-side wrapper -----------------------------

def _pad_last(a, to):
    pad = to - a.shape[-1]
    if pad == 0:
        return a
    return jnp.pad(a, [(0, 0)] * (a.ndim - 1) + [(0, pad)])


def _pad_axis0(a, to):
    pad = to - a.shape[0]
    if pad == 0:
        return a
    return jnp.pad(a, [(0, pad)] + [(0, 0)] * (a.ndim - 1))


def inverted_residual(x, params, *, stride, expand_ratio, out_channels):
    """x: (N, H, W, Cin) float32 NHWC. Returns (N, Hout, Wout, out_channels)."""
    N, H, W, Cin = x.shape
    hid = Cin * expand_ratio
    expand = expand_ratio != 1
    use_res = (stride == 1) and (Cin == out_channels)
    Hout = (H + 2 - 3) // stride + 1
    Wout = (W + 2 - 3) // stride + 1
    Cout = out_channels

    # Lane-dense padding only where it pays and costs no HBM bytes: the hidden
    # dim (matmul-1 N / depthwise lanes / matmul-2 K).  Cin and Cout stay at
    # their logical widths (x / y HBM traffic carries only real data).
    hid_p = _round_up(hid, LANE) if expand else hid
    Wbuf = _round_up(W + 2, SUB)                       # sublane-aligned scratch
    We = Wout + 1
    Wd = _round_up(We + Wout, SUB) if stride == 2 else 0

    args = [x]
    if expand:
        w1 = _pad_last(params["w1"], hid_p).astype(jnp.bfloat16)
        args += [w1, _pad_last(params["g1"], hid_p), _pad_last(params["b1"], hid_p)]
    wd = _pad_last(params["wd"], hid_p)
    w3 = _pad_axis0(params["w3"], hid_p).astype(jnp.bfloat16)
    args += [wd, _pad_last(params["g2"], hid_p), _pad_last(params["b2"], hid_p),
             w3, params["g3"], params["b3"]]

    kernel = _make_kernel(N, H, W, Cin, hid_p, Cout, stride, expand, use_res, Wbuf)

    in_specs = [pl.BlockSpec(memory_space=pltpu.MemorySpace.VMEM) for _ in args]
    out_spec = pl.BlockSpec(memory_space=pltpu.MemorySpace.VMEM)

    scratch = [pltpu.VMEM((N, H + 2, Wbuf, hid_p), jnp.bfloat16)]
    if stride == 2:
        scratch.append(pltpu.VMEM((N, H + 2, Wd, hid_p), jnp.bfloat16))

    # VMEM budget sized from the real allocations (2x headroom), capped at a
    # v7x-safe 48 MiB.  No grid -> no double-buffering multiplier.
    f32b, bf16b = 4, 2
    m1, m2 = N * H * W, N * Hout * Wout
    bytes_in = sum(int(np.prod(a.shape)) * a.dtype.itemsize for a in args)
    bytes_out = m2 * Cout * f32b
    bytes_scratch = N * (H + 2) * Wbuf * hid_p * bf16b
    if stride == 2:
        bytes_scratch += N * (H + 2) * Wd * hid_p * bf16b
    bytes_interm = (m1 * Cin * (f32b + bf16b)            # x + bf16 cast
                    + m1 * hid_p * f32b                   # h
                    + m2 * hid_p * (2 * f32b + bf16b)     # acc, a2d, bf16 cast
                    + m2 * Cout * 2 * f32b)               # y (+ residual)
    work = bytes_in + bytes_out + bytes_scratch + bytes_interm
    vmem_limit = int(min(max(2 * work, 16 * 1024 * 1024), 48 * 1024 * 1024))

    # Advisory cost estimate from *logical* (unpadded) dims.
    flops = ((2 * m1 * Cin * hid) if expand else 0) \
        + 2 * 9 * m2 * hid + 2 * m2 * hid * Cout
    bytes_accessed = ((m1 * Cin + m2 * Cout) * f32b
                      + ((Cin * hid * bf16b) if expand else 0)
                      + 9 * hid * f32b + hid * Cout * bf16b
                      + (4 * hid + 2 * Cout) * f32b)
    transcendentals = (hid if expand else 0) + hid + Cout   # rsqrt per BN channel
    cost = pl.CostEstimate(flops=int(flops), transcendentals=int(transcendentals),
                           bytes_accessed=int(bytes_accessed))

    out = pl.pallas_call(
        kernel,
        out_shape=jax.ShapeDtypeStruct((N, Hout, Wout, Cout), jnp.float32),
        in_specs=in_specs,
        out_specs=out_spec,
        scratch_shapes=scratch,
        compiler_params=pltpu.CompilerParams(vmem_limit_bytes=vmem_limit),
        cost_estimate=cost,
    )(*args)

    return out


# ------------------------------ params + reference ----------------------------

def init_params(key, cin, cout, expand_ratio):
    hid = cin * expand_ratio
    ks = jax.random.split(key, 9)
    p = {}
    if expand_ratio != 1:
        p["w1"] = jax.random.normal(ks[0], (cin, hid), jnp.float32) / sqrt(cin)
        p["g1"] = 1.0 + 0.1 * jax.random.normal(ks[1], (1, hid), jnp.float32)
        p["b1"] = 0.1 * jax.random.normal(ks[2], (1, hid), jnp.float32)
    p["wd"] = jax.random.normal(ks[3], (9, hid), jnp.float32) / 3.0
    p["g2"] = 1.0 + 0.1 * jax.random.normal(ks[4], (1, hid), jnp.float32)
    p["b2"] = 0.1 * jax.random.normal(ks[5], (1, hid), jnp.float32)
    p["w3"] = jax.random.normal(ks[6], (hid, cout), jnp.float32) / sqrt(hid)
    p["g3"] = 1.0 + 0.1 * jax.random.normal(ks[7], (1, cout), jnp.float32)
    p["b3"] = 0.1 * jax.random.normal(ks[8], (1, cout), jnp.float32)
    return p


def _bn_ref(x, gamma, beta):
    mean = jnp.mean(x, axis=(0, 1, 2), keepdims=True)
    var = jnp.mean((x - mean) ** 2, axis=(0, 1, 2), keepdims=True)
    return ((x - mean) * lax.rsqrt(var + EPS)
            * gamma.reshape(1, 1, 1, -1) + beta.reshape(1, 1, 1, -1))


def ref_forward(x, params, *, stride, expand_ratio, out_channels):
    cin = x.shape[-1]
    hid = cin * expand_ratio
    expand = expand_ratio != 1
    use_res = (stride == 1) and (cin == out_channels)
    h = x
    if expand:
        h = jnp.einsum("nhwc,cd->nhwd", h, params["w1"])
        h = jnp.clip(_bn_ref(h, params["g1"], params["b1"]), 0.0, 6.0)
    wd = params["wd"].reshape(3, 3, 1, hid)
    dn = lax.conv_dimension_numbers(h.shape, wd.shape, ("NHWC", "HWIO", "NHWC"))
    h = lax.conv_general_dilated(h, wd, (stride, stride), ((1, 1), (1, 1)),
                                 dimension_numbers=dn, feature_group_count=hid)
    h = jnp.clip(_bn_ref(h, params["g2"], params["b2"]), 0.0, 6.0)
    y = jnp.einsum("nhwc,cd->nhwd", h, params["w3"])
    y = _bn_ref(y, params["g3"], params["b3"])
    if use_res:
        y = y + x
    return y


# ------------------------------------ main ------------------------------------

if __name__ == "__main__":
    key = jax.random.PRNGKey(0)
    N, H, W = 2, 16, 16
    configs = [
        dict(cin=8, cout=8, stride=1, expand_ratio=4),   # residual branch
        dict(cin=8, cout=16, stride=2, expand_ratio=6),  # stride-2, no residual
        dict(cin=8, cout=16, stride=1, expand_ratio=1),  # no expansion conv
    ]
    for i, cfg in enumerate(configs):
        kx, kp = jax.random.split(jax.random.fold_in(key, i))
        x = jax.random.normal(kx, (N, H, W, cfg["cin"]), jnp.float32)
        params = init_params(kp, cfg["cin"], cfg["cout"], cfg["expand_ratio"])

        out = inverted_residual(x, params, stride=cfg["stride"],
                                expand_ratio=cfg["expand_ratio"],
                                out_channels=cfg["cout"])
        out = jax.block_until_ready(out)

        ref = ref_forward(x, params, stride=cfg["stride"],
                          expand_ratio=cfg["expand_ratio"],
                          out_channels=cfg["cout"])
        # bf16 MXU operands + bf16 depthwise scratch storage are intentional;
        # tolerance covers the resulting ~1% relative deviation.
        np.testing.assert_allclose(np.asarray(out), np.asarray(ref),
                                   rtol=2.5e-2, atol=2.5e-2)
    print("KERNEL_OK")
</pallas_src>

<mosaic_0001>
module attributes {stable_mosaic.version = 11 : i64} {
  func.func @kernel(%arg0: memref<2x16x16x8xf32, #tpu.memory_space<vmem>>, %arg1: memref<8x128xbf16, #tpu.memory_space<vmem>>, %arg2: memref<1x128xf32, #tpu.memory_space<vmem>>, %arg3: memref<1x128xf32, #tpu.memory_space<vmem>>, %arg4: memref<9x128xf32, #tpu.memory_space<vmem>>, %arg5: memref<1x128xf32, #tpu.memory_space<vmem>>, %arg6: memref<1x128xf32, #tpu.memory_space<vmem>>, %arg7: memref<128x8xbf16, #tpu.memory_space<vmem>>, %arg8: memref<1x8xf32, #tpu.memory_space<vmem>>, %arg9: memref<1x8xf32, #tpu.memory_space<vmem>>, %arg10: memref<2x16x16x8xf32, #tpu.memory_space<vmem>>, %arg11: memref<2x18x24x128xbf16, #tpu.memory_space<vmem>>) attributes {dimension_semantics = [], scalar_prefetch = 0 : i64, scratch_operands = 1 : i64, tpu.core_type = #tpu.core_type<tc>} {
    %c0 = arith.constant 0 : index
    %c0_0 = arith.constant 0 : index
    %c0_1 = arith.constant 0 : index
    %c0_2 = arith.constant 0 : index
    %0 = vector.load %arg0[%c0, %c0_0, %c0_1, %c0_2] : memref<2x16x16x8xf32, #tpu.memory_space<vmem>>, vector<2x16x16x8xf32>
    %1 = vector.shape_cast %0 : vector<2x16x16x8xf32> to vector<512x8xf32>
    %2 = arith.truncf %1 : vector<512x8xf32> to vector<512x8xbf16>
    %c0_3 = arith.constant 0 : index
    %c0_4 = arith.constant 0 : index
    %3 = vector.load %arg1[%c0_3, %c0_4] : memref<8x128xbf16, #tpu.memory_space<vmem>>, vector<8x128xbf16>
    %cst = arith.constant dense<0.000000e+00> : vector<512x128xf32>
    %4 = tpu.matmul %2, %3, %cst {dimension_numbers = #tpu.dot_dimension_numbers<[1], [0], [0], [1], [0, 0, 1, 1], [], []>} : vector<512x8xbf16>, vector<8x128xbf16>, vector<512x128xf32> -> vector<512x128xf32>
    %c0_5 = arith.constant 0 : index
    %c0_6 = arith.constant 0 : index
    %5 = vector.load %arg2[%c0_5, %c0_6] : memref<1x128xf32, #tpu.memory_space<vmem>>, vector<1x128xf32>
    %c0_7 = arith.constant 0 : index
    %c0_8 = arith.constant 0 : index
    %6 = vector.load %arg3[%c0_7, %c0_8] : memref<1x128xf32, #tpu.memory_space<vmem>>, vector<1x128xf32>
    %cst_9 = arith.constant dense<0.000000e+00> : vector<128xf32>
    %7 = vector.multi_reduction <add>, %4, %cst_9 [0] : vector<512x128xf32> to vector<128xf32>
    %8 = vector.shape_cast %7 : vector<128xf32> to vector<1x128xf32>
    %cst_10 = arith.constant 5.120000e+02 : f32
    %9 = vector.broadcast %cst_10 : f32 to vector<1x128xf32>
    %10 = arith.divf %8, %9 : vector<1x128xf32>
    %11 = arith.mulf %4, %4 : vector<512x128xf32>
    %cst_11 = arith.constant dense<0.000000e+00> : vector<128xf32>
    %12 = vector.multi_reduction <add>, %11, %cst_11 [0] : vector<512x128xf32> to vector<128xf32>
    %13 = vector.shape_cast %12 : vector<128xf32> to vector<1x128xf32>
    %cst_12 = arith.constant 5.120000e+02 : f32
    %14 = vector.broadcast %cst_12 : f32 to vector<1x128xf32>
    %15 = arith.divf %13, %14 : vector<1x128xf32>
    %16 = arith.mulf %10, %10 : vector<1x128xf32>
    %17 = arith.subf %15, %16 : vector<1x128xf32>
    %cst_13 = arith.constant 0.000000e+00 : f32
    %18 = vector.broadcast %cst_13 : f32 to vector<1x128xf32>
    %19 = arith.maximumf %17, %18 : vector<1x128xf32>
    %cst_14 = arith.constant 9.99999974E-6 : f32
    %20 = vector.broadcast %cst_14 : f32 to vector<1x128xf32>
    %21 = arith.addf %19, %20 : vector<1x128xf32>
    %22 = math.rsqrt %21 : vector<1x128xf32>
    %23 = arith.mulf %5, %22 : vector<1x128xf32>
    %24 = arith.mulf %10, %23 : vector<1x128xf32>
    %25 = arith.subf %6, %24 : vector<1x128xf32>
    %26 = vector.broadcast %23 : vector<1x128xf32> to vector<512x128xf32>
    %27 = arith.mulf %4, %26 : vector<512x128xf32>
    %28 = vector.broadcast %25 : vector<1x128xf32> to vector<512x128xf32>
    %29 = arith.addf %27, %28 : vector<512x128xf32>
    %cst_15 = arith.constant 0.000000e+00 : f32
    %cst_16 = arith.constant 6.000000e+00 : f32
    %30 = vector.broadcast %cst_15 : f32 to vector<512x128xf32>
    %31 = arith.maximumf %30, %29 : vector<512x128xf32>
    %32 = vector.broadcast %cst_16 : f32 to vector<512x128xf32>
    %33 = arith.minimumf %32, %31 : vector<512x128xf32>
    %cst_17 = arith.constant 0.000000e+00 : bf16
    %34 = vector.broadcast %cst_17 : bf16 to vector<2x1x24x128xbf16>
    %c0_18 = arith.constant 0 : index
    %c0_19 = arith.constant 0 : index
    %c0_20 = arith.constant 0 : index
    %c0_21 = arith.constant 0 : index
    %35 = vector.load %arg11[%c0_18, %c0_19, %c0_20, %c0_21] : memref<2x18x24x128xbf16, #tpu.memory_space<vmem>>, vector<2x1x24x128xbf16>
    tpu.vector_store %arg11[%c0_18, %c0_19, %c0_20, %c0_21], %34 {strides = array<i32>} : memref<2x18x24x128xbf16, #tpu.memory_space<vmem>>, vector<2x1x24x128xbf16>,
    %c0_22 = arith.constant 0 : index
    %c17 = arith.constant 17 : index
    %c0_23 = arith.constant 0 : index
    %c0_24 = arith.constant 0 : index
    %36 = vector.load %arg11[%c0_22, %c17, %c0_23, %c0_24] : memref<2x18x24x128xbf16, #tpu.memory_space<vmem>>, vector<2x1x24x128xbf16>
    tpu.vector_store %arg11[%c0_22, %c17, %c0_23, %c0_24], %34 {strides = array<i32>} : memref<2x18x24x128xbf16, #tpu.memory_space<vmem>>, vector<2x1x24x128xbf16>,
    %cst_25 = arith.constant 0.000000e+00 : bf16
    %37 = vector.broadcast %cst_25 : bf16 to vector<2x16x1x128xbf16>
    %c0_26 = arith.constant 0 : index
    %c1 = arith.constant 1 : index
    %c0_27 = arith.constant 0 : index
    %c0_28 = arith.constant 0 : index
    %38 = vector.load %arg11[%c0_26, %c1, %c0_27, %c0_28] : memref<2x18x24x128xbf16, #tpu.memory_space<vmem>>, vector<2x16x1x128xbf16>
    tpu.vector_store %arg11[%c0_26, %c1, %c0_27, %c0_28], %37 {strides = array<i32>} : memref<2x18x24x128xbf16, #tpu.memory_space<vmem>>, vector<2x16x1x128xbf16>,
    %cst_29 = arith.constant 0.000000e+00 : bf16
    %39 = vector.broadcast %cst_29 : bf16 to vector<2x16x7x128xbf16>
    %c0_30 = arith.constant 0 : index
    %c1_31 = arith.constant 1 : index
    %c17_32 = arith.constant 17 : index
    %c0_33 = arith.constant 0 : index
    %40 = vector.load %arg11[%c0_30, %c1_31, %c17_32, %c0_33] : memref<2x18x24x128xbf16, #tpu.memory_space<vmem>>, vector<2x16x7x128xbf16>
    tpu.vector_store %arg11[%c0_30, %c1_31, %c17_32, %c0_33], %39 {strides = array<i32>} : memref<2x18x24x128xbf16, #tpu.memory_space<vmem>>, vector<2x16x7x128xbf16>,
    %41 = vector.shape_cast %33 : vector<512x128xf32> to vector<2x16x16x128xf32>
    %42 = arith.truncf %41 : vector<2x16x16x128xf32> to vector<2x16x16x128xbf16>
    %c0_34 = arith.constant 0 : index
    %c1_35 = arith.constant 1 : index
    %c1_36 = arith.constant 1 : index
    %c0_37 = arith.constant 0 : index
    %43 = vector.load %arg11[%c0_34, %c1_35, %c1_36, %c0_37] : memref<2x18x24x128xbf16, #tpu.memory_space<vmem>>, vector<2x16x16x128xbf16>
    tpu.vector_store %arg11[%c0_34, %c1_35, %c1_36, %c0_37], %42 {strides = array<i32>} : memref<2x18x24x128xbf16, #tpu.memory_space<vmem>>, vector<2x16x16x128xbf16>,
    %c0_38 = arith.constant 0 : index
    %c0_39 = arith.constant 0 : index
    %44 = vector.load %arg4[%c0_38, %c0_39] : memref<9x128xf32, #tpu.memory_space<vmem>>, vector<9x128xf32>
    %45 = vector.extract_strided_slice %44 {offsets = [0, 0], sizes = [1, 128], strides = [1, 1]} : vector<9x128xf32> to vector<1x128xf32>
    %46 = vector.shape_cast %45 : vector<1x128xf32> to vector<1x1x1x128xf32>
    %47 = vector.extract_strided_slice %44 {offsets = [1, 0], sizes = [1, 128], strides = [1, 1]} : vector<9x128xf32> to vector<1x128xf32>
    %48 = vector.shape_cast %47 : vector<1x128xf32> to vector<1x1x1x128xf32>
    %49 = vector.extract_strided_slice %44 {offsets = [2, 0], sizes = [1, 128], strides = [1, 1]} : vector<9x128xf32> to vector<1x128xf32>
    %50 = vector.shape_cast %49 : vector<1x128xf32> to vector<1x1x1x128xf32>
    %51 = vector.extract_strided_slice %44 {offsets = [3, 0], sizes = [1, 128], strides = [1, 1]} : vector<9x128xf32> to vector<1x128xf32>
    %52 = vector.shape_cast %51 : vector<1x128xf32> to vector<1x1x1x128xf32>
    %53 = vector.extract_strided_slice %44 {offsets = [4, 0], sizes = [1, 128], strides = [1, 1]} : vector<9x128xf32> to vector<1x128xf32>
    %54 = vector.shape_cast %53 : vector<1x128xf32> to vector<1x1x1x128xf32>
    %55 = vector.extract_strided_slice %44 {offsets = [5, 0], sizes = [1, 128], strides = [1, 1]} : vector<9x128xf32> to vector<1x128xf32>
    %56 = vector.shape_cast %55 : vector<1x128xf32> to vector<1x1x1x128xf32>
    %57 = vector.extract_strided_slice %44 {offsets = [6, 0], sizes = [1, 128], strides = [1, 1]} : vector<9x128xf32> to vector<1x128xf32>
    %58 = vector.shape_cast %57 : vector<1x128xf32> to vector<1x1x1x128xf32>
    %59 = vector.extract_strided_slice %44 {offsets = [7, 0], sizes = [1, 128], strides = [1, 1]} : vector<9x128xf32> to vector<1x128xf32>
    %60 = vector.shape_cast %59 : vector<1x128xf32> to vector<1x1x1x128xf32>
    %61 = vector.extract_strided_slice %44 {offsets = [8, 0], sizes = [1, 128], strides = [1, 1]} : vector<9x128xf32> to vector<1x128xf32>
    %62 = vector.shape_cast %61 : vector<1x128xf32> to vector<1x1x1x128xf32>
    %c0_40 = arith.constant 0 : index
    %c0_41 = arith.constant 0 : index
    %c0_42 = arith.constant 0 : index
    %c0_43 = arith.constant 0 : index
    %63 = vector.load %arg11[%c0_40, %c0_41, %c0_42, %c0_43] : memref<2x18x24x128xbf16, #tpu.memory_space<vmem>>, vector<2x16x16x128xbf16>
    %64 = arith.extf %63 : vector<2x16x16x128xbf16> to vector<2x16x16x128xf32>
    %65 = vector.broadcast %46 : vector<1x1x1x128xf32> to vector<2x16x16x128xf32>
    %66 = arith.mulf %64, %65 : vector<2x16x16x128xf32>
    %c0_44 = arith.constant 0 : index
    %c0_45 = arith.constant 0 : index
    %c1_46 = arith.constant 1 : index
    %c0_47 = arith.constant 0 : index
    %67 = vector.load %arg11[%c0_44, %c0_45, %c1_46, %c0_47] : memref<2x18x24x128xbf16, #tpu.memory_space<vmem>>, vector<2x16x16x128xbf16>
    %68 = arith.extf %67 : vector<2x16x16x128xbf16> to vector<2x16x16x128xf32>
    %69 = vector.broadcast %48 : vector<1x1x1x128xf32> to vector<2x16x16x128xf32>
    %70 = arith.mulf %68, %69 : vector<2x16x16x128xf32>
    %71 = arith.addf %66, %70 : vector<2x16x16x128xf32>
    %c0_48 = arith.constant 0 : index
    %c0_49 = arith.constant 0 : index
    %c2 = arith.constant 2 : index
    %c0_50 = arith.constant 0 : index
    %72 = vector.load %arg11[%c0_48, %c0_49, %c2, %c0_50] : memref<2x18x24x128xbf16, #tpu.memory_space<vmem>>, vector<2x16x16x128xbf16>
    %73 = arith.extf %72 : vector<2x16x16x128xbf16> to vector<2x16x16x128xf32>
    %74 = vector.broadcast %50 : vector<1x1x1x128xf32> to vector<2x16x16x128xf32>
    %75 = arith.mulf %73, %74 : vector<2x16x16x128xf32>
    %76 = arith.addf %71, %75 : vector<2x16x16x128xf32>
    %c0_51 = arith.constant 0 : index
    %c1_52 = arith.constant 1 : index
    %c0_53 = arith.constant 0 : index
    %c0_54 = arith.constant 0 : index
    %77 = vector.load %arg11[%c0_51, %c1_52, %c0_53, %c0_54] : memref<2x18x24x128xbf16, #tpu.memory_space<vmem>>, vector<2x16x16x128xbf16>
    %78 = arith.extf %77 : vector<2x16x16x128xbf16> to vector<2x16x16x128xf32>
    %79 = vector.broadcast %52 : vector<1x1x1x128xf32> to vector<2x16x16x128xf32>
    %80 = arith.mulf %78, %79 : vector<2x16x16x128xf32>
    %81 = arith.addf %76, %80 : vector<2x16x16x128xf32>
    %c0_55 = arith.constant 0 : index
    %c1_56 = arith.constant 1 : index
    %c1_57 = arith.constant 1 : index
    %c0_58 = arith.constant 0 : index
    %82 = vector.load %arg11[%c0_55, %c1_56, %c1_57, %c0_58] : memref<2x18x24x128xbf16, #tpu.memory_space<vmem>>, vector<2x16x16x128xbf16>
    %83 = arith.extf %82 : vector<2x16x16x128xbf16> to vector<2x16x16x128xf32>
    %84 = vector.broadcast %54 : vector<1x1x1x128xf32> to vector<2x16x16x128xf32>
    %85 = arith.mulf %83, %84 : vector<2x16x16x128xf32>
    %86 = arith.addf %81, %85 : vector<2x16x16x128xf32>
    %c0_59 = arith.constant 0 : index
    %c1_60 = arith.constant 1 : index
    %c2_61 = arith.constant 2 : index
    %c0_62 = arith.constant 0 : index
    %87 = vector.load %arg11[%c0_59, %c1_60, %c2_61, %c0_62] : memref<2x18x24x128xbf16, #tpu.memory_space<vmem>>, vector<2x16x16x128xbf16>
    %88 = arith.extf %87 : vector<2x16x16x128xbf16> to vector<2x16x16x128xf32>
    %89 = vector.broadcast %56 : vector<1x1x1x128xf32> to vector<2x16x16x128xf32>
    %90 = arith.mulf %88, %89 : vector<2x16x16x128xf32>
    %91 = arith.addf %86, %90 : vector<2x16x16x128xf32>
    %c0_63 = arith.constant 0 : index
    %c2_64 = arith.constant 2 : index
    %c0_65 = arith.constant 0 : index
    %c0_66 = arith.constant 0 : index
    %92 = vector.load %arg11[%c0_63, %c2_64, %c0_65, %c0_66] : memref<2x18x24x128xbf16, #tpu.memory_space<vmem>>, vector<2x16x16x128xbf16>
    %93 = arith.extf %92 : vector<2x16x16x128xbf16> to vector<2x16x16x128xf32>
    %94 = vector.broadcast %58 : vector<1x1x1x128xf32> to vector<2x16x16x128xf32>
    %95 = arith.mulf %93, %94 : vector<2x16x16x128xf32>
    %96 = arith.addf %91, %95 : vector<2x16x16x128xf32>
    %c0_67 = arith.constant 0 : index
    %c2_68 = arith.constant 2 : index
    %c1_69 = arith.constant 1 : index
    %c0_70 = arith.constant 0 : index
    %97 = vector.load %arg11[%c0_67, %c2_68, %c1_69, %c0_70] : memref<2x18x24x128xbf16, #tpu.memory_space<vmem>>, vector<2x16x16x128xbf16>
    %98 = arith.extf %97 : vector<2x16x16x128xbf16> to vector<2x16x16x128xf32>
    %99 = vector.broadcast %60 : vector<1x1x1x128xf32> to vector<2x16x16x128xf32>
    %100 = arith.mulf %98, %99 : vector<2x16x16x128xf32>
    %101 = arith.addf %96, %100 : vector<2x16x16x128xf32>
    %c0_71 = arith.constant 0 : index
    %c2_72 = arith.constant 2 : index
    %c2_73 = arith.constant 2 : index
    %c0_74 = arith.constant 0 : index
    %102 = vector.load %arg11[%c0_71, %c2_72, %c2_73, %c0_74] : memref<2x18x24x128xbf16, #tpu.memory_space<vmem>>, vector<2x16x16x128xbf16>
    %103 = arith.extf %102 : vector<2x16x16x128xbf16> to vector<2x16x16x128xf32>
    %104 = vector.broadcast %62 : vector<1x1x1x128xf32> to vector<2x16x16x128xf32>
    %105 = arith.mulf %103, %104 : vector<2x16x16x128xf32>
    %106 = arith.addf %101, %105 : vector<2x16x16x128xf32>
    %107 = vector.shape_cast %106 : vector<2x16x16x128xf32> to vector<512x128xf32>
    %c0_75 = arith.constant 0 : index
    %c0_76 = arith.constant 0 : index
    %108 = vector.load %arg5[%c0_75, %c0_76] : memref<1x128xf32, #tpu.memory_space<vmem>>, vector<1x128xf32>
    %c0_77 = arith.constant 0 : index
    %c0_78 = arith.constant 0 : index
    %109 = vector.load %arg6[%c0_77, %c0_78] : memref<1x128xf32, #tpu.memory_space<vmem>>, vector<1x128xf32>
    %cst_79 = arith.constant dense<0.000000e+00> : vector<128xf32>
    %110 = vector.multi_reduction <add>, %107, %cst_79 [0] : vector<512x128xf32> to vector<128xf32>
    %111 = vector.shape_cast %110 : vector<128xf32> to vector<1x128xf32>
    %cst_80 = arith.constant 5.120000e+02 : f32
    %112 = vector.broadcast %cst_80 : f32 to vector<1x128xf32>
    %113 = arith.divf %111, %112 : vector<1x128xf32>
    %114 = arith.mulf %107, %107 : vector<512x128xf32>
    %cst_81 = arith.constant dense<0.000000e+00> : vector<128xf32>
    %115 = vector.multi_reduction <add>, %114, %cst_81 [0] : vector<512x128xf32> to vector<128xf32>
    %116 = vector.shape_cast %115 : vector<128xf32> to vector<1x128xf32>
    %cst_82 = arith.constant 5.120000e+02 : f32
    %117 = vector.broadcast %cst_82 : f32 to vector<1x128xf32>
    %118 = arith.divf %116, %117 : vector<1x128xf32>
    %119 = arith.mulf %113, %113 : vector<1x128xf32>
    %120 = arith.subf %118, %119 : vector<1x128xf32>
    %cst_83 = arith.constant 0.000000e+00 : f32
    %121 = vector.broadcast %cst_83 : f32 to vector<1x128xf32>
    %122 = arith.maximumf %120, %121 : vector<1x128xf32>
    %cst_84 = arith.constant 9.99999974E-6 : f32
    %123 = vector.broadcast %cst_84 : f32 to vector<1x128xf32>
    %124 = arith.addf %122, %123 : vector<1x128xf32>
    %125 = math.rsqrt %124 : vector<1x128xf32>
    %126 = arith.mulf %108, %125 : vector<1x128xf32>
    %127 = arith.mulf %113, %126 : vector<1x128xf32>
    %128 = arith.subf %109, %127 : vector<1x128xf32>
    %129 = vector.broadcast %126 : vector<1x128xf32> to vector<512x128xf32>
    %130 = arith.mulf %107, %129 : vector<512x128xf32>
    %131 = vector.broadcast %128 : vector<1x128xf32> to vector<512x128xf32>
    %132 = arith.addf %130, %131 : vector<512x128xf32>
    %cst_85 = arith.constant 0.000000e+00 : f32
    %cst_86 = arith.constant 6.000000e+00 : f32
    %133 = vector.broadcast %cst_85 : f32 to vector<512x128xf32>
    %134 = arith.maximumf %133, %132 : vector<512x128xf32>
    %135 = vector.broadcast %cst_86 : f32 to vector<512x128xf32>
    %136 = arith.minimumf %135, %134 : vector<512x128xf32>
    %137 = arith.truncf %136 : vector<512x128xf32> to vector<512x128xbf16>
    %c0_87 = arith.constant 0 : index
    %c0_88 = arith.constant 0 : index
    %138 = vector.load %arg7[%c0_87, %c0_88] : memref<128x8xbf16, #tpu.memory_space<vmem>>, vector<128x8xbf16>
    %cst_89 = arith.constant dense<0.000000e+00> : vector<512x8xf32>
    %139 = tpu.matmul %137, %138, %cst_89 {dimension_numbers = #tpu.dot_dimension_numbers<[1], [0], [0], [1], [0, 0, 1, 1], [], []>} : vector<512x128xbf16>, vector<128x8xbf16>, vector<512x8xf32> -> vector<512x8xf32>
    %c0_90 = arith.constant 0 : index
    %c0_91 = arith.constant 0 : index
    %140 = vector.load %arg8[%c0_90, %c0_91] : memref<1x8xf32, #tpu.memory_space<vmem>>, vector<1x8xf32>
    %c0_92 = arith.constant 0 : index
    %c0_93 = arith.constant 0 : index
    %141 = vector.load %arg9[%c0_92, %c0_93] : memref<1x8xf32, #tpu.memory_space<vmem>>, vector<1x8xf32>
    %cst_94 = arith.constant dense<0.000000e+00> : vector<8xf32>
    %142 = vector.multi_reduction <add>, %139, %cst_94 [0] : vector<512x8xf32> to vector<8xf32>
    %143 = vector.shape_cast %142 : vector<8xf32> to vector<1x8xf32>
    %cst_95 = arith.constant 5.120000e+02 : f32
    %144 = vector.broadcast %cst_95 : f32 to vector<1x8xf32>
    %145 = arith.divf %143, %144 : vector<1x8xf32>
    %146 = arith.mulf %139, %139 : vector<512x8xf32>
    %cst_96 = arith.constant dense<0.000000e+00> : vector<8xf32>
    %147 = vector.multi_reduction <add>, %146, %cst_96 [0] : vector<512x8xf32> to vector<8xf32>
    %148 = vector.shape_cast %147 : vector<8xf32> to vector<1x8xf32>
    %cst_97 = arith.constant 5.120000e+02 : f32
    %149 = vector.broadcast %cst_97 : f32 to vector<1x8xf32>
    %150 = arith.divf %148, %149 : vector<1x8xf32>
    %151 = arith.mulf %145, %145 : vector<1x8xf32>
    %152 = arith.subf %150, %151 : vector<1x8xf32>
    %cst_98 = arith.constant 0.000000e+00 : f32
    %153 = vector.broadcast %cst_98 : f32 to vector<1x8xf32>
    %154 = arith.maximumf %152, %153 : vector<1x8xf32>
    %cst_99 = arith.constant 9.99999974E-6 : f32
    %155 = vector.broadcast %cst_99 : f32 to vector<1x8xf32>
    %156 = arith.addf %154, %155 : vector<1x8xf32>
    %157 = math.rsqrt %156 : vector<1x8xf32>
    %158 = arith.mulf %140, %157 : vector<1x8xf32>
    %159 = arith.mulf %145, %158 : vector<1x8xf32>
    %160 = arith.subf %141, %159 : vector<1x8xf32>
    %161 = vector.broadcast %158 : vector<1x8xf32> to vector<512x8xf32>
    %162 = arith.mulf %139, %161 : vector<512x8xf32>
    %163 = vector.broadcast %160 : vector<1x8xf32> to vector<512x8xf32>
    %164 = arith.addf %162, %163 : vector<512x8xf32>
    %165 = vector.shape_cast %164 : vector<512x8xf32> to vector<2x16x16x8xf32>
    %166 = arith.addf %165, %0 : vector<2x16x16x8xf32>
    %c0_100 = arith.constant 0 : index
    %c0_101 = arith.constant 0 : index
    %c0_102 = arith.constant 0 : index
    %c0_103 = arith.constant 0 : index
    %167 = vector.load %arg10[%c0_100, %c0_101, %c0_102, %c0_103] : memref<2x16x16x8xf32, #tpu.memory_space<vmem>>, vector<2x16x16x8xf32>
    tpu.vector_store %arg10[%c0_100, %c0_101, %c0_102, %c0_103], %166 {strides = array<i32>} : memref<2x16x16x8xf32, #tpu.memory_space<vmem>>, vector<2x16x16x8xf32>,
    return
  }
}

</mosaic_0001>

<llo_original>
// kernel: tpu_custom_call.1
$region0: #{tpu_custom_call.1}
  #allocation0 [shape = 'u32[]', space=smem, size = 0x4, offset = 0x4, fixed_abs, tag = 'smem constant byte address 0x4 - core index']
  #allocation1 [shape = 'u32[144,128]{1,0:T(1,128)}', space=vmem, size = 0x12000, scoped, tag = 'internal scratch']
  #allocation2 [shape = 'bf16[2,18,24,128]{3,2,1,0:T(8,128)(2,1)}', space=vmem, size = 0x36000, scoped, tag = 'scratch operand']
  %s0 = inlined_call_operand.vmem [shape: f32[2,16,16,8], index: 0, kind: input, shape index: {}]
  %s1 = inlined_call_operand.vmem [shape: bf16[8,128], index: 1, kind: input, shape index: {}]
  %s2 = inlined_call_operand.vmem [shape: f32[1,128], index: 2, kind: input, shape index: {}]
  %s3 = inlined_call_operand.vmem [shape: f32[1,128], index: 3, kind: input, shape index: {}]
  %s4 = inlined_call_operand.vmem [shape: f32[9,128], index: 4, kind: input, shape index: {}]
  %s5 = inlined_call_operand.vmem [shape: f32[1,128], index: 5, kind: input, shape index: {}]
  %s6 = inlined_call_operand.vmem [shape: f32[1,128], index: 6, kind: input, shape index: {}]
  %s7 = inlined_call_operand.vmem [shape: bf16[128,8], index: 7, kind: input, shape index: {}]
  %s8 = inlined_call_operand.vmem [shape: f32[1,8], index: 8, kind: input, shape index: {}]
  %s9 = inlined_call_operand.vmem [shape: f32[1,8], index: 9, kind: input, shape index: {}]
  %s10 = inlined_call_operand.vmem [shape: f32[2,16,16,8], index: 10, kind: output, shape index: {}]
  %s11 = sld [smem:[#allocation0]]
  $region50: #{tpu_custom_call.1} parent=0
    _
  %s13 = ssub.s32 1, %s11
  %s14 = scalar_select 0, %s13, %s11
  // Predicated region
  $region2: #{tpu_custom_call.1} parent=0 // pred_check
    _
  $region3: #{tpu_custom_call.1} parent=0 // pred_check_branch
    %16 = sbr.rel (0) target = $region5
  $region4: #{tpu_custom_call.1} parent=0 // pred_region
    _
  $region5: #{tpu_custom_call.1} parent=0 // pred_fallthru
    _
  // Predicated region
  $region6: #{tpu_custom_call.1} parent=0 // pred_check
    _
  $region7: #{tpu_custom_call.1} parent=0 // pred_check_branch
    %18 = sbr.rel (0) target = $region9
  $region8: #{tpu_custom_call.1} parent=0 // pred_region
    _
  $region9: #{tpu_custom_call.1} parent=0 // pred_fallthru
    _
  // Predicated region
  $region10: #{tpu_custom_call.1} parent=0 // pred_check
    _
  $region11: #{tpu_custom_call.1} parent=0 // pred_check_branch
    %20 = sbr.rel (0) target = $region13
  $region12: #{tpu_custom_call.1} parent=0 // pred_region
    _
  $region13: #{tpu_custom_call.1} parent=0 // pred_fallthru
    _
  // Predicated region
  $region14: #{tpu_custom_call.1} parent=0 // pred_check
    _
  $region15: #{tpu_custom_call.1} parent=0 // pred_check_branch
    %22 = sbr.rel (0) target = $region17
  $region16: #{tpu_custom_call.1} parent=0 // pred_region
    _
  $region17: #{tpu_custom_call.1} parent=0 // pred_fallthru
    _
  // Predicated region
  $region18: #{tpu_custom_call.1} parent=0 // pred_check
    _
  $region19: #{tpu_custom_call.1} parent=0 // pred_check_branch
    %24 = sbr.rel (0) target = $region21
  $region20: #{tpu_custom_call.1} parent=0 // pred_region
    _
  $region21: #{tpu_custom_call.1} parent=0 // pred_fallthru
    _
  // Predicated region
  $region22: #{tpu_custom_call.1} parent=0 // pred_check
    _
  $region23: #{tpu_custom_call.1} parent=0 // pred_check_branch
    %26 = sbr.rel (0) target = $region25
  $region24: #{tpu_custom_call.1} parent=0 // pred_region
    _
  $region25: #{tpu_custom_call.1} parent=0 // pred_fallthru
    _
  // Predicated region
  $region26: #{tpu_custom_call.1} parent=0 // pred_check
    _
  $region27: #{tpu_custom_call.1} parent=0 // pred_check_branch
    %28 = sbr.rel (0) target = $region29
  $region28: #{tpu_custom_call.1} parent=0 // pred_region
    _
  $region29: #{tpu_custom_call.1} parent=0 // pred_fallthru
    _
  // Predicated region
  $region30: #{tpu_custom_call.1} parent=0 // pred_check
    _
  $region31: #{tpu_custom_call.1} parent=0 // pred_check_branch
    %30 = sbr.rel (0) target = $region33
  $region32: #{tpu_custom_call.1} parent=0 // pred_region
    _
  $region33: #{tpu_custom_call.1} parent=0 // pred_fallthru
    _
  // Predicated region
  $region34: #{tpu_custom_call.1} parent=0 // pred_check
    _
  $region35: #{tpu_custom_call.1} parent=0 // pred_check_branch
    %32 = sbr.rel (0) target = $region37
  $region36: #{tpu_custom_call.1} parent=0 // pred_region
    _
  $region37: #{tpu_custom_call.1} parent=0 // pred_fallthru
    _
  // Predicated region
  $region38: #{tpu_custom_call.1} parent=0 // pred_check
    _
  $region39: #{tpu_custom_call.1} parent=0 // pred_check_branch
    %34 = sbr.rel (0) target = $region41
  $region40: #{tpu_custom_call.1} parent=0 // pred_region
    _
  $region41: #{tpu_custom_call.1} parent=0 // pred_fallthru
    _
  %v36 = vld [vmem:[%s0] sm:$0xff]
  %v37 = vld [vmem:[%s0 + $0x8] sm:$0xff]
  %v38 = vld [vmem:[%s0 + $0x10] sm:$0xff]
  %v39 = vld [vmem:[%s0 + $0x18] sm:$0xff]
  %v40 = vld [vmem:[%s0 + $0x20] sm:$0xff]
  %v41 = vld [vmem:[%s0 + $0x28] sm:$0xff]
  %v42 = vld [vmem:[%s0 + $0x30] sm:$0xff]
  %v43 = vld [vmem:[%s0 + $0x38] sm:$0xff]
  %v44 = vld [vmem:[%s0 + $0x40] sm:$0xff]
  %v45 = vld [vmem:[%s0 + $0x48] sm:$0xff]
  %v46 = vld [vmem:[%s0 + $0x50] sm:$0xff]
  %v47 = vld [vmem:[%s0 + $0x58] sm:$0xff]
  %v48 = vld [vmem:[%s0 + $0x60] sm:$0xff]
  %v49 = vld [vmem:[%s0 + $0x68] sm:$0xff]
  %v50 = vld [vmem:[%s0 + $0x70] sm:$0xff]
  %v51 = vld [vmem:[%s0 + $0x78] sm:$0xff]
  %v52 = vld [vmem:[%s0 + $0x80] sm:$0xff]
  %v53 = vld [vmem:[%s0 + $0x88] sm:$0xff]
  %v54 = vld [vmem:[%s0 + $0x90] sm:$0xff]
  %v55 = vld [vmem:[%s0 + $0x98] sm:$0xff]
  %v56 = vld [vmem:[%s0 + $0xa0] sm:$0xff]
  %v57 = vld [vmem:[%s0 + $0xa8] sm:$0xff]
  %v58 = vld [vmem:[%s0 + $0xb0] sm:$0xff]
  %v59 = vld [vmem:[%s0 + $0xb8] sm:$0xff]
  %v60 = vld [vmem:[%s0 + $0xc0] sm:$0xff]
  %v61 = vld [vmem:[%s0 + $0xc8] sm:$0xff]
  %v62 = vld [vmem:[%s0 + $0xd0] sm:$0xff]
  %v63 = vld [vmem:[%s0 + $0xd8] sm:$0xff]
  %v64 = vld [vmem:[%s0 + $0xe0] sm:$0xff]
  %v65 = vld [vmem:[%s0 + $0xe8] sm:$0xff]
  %v66 = vld [vmem:[%s0 + $0xf0] sm:$0xff]
  %v67 = vld [vmem:[%s0 + $0xf8] sm:$0xff]
  %v68 = vld [vmem:[%s0 + $0x100] sm:$0xff]
  %v69 = vld [vmem:[%s0 + $0x108] sm:$0xff]
  %v70 = vld [vmem:[%s0 + $0x110] sm:$0xff]
  %v71 = vld [vmem:[%s0 + $0x118] sm:$0xff]
  %v72 = vld [vmem:[%s0 + $0x120] sm:$0xff]
  %v73 = vld [vmem:[%s0 + $0x128] sm:$0xff]
  %v74 = vld [vmem:[%s0 + $0x130] sm:$0xff]
  %v75 = vld [vmem:[%s0 + $0x138] sm:$0xff]
  %v76 = vld [vmem:[%s0 + $0x140] sm:$0xff]
  %v77 = vld [vmem:[%s0 + $0x148] sm:$0xff]
  %v78 = vld [vmem:[%s0 + $0x150] sm:$0xff]
  %v79 = vld [vmem:[%s0 + $0x158] sm:$0xff]
  %v80 = vld [vmem:[%s0 + $0x160] sm:$0xff]
  %v81 = vld [vmem:[%s0 + $0x168] sm:$0xff]
  %v82 = vld [vmem:[%s0 + $0x170] sm:$0xff]
  %v83 = vld [vmem:[%s0 + $0x178] sm:$0xff]
  %v84 = vld [vmem:[%s0 + $0x180] sm:$0xff]
  %v85 = vld [vmem:[%s0 + $0x188] sm:$0xff]
  %v86 = vld [vmem:[%s0 + $0x190] sm:$0xff]
  %v87 = vld [vmem:[%s0 + $0x198] sm:$0xff]
  %v88 = vld [vmem:[%s0 + $0x1a0] sm:$0xff]
  %v89 = vld [vmem:[%s0 + $0x1a8] sm:$0xff]
  %v90 = vld [vmem:[%s0 + $0x1b0] sm:$0xff]
  %v91 = vld [vmem:[%s0 + $0x1b8] sm:$0xff]
  %v92 = vld [vmem:[%s0 + $0x1c0] sm:$0xff]
  %v93 = vld [vmem:[%s0 + $0x1c8] sm:$0xff]
  %v94 = vld [vmem:[%s0 + $0x1d0] sm:$0xff]
  %v95 = vld [vmem:[%s0 + $0x1d8] sm:$0xff]
  %v96 = vld [vmem:[%s0 + $0x1e0] sm:$0xff]
  %v97 = vld [vmem:[%s0 + $0x1e8] sm:$0xff]
  %v98 = vld [vmem:[%s0 + $0x1f0] sm:$0xff]
  %v99 = vld [vmem:[%s0 + $0x1f8] sm:$0xff]
  %v100 = vpack.c.bf16 %v37, %v36
  %v101 = vpack.c.bf16 %v39, %v38
  %v102 = vpack.c.bf16 %v41, %v40
  %v103 = vpack.c.bf16 %v43, %v42
  %v104 = vpack.c.bf16 %v45, %v44
  %v105 = vpack.c.bf16 %v47, %v46
  %v106 = vpack.c.bf16 %v49, %v48
  %v107 = vpack.c.bf16 %v51, %v50
  %v108 = vpack.c.bf16 %v53, %v52
  %v109 = vpack.c.bf16 %v55, %v54
  %v110 = vpack.c.bf16 %v57, %v56
  %v111 = vpack.c.bf16 %v59, %v58
  %v112 = vpack.c.bf16 %v61, %v60
  %v113 = vpack.c.bf16 %v63, %v62
  %v114 = vpack.c.bf16 %v65, %v64
  %v115 = vpack.c.bf16 %v67, %v66
  %v116 = vpack.c.bf16 %v69, %v68
  %v117 = vpack.c.bf16 %v71, %v70
  %v118 = vpack.c.bf16 %v73, %v72
  %v119 = vpack.c.bf16 %v75, %v74
  %v120 = vpack.c.bf16 %v77, %v76
  %v121 = vpack.c.bf16 %v79, %v78
  %v122 = vpack.c.bf16 %v81, %v80
  %v123 = vpack.c.bf16 %v83, %v82
  %v124 = vpack.c.bf16 %v85, %v84
  %v125 = vpack.c.bf16 %v87, %v86
  %v126 = vpack.c.bf16 %v89, %v88
  %v127 = vpack.c.bf16 %v91, %v90
  %v128 = vpack.c.bf16 %v93, %v92
  %v129 = vpack.c.bf16 %v95, %v94
  %v130 = vpack.c.bf16 %v97, %v96
  %v131 = vpack.c.bf16 %v99, %v98
  %v132 = vld [vmem:[%s1] sm:$0xf]
  %vm133 = vcmask 64512
  %v135 = vsel %vm133, %v100, 0
  %v138 = vsel %vm133, %v101, 0
  %v141 = vsel %vm133, %v102, 0
  %v144 = vsel %vm133, %v103, 0
  %v147 = vsel %vm133, %v104, 0
  %v150 = vsel %vm133, %v105, 0
  %v153 = vsel %vm133, %v106, 0
  %v156 = vsel %vm133, %v107, 0
  %v159 = vsel %vm133, %v108, 0
  %v162 = vsel %vm133, %v109, 0
  %v165 = vsel %vm133, %v110, 0
  %v168 = vsel %vm133, %v111, 0
  %v171 = vsel %vm133, %v112, 0
  %v174 = vsel %vm133, %v113, 0
  %v177 = vsel %vm133, %v114, 0
  %v180 = vsel %vm133, %v115, 0
  %v183 = vsel %vm133, %v116, 0
  %v186 = vsel %vm133, %v117, 0
  %v189 = vsel %vm133, %v118, 0
  %v192 = vsel %vm133, %v119, 0
  %v195 = vsel %vm133, %v120, 0
  %v198 = vsel %vm133, %v121, 0
  %v201 = vsel %vm133, %v122, 0
  %v204 = vsel %vm133, %v123, 0
  %v207 = vsel %vm133, %v124, 0
  %v210 = vsel %vm133, %v125, 0
  %v213 = vsel %vm133, %v126, 0
  %v216 = vsel %vm133, %v127, 0
  %v219 = vsel %vm133, %v128, 0
  %v222 = vsel %vm133, %v129, 0
  %v225 = vsel %vm133, %v130, 0
  %v228 = vsel %vm133, %v131, 0
  %vm230 = vcmask 1043456
  %v232 = vsel %vm230, %v132, 0
  %234 = vmatprep.subr.bf16.mxu0 0
  %235 = vmatpush1.bf16.msra.mxu0 %v232
  %236 = vmatprep.subr.bf16.mxu0 0
  %237 = vmatpush1.bf16.msra.mxu0 0
  %238 = vmatprep.subr.bf16.mxu0 0
  %239 = vmatpush1.bf16.msra.mxu0 0
  %240 = vmatprep.subr.bf16.mxu0 0
  %241 = vmatpush1.bf16.msra.mxu0 0
  %242 = vmatprep.subr.bf16.mxu0 0
  %243 = vmatpush1.bf16.msra.mxu0 0
  %244 = vmatprep.subr.bf16.mxu0 0
  %245 = vmatpush1.bf16.msra.mxu0 0
  %246 = vmatprep.subr.bf16.mxu0 0
  %247 = vmatpush1.bf16.msra.mxu0 0
  %248 = vmatprep.subr.bf16.mxu0 0
  %249 = vmatpush1.bf16.msra.mxu0 0
  %250 = vmatprep.subr.bf16.mxu0 0
  %251 = vmatpush1.bf16.msra.mxu0 0
  %252 = vmatprep.subr.bf16.mxu0 0
  %253 = vmatpush1.bf16.msra.mxu0 0
  %254 = vmatprep.subr.bf16.mxu0 0
  %255 = vmatpush1.bf16.msra.mxu0 0
  %256 = vmatprep.subr.bf16.mxu0 0
  %257 = vmatpush1.bf16.msra.mxu0 0
  %258 = vmatprep.subr.bf16.mxu0 0
  %259 = vmatpush1.bf16.msra.mxu0 0
  %260 = vmatprep.subr.bf16.mxu0 0
  %261 = vmatpush1.bf16.msra.mxu0 0
  %262 = vmatprep.subr.bf16.mxu0 0
  %263 = vmatpush1.bf16.msra.mxu0 0
  %264 = vmatprep.subr.bf16.mxu0 0
  %265 = vmatpush1.bf16.msra.mxu0 0
  %266 = vmatprep.mubr.bf16.mxu0 0
  %267 = vmatmul.mubr.bf16.gmra.mrb[0].mxu0 %v135
  %v268 = vpop.f32.mrb[0].mxu0
  %v269 = vadd.f32 0.0, %v268
  %v270 = vpop.f32.mrb[0].mxu0
  %v271 = vpop.f32.mrb[0].mxu0
  %v272 = vadd.f32 0.0, %v271
  %v273 = vpop.f32.mrb[0].mxu0
  %274 = vmatprep.mubr.bf16.mxu0 0
  %275 = vmatmul.mubr.bf16.gmra.mrb[0].mxu0 %v138
  %v276 = vpop.f32.mrb[0].mxu0
  %v277 = vadd.f32 0.0, %v276
  %v278 = vpop.f32.mrb[0].mxu0
  %v279 = vpop.f32.mrb[0].mxu0
  %v280 = vadd.f32 0.0, %v279
  %v281 = vpop.f32.mrb[0].mxu0
  %282 = vmatprep.mubr.bf16.mxu0 0
  %283 = vmatmul.mubr.bf16.gmra.mrb[0].mxu0 %v141
  %v284 = vpop.f32.mrb[0].mxu0
  %v285 = vadd.f32 0.0, %v284
  %v286 = vpop.f32.mrb[0].mxu0
  %v287 = vpop.f32.mrb[0].mxu0
  %v288 = vadd.f32 0.0, %v287
  %v289 = vpop.f32.mrb[0].mxu0
  %290 = vmatprep.mubr.bf16.mxu0 0
  %291 = vmatmul.mubr.bf16.gmra.mrb[0].mxu0 %v144
  %v292 = vpop.f32.mrb[0].mxu0
  %v293 = vadd.f32 0.0, %v292
  %v294 = vpop.f32.mrb[0].mxu0
  %v295 = vpop.f32.mrb[0].mxu0
  %v296 = vadd.f32 0.0, %v295
  %v297 = vpop.f32.mrb[0].mxu0
  %298 = vmatprep.mubr.bf16.mxu0 0
  %299 = vmatmul.mubr.bf16.gmra.mrb[0].mxu0 %v147
  %v300 = vpop.f32.mrb[0].mxu0
  %v301 = vadd.f32 0.0, %v300
  %v302 = vpop.f32.mrb[0].mxu0
  %v303 = vpop.f32.mrb[0].mxu0
  %v304 = vadd.f32 0.0, %v303
  %v305 = vpop.f32.mrb[0].mxu0
  %306 = vmatprep.mubr.bf16.mxu0 0
  %307 = vmatmul.mubr.bf16.gmra.mrb[0].mxu0 %v150
  %v308 = vpop.f32.mrb[0].mxu0
  %v309 = vadd.f32 0.0, %v308
  %v310 = vpop.f32.mrb[0].mxu0
  %v311 = vpop.f32.mrb[0].mxu0
  %v312 = vadd.f32 0.0, %v311
  %v313 = vpop.f32.mrb[0].mxu0
  %314 = vmatprep.mubr.bf16.mxu0 0
  %315 = vmatmul.mubr.bf16.gmra.mrb[0].mxu0 %v153
  %v316 = vpop.f32.mrb[0].mxu0
  %v317 = vadd.f32 0.0, %v316
  %v318 = vpop.f32.mrb[0].mxu0
  %v319 = vpop.f32.mrb[0].mxu0
  %v320 = vadd.f32 0.0, %v319
  %v321 = vpop.f32.mrb[0].mxu0
  %322 = vmatprep.mubr.bf16.mxu0 0
  %323 = vmatmul.mubr.bf16.gmra.mrb[0].mxu0 %v156
  %v324 = vpop.f32.mrb[0].mxu0
  %v325 = vadd.f32 0.0, %v324
  %v326 = vpop.f32.mrb[0].mxu0
  %v327 = vpop.f32.mrb[0].mxu0
  %v328 = vadd.f32 0.0, %v327
  %v329 = vpop.f32.mrb[0].mxu0
  %330 = vmatprep.mubr.bf16.mxu0 0
  %331 = vmatmul.mubr.bf16.gmra.mrb[0].mxu0 %v159
  %v332 = vpop.f32.mrb[0].mxu0
  %v333 = vadd.f32 0.0, %v332
  %v334 = vpop.f32.mrb[0].mxu0
  %v335 = vpop.f32.mrb[0].mxu0
  %v336 = vadd.f32 0.0, %v335
  %v337 = vpop.f32.mrb[0].mxu0
  %338 = vmatprep.mubr.bf16.mxu0 0
  %339 = vmatmul.mubr.bf16.gmra.mrb[0].mxu0 %v162
  %v340 = vpop.f32.mrb[0].mxu0
  %v341 = vadd.f32 0.0, %v340
  %v342 = vpop.f32.mrb[0].mxu0
  %v343 = vpop.f32.mrb[0].mxu0
  %v344 = vadd.f32 0.0, %v343
  %v345 = vpop.f32.mrb[0].mxu0
  %346 = vmatprep.mubr.bf16.mxu0 0
  %347 = vmatmul.mubr.bf16.gmra.mrb[0].mxu0 %v165
  %v348 = vpop.f32.mrb[0].mxu0
  %v349 = vadd.f32 0.0, %v348
  %v350 = vpop.f32.mrb[0].mxu0
  %v351 = vpop.f32.mrb[0].mxu0
  %v352 = vadd.f32 0.0, %v351
  %v353 = vpop.f32.mrb[0].mxu0
  %354 = vmatprep.mubr.bf16.mxu0 0
  %355 = vmatmul.mubr.bf16.gmra.mrb[0].mxu0 %v168
  %v356 = vpop.f32.mrb[0].mxu0
  %v357 = vadd.f32 0.0, %v356
  %v358 = vpop.f32.mrb[0].mxu0
  %v359 = vpop.f32.mrb[0].mxu0
  %v360 = vadd.f32 0.0, %v359
  %v361 = vpop.f32.mrb[0].mxu0
  %362 = vmatprep.mubr.bf16.mxu0 0
  %363 = vmatmul.mubr.bf16.gmra.mrb[0].mxu0 %v171
  %v364 = vpop.f32.mrb[0].mxu0
  %v365 = vadd.f32 0.0, %v364
  %v366 = vpop.f32.mrb[0].mxu0
  %v367 = vpop.f32.mrb[0].mxu0
  %v368 = vadd.f32 0.0, %v367
  %v369 = vpop.f32.mrb[0].mxu0
  %370 = vmatprep.mubr.bf16.mxu0 0
  %371 = vmatmul.mubr.bf16.gmra.mrb[0].mxu0 %v174
  %v372 = vpop.f32.mrb[0].mxu0
  %v373 = vadd.f32 0.0, %v372
  %v374 = vpop.f32.mrb[0].mxu0
  %v375 = vpop.f32.mrb[0].mxu0
  %v376 = vadd.f32 0.0, %v375
  %v377 = vpop.f32.mrb[0].mxu0
  %378 = vmatprep.mubr.bf16.mxu0 0
  %379 = vmatmul.mubr.bf16.gmra.mrb[0].mxu0 %v177
  %v380 = vpop.f32.mrb[0].mxu0
  %v381 = vadd.f32 0.0, %v380
  %v382 = vpop.f32.mrb[0].mxu0
  %v383 = vpop.f32.mrb[0].mxu0
  %v384 = vadd.f32 0.0, %v383
  %v385 = vpop.f32.mrb[0].mxu0
  %386 = vmatprep.mubr.bf16.mxu0 0
  %387 = vmatmul.mubr.bf16.gmra.mrb[0].mxu0 %v180
  %v388 = vpop.f32.mrb[0].mxu0
  %v389 = vadd.f32 0.0, %v388
  %v390 = vpop.f32.mrb[0].mxu0
  %v391 = vpop.f32.mrb[0].mxu0
  %v392 = vadd.f32 0.0, %v391
  %v393 = vpop.f32.mrb[0].mxu0
  %394 = vmatprep.mubr.bf16.mxu0 0
  %395 = vmatmul.mubr.bf16.gmra.mrb[0].mxu0 %v183
  %v396 = vpop.f32.mrb[0].mxu0
  %v397 = vadd.f32 0.0, %v396
  %v398 = vpop.f32.mrb[0].mxu0
  %v399 = vpop.f32.mrb[0].mxu0
  %v400 = vadd.f32 0.0, %v399
  %v401 = vpop.f32.mrb[0].mxu0
  %402 = vmatprep.mubr.bf16.mxu0 0
  %403 = vmatmul.mubr.bf16.gmra.mrb[0].mxu0 %v186
  %v404 = vpop.f32.mrb[0].mxu0
  %v405 = vadd.f32 0.0, %v404
  %v406 = vpop.f32.mrb[0].mxu0
  %v407 = vpop.f32.mrb[0].mxu0
  %v408 = vadd.f32 0.0, %v407
  %v409 = vpop.f32.mrb[0].mxu0
  %410 = vmatprep.mubr.bf16.mxu0 0
  %411 = vmatmul.mubr.bf16.gmra.mrb[0].mxu0 %v189
  %v412 = vpop.f32.mrb[0].mxu0
  %v413 = vadd.f32 0.0, %v412
  %v414 = vpop.f32.mrb[0].mxu0
  %v415 = vpop.f32.mrb[0].mxu0
  %v416 = vadd.f32 0.0, %v415
  %v417 = vpop.f32.mrb[0].mxu0
  %418 = vmatprep.mubr.bf16.mxu0 0
  %419 = vmatmul.mubr.bf16.gmra.mrb[0].mxu0 %v192
  %v420 = vpop.f32.mrb[0].mxu0
  %v421 = vadd.f32 0.0, %v420
  %v422 = vpop.f32.mrb[0].mxu0
  %v423 = vpop.f32.mrb[0].mxu0
  %v424 = vadd.f32 0.0, %v423
  %v425 = vpop.f32.mrb[0].mxu0
  %426 = vmatprep.mubr.bf16.mxu0 0
  %427 = vmatmul.mubr.bf16.gmra.mrb[0].mxu0 %v195
  %v428 = vpop.f32.mrb[0].mxu0
  %v429 = vadd.f32 0.0, %v428
  %v430 = vpop.f32.mrb[0].mxu0
  %v431 = vpop.f32.mrb[0].mxu0
  %v432 = vadd.f32 0.0, %v431
  %v433 = vpop.f32.mrb[0].mxu0
  %434 = vmatprep.mubr.bf16.mxu0 0
  %435 = vmatmul.mubr.bf16.gmra.mrb[0].mxu0 %v198
  %v436 = vpop.f32.mrb[0].mxu0
  %v437 = vadd.f32 0.0, %v436
  %v438 = vpop.f32.mrb[0].mxu0
  %v439 = vpop.f32.mrb[0].mxu0
  %v440 = vadd.f32 0.0, %v439
  %v441 = vpop.f32.mrb[0].mxu0
  %442 = vmatprep.mubr.bf16.mxu0 0
  %443 = vmatmul.mubr.bf16.gmra.mrb[0].mxu0 %v201
  %v444 = vpop.f32.mrb[0].mxu0
  %v445 = vadd.f32 0.0, %v444
  %v446 = vpop.f32.mrb[0].mxu0
  %v447 = vpop.f32.mrb[0].mxu0
  %v448 = vadd.f32 0.0, %v447
  %v449 = vpop.f32.mrb[0].mxu0
  %450 = vmatprep.mubr.bf16.mxu0 0
  %451 = vmatmul.mubr.bf16.gmra.mrb[0].mxu0 %v204
  %v452 = vpop.f32.mrb[0].mxu0
  %v453 = vadd.f32 0.0, %v452
  %v454 = vpop.f32.mrb[0].mxu0
  %v455 = vpop.f32.mrb[0].mxu0
  %v456 = vadd.f32 0.0, %v455
  %v457 = vpop.f32.mrb[0].mxu0
  %458 = vmatprep.mubr.bf16.mxu0 0
  %459 = vmatmul.mubr.bf16.gmra.mrb[0].mxu0 %v207
  %v460 = vpop.f32.mrb[0].mxu0
  %v461 = vadd.f32 0.0, %v460
  %v462 = vpop.f32.mrb[0].mxu0
  %v463 = vpop.f32.mrb[0].mxu0
  %v464 = vadd.f32 0.0, %v463
  %v465 = vpop.f32.mrb[0].mxu0
  %466 = vmatprep.mubr.bf16.mxu0 0
  %467 = vmatmul.mubr.bf16.gmra.mrb[0].mxu0 %v210
  %v468 = vpop.f32.mrb[0].mxu0
  %v469 = vadd.f32 0.0, %v468
  %v470 = vpop.f32.mrb[0].mxu0
  %v471 = vpop.f32.mrb[0].mxu0
  %v472 = vadd.f32 0.0, %v471
  %v473 = vpop.f32.mrb[0].mxu0
  %474 = vmatprep.mubr.bf16.mxu0 0
  %475 = vmatmul.mubr.bf16.gmra.mrb[0].mxu0 %v213
  %v476 = vpop.f32.mrb[0].mxu0
  %v477 = vadd.f32 0.0, %v476
  %v478 = vpop.f32.mrb[0].mxu0
  %v479 = vpop.f32.mrb[0].mxu0
  %v480 = vadd.f32 0.0, %v479
  %v481 = vpop.f32.mrb[0].mxu0
  %482 = vmatprep.mubr.bf16.mxu0 0
  %483 = vmatmul.mubr.bf16.gmra.mrb[0].mxu0 %v216
  %v484 = vpop.f32.mrb[0].mxu0
  %v485 = vadd.f32 0.0, %v484
  %v486 = vpop.f32.mrb[0].mxu0
  %v487 = vpop.f32.mrb[0].mxu0
  %v488 = vadd.f32 0.0, %v487
  %v489 = vpop.f32.mrb[0].mxu0
  %490 = vmatprep.mubr.bf16.mxu0 0
  %491 = vmatmul.mubr.bf16.gmra.mrb[0].mxu0 %v219
  %v492 = vpop.f32.mrb[0].mxu0
  %v493 = vadd.f32 0.0, %v492
  %v494 = vpop.f32.mrb[0].mxu0
  %v495 = vpop.f32.mrb[0].mxu0
  %v496 = vadd.f32 0.0, %v495
  %v497 = vpop.f32.mrb[0].mxu0
  %498 = vmatprep.mubr.bf16.mxu0 0
  %499 = vmatmul.mubr.bf16.gmra.mrb[0].mxu0 %v222
  %v500 = vpop.f32.mrb[0].mxu0
  %v501 = vadd.f32 0.0, %v500
  %v502 = vpop.f32.mrb[0].mxu0
  %v503 = vpop.f32.mrb[0].mxu0
  %v504 = vadd.f32 0.0, %v503
  %v505 = vpop.f32.mrb[0].mxu0
  %506 = vmatprep.mubr.bf16.mxu0 0
  %507 = vmatmul.mubr.bf16.gmra.mrb[0].mxu0 %v225
  %v508 = vpop.f32.mrb[0].mxu0
  %v509 = vadd.f32 0.0, %v508
  %v510 = vpop.f32.mrb[0].mxu0
  %v511 = vpop.f32.mrb[0].mxu0
  %v512 = vadd.f32 0.0, %v511
  %v513 = vpop.f32.mrb[0].mxu0
  %514 = vmatprep.mubr.bf16.mxu0 0
  %515 = vmatmul.mubr.bf16.gmra.mrb[0].mxu0 %v228
  %v516 = vpop.f32.mrb[0].mxu0
  %v517 = vadd.f32 0.0, %v516
  %v518 = vpop.f32.mrb[0].mxu0
  %v519 = vpop.f32.mrb[0].mxu0
  %v520 = vadd.f32 0.0, %v519
  %v521 = vpop.f32.mrb[0].mxu0
  %522 = vdwg.mxu0
  %v523 = vld [vmem:[%s2] sm:$0x1]
  %v524 = vld [vmem:[%s3] sm:$0x1]
  %v525 = vadd.f32 %v269, %v272
  %v526 = vadd.f32 %v525, %v277
  %v527 = vadd.f32 %v526, %v280
  %v528 = vadd.f32 %v527, %v285
  %v529 = vadd.f32 %v528, %v288
  %v530 = vadd.f32 %v529, %v293
  %v531 = vadd.f32 %v530, %v296
  %v532 = vadd.f32 %v531, %v301
  %v533 = vadd.f32 %v532, %v304
  %v534 = vadd.f32 %v533, %v309
  %v535 = vadd.f32 %v534, %v312
  %v536 = vadd.f32 %v535, %v317
  %v537 = vadd.f32 %v536, %v320
  %v538 = vadd.f32 %v537, %v325
  %v539 = vadd.f32 %v538, %v328
  %v540 = vadd.f32 %v539, %v333
  %v541 = vadd.f32 %v540, %v336
  %v542 = vadd.f32 %v541, %v341
  %v543 = vadd.f32 %v542, %v344
  %v544 = vadd.f32 %v543, %v349
  %v545 = vadd.f32 %v544, %v352
  %v546 = vadd.f32 %v545, %v357
  %v547 = vadd.f32 %v546, %v360
  %v548 = vadd.f32 %v547, %v365
  %v549 = vadd.f32 %v548, %v368
  %v550 = vadd.f32 %v549, %v373
  %v551 = vadd.f32 %v550, %v376
  %v552 = vadd.f32 %v551, %v381
  %v553 = vadd.f32 %v552, %v384
  %v554 = vadd.f32 %v553, %v389
  %v555 = vadd.f32 %v554, %v392
  %v556 = vadd.f32 %v555, %v397
  %v557 = vadd.f32 %v556, %v400
  %v558 = vadd.f32 %v557, %v405
  %v559 = vadd.f32 %v558, %v408
  %v560 = vadd.f32 %v559, %v413
  %v561 = vadd.f32 %v560, %v416
  %v562 = vadd.f32 %v561, %v421
  %v563 = vadd.f32 %v562, %v424
  %v564 = vadd.f32 %v563, %v429
  %v565 = vadd.f32 %v564, %v432
  %v566 = vadd.f32 %v565, %v437
  %v567 = vadd.f32 %v566, %v440
  %v568 = vadd.f32 %v567, %v445
  %v569 = vadd.f32 %v568, %v448
  %v570 = vadd.f32 %v569, %v453
  %v571 = vadd.f32 %v570, %v456
  %v572 = vadd.f32 %v571, %v461
  %v573 = vadd.f32 %v572, %v464
  %v574 = vadd.f32 %v573, %v469
  %v575 = vadd.f32 %v574, %v472
  %v576 = vadd.f32 %v575, %v477
  %v577 = vadd.f32 %v576, %v480
  %v578 = vadd.f32 %v577, %v485
  %v579 = vadd.f32 %v578, %v488
  %v580 = vadd.f32 %v579, %v493
  %v581 = vadd.f32 %v580, %v496
  %v582 = vadd.f32 %v581, %v501
  %v583 = vadd.f32 %v582, %v504
  %v584 = vadd.f32 %v583, %v509
  %v585 = vadd.f32 %v584, %v512
  %v586 = vadd.f32 %v585, %v517
  %v587 = vadd.f32 %v586, %v520
  %v588 = vrot.slane %v587, 4
  %v589 = vadd.f32 %v587, %v588
  %v590 = vrot.slane %v589, 2
  %v591 = vadd.f32 %v589, %v590
  %v592 = vrot.slane %v591, 1
  %v593 = vadd.f32 %v591, %v592
  %v594 = vrcp.pop 512.0
  %v595 = vmul.f32 %v593, %v594
  %v596 = vmul.f32 %v269, %v269
  %v597 = vmul.f32 %v272, %v272
  %v598 = vmul.f32 %v277, %v277
  %v599 = vmul.f32 %v280, %v280
  %v600 = vmul.f32 %v285, %v285
  %v601 = vmul.f32 %v288, %v288
  %v602 = vmul.f32 %v293, %v293
  %v603 = vmul.f32 %v296, %v296
  %v604 = vmul.f32 %v301, %v301
  %v605 = vmul.f32 %v304, %v304
  %v606 = vmul.f32 %v309, %v309
  %v607 = vmul.f32 %v312, %v312
  %v608 = vmul.f32 %v317, %v317
  %v609 = vmul.f32 %v320, %v320
  %v610 = vmul.f32 %v325, %v325
  %v611 = vmul.f32 %v328, %v328
  %v612 = vmul.f32 %v333, %v333
  %v613 = vmul.f32 %v336, %v336
  %v614 = vmul.f32 %v341, %v341
  %v615 = vmul.f32 %v344, %v344
  %v616 = vmul.f32 %v349, %v349
  %v617 = vmul.f32 %v352, %v352
  %v618 = vmul.f32 %v357, %v357
  %v619 = vmul.f32 %v360, %v360
  %v620 = vmul.f32 %v365, %v365
  %v621 = vmul.f32 %v368, %v368
  %v622 = vmul.f32 %v373, %v373
  %v623 = vmul.f32 %v376, %v376
  %v624 = vmul.f32 %v381, %v381
  %v625 = vmul.f32 %v384, %v384
  %v626 = vmul.f32 %v389, %v389
  %v627 = vmul.f32 %v392, %v392
  %v628 = vmul.f32 %v397, %v397
  %v629 = vmul.f32 %v400, %v400
  %v630 = vmul.f32 %v405, %v405
  %v631 = vmul.f32 %v408, %v408
  %v632 = vmul.f32 %v413, %v413
  %v633 = vmul.f32 %v416, %v416
  %v634 = vmul.f32 %v421, %v421
  %v635 = vmul.f32 %v424, %v424
  %v636 = vmul.f32 %v429, %v429
  %v637 = vmul.f32 %v432, %v432
  %v638 = vmul.f32 %v437, %v437
  %v639 = vmul.f32 %v440, %v440
  %v640 = vmul.f32 %v445, %v445
  %v641 = vmul.f32 %v448, %v448
  %v642 = vmul.f32 %v453, %v453
  %v643 = vmul.f32 %v456, %v456
  %v644 = vmul.f32 %v461, %v461
  %v645 = vmul.f32 %v464, %v464
  %v646 = vmul.f32 %v469, %v469
  %v647 = vmul.f32 %v472, %v472
  %v648 = vmul.f32 %v477, %v477
  %v649 = vmul.f32 %v480, %v480
  %v650 = vmul.f32 %v485, %v485
  %v651 = vmul.f32 %v488, %v488
  %v652 = vmul.f32 %v493, %v493
  %v653 = vmul.f32 %v496, %v496
  %v654 = vmul.f32 %v501, %v501
  %v655 = vmul.f32 %v504, %v504
  %v656 = vmul.f32 %v509, %v509
  %v657 = vmul.f32 %v512, %v512
  %v658 = vmul.f32 %v517, %v517
  %v659 = vmul.f32 %v520, %v520
  %v660 = vadd.f32 %v596, %v597
  %v661 = vadd.f32 %v660, %v598
  %v662 = vadd.f32 %v661, %v599
  %v663 = vadd.f32 %v662, %v600
  %v664 = vadd.f32 %v663, %v601
  %v665 = vadd.f32 %v664, %v602
  %v666 = vadd.f32 %v665, %v603
  %v667 = vadd.f32 %v666, %v604
  %v668 = vadd.f32 %v667, %v605
  %v669 = vadd.f32 %v668, %v606
  %v670 = vadd.f32 %v669, %v607
  %v671 = vadd.f32 %v670, %v608
  %v672 = vadd.f32 %v671, %v609
  %v673 = vadd.f32 %v672, %v610
  %v674 = vadd.f32 %v673, %v611
  %v675 = vadd.f32 %v674, %v612
  %v676 = vadd.f32 %v675, %v613
  %v677 = vadd.f32 %v676, %v614
  %v678 = vadd.f32 %v677, %v615
  %v679 = vadd.f32 %v678, %v616
  %v680 = vadd.f32 %v679, %v617
  %v681 = vadd.f32 %v680, %v618
  %v682 = vadd.f32 %v681, %v619
  %v683 = vadd.f32 %v682, %v620
  %v684 = vadd.f32 %v683, %v621
  %v685 = vadd.f32 %v684, %v622
  %v686 = vadd.f32 %v685, %v623
  %v687 = vadd.f32 %v686, %v624
  %v688 = vadd.f32 %v687, %v625
  %v689 = vadd.f32 %v688, %v626
  %v690 = vadd.f32 %v689, %v627
  %v691 = vadd.f32 %v690, %v628
  %v692 = vadd.f32 %v691, %v629
  %v693 = vadd.f32 %v692, %v630
  %v694 = vadd.f32 %v693, %v631
  %v695 = vadd.f32 %v694, %v632
  %v696 = vadd.f32 %v695, %v633
  %v697 = vadd.f32 %v696, %v634
  %v698 = vadd.f32 %v697, %v635
  %v699 = vadd.f32 %v698, %v636
  %v700 = vadd.f32 %v699, %v637
  %v701 = vadd.f32 %v700, %v638
  %v702 = vadd.f32 %v701, %v639
  %v703 = vadd.f32 %v702, %v640
  %v704 = vadd.f32 %v703, %v641
  %v705 = vadd.f32 %v704, %v642
  %v706 = vadd.f32 %v705, %v643
  %v707 = vadd.f32 %v706, %v644
  %v708 = vadd.f32 %v707, %v645
  %v709 = vadd.f32 %v708, %v646
  %v710 = vadd.f32 %v709, %v647
  %v711 = vadd.f32 %v710, %v648
  %v712 = vadd.f32 %v711, %v649
  %v713 = vadd.f32 %v712, %v650
  %v714 = vadd.f32 %v713, %v651
  %v715 = vadd.f32 %v714, %v652
  %v716 = vadd.f32 %v715, %v653
  %v717 = vadd.f32 %v716, %v654
  %v718 = vadd.f32 %v717, %v655
  %v719 = vadd.f32 %v718, %v656
  %v720 = vadd.f32 %v719, %v657
  %v721 = vadd.f32 %v720, %v658
  %v722 = vadd.f32 %v721, %v659
  %v723 = vrot.slane %v722, 4
  %v724 = vadd.f32 %v722, %v723
  %v725 = vrot.slane %v724, 2
  %v726 = vadd.f32 %v724, %v725
  %v727 = vrot.slane %v726, 1
  %v728 = vadd.f32 %v726, %v727
  %v729 = vmul.f32 %v728, %v594
  %v730 = vmul.f32 %v595, %v595
  %v731 = vsub.f32 %v729, %v730
  %v732 = vmax.f32 %v731, 0.0
  %v733 = vadd.f32 %v732, 1e-05
  %v734 = vrsqrt.pop %v733
  %v735 = vmul.f32 %v523, %v734
  %v736 = vmul.f32 %v595, %v735
  %v737 = vsub.f32 %v524, %v736
  %v739 = vlaneseq
  %v740 = vshrl.u32 %v739, 7
  %v741 = vsub.s32 0, %v740
  %v742 = vrot.slane %v735, %v741
  %v744 = vmul.f32 %v269, %v742
  %v745 = vmul.f32 %v272, %v742
  %v746 = vmul.f32 %v277, %v742
  %v747 = vmul.f32 %v280, %v742
  %v748 = vmul.f32 %v285, %v742
  %v749 = vmul.f32 %v288, %v742
  %v750 = vmul.f32 %v293, %v742
  %v751 = vmul.f32 %v296, %v742
  %v752 = vmul.f32 %v301, %v742
  %v753 = vmul.f32 %v304, %v742
  %v754 = vmul.f32 %v309, %v742
  %v755 = vmul.f32 %v312, %v742
  %v756 = vmul.f32 %v317, %v742
  %v757 = vmul.f32 %v320, %v742
  %v758 = vmul.f32 %v325, %v742
  %v759 = vmul.f32 %v328, %v742
  %v760 = vmul.f32 %v333, %v742
  %v761 = vmul.f32 %v336, %v742
  %v762 = vmul.f32 %v341, %v742
  %v763 = vmul.f32 %v344, %v742
  %v764 = vmul.f32 %v349, %v742
  %v765 = vmul.f32 %v352, %v742
  %v766 = vmul.f32 %v357, %v742
  %v767 = vmul.f32 %v360, %v742
  %v768 = vmul.f32 %v365, %v742
  %v769 = vmul.f32 %v368, %v742
  %v770 = vmul.f32 %v373, %v742
  %v771 = vmul.f32 %v376, %v742
  %v772 = vmul.f32 %v381, %v742
  %v773 = vmul.f32 %v384, %v742
  %v774 = vmul.f32 %v389, %v742
  %v775 = vmul.f32 %v392, %v742
  %v776 = vmul.f32 %v397, %v742
  %v777 = vmul.f32 %v400, %v742
  %v778 = vmul.f32 %v405, %v742
  %v779 = vmul.f32 %v408, %v742
  %v780 = vmul.f32 %v413, %v742
  %v781 = vmul.f32 %v416, %v742
  %v782 = vmul.f32 %v421, %v742
  %v783 = vmul.f32 %v424, %v742
  %v784 = vmul.f32 %v429, %v742
  %v785 = vmul.f32 %v432, %v742
  %v786 = vmul.f32 %v437, %v742
  %v787 = vmul.f32 %v440, %v742
  %v788 = vmul.f32 %v445, %v742
  %v789 = vmul.f32 %v448, %v742
  %v790 = vmul.f32 %v453, %v742
  %v791 = vmul.f32 %v456, %v742
  %v792 = vmul.f32 %v461, %v742
  %v793 = vmul.f32 %v464, %v742
  %v794 = vmul.f32 %v469, %v742
  %v795 = vmul.f32 %v472, %v742
  %v796 = vmul.f32 %v477, %v742
  %v797 = vmul.f32 %v480, %v742
  %v798 = vmul.f32 %v485, %v742
  %v799 = vmul.f32 %v488, %v742
  %v800 = vmul.f32 %v493, %v742
  %v801 = vmul.f32 %v496, %v742
  %v802 = vmul.f32 %v501, %v742
  %v803 = vmul.f32 %v504, %v742
  %v804 = vmul.f32 %v509, %v742
  %v805 = vmul.f32 %v512, %v742
  %v806 = vmul.f32 %v517, %v742
  %v807 = vmul.f32 %v520, %v742
  %v809 = vlaneseq
  %v810 = vshrl.u32 %v809, 7
  %v811 = vsub.s32 0, %v810
  %v812 = vrot.slane %v737, %v811
  %v814 = vadd.f32 %v744, %v812
  %v815 = vadd.f32 %v745, %v812
  %v816 = vadd.f32 %v746, %v812
  %v817 = vadd.f32 %v747, %v812
  %v818 = vadd.f32 %v748, %v812
  %v819 = vadd.f32 %v749, %v812
  %v820 = vadd.f32 %v750, %v812
  %v821 = vadd.f32 %v751, %v812
  %v822 = vadd.f32 %v752, %v812
  %v823 = vadd.f32 %v753, %v812
  %v824 = vadd.f32 %v754, %v812
  %v825 = vadd.f32 %v755, %v812
  %v826 = vadd.f32 %v756, %v812
  %v827 = vadd.f32 %v757, %v812
  %v828 = vadd.f32 %v758, %v812
  %v829 = vadd.f32 %v759, %v812
  %v830 = vadd.f32 %v760, %v812
  %v831 = vadd.f32 %v761, %v812
  %v832 = vadd.f32 %v762, %v812
  %v833 = vadd.f32 %v763, %v812
  %v834 = vadd.f32 %v764, %v812
  %v835 = vadd.f32 %v765, %v812
  %v836 = vadd.f32 %v766, %v812
  %v837 = vadd.f32 %v767, %v812
  %v838 = vadd.f32 %v768, %v812
  %v839 = vadd.f32 %v769, %v812
  %v840 = vadd.f32 %v770, %v812
  %v841 = vadd.f32 %v771, %v812
  %v842 = vadd.f32 %v772, %v812
  %v843 = vadd.f32 %v773, %v812
  %v844 = vadd.f32 %v774, %v812
  %v845 = vadd.f32 %v775, %v812
  %v846 = vadd.f32 %v776, %v812
  %v847 = vadd.f32 %v777, %v812
  %v848 = vadd.f32 %v778, %v812
  %v849 = vadd.f32 %v779, %v812
  %v850 = vadd.f32 %v780, %v812
  %v851 = vadd.f32 %v781, %v812
  %v852 = vadd.f32 %v782, %v812
  %v853 = vadd.f32 %v783, %v812
  %v854 = vadd.f32 %v784, %v812
  %v855 = vadd.f32 %v785, %v812
  %v856 = vadd.f32 %v786, %v812
  %v857 = vadd.f32 %v787, %v812
  %v858 = vadd.f32 %v788, %v812
  %v859 = vadd.f32 %v789, %v812
  %v860 = vadd.f32 %v790, %v812
  %v861 = vadd.f32 %v791, %v812
  %v862 = vadd.f32 %v792, %v812
  %v863 = vadd.f32 %v793, %v812
  %v864 = vadd.f32 %v794, %v812
  %v865 = vadd.f32 %v795, %v812
  %v866 = vadd.f32 %v796, %v812
  %v867 = vadd.f32 %v797, %v812
  %v868 = vadd.f32 %v798, %v812
  %v869 = vadd.f32 %v799, %v812
  %v870 = vadd.f32 %v800, %v812
  %v871 = vadd.f32 %v801, %v812
  %v872 = vadd.f32 %v802, %v812
  %v873 = vadd.f32 %v803, %v812
  %v874 = vadd.f32 %v804, %v812
  %v875 = vadd.f32 %v805, %v812
  %v876 = vadd.f32 %v806, %v812
  %v877 = vadd.f32 %v807, %v812
  %v878 = vmax.f32 %v814, 0.0
  %v879 = vmax.f32 %v815, 0.0
  %v880 = vmax.f32 %v816, 0.0
  %v881 = vmax.f32 %v817, 0.0
  %v882 = vmax.f32 %v818, 0.0
  %v883 = vmax.f32 %v819, 0.0
  %v884 = vmax.f32 %v820, 0.0
  %v885 = vmax.f32 %v821, 0.0
  %v886 = vmax.f32 %v822, 0.0
  %v887 = vmax.f32 %v823, 0.0
  %v888 = vmax.f32 %v824, 0.0
  %v889 = vmax.f32 %v825, 0.0
  %v890 = vmax.f32 %v826, 0.0
  %v891 = vmax.f32 %v827, 0.0
  %v892 = vmax.f32 %v828, 0.0
  %v893 = vmax.f32 %v829, 0.0
  %v894 = vmax.f32 %v830, 0.0
  %v895 = vmax.f32 %v831, 0.0
  %v896 = vmax.f32 %v832, 0.0
  %v897 = vmax.f32 %v833, 0.0
  %v898 = vmax.f32 %v834, 0.0
  %v899 = vmax.f32 %v835, 0.0
  %v900 = vmax.f32 %v836, 0.0
  %v901 = vmax.f32 %v837, 0.0
  %v902 = vmax.f32 %v838, 0.0
  %v903 = vmax.f32 %v839, 0.0
  %v904 = vmax.f32 %v840, 0.0
  %v905 = vmax.f32 %v841, 0.0
  %v906 = vmax.f32 %v842, 0.0
  %v907 = vmax.f32 %v843, 0.0
  %v908 = vmax.f32 %v844, 0.0
  %v909 = vmax.f32 %v845, 0.0
  %v910 = vmax.f32 %v846, 0.0
  %v911 = vmax.f32 %v847, 0.0
  %v912 = vmax.f32 %v848, 0.0
  %v913 = vmax.f32 %v849, 0.0
  %v914 = vmax.f32 %v850, 0.0
  %v915 = vmax.f32 %v851, 0.0
  %v916 = vmax.f32 %v852, 0.0
  %v917 = vmax.f32 %v853, 0.0
  %v918 = vmax.f32 %v854, 0.0
  %v919 = vmax.f32 %v855, 0.0
  %v920 = vmax.f32 %v856, 0.0
  %v921 = vmax.f32 %v857, 0.0
  %v922 = vmax.f32 %v858, 0.0
  %v923 = vmax.f32 %v859, 0.0
  %v924 = vmax.f32 %v860, 0.0
  %v925 = vmax.f32 %v861, 0.0
  %v926 = vmax.f32 %v862, 0.0
  %v927 = vmax.f32 %v863, 0.0
  %v928 = vmax.f32 %v864, 0.0
  %v929 = vmax.f32 %v865, 0.0
  %v930 = vmax.f32 %v866, 0.0
  %v931 = vmax.f32 %v867, 0.0
  %v932 = vmax.f32 %v868, 0.0
  %v933 = vmax.f32 %v869, 0.0
  %v934 = vmax.f32 %v870, 0.0
  %v935 = vmax.f32 %v871, 0.0
  %v936 = vmax.f32 %v872, 0.0
  %v937 = vmax.f32 %v873, 0.0
  %v938 = vmax.f32 %v874, 0.0
  %v939 = vmax.f32 %v875, 0.0
  %v940 = vmax.f32 %v876, 0.0
  %v941 = vmax.f32 %v877, 0.0
  %v942 = vmin.f32 %v878, 6.0
  %v943 = vmin.f32 %v879, 6.0
  %v944 = vmin.f32 %v880, 6.0
  %v945 = vmin.f32 %v881, 6.0
  %v946 = vmin.f32 %v882, 6.0
  %v947 = vmin.f32 %v883, 6.0
  %v948 = vmin.f32 %v884, 6.0
  %v949 = vmin.f32 %v885, 6.0
  %v950 = vmin.f32 %v886, 6.0
  %v951 = vmin.f32 %v887, 6.0
  %v952 = vmin.f32 %v888, 6.0
  %v953 = vmin.f32 %v889, 6.0
  %v954 = vmin.f32 %v890, 6.0
  %v955 = vmin.f32 %v891, 6.0
  %v956 = vmin.f32 %v892, 6.0
  %v957 = vmin.f32 %v893, 6.0
  %v958 = vmin.f32 %v894, 6.0
  %v959 = vmin.f32 %v895, 6.0
  %v960 = vmin.f32 %v896, 6.0
  %v961 = vmin.f32 %v897, 6.0
  %v962 = vmin.f32 %v898, 6.0
  %v963 = vmin.f32 %v899, 6.0
  %v964 = vmin.f32 %v900, 6.0
  %v965 = vmin.f32 %v901, 6.0
  %v966 = vmin.f32 %v902, 6.0
  %v967 = vmin.f32 %v903, 6.0
  %v968 = vmin.f32 %v904, 6.0
  %v969 = vmin.f32 %v905, 6.0
  %v970 = vmin.f32 %v906, 6.0
  %v971 = vmin.f32 %v907, 6.0
  %v972 = vmin.f32 %v908, 6.0
  %v973 = vmin.f32 %v909, 6.0
  %v974 = vmin.f32 %v910, 6.0
  %v975 = vmin.f32 %v911, 6.0
  %v976 = vmin.f32 %v912, 6.0
  %v977 = vmin.f32 %v913, 6.0
  %v978 = vmin.f32 %v914, 6.0
  %v979 = vmin.f32 %v915, 6.0
  %v980 = vmin.f32 %v916, 6.0
  %v981 = vmin.f32 %v917, 6.0
  %v982 = vmin.f32 %v918, 6.0
  %v983 = vmin.f32 %v919, 6.0
  %v984 = vmin.f32 %v920, 6.0
  %v985 = vmin.f32 %v921, 6.0
  %v986 = vmin.f32 %v922, 6.0
  %v987 = vmin.f32 %v923, 6.0
  %v988 = vmin.f32 %v924, 6.0
  %v989 = vmin.f32 %v925, 6.0
  %v990 = vmin.f32 %v926, 6.0
  %v991 = vmin.f32 %v927, 6.0
  %v992 = vmin.f32 %v928, 6.0
  %v993 = vmin.f32 %v929, 6.0
  %v994 = vmin.f32 %v930, 6.0
  %v995 = vmin.f32 %v931, 6.0
  %v996 = vmin.f32 %v932, 6.0
  %v997 = vmin.f32 %v933, 6.0
  %v998 = vmin.f32 %v934, 6.0
  %v999 = vmin.f32 %v935, 6.0
  %v1000 = vmin.f32 %v936, 6.0
  %v1001 = vmin.f32 %v937, 6.0
  %v1002 = vmin.f32 %v938, 6.0
  %v1003 = vmin.f32 %v939, 6.0
  %v1004 = vmin.f32 %v940, 6.0
  %v1005 = vmin.f32 %v941, 6.0
  %1006 = vst [vmem:[#allocation2] sm:$0xf] 0
  %1007 = vst [vmem:[#allocation2 + $0x4] sm:$0xf] 0
  %1008 = vst [vmem:[#allocation2 + $0x8] sm:$0xf] 0
  %1009 = vst [vmem:[#allocation2 + $0xd8] sm:$0xf] 0
  %1010 = vst [vmem:[#allocation2 + $0xdc] sm:$0xf] 0
  %1011 = vst [vmem:[#allocation2 + $0xe0] sm:$0xf] 0
  %s1012 = scalar_lea.vmem [#allocation2], 204
  %1013 = vst [vmem:[%s1012] sm:$0xf] 0
  %1014 = vst [vmem:[%s1012 + $0x4] sm:$0xf] 0
  %1015 = vst [vmem:[%s1012 + $0x8] sm:$0xf] 0
  %1016 = vst [vmem:[%s1012 + $0xd8] sm:$0xf] 0
  %1017 = vst [vmem:[%s1012 + $0xdc] sm:$0xf] 0
  %1018 = vst [vmem:[%s1012 + $0xe0] sm:$0xf] 0
  %s1019 = scalar_lea.vmem [#allocation2], 12
  %vm1020 = vcmask 1040384
  %vm1021 = vsmask.f32 256
  %vm1022 = vmand %vm1020, %vm1021
  %v1023 = vld [vmem:[%s1019] sm:$0x1]
  %v1024 = vsel %vm1022, 0, %v1023
  %1025 = vst [vmem:[%s1019] sm:$0x1] %v1024
  %v1026 = vld [vmem:[%s1019 + $0xc] sm:$0x1]
  %v1027 = vsel %vm1022, 0, %v1026
  %1028 = vst [vmem:[%s1019 + $0xc] sm:$0x1] %v1027
  %v1029 = vld [vmem:[%s1019 + $0x18] sm:$0x1]
  %v1030 = vsel %vm1022, 0, %v1029
  %1031 = vst [vmem:[%s1019 + $0x18] sm:$0x1] %v1030
  %v1032 = vld [vmem:[%s1019 + $0x24] sm:$0x1]
  %v1033 = vsel %vm1022, 0, %v1032
  %1034 = vst [vmem:[%s1019 + $0x24] sm:$0x1] %v1033
  %v1035 = vld [vmem:[%s1019 + $0x30] sm:$0x1]
  %v1036 = vsel %vm1022, 0, %v1035
  %1037 = vst [vmem:[%s1019 + $0x30] sm:$0x1] %v1036
  %v1038 = vld [vmem:[%s1019 + $0x3c] sm:$0x1]
  %v1039 = vsel %vm1022, 0, %v1038
  %1040 = vst [vmem:[%s1019 + $0x3c] sm:$0x1] %v1039
  %v1041 = vld [vmem:[%s1019 + $0x48] sm:$0x1]
  %v1042 = vsel %vm1022, 0, %v1041
  %1043 = vst [vmem:[%s1019 + $0x48] sm:$0x1] %v1042
  %v1044 = vld [vmem:[%s1019 + $0x54] sm:$0x1]
  %v1045 = vsel %vm1022, 0, %v1044
  %1046 = vst [vmem:[%s1019 + $0x54] sm:$0x1] %v1045
  %v1047 = vld [vmem:[%s1019 + $0x60] sm:$0x1]
  %v1048 = vsel %vm1022, 0, %v1047
  %1049 = vst [vmem:[%s1019 + $0x60] sm:$0x1] %v1048
  %v1050 = vld [vmem:[%s1019 + $0x6c] sm:$0x1]
  %v1051 = vsel %vm1022, 0, %v1050
  %1052 = vst [vmem:[%s1019 + $0x6c] sm:$0x1] %v1051
  %v1053 = vld [vmem:[%s1019 + $0x78] sm:$0x1]
  %v1054 = vsel %vm1022, 0, %v1053
  %1055 = vst [vmem:[%s1019 + $0x78] sm:$0x1] %v1054
  %v1056 = vld [vmem:[%s1019 + $0x84] sm:$0x1]
  %v1057 = vsel %vm1022, 0, %v1056
  %1058 = vst [vmem:[%s1019 + $0x84] sm:$0x1] %v1057
  %v1059 = vld [vmem:[%s1019 + $0x90] sm:$0x1]
  %v1060 = vsel %vm1022, 0, %v1059
  %1061 = vst [vmem:[%s1019 + $0x90] sm:$0x1] %v1060
  %v1062 = vld [vmem:[%s1019 + $0x9c] sm:$0x1]
  %v1063 = vsel %vm1022, 0, %v1062
  %1064 = vst [vmem:[%s1019 + $0x9c] sm:$0x1] %v1063
  %v1065 = vld [vmem:[%s1019 + $0xa8] sm:$0x1]
  %v1066 = vsel %vm1022, 0, %v1065
  %1067 = vst [vmem:[%s1019 + $0xa8] sm:$0x1] %v1066
  %v1068 = vld [vmem:[%s1019 + $0xb4] sm:$0x1]
  %v1069 = vsel %vm1022, 0, %v1068
  %1070 = vst [vmem:[%s1019 + $0xb4] sm:$0x1] %v1069
  %v1071 = vld [vmem:[%s1019 + $0xd8] sm:$0x1]
  %v1072 = vsel %vm1022, 0, %v1071
  %1073 = vst [vmem:[%s1019 + $0xd8] sm:$0x1] %v1072
  %v1074 = vld [vmem:[%s1019 + $0xe4] sm:$0x1]
  %v1075 = vsel %vm1022, 0, %v1074
  %1076 = vst [vmem:[%s1019 + $0xe4] sm:$0x1] %v1075
  %v1077 = vld [vmem:[%s1019 + $0xf0] sm:$0x1]
  %v1078 = vsel %vm1022, 0, %v1077
  %1079 = vst [vmem:[%s1019 + $0xf0] sm:$0x1] %v1078
  %v1080 = vld [vmem:[%s1019 + $0xfc] sm:$0x1]
  %v1081 = vsel %vm1022, 0, %v1080
  %1082 = vst [vmem:[%s1019 + $0xfc] sm:$0x1] %v1081
  %v1083 = vld [vmem:[%s1019 + $0x108] sm:$0x1]
  %v1084 = vsel %vm1022, 0, %v1083
  %1085 = vst [vmem:[%s1019 + $0x108] sm:$0x1] %v1084
  %v1086 = vld [vmem:[%s1019 + $0x114] sm:$0x1]
  %v1087 = vsel %vm1022, 0, %v1086
  %1088 = vst [vmem:[%s1019 + $0x114] sm:$0x1] %v1087
  %v1089 = vld [vmem:[%s1019 + $0x120] sm:$0x1]
  %v1090 = vsel %vm1022, 0, %v1089
  %1091 = vst [vmem:[%s1019 + $0x120] sm:$0x1] %v1090
  %v1092 = vld [vmem:[%s1019 + $0x12c] sm:$0x1]
  %v1093 = vsel %vm1022, 0, %v1092
  %1094 = vst [vmem:[%s1019 + $0x12c] sm:$0x1] %v1093
  %v1095 = vld [vmem:[%s1019 + $0x138] sm:$0x1]
  %v1096 = vsel %vm1022, 0, %v1095
  %1097 = vst [vmem:[%s1019 + $0x138] sm:$0x1] %v1096
  %v1098 = vld [vmem:[%s1019 + $0x144] sm:$0x1]
  %v1099 = vsel %vm1022, 0, %v1098
  %1100 = vst [vmem:[%s1019 + $0x144] sm:$0x1] %v1099
  %v1101 = vld [vmem:[%s1019 + $0x150] sm:$0x1]
  %v1102 = vsel %vm1022, 0, %v1101
  %1103 = vst [vmem:[%s1019 + $0x150] sm:$0x1] %v1102
  %v1104 = vld [vmem:[%s1019 + $0x15c] sm:$0x1]
  %v1105 = vsel %vm1022, 0, %v1104
  %1106 = vst [vmem:[%s1019 + $0x15c] sm:$0x1] %v1105
  %v1107 = vld [vmem:[%s1019 + $0x168] sm:$0x1]
  %v1108 = vsel %vm1022, 0, %v1107
  %1109 = vst [vmem:[%s1019 + $0x168] sm:$0x1] %v1108
  %v1110 = vld [vmem:[%s1019 + $0x174] sm:$0x1]
  %v1111 = vsel %vm1022, 0, %v1110
  %1112 = vst [vmem:[%s1019 + $0x174] sm:$0x1] %v1111
  %v1113 = vld [vmem:[%s1019 + $0x180] sm:$0x1]
  %v1114 = vsel %vm1022, 0, %v1113
  %1115 = vst [vmem:[%s1019 + $0x180] sm:$0x1] %v1114
  %v1116 = vld [vmem:[%s1019 + $0x18c] sm:$0x1]
  %v1117 = vsel %vm1022, 0, %v1116
  %1118 = vst [vmem:[%s1019 + $0x18c] sm:$0x1] %v1117
  %vm1119 = vcmask 1043456
  %vm1120 = vsmask.f32 7938
  %vm1121 = vmand %vm1119, %vm1120
  %v1122 = vld [vmem:[%s1019 + $0x8] sm:$0xf]
  %v1123 = vsel %vm1121, 0, %v1122
  %1124 = vst [vmem:[%s1019 + $0x8] sm:$0xf] %v1123
  %v1125 = vld [vmem:[%s1019 + $0x14] sm:$0xf]
  %v1126 = vsel %vm1121, 0, %v1125
  %1127 = vst [vmem:[%s1019 + $0x14] sm:$0xf] %v1126
  %v1128 = vld [vmem:[%s1019 + $0x20] sm:$0xf]
  %v1129 = vsel %vm1121, 0, %v1128
  %1130 = vst [vmem:[%s1019 + $0x20] sm:$0xf] %v1129
  %v1131 = vld [vmem:[%s1019 + $0x2c] sm:$0xf]
  %v1132 = vsel %vm1121, 0, %v1131
  %1133 = vst [vmem:[%s1019 + $0x2c] sm:$0xf] %v1132
  %v1134 = vld [vmem:[%s1019 + $0x38] sm:$0xf]
  %v1135 = vsel %vm1121, 0, %v1134
  %1136 = vst [vmem:[%s1019 + $0x38] sm:$0xf] %v1135
  %v1137 = vld [vmem:[%s1019 + $0x44] sm:$0xf]
  %v1138 = vsel %vm1121, 0, %v1137
  %1139 = vst [vmem:[%s1019 + $0x44] sm:$0xf] %v1138
  %v1140 = vld [vmem:[%s1019 + $0x50] sm:$0xf]
  %v1141 = vsel %vm1121, 0, %v1140
  %1142 = vst [vmem:[%s1019 + $0x50] sm:$0xf] %v1141
  %v1143 = vld [vmem:[%s1019 + $0x5c] sm:$0xf]
  %v1144 = vsel %vm1121, 0, %v1143
  %1145 = vst [vmem:[%s1019 + $0x5c] sm:$0xf] %v1144
  %v1146 = vld [vmem:[%s1019 + $0x68] sm:$0xf]
  %v1147 = vsel %vm1121, 0, %v1146
  %1148 = vst [vmem:[%s1019 + $0x68] sm:$0xf] %v1147
  %v1149 = vld [vmem:[%s1019 + $0x74] sm:$0xf]
  %v1150 = vsel %vm1121, 0, %v1149
  %1151 = vst [vmem:[%s1019 + $0x74] sm:$0xf] %v1150
  %v1152 = vld [vmem:[%s1019 + $0x80] sm:$0xf]
  %v1153 = vsel %vm1121, 0, %v1152
  %1154 = vst [vmem:[%s1019 + $0x80] sm:$0xf] %v1153
  %v1155 = vld [vmem:[%s1019 + $0x8c] sm:$0xf]
  %v1156 = vsel %vm1121, 0, %v1155
  %1157 = vst [vmem:[%s1019 + $0x8c] sm:$0xf] %v1156
  %v1158 = vld [vmem:[%s1019 + $0x98] sm:$0xf]
  %v1159 = vsel %vm1121, 0, %v1158
  %1160 = vst [vmem:[%s1019 + $0x98] sm:$0xf] %v1159
  %v1161 = vld [vmem:[%s1019 + $0xa4] sm:$0xf]
  %v1162 = vsel %vm1121, 0, %v1161
  %1163 = vst [vmem:[%s1019 + $0xa4] sm:$0xf] %v1162
  %v1164 = vld [vmem:[%s1019 + $0xb0] sm:$0xf]
  %v1165 = vsel %vm1121, 0, %v1164
  %1166 = vst [vmem:[%s1019 + $0xb0] sm:$0xf] %v1165
  %v1167 = vld [vmem:[%s1019 + $0xbc] sm:$0xf]
  %v1168 = vsel %vm1121, 0, %v1167
  %1169 = vst [vmem:[%s1019 + $0xbc] sm:$0xf] %v1168
  %v1170 = vld [vmem:[%s1019 + $0xe0] sm:$0xf]
  %v1171 = vsel %vm1121, 0, %v1170
  %1172 = vst [vmem:[%s1019 + $0xe0] sm:$0xf] %v1171
  %v1173 = vld [vmem:[%s1019 + $0xec] sm:$0xf]
  %v1174 = vsel %vm1121, 0, %v1173
  %1175 = vst [vmem:[%s1019 + $0xec] sm:$0xf] %v1174
  %v1176 = vld [vmem:[%s1019 + $0xf8] sm:$0xf]
  %v1177 = vsel %vm1121, 0, %v1176
  %1178 = vst [vmem:[%s1019 + $0xf8] sm:$0xf] %v1177
  %v1179 = vld [vmem:[%s1019 + $0x104] sm:$0xf]
  %v1180 = vsel %vm1121, 0, %v1179
  %1181 = vst [vmem:[%s1019 + $0x104] sm:$0xf] %v1180
  %v1182 = vld [vmem:[%s1019 + $0x110] sm:$0xf]
  %v1183 = vsel %vm1121, 0, %v1182
  %1184 = vst [vmem:[%s1019 + $0x110] sm:$0xf] %v1183
  %v1185 = vld [vmem:[%s1019 + $0x11c] sm:$0xf]
  %v1186 = vsel %vm1121, 0, %v1185
  %1187 = vst [vmem:[%s1019 + $0x11c] sm:$0xf] %v1186
  %v1188 = vld [vmem:[%s1019 + $0x128] sm:$0xf]
  %v1189 = vsel %vm1121, 0, %v1188
  %1190 = vst [vmem:[%s1019 + $0x128] sm:$0xf] %v1189
  %v1191 = vld [vmem:[%s1019 + $0x134] sm:$0xf]
  %v1192 = vsel %vm1121, 0, %v1191
  %1193 = vst [vmem:[%s1019 + $0x134] sm:$0xf] %v1192
  %v1194 = vld [vmem:[%s1019 + $0x140] sm:$0xf]
  %v1195 = vsel %vm1121, 0, %v1194
  %1196 = vst [vmem:[%s1019 + $0x140] sm:$0xf] %v1195
  %v1197 = vld [vmem:[%s1019 + $0x14c] sm:$0xf]
  %v1198 = vsel %vm1121, 0, %v1197
  %1199 = vst [vmem:[%s1019 + $0x14c] sm:$0xf] %v1198
  %v1200 = vld [vmem:[%s1019 + $0x158] sm:$0xf]
  %v1201 = vsel %vm1121, 0, %v1200
  %1202 = vst [vmem:[%s1019 + $0x158] sm:$0xf] %v1201
  %v1203 = vld [vmem:[%s1019 + $0x164] sm:$0xf]
  %v1204 = vsel %vm1121, 0, %v1203
  %1205 = vst [vmem:[%s1019 + $0x164] sm:$0xf] %v1204
  %v1206 = vld [vmem:[%s1019 + $0x170] sm:$0xf]
  %v1207 = vsel %vm1121, 0, %v1206
  %1208 = vst [vmem:[%s1019 + $0x170] sm:$0xf] %v1207
  %v1209 = vld [vmem:[%s1019 + $0x17c] sm:$0xf]
  %v1210 = vsel %vm1121, 0, %v1209
  %1211 = vst [vmem:[%s1019 + $0x17c] sm:$0xf] %v1210
  %v1212 = vld [vmem:[%s1019 + $0x188] sm:$0xf]
  %v1213 = vsel %vm1121, 0, %v1212
  %1214 = vst [vmem:[%s1019 + $0x188] sm:$0xf] %v1213
  %v1215 = vld [vmem:[%s1019 + $0x194] sm:$0xf]
  %v1216 = vsel %vm1121, 0, %v1215
  %1217 = vst [vmem:[%s1019 + $0x194] sm:$0xf] %v1216
  %v1218 = vpack.c.bf16 %v943, %v942
  %v1219 = vpack.c.bf16 %v945, %v944
  %v1220 = vpack.c.bf16 %v947, %v946
  %v1221 = vpack.c.bf16 %v949, %v948
  %v1222 = vpack.c.bf16 %v951, %v950
  %v1223 = vpack.c.bf16 %v953, %v952
  %v1224 = vpack.c.bf16 %v955, %v954
  %v1225 = vpack.c.bf16 %v957, %v956
  %v1226 = vpack.c.bf16 %v959, %v958
  %v1227 = vpack.c.bf16 %v961, %v960
  %v1228 = vpack.c.bf16 %v963, %v962
  %v1229 = vpack.c.bf16 %v965, %v964
  %v1230 = vpack.c.bf16 %v967, %v966
  %v1231 = vpack.c.bf16 %v969, %v968
  %v1232 = vpack.c.bf16 %v971, %v970
  %v1233 = vpack.c.bf16 %v973, %v972
  %v1234 = vpack.c.bf16 %v975, %v974
  %v1235 = vpack.c.bf16 %v977, %v976
  %v1236 = vpack.c.bf16 %v979, %v978
  %v1237 = vpack.c.bf16 %v981, %v980
  %v1238 = vpack.c.bf16 %v983, %v982
  %v1239 = vpack.c.bf16 %v985, %v984
  %v1240 = vpack.c.bf16 %v987, %v986
  %v1241 = vpack.c.bf16 %v989, %v988
  %v1242 = vpack.c.bf16 %v991, %v990
  %v1243 = vpack.c.bf16 %v993, %v992
  %v1244 = vpack.c.bf16 %v995, %v994
  %v1245 = vpack.c.bf16 %v997, %v996
  %v1246 = vpack.c.bf16 %v999, %v998
  %v1247 = vpack.c.bf16 %v1001, %v1000
  %v1248 = vpack.c.bf16 %v1003, %v1002
  %v1249 = vpack.c.bf16 %v1005, %v1004
  %v1282 = vunpack.c.l.b16 %v1218
  %v1283 = vunpack.c.h.b16 %v1218
  %v1284 = vunpack.c.l.b16 %v1219
  %v1285 = vunpack.c.h.b16 %v1219
  %v1286 = vunpack.c.l.b16 %v1220
  %v1287 = vunpack.c.h.b16 %v1220
  %v1288 = vunpack.c.l.b16 %v1221
  %v1289 = vunpack.c.h.b16 %v1221
  %v1290 = vunpack.c.l.b16 %v1222
  %v1291 = vunpack.c.h.b16 %v1222
  %v1292 = vunpack.c.l.b16 %v1223
  %v1293 = vunpack.c.h.b16 %v1223
  %v1294 = vunpack.c.l.b16 %v1224
  %v1295 = vunpack.c.h.b16 %v1224
  %v1296 = vunpack.c.l.b16 %v1225
  %v1297 = vunpack.c.h.b16 %v1225
  %v1298 = vunpack.c.l.b16 %v1226
  %v1299 = vunpack.c.h.b16 %v1226
  %v1300 = vunpack.c.l.b16 %v1227
  %v1301 = vunpack.c.h.b16 %v1227
  %v1302 = vunpack.c.l.b16 %v1228
  %v1303 = vunpack.c.h.b16 %v1228
  %v1304 = vunpack.c.l.b16 %v1229
  %v1305 = vunpack.c.h.b16 %v1229
  %v1306 = vunpack.c.l.b16 %v1230
  %v1307 = vunpack.c.h.b16 %v1230
  %v1308 = vunpack.c.l.b16 %v1231
  %v1309 = vunpack.c.h.b16 %v1231
  %v1310 = vunpack.c.l.b16 %v1232
  %v1311 = vunpack.c.h.b16 %v1232
  %v1312 = vunpack.c.l.b16 %v1233
  %v1313 = vunpack.c.h.b16 %v1233
  %v1314 = vunpack.c.l.b16 %v1234
  %v1315 = vunpack.c.h.b16 %v1234
  %v1316 = vunpack.c.l.b16 %v1235
  %v1317 = vunpack.c.h.b16 %v1235
  %v1318 = vunpack.c.l.b16 %v1236
  %v1319 = vunpack.c.h.b16 %v1236
  %v1320 = vunpack.c.l.b16 %v1237
  %v1321 = vunpack.c.h.b16 %v1237
  %v1322 = vunpack.c.l.b16 %v1238
  %v1323 = vunpack.c.h.b16 %v1238
  %v1324 = vunpack.c.l.b16 %v1239
  %v1325 = vunpack.c.h.b16 %v1239
  %v1326 = vunpack.c.l.b16 %v1240
  %v1327 = vunpack.c.h.b16 %v1240
  %v1328 = vunpack.c.l.b16 %v1241
  %v1329 = vunpack.c.h.b16 %v1241
  %v1330 = vunpack.c.l.b16 %v1242
  %v1331 = vunpack.c.h.b16 %v1242
  %v1332 = vunpack.c.l.b16 %v1243
  %v1333 = vunpack.c.h.b16 %v1243
  %v1334 = vunpack.c.l.b16 %v1244
  %v1335 = vunpack.c.h.b16 %v1244
  %v1336 = vunpack.c.l.b16 %v1245
  %v1337 = vunpack.c.h.b16 %v1245
  %v1338 = vunpack.c.l.b16 %v1246
  %v1339 = vunpack.c.h.b16 %v1246
  %v1340 = vunpack.c.l.b16 %v1247
  %v1341 = vunpack.c.h.b16 %v1247
  %v1342 = vunpack.c.l.b16 %v1248
  %v1343 = vunpack.c.h.b16 %v1248
  %v1344 = vunpack.c.l.b16 %v1249
  %v1345 = vunpack.c.h.b16 %v1249
  %v1346 = vpack.c.b16 %v1282, %v1282
  %v1347 = vpack.c.b16 %v1283, %v1283
  %v1348 = vpack.c.b16 %v1284, %v1284
  %v1349 = vpack.c.b16 %v1285, %v1285
  %v1350 = vpack.c.b16 %v1286, %v1286
  %v1351 = vpack.c.b16 %v1287, %v1287
  %v1352 = vpack.c.b16 %v1288, %v1288
  %v1353 = vpack.c.b16 %v1289, %v1289
  %v1354 = vpack.c.b16 %v1290, %v1290
  %v1355 = vpack.c.b16 %v1291, %v1291
  %v1356 = vpack.c.b16 %v1292, %v1292
  %v1357 = vpack.c.b16 %v1293, %v1293
  %v1358 = vpack.c.b16 %v1294, %v1294
  %v1359 = vpack.c.b16 %v1295, %v1295
  %v1360 = vpack.c.b16 %v1296, %v1296
  %v1361 = vpack.c.b16 %v1297, %v1297
  %v1362 = vpack.c.b16 %v1298, %v1298
  %v1363 = vpack.c.b16 %v1299, %v1299
  %v1364 = vpack.c.b16 %v1300, %v1300
  %v1365 = vpack.c.b16 %v1301, %v1301
  %v1366 = vpack.c.b16 %v1302, %v1302
  %v1367 = vpack.c.b16 %v1303, %v1303
  %v1368 = vpack.c.b16 %v1304, %v1304
  %v1369 = vpack.c.b16 %v1305, %v1305
  %v1370 = vpack.c.b16 %v1306, %v1306
  %v1371 = vpack.c.b16 %v1307, %v1307
  %v1372 = vpack.c.b16 %v1308, %v1308
  %v1373 = vpack.c.b16 %v1309, %v1309
  %v1374 = vpack.c.b16 %v1310, %v1310
  %v1375 = vpack.c.b16 %v1311, %v1311
  %v1376 = vpack.c.b16 %v1312, %v1312
  %v1377 = vpack.c.b16 %v1313, %v1313
  %v1378 = vpack.c.b16 %v1314, %v1314
  %v1379 = vpack.c.b16 %v1315, %v1315
  %v1380 = vpack.c.b16 %v1316, %v1316
  %v1381 = vpack.c.b16 %v1317, %v1317
  %v1382 = vpack.c.b16 %v1318, %v1318
  %v1383 = vpack.c.b16 %v1319, %v1319
  %v1384 = vpack.c.b16 %v1320, %v1320
  %v1385 = vpack.c.b16 %v1321, %v1321
  %v1386 = vpack.c.b16 %v1322, %v1322
  %v1387 = vpack.c.b16 %v1323, %v1323
  %v1388 = vpack.c.b16 %v1324, %v1324
  %v1389 = vpack.c.b16 %v1325, %v1325
  %v1390 = vpack.c.b16 %v1326, %v1326
  %v1391 = vpack.c.b16 %v1327, %v1327
  %v1392 = vpack.c.b16 %v1328, %v1328
  %v1393 = vpack.c.b16 %v1329, %v1329
  %v1394 = vpack.c.b16 %v1330, %v1330
  %v1395 = vpack.c.b16 %v1331, %v1331
  %v1396 = vpack.c.b16 %v1332, %v1332
  %v1397 = vpack.c.b16 %v1333, %v1333
  %v1398 = vpack.c.b16 %v1334, %v1334
  %v1399 = vpack.c.b16 %v1335, %v1335
  %v1400 = vpack.c.b16 %v1336, %v1336
  %v1401 = vpack.c.b16 %v1337, %v1337
  %v1402 = vpack.c.b16 %v1338, %v1338
  %v1403 = vpack.c.b16 %v1339, %v1339
  %v1404 = vpack.c.b16 %v1340, %v1340
  %v1405 = vpack.c.b16 %v1341, %v1341
  %v1406 = vpack.c.b16 %v1342, %v1342
  %v1407 = vpack.c.b16 %v1343, %v1343
  %v1408 = vpack.c.b16 %v1344, %v1344
  %v1409 = vpack.c.b16 %v1345, %v1345
  %vm1410 = vsmask.f32 4368
  %vm1411 = vmor %vm1021, %vm1410
  %v1413 = vshrl.u32 %v1346, 16
  %v1415 = vrot.slane %v1413, 7
  %v1416 = vshll.u32 %v1346, 16
  %v1418 = vor.u32 %v1415, %v1416
  %v1419 = vrot.slane %v1415, 4
  %v1421 = vshrl.u32 %v1347, 16
  %v1423 = vrot.slane %v1421, 7
  %v1424 = vshll.u32 %v1347, 16
  %v1426 = vor.u32 %v1423, %v1424
  %v1427 = vsel %vm1411, %v1419, %v1426
  %v1428 = vrot.slane %v1423, 4
  %v1430 = vshrl.u32 %v1348, 16
  %v1432 = vrot.slane %v1430, 7
  %v1433 = vshll.u32 %v1348, 16
  %v1435 = vor.u32 %v1432, %v1433
  %v1436 = vrot.slane %v1432, 4
  %v1438 = vshrl.u32 %v1349, 16
  %v1440 = vrot.slane %v1438, 7
  %v1441 = vshll.u32 %v1349, 16
  %v1443 = vor.u32 %v1440, %v1441
  %v1444 = vsel %vm1411, %v1436, %v1443
  %v1445 = vrot.slane %v1440, 4
  %v1447 = vshrl.u32 %v1350, 16
  %v1449 = vrot.slane %v1447, 7
  %v1450 = vshll.u32 %v1350, 16
  %v1452 = vor.u32 %v1449, %v1450
  %v1453 = vrot.slane %v1449, 4
  %v1455 = vshrl.u32 %v1351, 16
  %v1457 = vrot.slane %v1455, 7
  %v1458 = vshll.u32 %v1351, 16
  %v1460 = vor.u32 %v1457, %v1458
  %v1461 = vsel %vm1411, %v1453, %v1460
  %v1462 = vrot.slane %v1457, 4
  %v1464 = vshrl.u32 %v1352, 16
  %v1466 = vrot.slane %v1464, 7
  %v1467 = vshll.u32 %v1352, 16
  %v1469 = vor.u32 %v1466, %v1467
  %v1470 = vrot.slane %v1466, 4
  %v1472 = vshrl.u32 %v1353, 16
  %v1474 = vrot.slane %v1472, 7
  %v1475 = vshll.u32 %v1353, 16
  %v1477 = vor.u32 %v1474, %v1475
  %v1478 = vsel %vm1411, %v1470, %v1477
  %v1479 = vrot.slane %v1474, 4
  %v1481 = vshrl.u32 %v1354, 16
  %v1483 = vrot.slane %v1481, 7
  %v1484 = vshll.u32 %v1354, 16
  %v1486 = vor.u32 %v1483, %v1484
  %v1487 = vrot.slane %v1483, 4
  %v1489 = vshrl.u32 %v1355, 16
  %v1491 = vrot.slane %v1489, 7
  %v1492 = vshll.u32 %v1355, 16
  %v1494 = vor.u32 %v1491, %v1492
  %v1495 = vsel %vm1411, %v1487, %v1494
  %v1496 = vrot.slane %v1491, 4
  %v1498 = vshrl.u32 %v1356, 16
  %v1500 = vrot.slane %v1498, 7
  %v1501 = vshll.u32 %v1356, 16
  %v1503 = vor.u32 %v1500, %v1501
  %v1504 = vrot.slane %v1500, 4
  %v1506 = vshrl.u32 %v1357, 16
  %v1508 = vrot.slane %v1506, 7
  %v1509 = vshll.u32 %v1357, 16
  %v1511 = vor.u32 %v1508, %v1509
  %v1512 = vsel %vm1411, %v1504, %v1511
  %v1513 = vrot.slane %v1508, 4
  %v1515 = vshrl.u32 %v1358, 16
  %v1517 = vrot.slane %v1515, 7
  %v1518 = vshll.u32 %v1358, 16
  %v1520 = vor.u32 %v1517, %v1518
  %v1521 = vrot.slane %v1517, 4
  %v1523 = vshrl.u32 %v1359, 16
  %v1525 = vrot.slane %v1523, 7
  %v1526 = vshll.u32 %v1359, 16
  %v1528 = vor.u32 %v1525, %v1526
  %v1529 = vsel %vm1411, %v1521, %v1528
  %v1530 = vrot.slane %v1525, 4
  %v1532 = vshrl.u32 %v1360, 16
  %v1534 = vrot.slane %v1532, 7
  %v1535 = vshll.u32 %v1360, 16
  %v1537 = vor.u32 %v1534, %v1535
  %v1538 = vrot.slane %v1534, 4
  %v1540 = vshrl.u32 %v1361, 16
  %v1542 = vrot.slane %v1540, 7
  %v1543 = vshll.u32 %v1361, 16
  %v1545 = vor.u32 %v1542, %v1543
  %v1546 = vsel %vm1411, %v1538, %v1545
  %v1547 = vrot.slane %v1542, 4
  %v1549 = vshrl.u32 %v1362, 16
  %v1551 = vrot.slane %v1549, 7
  %v1552 = vshll.u32 %v1362, 16
  %v1554 = vor.u32 %v1551, %v1552
  %v1555 = vrot.slane %v1551, 4
  %v1557 = vshrl.u32 %v1363, 16
  %v1559 = vrot.slane %v1557, 7
  %v1560 = vshll.u32 %v1363, 16
  %v1562 = vor.u32 %v1559, %v1560
  %v1563 = vsel %vm1411, %v1555, %v1562
  %v1564 = vrot.slane %v1559, 4
  %v1566 = vshrl.u32 %v1364, 16
  %v1568 = vrot.slane %v1566, 7
  %v1569 = vshll.u32 %v1364, 16
  %v1571 = vor.u32 %v1568, %v1569
  %v1572 = vrot.slane %v1568, 4
  %v1574 = vshrl.u32 %v1365, 16
  %v1576 = vrot.slane %v1574, 7
  %v1577 = vshll.u32 %v1365, 16
  %v1579 = vor.u32 %v1576, %v1577
  %v1580 = vsel %vm1411, %v1572, %v1579
  %v1581 = vrot.slane %v1576, 4
  %v1583 = vshrl.u32 %v1366, 16
  %v1585 = vrot.slane %v1583, 7
  %v1586 = vshll.u32 %v1366, 16
  %v1588 = vor.u32 %v1585, %v1586
  %v1589 = vrot.slane %v1585, 4
  %v1591 = vshrl.u32 %v1367, 16
  %v1593 = vrot.slane %v1591, 7
  %v1594 = vshll.u32 %v1367, 16
  %v1596 = vor.u32 %v1593, %v1594
  %v1597 = vsel %vm1411, %v1589, %v1596
  %v1598 = vrot.slane %v1593, 4
  %v1600 = vshrl.u32 %v1368, 16
  %v1602 = vrot.slane %v1600, 7
  %v1603 = vshll.u32 %v1368, 16
  %v1605 = vor.u32 %v1602, %v1603
  %v1606 = vrot.slane %v1602, 4
  %v1608 = vshrl.u32 %v1369, 16
  %v1610 = vrot.slane %v1608, 7
  %v1611 = vshll.u32 %v1369, 16
  %v1613 = vor.u32 %v1610, %v1611
  %v1614 = vsel %vm1411, %v1606, %v1613
  %v1615 = vrot.slane %v1610, 4
  %v1617 = vshrl.u32 %v1370, 16
  %v1619 = vrot.slane %v1617, 7
  %v1620 = vshll.u32 %v1370, 16
  %v1622 = vor.u32 %v1619, %v1620
  %v1623 = vrot.slane %v1619, 4
  %v1625 = vshrl.u32 %v1371, 16
  %v1627 = vrot.slane %v1625, 7
  %v1628 = vshll.u32 %v1371, 16
  %v1630 = vor.u32 %v1627, %v1628
  %v1631 = vsel %vm1411, %v1623, %v1630
  %v1632 = vrot.slane %v1627, 4
  %v1634 = vshrl.u32 %v1372, 16
  %v1636 = vrot.slane %v1634, 7
  %v1637 = vshll.u32 %v1372, 16
  %v1639 = vor.u32 %v1636, %v1637
  %v1640 = vrot.slane %v1636, 4
  %v1642 = vshrl.u32 %v1373, 16
  %v1644 = vrot.slane %v1642, 7
  %v1645 = vshll.u32 %v1373, 16
  %v1647 = vor.u32 %v1644, %v1645
  %v1648 = vsel %vm1411, %v1640, %v1647
  %v1649 = vrot.slane %v1644, 4
  %v1651 = vshrl.u32 %v1374, 16
  %v1653 = vrot.slane %v1651, 7
  %v1654 = vshll.u32 %v1374, 16
  %v1656 = vor.u32 %v1653, %v1654
  %v1657 = vrot.slane %v1653, 4
  %v1659 = vshrl.u32 %v1375, 16
  %v1661 = vrot.slane %v1659, 7
  %v1662 = vshll.u32 %v1375, 16
  %v1664 = vor.u32 %v1661, %v1662
  %v1665 = vsel %vm1411, %v1657, %v1664
  %v1666 = vrot.slane %v1661, 4
  %v1668 = vshrl.u32 %v1376, 16
  %v1670 = vrot.slane %v1668, 7
  %v1671 = vshll.u32 %v1376, 16
  %v1673 = vor.u32 %v1670, %v1671
  %v1674 = vrot.slane %v1670, 4
  %v1676 = vshrl.u32 %v1377, 16
  %v1678 = vrot.slane %v1676, 7
  %v1679 = vshll.u32 %v1377, 16
  %v1681 = vor.u32 %v1678, %v1679
  %v1682 = vsel %vm1411, %v1674, %v1681
  %v1683 = vrot.slane %v1678, 4
  %v1685 = vshrl.u32 %v1378, 16
  %v1687 = vrot.slane %v1685, 7
  %v1688 = vshll.u32 %v1378, 16
  %v1690 = vor.u32 %v1687, %v1688
  %v1691 = vrot.slane %v1687, 4
  %v1693 = vshrl.u32 %v1379, 16
  %v1695 = vrot.slane %v1693, 7
  %v1696 = vshll.u32 %v1379, 16
  %v1698 = vor.u32 %v1695, %v1696
  %v1699 = vsel %vm1411, %v1691, %v1698
  %v1700 = vrot.slane %v1695, 4
  %v1702 = vshrl.u32 %v1380, 16
  %v1704 = vrot.slane %v1702, 7
  %v1705 = vshll.u32 %v1380, 16
  %v1707 = vor.u32 %v1704, %v1705
  %v1708 = vrot.slane %v1704, 4
  %v1710 = vshrl.u32 %v1381, 16
  %v1712 = vrot.slane %v1710, 7
  %v1713 = vshll.u32 %v1381, 16
  %v1715 = vor.u32 %v1712, %v1713
  %v1716 = vsel %vm1411, %v1708, %v1715
  %v1717 = vrot.slane %v1712, 4
  %v1719 = vshrl.u32 %v1382, 16
  %v1721 = vrot.slane %v1719, 7
  %v1722 = vshll.u32 %v1382, 16
  %v1724 = vor.u32 %v1721, %v1722
  %v1725 = vrot.slane %v1721, 4
  %v1727 = vshrl.u32 %v1383, 16
  %v1729 = vrot.slane %v1727, 7
  %v1730 = vshll.u32 %v1383, 16
  %v1732 = vor.u32 %v1729, %v1730
  %v1733 = vsel %vm1411, %v1725, %v1732
  %v1734 = vrot.slane %v1729, 4
  %v1736 = vshrl.u32 %v1384, 16
  %v1738 = vrot.slane %v1736, 7
  %v1739 = vshll.u32 %v1384, 16
  %v1741 = vor.u32 %v1738, %v1739
  %v1742 = vrot.slane %v1738, 4
  %v1744 = vshrl.u32 %v1385, 16
  %v1746 = vrot.slane %v1744, 7
  %v1747 = vshll.u32 %v1385, 16
  %v1749 = vor.u32 %v1746, %v1747
  %v1750 = vsel %vm1411, %v1742, %v1749
  %v1751 = vrot.slane %v1746, 4
  %v1753 = vshrl.u32 %v1386, 16
  %v1755 = vrot.slane %v1753, 7
  %v1756 = vshll.u32 %v1386, 16
  %v1758 = vor.u32 %v1755, %v1756
  %v1759 = vrot.slane %v1755, 4
  %v1761 = vshrl.u32 %v1387, 16
  %v1763 = vrot.slane %v1761, 7
  %v1764 = vshll.u32 %v1387, 16
  %v1766 = vor.u32 %v1763, %v1764
  %v1767 = vsel %vm1411, %v1759, %v1766
  %v1768 = vrot.slane %v1763, 4
  %v1770 = vshrl.u32 %v1388, 16
  %v1772 = vrot.slane %v1770, 7
  %v1773 = vshll.u32 %v1388, 16
  %v1775 = vor.u32 %v1772, %v1773
  %v1776 = vrot.slane %v1772, 4
  %v1778 = vshrl.u32 %v1389, 16
  %v1780 = vrot.slane %v1778, 7
  %v1781 = vshll.u32 %v1389, 16
  %v1783 = vor.u32 %v1780, %v1781
  %v1784 = vsel %vm1411, %v1776, %v1783
  %v1785 = vrot.slane %v1780, 4
  %v1787 = vshrl.u32 %v1390, 16
  %v1789 = vrot.slane %v1787, 7
  %v1790 = vshll.u32 %v1390, 16
  %v1792 = vor.u32 %v1789, %v1790
  %v1793 = vrot.slane %v1789, 4
  %v1795 = vshrl.u32 %v1391, 16
  %v1797 = vrot.slane %v1795, 7
  %v1798 = vshll.u32 %v1391, 16
  %v1800 = vor.u32 %v1797, %v1798
  %v1801 = vsel %vm1411, %v1793, %v1800
  %v1802 = vrot.slane %v1797, 4
  %v1804 = vshrl.u32 %v1392, 16
  %v1806 = vrot.slane %v1804, 7
  %v1807 = vshll.u32 %v1392, 16
  %v1809 = vor.u32 %v1806, %v1807
  %v1810 = vrot.slane %v1806, 4
  %v1812 = vshrl.u32 %v1393, 16
  %v1814 = vrot.slane %v1812, 7
  %v1815 = vshll.u32 %v1393, 16
  %v1817 = vor.u32 %v1814, %v1815
  %v1818 = vsel %vm1411, %v1810, %v1817
  %v1819 = vrot.slane %v1814, 4
  %v1821 = vshrl.u32 %v1394, 16
  %v1823 = vrot.slane %v1821, 7
  %v1824 = vshll.u32 %v1394, 16
  %v1826 = vor.u32 %v1823, %v1824
  %v1827 = vrot.slane %v1823, 4
  %v1829 = vshrl.u32 %v1395, 16
  %v1831 = vrot.slane %v1829, 7
  %v1832 = vshll.u32 %v1395, 16
  %v1834 = vor.u32 %v1831, %v1832
  %v1835 = vsel %vm1411, %v1827, %v1834
  %v1836 = vrot.slane %v1831, 4
  %v1838 = vshrl.u32 %v1396, 16
  %v1840 = vrot.slane %v1838, 7
  %v1841 = vshll.u32 %v1396, 16
  %v1843 = vor.u32 %v1840, %v1841
  %v1844 = vrot.slane %v1840, 4
  %v1846 = vshrl.u32 %v1397, 16
  %v1848 = vrot.slane %v1846, 7
  %v1849 = vshll.u32 %v1397, 16
  %v1851 = vor.u32 %v1848, %v1849
  %v1852 = vsel %vm1411, %v1844, %v1851
  %v1853 = vrot.slane %v1848, 4
  %v1855 = vshrl.u32 %v1398, 16
  %v1857 = vrot.slane %v1855, 7
  %v1858 = vshll.u32 %v1398, 16
  %v1860 = vor.u32 %v1857, %v1858
  %v1861 = vrot.slane %v1857, 4
  %v1863 = vshrl.u32 %v1399, 16
  %v1865 = vrot.slane %v1863, 7
  %v1866 = vshll.u32 %v1399, 16
  %v1868 = vor.u32 %v1865, %v1866
  %v1869 = vsel %vm1411, %v1861, %v1868
  %v1870 = vrot.slane %v1865, 4
  %v1872 = vshrl.u32 %v1400, 16
  %v1874 = vrot.slane %v1872, 7
  %v1875 = vshll.u32 %v1400, 16
  %v1877 = vor.u32 %v1874, %v1875
  %v1878 = vrot.slane %v1874, 4
  %v1880 = vshrl.u32 %v1401, 16
  %v1882 = vrot.slane %v1880, 7
  %v1883 = vshll.u32 %v1401, 16
  %v1885 = vor.u32 %v1882, %v1883
  %v1886 = vsel %vm1411, %v1878, %v1885
  %v1887 = vrot.slane %v1882, 4
  %v1889 = vshrl.u32 %v1402, 16
  %v1891 = vrot.slane %v1889, 7
  %v1892 = vshll.u32 %v1402, 16
  %v1894 = vor.u32 %v1891, %v1892
  %v1895 = vrot.slane %v1891, 4
  %v1897 = vshrl.u32 %v1403, 16
  %v1899 = vrot.slane %v1897, 7
  %v1900 = vshll.u32 %v1403, 16
  %v1902 = vor.u32 %v1899, %v1900
  %v1903 = vsel %vm1411, %v1895, %v1902
  %v1904 = vrot.slane %v1899, 4
  %v1906 = vshrl.u32 %v1404, 16
  %v1908 = vrot.slane %v1906, 7
  %v1909 = vshll.u32 %v1404, 16
  %v1911 = vor.u32 %v1908, %v1909
  %v1912 = vrot.slane %v1908, 4
  %v1914 = vshrl.u32 %v1405, 16
  %v1916 = vrot.slane %v1914, 7
  %v1917 = vshll.u32 %v1405, 16
  %v1919 = vor.u32 %v1916, %v1917
  %v1920 = vsel %vm1411, %v1912, %v1919
  %v1921 = vrot.slane %v1916, 4
  %v1923 = vshrl.u32 %v1406, 16
  %v1925 = vrot.slane %v1923, 7
  %v1926 = vshll.u32 %v1406, 16
  %v1928 = vor.u32 %v1925, %v1926
  %v1929 = vrot.slane %v1925, 4
  %v1931 = vshrl.u32 %v1407, 16
  %v1933 = vrot.slane %v1931, 7
  %v1934 = vshll.u32 %v1407, 16
  %v1936 = vor.u32 %v1933, %v1934
  %v1937 = vsel %vm1411, %v1929, %v1936
  %v1938 = vrot.slane %v1933, 4
  %v1940 = vshrl.u32 %v1408, 16
  %v1942 = vrot.slane %v1940, 7
  %v1943 = vshll.u32 %v1408, 16
  %v1945 = vor.u32 %v1942, %v1943
  %v1946 = vrot.slane %v1942, 4
  %v1948 = vshrl.u32 %v1409, 16
  %v1950 = vrot.slane %v1948, 7
  %v1951 = vshll.u32 %v1409, 16
  %v1953 = vor.u32 %v1950, %v1951
  %v1954 = vsel %vm1411, %v1946, %v1953
  %v1955 = vrot.slane %v1950, 4
  %v2052 = vld [vmem:[%s1019] sm:$0xf]
  %v2053 = vsel %vm1121, %v1418, %v2052
  %2054 = vst [vmem:[%s1019] sm:$0xf] %v2053
  %2055 = vst [vmem:[%s1019 + $0x4] sm:$0xf] %v1427
  %v2056 = vld [vmem:[%s1019 + $0x8] sm:$0x1]
  %v2057 = vsel %vm1022, %v1428, %v2056
  %2058 = vst [vmem:[%s1019 + $0x8] sm:$0x1] %v2057
  %v2059 = vld [vmem:[%s1019 + $0xc] sm:$0xf]
  %v2060 = vsel %vm1121, %v1435, %v2059
  %2061 = vst [vmem:[%s1019 + $0xc] sm:$0xf] %v2060
  %2062 = vst [vmem:[%s1019 + $0x10] sm:$0xf] %v1444
  %v2063 = vld [vmem:[%s1019 + $0x14] sm:$0x1]
  %v2064 = vsel %vm1022, %v1445, %v2063
  %2065 = vst [vmem:[%s1019 + $0x14] sm:$0x1] %v2064
  %v2066 = vld [vmem:[%s1019 + $0x18] sm:$0xf]
  %v2067 = vsel %vm1121, %v1452, %v2066
  %2068 = vst [vmem:[%s1019 + $0x18] sm:$0xf] %v2067
  %2069 = vst [vmem:[%s1019 + $0x1c] sm:$0xf] %v1461
  %v2070 = vld [vmem:[%s1019 + $0x20] sm:$0x1]
  %v2071 = vsel %vm1022, %v1462, %v2070
  %2072 = vst [vmem:[%s1019 + $0x20] sm:$0x1] %v2071
  %v2073 = vld [vmem:[%s1019 + $0x24] sm:$0xf]
  %v2074 = vsel %vm1121, %v1469, %v2073
  %2075 = vst [vmem:[%s1019 + $0x24] sm:$0xf] %v2074
  %2076 = vst [vmem:[%s1019 + $0x28] sm:$0xf] %v1478
  %v2077 = vld [vmem:[%s1019 + $0x2c] sm:$0x1]
  %v2078 = vsel %vm1022, %v1479, %v2077
  %2079 = vst [vmem:[%s1019 + $0x2c] sm:$0x1] %v2078
  %v2080 = vld [vmem:[%s1019 + $0x30] sm:$0xf]
  %v2081 = vsel %vm1121, %v1486, %v2080
  %2082 = vst [vmem:[%s1019 + $0x30] sm:$0xf] %v2081
  %2083 = vst [vmem:[%s1019 + $0x34] sm:$0xf] %v1495
  %v2084 = vld [vmem:[%s1019 + $0x38] sm:$0x1]
  %v2085 = vsel %vm1022, %v1496, %v2084
  %2086 = vst [vmem:[%s1019 + $0x38] sm:$0x1] %v2085
  %v2087 = vld [vmem:[%s1019 + $0x3c] sm:$0xf]
  %v2088 = vsel %vm1121, %v1503, %v2087
  %2089 = vst [vmem:[%s1019 + $0x3c] sm:$0xf] %v2088
  %2090 = vst [vmem:[%s1019 + $0x40] sm:$0xf] %v1512
  %v2091 = vld [vmem:[%s1019 + $0x44] sm:$0x1]
  %v2092 = vsel %vm1022, %v1513, %v2091
  %2093 = vst [vmem:[%s1019 + $0x44] sm:$0x1] %v2092
  %v2094 = vld [vmem:[%s1019 + $0x48] sm:$0xf]
  %v2095 = vsel %vm1121, %v1520, %v2094
  %2096 = vst [vmem:[%s1019 + $0x48] sm:$0xf] %v2095
  %2097 = vst [vmem:[%s1019 + $0x4c] sm:$0xf] %v1529
  %v2098 = vld [vmem:[%s1019 + $0x50] sm:$0x1]
  %v2099 = vsel %vm1022, %v1530, %v2098
  %2100 = vst [vmem:[%s1019 + $0x50] sm:$0x1] %v2099
  %v2101 = vld [vmem:[%s1019 + $0x54] sm:$0xf]
  %v2102 = vsel %vm1121, %v1537, %v2101
  %2103 = vst [vmem:[%s1019 + $0x54] sm:$0xf] %v2102
  %2104 = vst [vmem:[%s1019 + $0x58] sm:$0xf] %v1546
  %v2105 = vld [vmem:[%s1019 + $0x5c] sm:$0x1]
  %v2106 = vsel %vm1022, %v1547, %v2105
  %2107 = vst [vmem:[%s1019 + $0x5c] sm:$0x1] %v2106
  %v2108 = vld [vmem:[%s1019 + $0x60] sm:$0xf]
  %v2109 = vsel %vm1121, %v1554, %v2108
  %2110 = vst [vmem:[%s1019 + $0x60] sm:$0xf] %v2109
  %2111 = vst [vmem:[%s1019 + $0x64] sm:$0xf] %v1563
  %v2112 = vld [vmem:[%s1019 + $0x68] sm:$0x1]
  %v2113 = vsel %vm1022, %v1564, %v2112
  %2114 = vst [vmem:[%s1019 + $0x68] sm:$0x1] %v2113
  %v2115 = vld [vmem:[%s1019 + $0x6c] sm:$0xf]
  %v2116 = vsel %vm1121, %v1571, %v2115
  %2117 = vst [vmem:[%s1019 + $0x6c] sm:$0xf] %v2116
  %2118 = vst [vmem:[%s1019 + $0x70] sm:$0xf] %v1580
  %v2119 = vld [vmem:[%s1019 + $0x74] sm:$0x1]
  %v2120 = vsel %vm1022, %v1581, %v2119
  %2121 = vst [vmem:[%s1019 + $0x74] sm:$0x1] %v2120
  %v2122 = vld [vmem:[%s1019 + $0x78] sm:$0xf]
  %v2123 = vsel %vm1121, %v1588, %v2122
  %2124 = vst [vmem:[%s1019 + $0x78] sm:$0xf] %v2123
  %2125 = vst [vmem:[%s1019 + $0x7c] sm:$0xf] %v1597
  %v2126 = vld [vmem:[%s1019 + $0x80] sm:$0x1]
  %v2127 = vsel %vm1022, %v1598, %v2126
  %2128 = vst [vmem:[%s1019 + $0x80] sm:$0x1] %v2127
  %v2129 = vld [vmem:[%s1019 + $0x84] sm:$0xf]
  %v2130 = vsel %vm1121, %v1605, %v2129
  %2131 = vst [vmem:[%s1019 + $0x84] sm:$0xf] %v2130
  %2132 = vst [vmem:[%s1019 + $0x88] sm:$0xf] %v1614
  %v2133 = vld [vmem:[%s1019 + $0x8c] sm:$0x1]
  %v2134 = vsel %vm1022, %v1615, %v2133
  %2135 = vst [vmem:[%s1019 + $0x8c] sm:$0x1] %v2134
  %v2136 = vld [vmem:[%s1019 + $0x90] sm:$0xf]
  %v2137 = vsel %vm1121, %v1622, %v2136
  %2138 = vst [vmem:[%s1019 + $0x90] sm:$0xf] %v2137
  %2139 = vst [vmem:[%s1019 + $0x94] sm:$0xf] %v1631
  %v2140 = vld [vmem:[%s1019 + $0x98] sm:$0x1]
  %v2141 = vsel %vm1022, %v1632, %v2140
  %2142 = vst [vmem:[%s1019 + $0x98] sm:$0x1] %v2141
  %v2143 = vld [vmem:[%s1019 + $0x9c] sm:$0xf]
  %v2144 = vsel %vm1121, %v1639, %v2143
  %2145 = vst [vmem:[%s1019 + $0x9c] sm:$0xf] %v2144
  %2146 = vst [vmem:[%s1019 + $0xa0] sm:$0xf] %v1648
  %v2147 = vld [vmem:[%s1019 + $0xa4] sm:$0x1]
  %v2148 = vsel %vm1022, %v1649, %v2147
  %2149 = vst [vmem:[%s1019 + $0xa4] sm:$0x1] %v2148
  %v2150 = vld [vmem:[%s1019 + $0xa8] sm:$0xf]
  %v2151 = vsel %vm1121, %v1656, %v2150
  %2152 = vst [vmem:[%s1019 + $0xa8] sm:$0xf] %v2151
  %2153 = vst [vmem:[%s1019 + $0xac] sm:$0xf] %v1665
  %v2154 = vld [vmem:[%s1019 + $0xb0] sm:$0x1]
  %v2155 = vsel %vm1022, %v1666, %v2154
  %2156 = vst [vmem:[%s1019 + $0xb0] sm:$0x1] %v2155
  %v2157 = vld [vmem:[%s1019 + $0xb4] sm:$0xf]
  %v2158 = vsel %vm1121, %v1673, %v2157
  %2159 = vst [vmem:[%s1019 + $0xb4] sm:$0xf] %v2158
  %2160 = vst [vmem:[%s1019 + $0xb8] sm:$0xf] %v1682
  %v2161 = vld [vmem:[%s1019 + $0xbc] sm:$0x1]
  %v2162 = vsel %vm1022, %v1683, %v2161
  %2163 = vst [vmem:[%s1019 + $0xbc] sm:$0x1] %v2162
  %v2164 = vld [vmem:[%s1019 + $0xd8] sm:$0xf]
  %v2165 = vsel %vm1121, %v1690, %v2164
  %2166 = vst [vmem:[%s1019 + $0xd8] sm:$0xf] %v2165
  %2167 = vst [vmem:[%s1019 + $0xdc] sm:$0xf] %v1699
  %v2168 = vld [vmem:[%s1019 + $0xe0] sm:$0x1]
  %v2169 = vsel %vm1022, %v1700, %v2168
  %2170 = vst [vmem:[%s1019 + $0xe0] sm:$0x1] %v2169
  %v2171 = vld [vmem:[%s1019 + $0xe4] sm:$0xf]
  %v2172 = vsel %vm1121, %v1707, %v2171
  %2173 = vst [vmem:[%s1019 + $0xe4] sm:$0xf] %v2172
  %2174 = vst [vmem:[%s1019 + $0xe8] sm:$0xf] %v1716
  %v2175 = vld [vmem:[%s1019 + $0xec] sm:$0x1]
  %v2176 = vsel %vm1022, %v1717, %v2175
  %2177 = vst [vmem:[%s1019 + $0xec] sm:$0x1] %v2176
  %v2178 = vld [vmem:[%s1019 + $0xf0] sm:$0xf]
  %v2179 = vsel %vm1121, %v1724, %v2178
  %2180 = vst [vmem:[%s1019 + $0xf0] sm:$0xf] %v2179
  %2181 = vst [vmem:[%s1019 + $0xf4] sm:$0xf] %v1733
  %v2182 = vld [vmem:[%s1019 + $0xf8] sm:$0x1]
  %v2183 = vsel %vm1022, %v1734, %v2182
  %2184 = vst [vmem:[%s1019 + $0xf8] sm:$0x1] %v2183
  %v2185 = vld [vmem:[%s1019 + $0xfc] sm:$0xf]
  %v2186 = vsel %vm1121, %v1741, %v2185
  %2187 = vst [vmem:[%s1019 + $0xfc] sm:$0xf] %v2186
  %2188 = vst [vmem:[%s1019 + $0x100] sm:$0xf] %v1750
  %v2189 = vld [vmem:[%s1019 + $0x104] sm:$0x1]
  %v2190 = vsel %vm1022, %v1751, %v2189
  %2191 = vst [vmem:[%s1019 + $0x104] sm:$0x1] %v2190
  %v2192 = vld [vmem:[%s1019 + $0x108] sm:$0xf]
  %v2193 = vsel %vm1121, %v1758, %v2192
  %2194 = vst [vmem:[%s1019 + $0x108] sm:$0xf] %v2193
  %2195 = vst [vmem:[%s1019 + $0x10c] sm:$0xf] %v1767
  %v2196 = vld [vmem:[%s1019 + $0x110] sm:$0x1]
  %v2197 = vsel %vm1022, %v1768, %v2196
  %2198 = vst [vmem:[%s1019 + $0x110] sm:$0x1] %v2197
  %v2199 = vld [vmem:[%s1019 + $0x114] sm:$0xf]
  %v2200 = vsel %vm1121, %v1775, %v2199
  %2201 = vst [vmem:[%s1019 + $0x114] sm:$0xf] %v2200
  %2202 = vst [vmem:[%s1019 + $0x118] sm:$0xf] %v1784
  %v2203 = vld [vmem:[%s1019 + $0x11c] sm:$0x1]
  %v2204 = vsel %vm1022, %v1785, %v2203
  %2205 = vst [vmem:[%s1019 + $0x11c] sm:$0x1] %v2204
  %v2206 = vld [vmem:[%s1019 + $0x120] sm:$0xf]
  %v2207 = vsel %vm1121, %v1792, %v2206
  %2208 = vst [vmem:[%s1019 + $0x120] sm:$0xf] %v2207
  %2209 = vst [vmem:[%s1019 + $0x124] sm:$0xf] %v1801
  %v2210 = vld [vmem:[%s1019 + $0x128] sm:$0x1]
  %v2211 = vsel %vm1022, %v1802, %v2210
  %2212 = vst [vmem:[%s1019 + $0x128] sm:$0x1] %v2211
  %v2213 = vld [vmem:[%s1019 + $0x12c] sm:$0xf]
  %v2214 = vsel %vm1121, %v1809, %v2213
  %2215 = vst [vmem:[%s1019 + $0x12c] sm:$0xf] %v2214
  %2216 = vst [vmem:[%s1019 + $0x130] sm:$0xf] %v1818
  %v2217 = vld [vmem:[%s1019 + $0x134] sm:$0x1]
  %v2218 = vsel %vm1022, %v1819, %v2217
  %2219 = vst [vmem:[%s1019 + $0x134] sm:$0x1] %v2218
  %v2220 = vld [vmem:[%s1019 + $0x138] sm:$0xf]
  %v2221 = vsel %vm1121, %v1826, %v2220
  %2222 = vst [vmem:[%s1019 + $0x138] sm:$0xf] %v2221
  %2223 = vst [vmem:[%s1019 + $0x13c] sm:$0xf] %v1835
  %v2224 = vld [vmem:[%s1019 + $0x140] sm:$0x1]
  %v2225 = vsel %vm1022, %v1836, %v2224
  %2226 = vst [vmem:[%s1019 + $0x140] sm:$0x1] %v2225
  %v2227 = vld [vmem:[%s1019 + $0x144] sm:$0xf]
  %v2228 = vsel %vm1121, %v1843, %v2227
  %2229 = vst [vmem:[%s1019 + $0x144] sm:$0xf] %v2228
  %2230 = vst [vmem:[%s1019 + $0x148] sm:$0xf] %v1852
  %v2231 = vld [vmem:[%s1019 + $0x14c] sm:$0x1]
  %v2232 = vsel %vm1022, %v1853, %v2231
  %2233 = vst [vmem:[%s1019 + $0x14c] sm:$0x1] %v2232
  %v2234 = vld [vmem:[%s1019 + $0x150] sm:$0xf]
  %v2235 = vsel %vm1121, %v1860, %v2234
  %2236 = vst [vmem:[%s1019 + $0x150] sm:$0xf] %v2235
  %2237 = vst [vmem:[%s1019 + $0x154] sm:$0xf] %v1869
  %v2238 = vld [vmem:[%s1019 + $0x158] sm:$0x1]
  %v2239 = vsel %vm1022, %v1870, %v2238
  %2240 = vst [vmem:[%s1019 + $0x158] sm:$0x1] %v2239
  %v2241 = vld [vmem:[%s1019 + $0x15c] sm:$0xf]
  %v2242 = vsel %vm1121, %v1877, %v2241
  %2243 = vst [vmem:[%s1019 + $0x15c] sm:$0xf] %v2242
  %2244 = vst [vmem:[%s1019 + $0x160] sm:$0xf] %v1886
  %v2245 = vld [vmem:[%s1019 + $0x164] sm:$0x1]
  %v2246 = vsel %vm1022, %v1887, %v2245
  %2247 = vst [vmem:[%s1019 + $0x164] sm:$0x1] %v2246
  %v2248 = vld [vmem:[%s1019 + $0x168] sm:$0xf]
  %v2249 = vsel %vm1121, %v1894, %v2248
  %2250 = vst [vmem:[%s1019 + $0x168] sm:$0xf] %v2249
  %2251 = vst [vmem:[%s1019 + $0x16c] sm:$0xf] %v1903
  %v2252 = vld [vmem:[%s1019 + $0x170] sm:$0x1]
  %v2253 = vsel %vm1022, %v1904, %v2252
  %2254 = vst [vmem:[%s1019 + $0x170] sm:$0x1] %v2253
  %v2255 = vld [vmem:[%s1019 + $0x174] sm:$0xf]
  %v2256 = vsel %vm1121, %v1911, %v2255
  %2257 = vst [vmem:[%s1019 + $0x174] sm:$0xf] %v2256
  %2258 = vst [vmem:[%s1019 + $0x178] sm:$0xf] %v1920
  %v2259 = vld [vmem:[%s1019 + $0x17c] sm:$0x1]
  %v2260 = vsel %vm1022, %v1921, %v2259
  %2261 = vst [vmem:[%s1019 + $0x17c] sm:$0x1] %v2260
  %v2262 = vld [vmem:[%s1019 + $0x180] sm:$0xf]
  %v2263 = vsel %vm1121, %v1928, %v2262
  %2264 = vst [vmem:[%s1019 + $0x180] sm:$0xf] %v2263
  %2265 = vst [vmem:[%s1019 + $0x184] sm:$0xf] %v1937
  %v2266 = vld [vmem:[%s1019 + $0x188] sm:$0x1]
  %v2267 = vsel %vm1022, %v1938, %v2266
  %2268 = vst [vmem:[%s1019 + $0x188] sm:$0x1] %v2267
  %v2269 = vld [vmem:[%s1019 + $0x18c] sm:$0xf]
  %v2270 = vsel %vm1121, %v1945, %v2269
  %2271 = vst [vmem:[%s1019 + $0x18c] sm:$0xf] %v2270
  %2272 = vst [vmem:[%s1019 + $0x190] sm:$0xf] %v1954
  %v2273 = vld [vmem:[%s1019 + $0x194] sm:$0x1]
  %v2274 = vsel %vm1022, %v1955, %v2273
  %2275 = vst [vmem:[%s1019 + $0x194] sm:$0x1] %v2274
  %v2276 = vld [vmem:[%s4] sm:$0xff]
  %v2277 = vld [vmem:[%s4 + $0x8] sm:$0x1]
  %v2278 = vld [vmem:[#allocation2] sm:$0xf]
  %v2279 = vld [vmem:[#allocation2 + $0x4] sm:$0xf]
  %v2280 = vld [vmem:[#allocation2 + $0xc] sm:$0xf]
  %v2281 = vld [vmem:[#allocation2 + $0x10] sm:$0xf]
  %v2282 = vld [vmem:[#allocation2 + $0x18] sm:$0xf]
  %v2283 = vld [vmem:[#allocation2 + $0x1c] sm:$0xf]
  %v2284 = vld [vmem:[#allocation2 + $0x24] sm:$0xf]
  %v2285 = vld [vmem:[#allocation2 + $0x28] sm:$0xf]
  %v2286 = vld [vmem:[#allocation2 + $0x30] sm:$0xf]
  %v2287 = vld [vmem:[#allocation2 + $0x34] sm:$0xf]
  %v2288 = vld [vmem:[#allocation2 + $0x3c] sm:$0xf]
  %v2289 = vld [vmem:[#allocation2 + $0x40] sm:$0xf]
  %v2290 = vld [vmem:[#allocation2 + $0x48] sm:$0xf]
  %v2291 = vld [vmem:[#allocation2 + $0x4c] sm:$0xf]
  %v2292 = vld [vmem:[#allocation2 + $0x54] sm:$0xf]
  %v2293 = vld [vmem:[#allocation2 + $0x58] sm:$0xf]
  %v2294 = vld [vmem:[#allocation2 + $0x60] sm:$0xf]
  %v2295 = vld [vmem:[#allocation2 + $0x64] sm:$0xf]
  %v2296 = vld [vmem:[#allocation2 + $0x6c] sm:$0xf]
  %v2297 = vld [vmem:[#allocation2 + $0x70] sm:$0xf]
  %v2298 = vld [vmem:[#allocation2 + $0x78] sm:$0xf]
  %v2299 = vld [vmem:[#allocation2 + $0x7c] sm:$0xf]
  %v2300 = vld [vmem:[#allocation2 + $0x84] sm:$0xf]
  %v2301 = vld [vmem:[#allocation2 + $0x88] sm:$0xf]
  %v2302 = vld [vmem:[#allocation2 + $0x90] sm:$0xf]
  %v2303 = vld [vmem:[#allocation2 + $0x94] sm:$0xf]
  %v2304 = vld [vmem:[#allocation2 + $0x9c] sm:$0xf]
  %v2305 = vld [vmem:[#allocation2 + $0xa0] sm:$0xf]
  %v2306 = vld [vmem:[#allocation2 + $0xa8] sm:$0xf]
  %v2307 = vld [vmem:[#allocation2 + $0xac] sm:$0xf]
  %v2308 = vld [vmem:[#allocation2 + $0xb4] sm:$0xf]
  %v2309 = vld [vmem:[#allocation2 + $0xb8] sm:$0xf]
  %v2310 = vld [vmem:[#allocation2 + $0xd8] sm:$0xf]
  %v2311 = vld [vmem:[#allocation2 + $0xdc] sm:$0xf]
  %v2312 = vld [vmem:[#allocation2 + $0xe4] sm:$0xf]
  %v2313 = vld [vmem:[#allocation2 + $0xe8] sm:$0xf]
  %v2314 = vld [vmem:[#allocation2 + $0xf0] sm:$0xf]
  %v2315 = vld [vmem:[#allocation2 + $0xf4] sm:$0xf]
  %v2316 = vld [vmem:[#allocation2 + $0xfc] sm:$0xf]
  %v2317 = vld [vmem:[#allocation2 + $0x100] sm:$0xf]
  %v2318 = vld [vmem:[#allocation2 + $0x108] sm:$0xf]
  %v2319 = vld [vmem:[#allocation2 + $0x10c] sm:$0xf]
  %v2320 = vld [vmem:[#allocation2 + $0x114] sm:$0xf]
  %v2321 = vld [vmem:[#allocation2 + $0x118] sm:$0xf]
  %v2322 = vld [vmem:[#allocation2 + $0x120] sm:$0xf]
  %v2323 = vld [vmem:[#allocation2 + $0x124] sm:$0xf]
  %v2324 = vld [vmem:[#allocation2 + $0x12c] sm:$0xf]
  %v2325 = vld [vmem:[#allocation2 + $0x130] sm:$0xf]
  %v2326 = vld [vmem:[#allocation2 + $0x138] sm:$0xf]
  %v2327 = vld [vmem:[#allocation2 + $0x13c] sm:$0xf]
  %v2328 = vld [vmem:[#allocation2 + $0x144] sm:$0xf]
  %v2329 = vld [vmem:[#allocation2 + $0x148] sm:$0xf]
  %v2330 = vld [vmem:[#allocation2 + $0x150] sm:$0xf]
  %v2331 = vld [vmem:[#allocation2 + $0x154] sm:$0xf]
  %v2332 = vld [vmem:[#allocation2 + $0x15c] sm:$0xf]
  %v2333 = vld [vmem:[#allocation2 + $0x160] sm:$0xf]
  %v2334 = vld [vmem:[#allocation2 + $0x168] sm:$0xf]
  %v2335 = vld [vmem:[#allocation2 + $0x16c] sm:$0xf]
  %v2336 = vld [vmem:[#allocation2 + $0x174] sm:$0xf]
  %v2337 = vld [vmem:[#allocation2 + $0x178] sm:$0xf]
  %v2338 = vld [vmem:[#allocation2 + $0x180] sm:$0xf]
  %v2339 = vld [vmem:[#allocation2 + $0x184] sm:$0xf]
  %v2340 = vld [vmem:[#allocation2 + $0x18c] sm:$0xf]
  %v2341 = vld [vmem:[#allocation2 + $0x190] sm:$0xf]
  %v2342 = vunpack.c.l.bf16 %v2278
  %v2343 = vunpack.c.l.bf16 %v2279
  %v2344 = vunpack.c.l.bf16 %v2280
  %v2345 = vunpack.c.l.bf16 %v2281
  %v2346 = vunpack.c.l.bf16 %v2282
  %v2347 = vunpack.c.l.bf16 %v2283
  %v2348 = vunpack.c.l.bf16 %v2284
  %v2349 = vunpack.c.l.bf16 %v2285
  %v2350 = vunpack.c.l.bf16 %v2286
  %v2351 = vunpack.c.l.bf16 %v2287
  %v2352 = vunpack.c.l.bf16 %v2288
  %v2353 = vunpack.c.l.bf16 %v2289
  %v2354 = vunpack.c.l.bf16 %v2290
  %v2355 = vunpack.c.l.bf16 %v2291
  %v2356 = vunpack.c.l.bf16 %v2292
  %v2357 = vunpack.c.l.bf16 %v2293
  %v2358 = vunpack.c.l.bf16 %v2294
  %v2359 = vunpack.c.l.bf16 %v2295
  %v2360 = vunpack.c.l.bf16 %v2296
  %v2361 = vunpack.c.l.bf16 %v2297
  %v2362 = vunpack.c.l.bf16 %v2298
  %v2363 = vunpack.c.l.bf16 %v2299
  %v2364 = vunpack.c.l.bf16 %v2300
  %v2365 = vunpack.c.l.bf16 %v2301
  %v2366 = vunpack.c.l.bf16 %v2302
  %v2367 = vunpack.c.l.bf16 %v2303
  %v2368 = vunpack.c.l.bf16 %v2304
  %v2369 = vunpack.c.l.bf16 %v2305
  %v2370 = vunpack.c.l.bf16 %v2306
  %v2371 = vunpack.c.l.bf16 %v2307
  %v2372 = vunpack.c.l.bf16 %v2308
  %v2373 = vunpack.c.l.bf16 %v2309
  %v2374 = vunpack.c.l.bf16 %v2310
  %v2375 = vunpack.c.l.bf16 %v2311
  %v2376 = vunpack.c.l.bf16 %v2312
  %v2377 = vunpack.c.l.bf16 %v2313
  %v2378 = vunpack.c.l.bf16 %v2314
  %v2379 = vunpack.c.l.bf16 %v2315
  %v2380 = vunpack.c.l.bf16 %v2316
  %v2381 = vunpack.c.l.bf16 %v2317
  %v2382 = vunpack.c.l.bf16 %v2318
  %v2383 = vunpack.c.l.bf16 %v2319
  %v2384 = vunpack.c.l.bf16 %v2320
  %v2385 = vunpack.c.l.bf16 %v2321
  %v2386 = vunpack.c.l.bf16 %v2322
  %v2387 = vunpack.c.l.bf16 %v2323
  %v2388 = vunpack.c.l.bf16 %v2324
  %v2389 = vunpack.c.l.bf16 %v2325
  %v2390 = vunpack.c.l.bf16 %v2326
  %v2391 = vunpack.c.l.bf16 %v2327
  %v2392 = vunpack.c.l.bf16 %v2328
  %v2393 = vunpack.c.l.bf16 %v2329
  %v2394 = vunpack.c.l.bf16 %v2330
  %v2395 = vunpack.c.l.bf16 %v2331
  %v2396 = vunpack.c.l.bf16 %v2332
  %v2397 = vunpack.c.l.bf16 %v2333
  %v2398 = vunpack.c.l.bf16 %v2334
  %v2399 = vunpack.c.l.bf16 %v2335
  %v2400 = vunpack.c.l.bf16 %v2336
  %v2401 = vunpack.c.l.bf16 %v2337
  %v2402 = vunpack.c.l.bf16 %v2338
  %v2403 = vunpack.c.l.bf16 %v2339
  %v2404 = vunpack.c.l.bf16 %v2340
  %v2405 = vunpack.c.l.bf16 %v2341
  %v2406 = vlaneseq
  %v2407 = vshrl.u32 %v2406, 7
  %v2408 = vsub.s32 0, %v2407
  %v2409 = vrot.slane %v2276, %v2408
  %v2410 = vmul.f32 %v2342, %v2409
  %v2411 = vmul.f32 %v2343, %v2409
  %v2412 = vmul.f32 %v2344, %v2409
  %v2413 = vmul.f32 %v2345, %v2409
  %v2414 = vmul.f32 %v2346, %v2409
  %v2415 = vmul.f32 %v2347, %v2409
  %v2416 = vmul.f32 %v2348, %v2409
  %v2417 = vmul.f32 %v2349, %v2409
  %v2418 = vmul.f32 %v2350, %v2409
  %v2419 = vmul.f32 %v2351, %v2409
  %v2420 = vmul.f32 %v2352, %v2409
  %v2421 = vmul.f32 %v2353, %v2409
  %v2422 = vmul.f32 %v2354, %v2409
  %v2423 = vmul.f32 %v2355, %v2409
  %v2424 = vmul.f32 %v2356, %v2409
  %v2425 = vmul.f32 %v2357, %v2409
  %v2426 = vmul.f32 %v2358, %v2409
  %v2427 = vmul.f32 %v2359, %v2409
  %v2428 = vmul.f32 %v2360, %v2409
  %v2429 = vmul.f32 %v2361, %v2409
  %v2430 = vmul.f32 %v2362, %v2409
  %v2431 = vmul.f32 %v2363, %v2409
  %v2432 = vmul.f32 %v2364, %v2409
  %v2433 = vmul.f32 %v2365, %v2409
  %v2434 = vmul.f32 %v2366, %v2409
  %v2435 = vmul.f32 %v2367, %v2409
  %v2436 = vmul.f32 %v2368, %v2409
  %v2437 = vmul.f32 %v2369, %v2409
  %v2438 = vmul.f32 %v2370, %v2409
  %v2439 = vmul.f32 %v2371, %v2409
  %v2440 = vmul.f32 %v2372, %v2409
  %v2441 = vmul.f32 %v2373, %v2409
  %v2442 = vmul.f32 %v2374, %v2409
  %v2443 = vmul.f32 %v2375, %v2409
  %v2444 = vmul.f32 %v2376, %v2409
  %v2445 = vmul.f32 %v2377, %v2409
  %v2446 = vmul.f32 %v2378, %v2409
  %v2447 = vmul.f32 %v2379, %v2409
  %v2448 = vmul.f32 %v2380, %v2409
  %v2449 = vmul.f32 %v2381, %v2409
  %v2450 = vmul.f32 %v2382, %v2409
  %v2451 = vmul.f32 %v2383, %v2409
  %v2452 = vmul.f32 %v2384, %v2409
  %v2453 = vmul.f32 %v2385, %v2409
  %v2454 = vmul.f32 %v2386, %v2409
  %v2455 = vmul.f32 %v2387, %v2409
  %v2456 = vmul.f32 %v2388, %v2409
  %v2457 = vmul.f32 %v2389, %v2409
  %v2458 = vmul.f32 %v2390, %v2409
  %v2459 = vmul.f32 %v2391, %v2409
  %v2460 = vmul.f32 %v2392, %v2409
  %v2461 = vmul.f32 %v2393, %v2409
  %v2462 = vmul.f32 %v2394, %v2409
  %v2463 = vmul.f32 %v2395, %v2409
  %v2464 = vmul.f32 %v2396, %v2409
  %v2465 = vmul.f32 %v2397, %v2409
  %v2466 = vmul.f32 %v2398, %v2409
  %v2467 = vmul.f32 %v2399, %v2409
  %v2468 = vmul.f32 %v2400, %v2409
  %v2469 = vmul.f32 %v2401, %v2409
  %v2470 = vmul.f32 %v2402, %v2409
  %v2471 = vmul.f32 %v2403, %v2409
  %v2472 = vmul.f32 %v2404, %v2409
  %v2473 = vmul.f32 %v2405, %v2409
  %v2474 = vld [vmem:[#allocation2 + $0x8] sm:$0x1]
  %v2475 = vld [vmem:[#allocation2 + $0x14] sm:$0x1]
  %v2476 = vld [vmem:[#allocation2 + $0x20] sm:$0x1]
  %v2477 = vld [vmem:[#allocation2 + $0x2c] sm:$0x1]
  %v2478 = vld [vmem:[#allocation2 + $0x38] sm:$0x1]
  %v2479 = vld [vmem:[#allocation2 + $0x44] sm:$0x1]
  %v2480 = vld [vmem:[#allocation2 + $0x50] sm:$0x1]
  %v2481 = vld [vmem:[#allocation2 + $0x5c] sm:$0x1]
  %v2482 = vld [vmem:[#allocation2 + $0x68] sm:$0x1]
  %v2483 = vld [vmem:[#allocation2 + $0x74] sm:$0x1]
  %v2484 = vld [vmem:[#allocation2 + $0x80] sm:$0x1]
  %v2485 = vld [vmem:[#allocation2 + $0x8c] sm:$0x1]
  %v2486 = vld [vmem:[#allocation2 + $0x98] sm:$0x1]
  %v2487 = vld [vmem:[#allocation2 + $0xa4] sm:$0x1]
  %v2488 = vld [vmem:[#allocation2 + $0xb0] sm:$0x1]
  %v2489 = vld [vmem:[#allocation2 + $0xbc] sm:$0x1]
  %v2490 = vld [vmem:[#allocation2 + $0xe0] sm:$0x1]
  %v2491 = vld [vmem:[#allocation2 + $0xec] sm:$0x1]
  %v2492 = vld [vmem:[#allocation2 + $0xf8] sm:$0x1]
  %v2493 = vld [vmem:[#allocation2 + $0x104] sm:$0x1]
  %v2494 = vld [vmem:[#allocation2 + $0x110] sm:$0x1]
  %v2495 = vld [vmem:[#allocation2 + $0x11c] sm:$0x1]
  %v2496 = vld [vmem:[#allocation2 + $0x128] sm:$0x1]
  %v2497 = vld [vmem:[#allocation2 + $0x134] sm:$0x1]
  %v2498 = vld [vmem:[#allocation2 + $0x140] sm:$0x1]
  %v2499 = vld [vmem:[#allocation2 + $0x14c] sm:$0x1]
  %v2500 = vld [vmem:[#allocation2 + $0x158] sm:$0x1]
  %v2501 = vld [vmem:[#allocation2 + $0x164] sm:$0x1]
  %v2502 = vld [vmem:[#allocation2 + $0x170] sm:$0x1]
  %v2503 = vld [vmem:[#allocation2 + $0x17c] sm:$0x1]
  %v2504 = vld [vmem:[#allocation2 + $0x188] sm:$0x1]
  %v2505 = vld [vmem:[#allocation2 + $0x194] sm:$0x1]
  %v2506 = vunpack.c.l.bf16 %v2474
  %v2507 = vunpack.c.l.bf16 %v2475
  %v2508 = vunpack.c.l.bf16 %v2476
  %v2509 = vunpack.c.l.bf16 %v2477
  %v2510 = vunpack.c.l.bf16 %v2478
  %v2511 = vunpack.c.l.bf16 %v2479
  %v2512 = vunpack.c.l.bf16 %v2480
  %v2513 = vunpack.c.l.bf16 %v2481
  %v2514 = vunpack.c.l.bf16 %v2482
  %v2515 = vunpack.c.l.bf16 %v2483
  %v2516 = vunpack.c.l.bf16 %v2484
  %v2517 = vunpack.c.l.bf16 %v2485
  %v2518 = vunpack.c.l.bf16 %v2486
  %v2519 = vunpack.c.l.bf16 %v2487
  %v2520 = vunpack.c.l.bf16 %v2488
  %v2521 = vunpack.c.l.bf16 %v2489
  %v2522 = vunpack.c.l.bf16 %v2490
  %v2523 = vunpack.c.l.bf16 %v2491
  %v2524 = vunpack.c.l.bf16 %v2492
  %v2525 = vunpack.c.l.bf16 %v2493
  %v2526 = vunpack.c.l.bf16 %v2494
  %v2527 = vunpack.c.l.bf16 %v2495
  %v2528 = vunpack.c.l.bf16 %v2496
  %v2529 = vunpack.c.l.bf16 %v2497
  %v2530 = vunpack.c.l.bf16 %v2498
  %v2531 = vunpack.c.l.bf16 %v2499
  %v2532 = vunpack.c.l.bf16 %v2500
  %v2533 = vunpack.c.l.bf16 %v2501
  %v2534 = vunpack.c.l.bf16 %v2502
  %v2535 = vunpack.c.l.bf16 %v2503
  %v2536 = vunpack.c.l.bf16 %v2504
  %v2537 = vunpack.c.l.bf16 %v2505
  %v2538 = vlaneseq
  %v2539 = vshrl.u32 %v2538, 7
  %v2540 = vsub.s32 1, %v2539
  %v2541 = vrot.slane %v2276, %v2540
  %v2542 = vmul.f32 %v2342, %v2541
  %v2543 = vmul.f32 %v2343, %v2541
  %v2544 = vmul.f32 %v2506, %v2541
  %v2545 = vmul.f32 %v2344, %v2541
  %v2546 = vmul.f32 %v2345, %v2541
  %v2547 = vmul.f32 %v2507, %v2541
  %v2548 = vmul.f32 %v2346, %v2541
  %v2549 = vmul.f32 %v2347, %v2541
  %v2550 = vmul.f32 %v2508, %v2541
  %v2551 = vmul.f32 %v2348, %v2541
  %v2552 = vmul.f32 %v2349, %v2541
  %v2553 = vmul.f32 %v2509, %v2541
  %v2554 = vmul.f32 %v2350, %v2541
  %v2555 = vmul.f32 %v2351, %v2541
  %v2556 = vmul.f32 %v2510, %v2541
  %v2557 = vmul.f32 %v2352, %v2541
  %v2558 = vmul.f32 %v2353, %v2541
  %v2559 = vmul.f32 %v2511, %v2541
  %v2560 = vmul.f32 %v2354, %v2541
  %v2561 = vmul.f32 %v2355, %v2541
  %v2562 = vmul.f32 %v2512, %v2541
  %v2563 = vmul.f32 %v2356, %v2541
  %v2564 = vmul.f32 %v2357, %v2541
  %v2565 = vmul.f32 %v2513, %v2541
  %v2566 = vmul.f32 %v2358, %v2541
  %v2567 = vmul.f32 %v2359, %v2541
  %v2568 = vmul.f32 %v2514, %v2541
  %v2569 = vmul.f32 %v2360, %v2541
  %v2570 = vmul.f32 %v2361, %v2541
  %v2571 = vmul.f32 %v2515, %v2541
  %v2572 = vmul.f32 %v2362, %v2541
  %v2573 = vmul.f32 %v2363, %v2541
  %v2574 = vmul.f32 %v2516, %v2541
  %v2575 = vmul.f32 %v2364, %v2541
  %v2576 = vmul.f32 %v2365, %v2541
  %v2577 = vmul.f32 %v2517, %v2541
  %v2578 = vmul.f32 %v2366, %v2541
  %v2579 = vmul.f32 %v2367, %v2541
  %v2580 = vmul.f32 %v2518, %v2541
  %v2581 = vmul.f32 %v2368, %v2541
  %v2582 = vmul.f32 %v2369, %v2541
  %v2583 = vmul.f32 %v2519, %v2541
  %v2584 = vmul.f32 %v2370, %v2541
  %v2585 = vmul.f32 %v2371, %v2541
  %v2586 = vmul.f32 %v2520, %v2541
  %v2587 = vmul.f32 %v2372, %v2541
  %v2588 = vmul.f32 %v2373, %v2541
  %v2589 = vmul.f32 %v2521, %v2541
  %v2590 = vmul.f32 %v2374, %v2541
  %v2591 = vmul.f32 %v2375, %v2541
  %v2592 = vmul.f32 %v2522, %v2541
  %v2593 = vmul.f32 %v2376, %v2541
  %v2594 = vmul.f32 %v2377, %v2541
  %v2595 = vmul.f32 %v2523, %v2541
  %v2596 = vmul.f32 %v2378, %v2541
  %v2597 = vmul.f32 %v2379, %v2541
  %v2598 = vmul.f32 %v2524, %v2541
  %v2599 = vmul.f32 %v2380, %v2541
  %v2600 = vmul.f32 %v2381, %v2541
  %v2601 = vmul.f32 %v2525, %v2541
  %v2602 = vmul.f32 %v2382, %v2541
  %v2603 = vmul.f32 %v2383, %v2541
  %v2604 = vmul.f32 %v2526, %v2541
  %v2605 = vmul.f32 %v2384, %v2541
  %v2606 = vmul.f32 %v2385, %v2541
  %v2607 = vmul.f32 %v2527, %v2541
  %v2608 = vmul.f32 %v2386, %v2541
  %v2609 = vmul.f32 %v2387, %v2541
  %v2610 = vmul.f32 %v2528, %v2541
  %v2611 = vmul.f32 %v2388, %v2541
  %v2612 = vmul.f32 %v2389, %v2541
  %v2613 = vmul.f32 %v2529, %v2541
  %v2614 = vmul.f32 %v2390, %v2541
  %v2615 = vmul.f32 %v2391, %v2541
  %v2616 = vmul.f32 %v2530, %v2541
  %v2617 = vmul.f32 %v2392, %v2541
  %v2618 = vmul.f32 %v2393, %v2541
  %v2619 = vmul.f32 %v2531, %v2541
  %v2620 = vmul.f32 %v2394, %v2541
  %v2621 = vmul.f32 %v2395, %v2541
  %v2622 = vmul.f32 %v2532, %v2541
  %v2623 = vmul.f32 %v2396, %v2541
  %v2624 = vmul.f32 %v2397, %v2541
  %v2625 = vmul.f32 %v2533, %v2541
  %v2626 = vmul.f32 %v2398, %v2541
  %v2627 = vmul.f32 %v2399, %v2541
  %v2628 = vmul.f32 %v2534, %v2541
  %v2629 = vmul.f32 %v2400, %v2541
  %v2630 = vmul.f32 %v2401, %v2541
  %v2631 = vmul.f32 %v2535, %v2541
  %v2632 = vmul.f32 %v2402, %v2541
  %v2633 = vmul.f32 %v2403, %v2541
  %v2634 = vmul.f32 %v2536, %v2541
  %v2635 = vmul.f32 %v2404, %v2541
  %v2636 = vmul.f32 %v2405, %v2541
  %v2637 = vmul.f32 %v2537, %v2541
  %vm2734 = vcmask 1046528
  %v2735 = vrot.slane %v2542, 1
  %v2736 = vrot.slane %v2543, 1
  %v2737 = vsel %vm2734, %v2735, %v2736
  %v2738 = vrot.slane %v2544, 1
  %v2739 = vsel %vm2734, %v2736, %v2738
  %v2740 = vrot.slane %v2545, 1
  %v2741 = vrot.slane %v2546, 1
  %v2742 = vsel %vm2734, %v2740, %v2741
  %v2743 = vrot.slane %v2547, 1
  %v2744 = vsel %vm2734, %v2741, %v2743
  %v2745 = vrot.slane %v2548, 1
  %v2746 = vrot.slane %v2549, 1
  %v2747 = vsel %vm2734, %v2745, %v2746
  %v2748 = vrot.slane %v2550, 1
  %v2749 = vsel %vm2734, %v2746, %v2748
  %v2750 = vrot.slane %v2551, 1
  %v2751 = vrot.slane %v2552, 1
  %v2752 = vsel %vm2734, %v2750, %v2751
  %v2753 = vrot.slane %v2553, 1
  %v2754 = vsel %vm2734, %v2751, %v2753
  %v2755 = vrot.slane %v2554, 1
  %v2756 = vrot.slane %v2555, 1
  %v2757 = vsel %vm2734, %v2755, %v2756
  %v2758 = vrot.slane %v2556, 1
  %v2759 = vsel %vm2734, %v2756, %v2758
  %v2760 = vrot.slane %v2557, 1
  %v2761 = vrot.slane %v2558, 1
  %v2762 = vsel %vm2734, %v2760, %v2761
  %v2763 = vrot.slane %v2559, 1
  %v2764 = vsel %vm2734, %v2761, %v2763
  %v2765 = vrot.slane %v2560, 1
  %v2766 = vrot.slane %v2561, 1
  %v2767 = vsel %vm2734, %v2765, %v2766
  %v2768 = vrot.slane %v2562, 1
  %v2769 = vsel %vm2734, %v2766, %v2768
  %v2770 = vrot.slane %v2563, 1
  %v2771 = vrot.slane %v2564, 1
  %v2772 = vsel %vm2734, %v2770, %v2771
  %v2773 = vrot.slane %v2565, 1
  %v2774 = vsel %vm2734, %v2771, %v2773
  %v2775 = vrot.slane %v2566, 1
  %v2776 = vrot.slane %v2567, 1
  %v2777 = vsel %vm2734, %v2775, %v2776
  %v2778 = vrot.slane %v2568, 1
  %v2779 = vsel %vm2734, %v2776, %v2778
  %v2780 = vrot.slane %v2569, 1
  %v2781 = vrot.slane %v2570, 1
  %v2782 = vsel %vm2734, %v2780, %v2781
  %v2783 = vrot.slane %v2571, 1
  %v2784 = vsel %vm2734, %v2781, %v2783
  %v2785 = vrot.slane %v2572, 1
  %v2786 = vrot.slane %v2573, 1
  %v2787 = vsel %vm2734, %v2785, %v2786
  %v2788 = vrot.slane %v2574, 1
  %v2789 = vsel %vm2734, %v2786, %v2788
  %v2790 = vrot.slane %v2575, 1
  %v2791 = vrot.slane %v2576, 1
  %v2792 = vsel %vm2734, %v2790, %v2791
  %v2793 = vrot.slane %v2577, 1
  %v2794 = vsel %vm2734, %v2791, %v2793
  %v2795 = vrot.slane %v2578, 1
  %v2796 = vrot.slane %v2579, 1
  %v2797 = vsel %vm2734, %v2795, %v2796
  %v2798 = vrot.slane %v2580, 1
  %v2799 = vsel %vm2734, %v2796, %v2798
  %v2800 = vrot.slane %v2581, 1
  %v2801 = vrot.slane %v2582, 1
  %v2802 = vsel %vm2734, %v2800, %v2801
  %v2803 = vrot.slane %v2583, 1
  %v2804 = vsel %vm2734, %v2801, %v2803
  %v2805 = vrot.slane %v2584, 1
  %v2806 = vrot.slane %v2585, 1
  %v2807 = vsel %vm2734, %v2805, %v2806
  %v2808 = vrot.slane %v2586, 1
  %v2809 = vsel %vm2734, %v2806, %v2808
  %v2810 = vrot.slane %v2587, 1
  %v2811 = vrot.slane %v2588, 1
  %v2812 = vsel %vm2734, %v2810, %v2811
  %v2813 = vrot.slane %v2589, 1
  %v2814 = vsel %vm2734, %v2811, %v2813
  %v2815 = vrot.slane %v2590, 1
  %v2816 = vrot.slane %v2591, 1
  %v2817 = vsel %vm2734, %v2815, %v2816
  %v2818 = vrot.slane %v2592, 1
  %v2819 = vsel %vm2734, %v2816, %v2818
  %v2820 = vrot.slane %v2593, 1
  %v2821 = vrot.slane %v2594, 1
  %v2822 = vsel %vm2734, %v2820, %v2821
  %v2823 = vrot.slane %v2595, 1
  %v2824 = vsel %vm2734, %v2821, %v2823
  %v2825 = vrot.slane %v2596, 1
  %v2826 = vrot.slane %v2597, 1
  %v2827 = vsel %vm2734, %v2825, %v2826
  %v2828 = vrot.slane %v2598, 1
  %v2829 = vsel %vm2734, %v2826, %v2828
  %v2830 = vrot.slane %v2599, 1
  %v2831 = vrot.slane %v2600, 1
  %v2832 = vsel %vm2734, %v2830, %v2831
  %v2833 = vrot.slane %v2601, 1
  %v2834 = vsel %vm2734, %v2831, %v2833
  %v2835 = vrot.slane %v2602, 1
  %v2836 = vrot.slane %v2603, 1
  %v2837 = vsel %vm2734, %v2835, %v2836
  %v2838 = vrot.slane %v2604, 1
  %v2839 = vsel %vm2734, %v2836, %v2838
  %v2840 = vrot.slane %v2605, 1
  %v2841 = vrot.slane %v2606, 1
  %v2842 = vsel %vm2734, %v2840, %v2841
  %v2843 = vrot.slane %v2607, 1
  %v2844 = vsel %vm2734, %v2841, %v2843
  %v2845 = vrot.slane %v2608, 1
  %v2846 = vrot.slane %v2609, 1
  %v2847 = vsel %vm2734, %v2845, %v2846
  %v2848 = vrot.slane %v2610, 1
  %v2849 = vsel %vm2734, %v2846, %v2848
  %v2850 = vrot.slane %v2611, 1
  %v2851 = vrot.slane %v2612, 1
  %v2852 = vsel %vm2734, %v2850, %v2851
  %v2853 = vrot.slane %v2613, 1
  %v2854 = vsel %vm2734, %v2851, %v2853
  %v2855 = vrot.slane %v2614, 1
  %v2856 = vrot.slane %v2615, 1
  %v2857 = vsel %vm2734, %v2855, %v2856
  %v2858 = vrot.slane %v2616, 1
  %v2859 = vsel %vm2734, %v2856, %v2858
  %v2860 = vrot.slane %v2617, 1
  %v2861 = vrot.slane %v2618, 1
  %v2862 = vsel %vm2734, %v2860, %v2861
  %v2863 = vrot.slane %v2619, 1
  %v2864 = vsel %vm2734, %v2861, %v2863
  %v2865 = vrot.slane %v2620, 1
  %v2866 = vrot.slane %v2621, 1
  %v2867 = vsel %vm2734, %v2865, %v2866
  %v2868 = vrot.slane %v2622, 1
  %v2869 = vsel %vm2734, %v2866, %v2868
  %v2870 = vrot.slane %v2623, 1
  %v2871 = vrot.slane %v2624, 1
  %v2872 = vsel %vm2734, %v2870, %v2871
  %v2873 = vrot.slane %v2625, 1
  %v2874 = vsel %vm2734, %v2871, %v2873
  %v2875 = vrot.slane %v2626, 1
  %v2876 = vrot.slane %v2627, 1
  %v2877 = vsel %vm2734, %v2875, %v2876
  %v2878 = vrot.slane %v2628, 1
  %v2879 = vsel %vm2734, %v2876, %v2878
  %v2880 = vrot.slane %v2629, 1
  %v2881 = vrot.slane %v2630, 1
  %v2882 = vsel %vm2734, %v2880, %v2881
  %v2883 = vrot.slane %v2631, 1
  %v2884 = vsel %vm2734, %v2881, %v2883
  %v2885 = vrot.slane %v2632, 1
  %v2886 = vrot.slane %v2633, 1
  %v2887 = vsel %vm2734, %v2885, %v2886
  %v2888 = vrot.slane %v2634, 1
  %v2889 = vsel %vm2734, %v2886, %v2888
  %v2890 = vrot.slane %v2635, 1
  %v2891 = vrot.slane %v2636, 1
  %v2892 = vsel %vm2734, %v2890, %v2891
  %v2893 = vrot.slane %v2637, 1
  %v2894 = vsel %vm2734, %v2891, %v2893
  %v2959 = vadd.f32 %v2410, %v2737
  %v2960 = vadd.f32 %v2411, %v2739
  %v2961 = vadd.f32 %v2412, %v2742
  %v2962 = vadd.f32 %v2413, %v2744
  %v2963 = vadd.f32 %v2414, %v2747
  %v2964 = vadd.f32 %v2415, %v2749
  %v2965 = vadd.f32 %v2416, %v2752
  %v2966 = vadd.f32 %v2417, %v2754
  %v2967 = vadd.f32 %v2418, %v2757
  %v2968 = vadd.f32 %v2419, %v2759
  %v2969 = vadd.f32 %v2420, %v2762
  %v2970 = vadd.f32 %v2421, %v2764
  %v2971 = vadd.f32 %v2422, %v2767
  %v2972 = vadd.f32 %v2423, %v2769
  %v2973 = vadd.f32 %v2424, %v2772
  %v2974 = vadd.f32 %v2425, %v2774
  %v2975 = vadd.f32 %v2426, %v2777
  %v2976 = vadd.f32 %v2427, %v2779
  %v2977 = vadd.f32 %v2428, %v2782
  %v2978 = vadd.f32 %v2429, %v2784
  %v2979 = vadd.f32 %v2430, %v2787
  %v2980 = vadd.f32 %v2431, %v2789
  %v2981 = vadd.f32 %v2432, %v2792
  %v2982 = vadd.f32 %v2433, %v2794
  %v2983 = vadd.f32 %v2434, %v2797
  %v2984 = vadd.f32 %v2435, %v2799
  %v2985 = vadd.f32 %v2436, %v2802
  %v2986 = vadd.f32 %v2437, %v2804
  %v2987 = vadd.f32 %v2438, %v2807
  %v2988 = vadd.f32 %v2439, %v2809
  %v2989 = vadd.f32 %v2440, %v2812
  %v2990 = vadd.f32 %v2441, %v2814
  %v2991 = vadd.f32 %v2442, %v2817
  %v2992 = vadd.f32 %v2443, %v2819
  %v2993 = vadd.f32 %v2444, %v2822
  %v2994 = vadd.f32 %v2445, %v2824
  %v2995 = vadd.f32 %v2446, %v2827
  %v2996 = vadd.f32 %v2447, %v2829
  %v2997 = vadd.f32 %v2448, %v2832
  %v2998 = vadd.f32 %v2449, %v2834
  %v2999 = vadd.f32 %v2450, %v2837
  %v3000 = vadd.f32 %v2451, %v2839
  %v3001 = vadd.f32 %v2452, %v2842
  %v3002 = vadd.f32 %v2453, %v2844
  %v3003 = vadd.f32 %v2454, %v2847
  %v3004 = vadd.f32 %v2455, %v2849
  %v3005 = vadd.f32 %v2456, %v2852
  %v3006 = vadd.f32 %v2457, %v2854
  %v3007 = vadd.f32 %v2458, %v2857
  %v3008 = vadd.f32 %v2459, %v2859
  %v3009 = vadd.f32 %v2460, %v2862
  %v3010 = vadd.f32 %v2461, %v2864
  %v3011 = vadd.f32 %v2462, %v2867
  %v3012 = vadd.f32 %v2463, %v2869
  %v3013 = vadd.f32 %v2464, %v2872
  %v3014 = vadd.f32 %v2465, %v2874
  %v3015 = vadd.f32 %v2466, %v2877
  %v3016 = vadd.f32 %v2467, %v2879
  %v3017 = vadd.f32 %v2468, %v2882
  %v3018 = vadd.f32 %v2469, %v2884
  %v3019 = vadd.f32 %v2470, %v2887
  %v3020 = vadd.f32 %v2471, %v2889
  %v3021 = vadd.f32 %v2472, %v2892
  %v3022 = vadd.f32 %v2473, %v2894
  %v3023 = vld [vmem:[#allocation2] sm:$0xe]
  %v3024 = vld [vmem:[#allocation2 + $0xc] sm:$0xe]
  %v3025 = vld [vmem:[#allocation2 + $0x18] sm:$0xe]
  %v3026 = vld [vmem:[#allocation2 + $0x24] sm:$0xe]
  %v3027 = vld [vmem:[#allocation2 + $0x30] sm:$0xe]
  %v3028 = vld [vmem:[#allocation2 + $0x3c] sm:$0xe]
  %v3029 = vld [vmem:[#allocation2 + $0x48] sm:$0xe]
  %v3030 = vld [vmem:[#allocation2 + $0x54] sm:$0xe]
  %v3031 = vld [vmem:[#allocation2 + $0x60] sm:$0xe]
  %v3032 = vld [vmem:[#allocation2 + $0x6c] sm:$0xe]
  %v3033 = vld [vmem:[#allocation2 + $0x78] sm:$0xe]
  %v3034 = vld [vmem:[#allocation2 + $0x84] sm:$0xe]
  %v3035 = vld [vmem:[#allocation2 + $0x90] sm:$0xe]
  %v3036 = vld [vmem:[#allocation2 + $0x9c] sm:$0xe]
  %v3037 = vld [vmem:[#allocation2 + $0xa8] sm:$0xe]
  %v3038 = vld [vmem:[#allocation2 + $0xb4] sm:$0xe]
  %v3039 = vld [vmem:[#allocation2 + $0xd8] sm:$0xe]
  %v3040 = vld [vmem:[#allocation2 + $0xe4] sm:$0xe]
  %v3041 = vld [vmem:[#allocation2 + $0xf0] sm:$0xe]
  %v3042 = vld [vmem:[#allocation2 + $0xfc] sm:$0xe]
  %v3043 = vld [vmem:[#allocation2 + $0x108] sm:$0xe]
  %v3044 = vld [vmem:[#allocation2 + $0x114] sm:$0xe]
  %v3045 = vld [vmem:[#allocation2 + $0x120] sm:$0xe]
  %v3046 = vld [vmem:[#allocation2 + $0x12c] sm:$0xe]
  %v3047 = vld [vmem:[#allocation2 + $0x138] sm:$0xe]
  %v3048 = vld [vmem:[#allocation2 + $0x144] sm:$0xe]
  %v3049 = vld [vmem:[#allocation2 + $0x150] sm:$0xe]
  %v3050 = vld [vmem:[#allocation2 + $0x15c] sm:$0xe]
  %v3051 = vld [vmem:[#allocation2 + $0x168] sm:$0xe]
  %v3052 = vld [vmem:[#allocation2 + $0x174] sm:$0xe]
  %v3053 = vld [vmem:[#allocation2 + $0x180] sm:$0xe]
  %v3054 = vld [vmem:[#allocation2 + $0x18c] sm:$0xe]
  %v3055 = vunpack.c.l.bf16 %v3023
  %v3056 = vunpack.c.l.bf16 %v3024
  %v3057 = vunpack.c.l.bf16 %v3025
  %v3058 = vunpack.c.l.bf16 %v3026
  %v3059 = vunpack.c.l.bf16 %v3027
  %v3060 = vunpack.c.l.bf16 %v3028
  %v3061 = vunpack.c.l.bf16 %v3029
  %v3062 = vunpack.c.l.bf16 %v3030
  %v3063 = vunpack.c.l.bf16 %v3031
  %v3064 = vunpack.c.l.bf16 %v3032
  %v3065 = vunpack.c.l.bf16 %v3033
  %v3066 = vunpack.c.l.bf16 %v3034
  %v3067 = vunpack.c.l.bf16 %v3035
  %v3068 = vunpack.c.l.bf16 %v3036
  %v3069 = vunpack.c.l.bf16 %v3037
  %v3070 = vunpack.c.l.bf16 %v3038
  %v3071 = vunpack.c.l.bf16 %v3039
  %v3072 = vunpack.c.l.bf16 %v3040
  %v3073 = vunpack.c.l.bf16 %v3041
  %v3074 = vunpack.c.l.bf16 %v3042
  %v3075 = vunpack.c.l.bf16 %v3043
  %v3076 = vunpack.c.l.bf16 %v3044
  %v3077 = vunpack.c.l.bf16 %v3045
  %v3078 = vunpack.c.l.bf16 %v3046
  %v3079 = vunpack.c.l.bf16 %v3047
  %v3080 = vunpack.c.l.bf16 %v3048
  %v3081 = vunpack.c.l.bf16 %v3049
  %v3082 = vunpack.c.l.bf16 %v3050
  %v3083 = vunpack.c.l.bf16 %v3051
  %v3084 = vunpack.c.l.bf16 %v3052
  %v3085 = vunpack.c.l.bf16 %v3053
  %v3086 = vunpack.c.l.bf16 %v3054
  %v3087 = vlaneseq
  %v3088 = vshrl.u32 %v3087, 7
  %v3089 = vsub.s32 2, %v3088
  %v3090 = vrot.slane %v2276, %v3089
  %v3091 = vmul.f32 %v3055, %v3090
  %v3092 = vmul.f32 %v2343, %v3090
  %v3093 = vmul.f32 %v2506, %v3090
  %v3094 = vmul.f32 %v3056, %v3090
  %v3095 = vmul.f32 %v2345, %v3090
  %v3096 = vmul.f32 %v2507, %v3090
  %v3097 = vmul.f32 %v3057, %v3090
  %v3098 = vmul.f32 %v2347, %v3090
  %v3099 = vmul.f32 %v2508, %v3090
  %v3100 = vmul.f32 %v3058, %v3090
  %v3101 = vmul.f32 %v2349, %v3090
  %v3102 = vmul.f32 %v2509, %v3090
  %v3103 = vmul.f32 %v3059, %v3090
  %v3104 = vmul.f32 %v2351, %v3090
  %v3105 = vmul.f32 %v2510, %v3090
  %v3106 = vmul.f32 %v3060, %v3090
  %v3107 = vmul.f32 %v2353, %v3090
  %v3108 = vmul.f32 %v2511, %v3090
  %v3109 = vmul.f32 %v3061, %v3090
  %v3110 = vmul.f32 %v2355, %v3090
  %v3111 = vmul.f32 %v2512, %v3090
  %v3112 = vmul.f32 %v3062, %v3090
  %v3113 = vmul.f32 %v2357, %v3090
  %v3114 = vmul.f32 %v2513, %v3090
  %v3115 = vmul.f32 %v3063, %v3090
  %v3116 = vmul.f32 %v2359, %v3090
  %v3117 = vmul.f32 %v2514, %v3090
  %v3118 = vmul.f32 %v3064, %v3090
  %v3119 = vmul.f32 %v2361, %v3090
  %v3120 = vmul.f32 %v2515, %v3090
  %v3121 = vmul.f32 %v3065, %v3090
  %v3122 = vmul.f32 %v2363, %v3090
  %v3123 = vmul.f32 %v2516, %v3090
  %v3124 = vmul.f32 %v3066, %v3090
  %v3125 = vmul.f32 %v2365, %v3090
  %v3126 = vmul.f32 %v2517, %v3090
  %v3127 = vmul.f32 %v3067, %v3090
  %v3128 = vmul.f32 %v2367, %v3090
  %v3129 = vmul.f32 %v2518, %v3090
  %v3130 = vmul.f32 %v3068, %v3090
  %v3131 = vmul.f32 %v2369, %v3090
  %v3132 = vmul.f32 %v2519, %v3090
  %v3133 = vmul.f32 %v3069, %v3090
  %v3134 = vmul.f32 %v2371, %v3090
  %v3135 = vmul.f32 %v2520, %v3090
  %v3136 = vmul.f32 %v3070, %v3090
  %v3137 = vmul.f32 %v2373, %v3090
  %v3138 = vmul.f32 %v2521, %v3090
  %v3139 = vmul.f32 %v3071, %v3090
  %v3140 = vmul.f32 %v2375, %v3090
  %v3141 = vmul.f32 %v2522, %v3090
  %v3142 = vmul.f32 %v3072, %v3090
  %v3143 = vmul.f32 %v2377, %v3090
  %v3144 = vmul.f32 %v2523, %v3090
  %v3145 = vmul.f32 %v3073, %v3090
  %v3146 = vmul.f32 %v2379, %v3090
  %v3147 = vmul.f32 %v2524, %v3090
  %v3148 = vmul.f32 %v3074, %v3090
  %v3149 = vmul.f32 %v2381, %v3090
  %v3150 = vmul.f32 %v2525, %v3090
  %v3151 = vmul.f32 %v3075, %v3090
  %v3152 = vmul.f32 %v2383, %v3090
  %v3153 = vmul.f32 %v2526, %v3090
  %v3154 = vmul.f32 %v3076, %v3090
  %v3155 = vmul.f32 %v2385, %v3090
  %v3156 = vmul.f32 %v2527, %v3090
  %v3157 = vmul.f32 %v3077, %v3090
  %v3158 = vmul.f32 %v2387, %v3090
  %v3159 = vmul.f32 %v2528, %v3090
  %v3160 = vmul.f32 %v3078, %v3090
  %v3161 = vmul.f32 %v2389, %v3090
  %v3162 = vmul.f32 %v2529, %v3090
  %v3163 = vmul.f32 %v3079, %v3090
  %v3164 = vmul.f32 %v2391, %v3090
  %v3165 = vmul.f32 %v2530, %v3090
  %v3166 = vmul.f32 %v3080, %v3090
  %v3167 = vmul.f32 %v2393, %v3090
  %v3168 = vmul.f32 %v2531, %v3090
  %v3169 = vmul.f32 %v3081, %v3090
  %v3170 = vmul.f32 %v2395, %v3090
  %v3171 = vmul.f32 %v2532, %v3090
  %v3172 = vmul.f32 %v3082, %v3090
  %v3173 = vmul.f32 %v2397, %v3090
  %v3174 = vmul.f32 %v2533, %v3090
  %v3175 = vmul.f32 %v3083, %v3090
  %v3176 = vmul.f32 %v2399, %v3090
  %v3177 = vmul.f32 %v2534, %v3090
  %v3178 = vmul.f32 %v3084, %v3090
  %v3179 = vmul.f32 %v2401, %v3090
  %v3180 = vmul.f32 %v2535, %v3090
  %v3181 = vmul.f32 %v3085, %v3090
  %v3182 = vmul.f32 %v2403, %v3090
  %v3183 = vmul.f32 %v2536, %v3090
  %v3184 = vmul.f32 %v3086, %v3090
  %v3185 = vmul.f32 %v2405, %v3090
  %v3186 = vmul.f32 %v2537, %v3090
  %vm3283 = vcmask 1045504
  %v3284 = vrot.slane %v3091, 2
  %v3285 = vrot.slane %v3092, 2
  %v3286 = vsel %vm3283, %v3284, %v3285
  %v3287 = vrot.slane %v3093, 2
  %v3288 = vsel %vm3283, %v3285, %v3287
  %v3289 = vrot.slane %v3094, 2
  %v3290 = vrot.slane %v3095, 2
  %v3291 = vsel %vm3283, %v3289, %v3290
  %v3292 = vrot.slane %v3096, 2
  %v3293 = vsel %vm3283, %v3290, %v3292
  %v3294 = vrot.slane %v3097, 2
  %v3295 = vrot.slane %v3098, 2
  %v3296 = vsel %vm3283, %v3294, %v3295
  %v3297 = vrot.slane %v3099, 2
  %v3298 = vsel %vm3283, %v3295, %v3297
  %v3299 = vrot.slane %v3100, 2
  %v3300 = vrot.slane %v3101, 2
  %v3301 = vsel %vm3283, %v3299, %v3300
  %v3302 = vrot.slane %v3102, 2
  %v3303 = vsel %vm3283, %v3300, %v3302
  %v3304 = vrot.slane %v3103, 2
  %v3305 = vrot.slane %v3104, 2
  %v3306 = vsel %vm3283, %v3304, %v3305
  %v3307 = vrot.slane %v3105, 2
  %v3308 = vsel %vm3283, %v3305, %v3307
  %v3309 = vrot.slane %v3106, 2
  %v3310 = vrot.slane %v3107, 2
  %v3311 = vsel %vm3283, %v3309, %v3310
  %v3312 = vrot.slane %v3108, 2
  %v3313 = vsel %vm3283, %v3310, %v3312
  %v3314 = vrot.slane %v3109, 2
  %v3315 = vrot.slane %v3110, 2
  %v3316 = vsel %vm3283, %v3314, %v3315
  %v3317 = vrot.slane %v3111, 2
  %v3318 = vsel %vm3283, %v3315, %v3317
  %v3319 = vrot.slane %v3112, 2
  %v3320 = vrot.slane %v3113, 2
  %v3321 = vsel %vm3283, %v3319, %v3320
  %v3322 = vrot.slane %v3114, 2
  %v3323 = vsel %vm3283, %v3320, %v3322
  %v3324 = vrot.slane %v3115, 2
  %v3325 = vrot.slane %v3116, 2
  %v3326 = vsel %vm3283, %v3324, %v3325
  %v3327 = vrot.slane %v3117, 2
  %v3328 = vsel %vm3283, %v3325, %v3327
  %v3329 = vrot.slane %v3118, 2
  %v3330 = vrot.slane %v3119, 2
  %v3331 = vsel %vm3283, %v3329, %v3330
  %v3332 = vrot.slane %v3120, 2
  %v3333 = vsel %vm3283, %v3330, %v3332
  %v3334 = vrot.slane %v3121, 2
  %v3335 = vrot.slane %v3122, 2
  %v3336 = vsel %vm3283, %v3334, %v3335
  %v3337 = vrot.slane %v3123, 2
  %v3338 = vsel %vm3283, %v3335, %v3337
  %v3339 = vrot.slane %v3124, 2
  %v3340 = vrot.slane %v3125, 2
  %v3341 = vsel %vm3283, %v3339, %v3340
  %v3342 = vrot.slane %v3126, 2
  %v3343 = vsel %vm3283, %v3340, %v3342
  %v3344 = vrot.slane %v3127, 2
  %v3345 = vrot.slane %v3128, 2
  %v3346 = vsel %vm3283, %v3344, %v3345
  %v3347 = vrot.slane %v3129, 2
  %v3348 = vsel %vm3283, %v3345, %v3347
  %v3349 = vrot.slane %v3130, 2
  %v3350 = vrot.slane %v3131, 2
  %v3351 = vsel %vm3283, %v3349, %v3350
  %v3352 = vrot.slane %v3132, 2
  %v3353 = vsel %vm3283, %v3350, %v3352
  %v3354 = vrot.slane %v3133, 2
  %v3355 = vrot.slane %v3134, 2
  %v3356 = vsel %vm3283, %v3354, %v3355
  %v3357 = vrot.slane %v3135, 2
  %v3358 = vsel %vm3283, %v3355, %v3357
  %v3359 = vrot.slane %v3136, 2
  %v3360 = vrot.slane %v3137, 2
  %v3361 = vsel %vm3283, %v3359, %v3360
  %v3362 = vrot.slane %v3138, 2
  %v3363 = vsel %vm3283, %v3360, %v3362
  %v3364 = vrot.slane %v3139, 2
  %v3365 = vrot.slane %v3140, 2
  %v3366 = vsel %vm3283, %v3364, %v3365
  %v3367 = vrot.slane %v3141, 2
  %v3368 = vsel %vm3283, %v3365, %v3367
  %v3369 = vrot.slane %v3142, 2
  %v3370 = vrot.slane %v3143, 2
  %v3371 = vsel %vm3283, %v3369, %v3370
  %v3372 = vrot.slane %v3144, 2
  %v3373 = vsel %vm3283, %v3370, %v3372
  %v3374 = vrot.slane %v3145, 2
  %v3375 = vrot.slane %v3146, 2
  %v3376 = vsel %vm3283, %v3374, %v3375
  %v3377 = vrot.slane %v3147, 2
  %v3378 = vsel %vm3283, %v3375, %v3377
  %v3379 = vrot.slane %v3148, 2
  %v3380 = vrot.slane %v3149, 2
  %v3381 = vsel %vm3283, %v3379, %v3380
  %v3382 = vrot.slane %v3150, 2
  %v3383 = vsel %vm3283, %v3380, %v3382
  %v3384 = vrot.slane %v3151, 2
  %v3385 = vrot.slane %v3152, 2
  %v3386 = vsel %vm3283, %v3384, %v3385
  %v3387 = vrot.slane %v3153, 2
  %v3388 = vsel %vm3283, %v3385, %v3387
  %v3389 = vrot.slane %v3154, 2
  %v3390 = vrot.slane %v3155, 2
  %v3391 = vsel %vm3283, %v3389, %v3390
  %v3392 = vrot.slane %v3156, 2
  %v3393 = vsel %vm3283, %v3390, %v3392
  %v3394 = vrot.slane %v3157, 2
  %v3395 = vrot.slane %v3158, 2
  %v3396 = vsel %vm3283, %v3394, %v3395
  %v3397 = vrot.slane %v3159, 2
  %v3398 = vsel %vm3283, %v3395, %v3397
  %v3399 = vrot.slane %v3160, 2
  %v3400 = vrot.slane %v3161, 2
  %v3401 = vsel %vm3283, %v3399, %v3400
  %v3402 = vrot.slane %v3162, 2
  %v3403 = vsel %vm3283, %v3400, %v3402
  %v3404 = vrot.slane %v3163, 2
  %v3405 = vrot.slane %v3164, 2
  %v3406 = vsel %vm3283, %v3404, %v3405
  %v3407 = vrot.slane %v3165, 2
  %v3408 = vsel %vm3283, %v3405, %v3407
  %v3409 = vrot.slane %v3166, 2
  %v3410 = vrot.slane %v3167, 2
  %v3411 = vsel %vm3283, %v3409, %v3410
  %v3412 = vrot.slane %v3168, 2
  %v3413 = vsel %vm3283, %v3410, %v3412
  %v3414 = vrot.slane %v3169, 2
  %v3415 = vrot.slane %v3170, 2
  %v3416 = vsel %vm3283, %v3414, %v3415
  %v3417 = vrot.slane %v3171, 2
  %v3418 = vsel %vm3283, %v3415, %v3417
  %v3419 = vrot.slane %v3172, 2
  %v3420 = vrot.slane %v3173, 2
  %v3421 = vsel %vm3283, %v3419, %v3420
  %v3422 = vrot.slane %v3174, 2
  %v3423 = vsel %vm3283, %v3420, %v3422
  %v3424 = vrot.slane %v3175, 2
  %v3425 = vrot.slane %v3176, 2
  %v3426 = vsel %vm3283, %v3424, %v3425
  %v3427 = vrot.slane %v3177, 2
  %v3428 = vsel %vm3283, %v3425, %v3427
  %v3429 = vrot.slane %v3178, 2
  %v3430 = vrot.slane %v3179, 2
  %v3431 = vsel %vm3283, %v3429, %v3430
  %v3432 = vrot.slane %v3180, 2
  %v3433 = vsel %vm3283, %v3430, %v3432
  %v3434 = vrot.slane %v3181, 2
  %v3435 = vrot.slane %v3182, 2
  %v3436 = vsel %vm3283, %v3434, %v3435
  %v3437 = vrot.slane %v3183, 2
  %v3438 = vsel %vm3283, %v3435, %v3437
  %v3439 = vrot.slane %v3184, 2
  %v3440 = vrot.slane %v3185, 2
  %v3441 = vsel %vm3283, %v3439, %v3440
  %v3442 = vrot.slane %v3186, 2
  %v3443 = vsel %vm3283, %v3440, %v3442
  %v3508 = vadd.f32 %v2959, %v3286
  %v3509 = vadd.f32 %v2960, %v3288
  %v3510 = vadd.f32 %v2961, %v3291
  %v3511 = vadd.f32 %v2962, %v3293
  %v3512 = vadd.f32 %v2963, %v3296
  %v3513 = vadd.f32 %v2964, %v3298
  %v3514 = vadd.f32 %v2965, %v3301
  %v3515 = vadd.f32 %v2966, %v3303
  %v3516 = vadd.f32 %v2967, %v3306
  %v3517 = vadd.f32 %v2968, %v3308
  %v3518 = vadd.f32 %v2969, %v3311
  %v3519 = vadd.f32 %v2970, %v3313
  %v3520 = vadd.f32 %v2971, %v3316
  %v3521 = vadd.f32 %v2972, %v3318
  %v3522 = vadd.f32 %v2973, %v3321
  %v3523 = vadd.f32 %v2974, %v3323
  %v3524 = vadd.f32 %v2975, %v3326
  %v3525 = vadd.f32 %v2976, %v3328
  %v3526 = vadd.f32 %v2977, %v3331
  %v3527 = vadd.f32 %v2978, %v3333
  %v3528 = vadd.f32 %v2979, %v3336
  %v3529 = vadd.f32 %v2980, %v3338
  %v3530 = vadd.f32 %v2981, %v3341
  %v3531 = vadd.f32 %v2982, %v3343
  %v3532 = vadd.f32 %v2983, %v3346
  %v3533 = vadd.f32 %v2984, %v3348
  %v3534 = vadd.f32 %v2985, %v3351
  %v3535 = vadd.f32 %v2986, %v3353
  %v3536 = vadd.f32 %v2987, %v3356
  %v3537 = vadd.f32 %v2988, %v3358
  %v3538 = vadd.f32 %v2989, %v3361
  %v3539 = vadd.f32 %v2990, %v3363
  %v3540 = vadd.f32 %v2991, %v3366
  %v3541 = vadd.f32 %v2992, %v3368
  %v3542 = vadd.f32 %v2993, %v3371
  %v3543 = vadd.f32 %v2994, %v3373
  %v3544 = vadd.f32 %v2995, %v3376
  %v3545 = vadd.f32 %v2996, %v3378
  %v3546 = vadd.f32 %v2997, %v3381
  %v3547 = vadd.f32 %v2998, %v3383
  %v3548 = vadd.f32 %v2999, %v3386
  %v3549 = vadd.f32 %v3000, %v3388
  %v3550 = vadd.f32 %v3001, %v3391
  %v3551 = vadd.f32 %v3002, %v3393
  %v3552 = vadd.f32 %v3003, %v3396
  %v3553 = vadd.f32 %v3004, %v3398
  %v3554 = vadd.f32 %v3005, %v3401
  %v3555 = vadd.f32 %v3006, %v3403
  %v3556 = vadd.f32 %v3007, %v3406
  %v3557 = vadd.f32 %v3008, %v3408
  %v3558 = vadd.f32 %v3009, %v3411
  %v3559 = vadd.f32 %v3010, %v3413
  %v3560 = vadd.f32 %v3011, %v3416
  %v3561 = vadd.f32 %v3012, %v3418
  %v3562 = vadd.f32 %v3013, %v3421
  %v3563 = vadd.f32 %v3014, %v3423
  %v3564 = vadd.f32 %v3015, %v3426
  %v3565 = vadd.f32 %v3016, %v3428
  %v3566 = vadd.f32 %v3017, %v3431
  %v3567 = vadd.f32 %v3018, %v3433
  %v3568 = vadd.f32 %v3019, %v3436
  %v3569 = vadd.f32 %v3020, %v3438
  %v3570 = vadd.f32 %v3021, %v3441
  %v3571 = vadd.f32 %v3022, %v3443
  %v3572 = vld [vmem:[%s1019] sm:$0xf]
  %v3573 = vld [vmem:[%s1019 + $0x4] sm:$0xf]
  %v3574 = vld [vmem:[%s1019 + $0xc] sm:$0xf]
  %v3575 = vld [vmem:[%s1019 + $0x10] sm:$0xf]
  %v3576 = vld [vmem:[%s1019 + $0x18] sm:$0xf]
  %v3577 = vld [vmem:[%s1019 + $0x1c] sm:$0xf]
  %v3578 = vld [vmem:[%s1019 + $0x24] sm:$0xf]
  %v3579 = vld [vmem:[%s1019 + $0x28] sm:$0xf]
  %v3580 = vld [vmem:[%s1019 + $0x30] sm:$0xf]
  %v3581 = vld [vmem:[%s1019 + $0x34] sm:$0xf]
  %v3582 = vld [vmem:[%s1019 + $0x3c] sm:$0xf]
  %v3583 = vld [vmem:[%s1019 + $0x40] sm:$0xf]
  %v3584 = vld [vmem:[%s1019 + $0x48] sm:$0xf]
  %v3585 = vld [vmem:[%s1019 + $0x4c] sm:$0xf]
  %v3586 = vld [vmem:[%s1019 + $0x54] sm:$0xf]
  %v3587 = vld [vmem:[%s1019 + $0x58] sm:$0xf]
  %v3588 = vld [vmem:[%s1019 + $0x60] sm:$0xf]
  %v3589 = vld [vmem:[%s1019 + $0x64] sm:$0xf]
  %v3590 = vld [vmem:[%s1019 + $0x6c] sm:$0xf]
  %v3591 = vld [vmem:[%s1019 + $0x70] sm:$0xf]
  %v3592 = vld [vmem:[%s1019 + $0x78] sm:$0xf]
  %v3593 = vld [vmem:[%s1019 + $0x7c] sm:$0xf]
  %v3594 = vld [vmem:[%s1019 + $0x84] sm:$0xf]
  %v3595 = vld [vmem:[%s1019 + $0x88] sm:$0xf]
  %v3596 = vld [vmem:[%s1019 + $0x90] sm:$0xf]
  %v3597 = vld [vmem:[%s1019 + $0x94] sm:$0xf]
  %v3598 = vld [vmem:[%s1019 + $0x9c] sm:$0xf]
  %v3599 = vld [vmem:[%s1019 + $0xa0] sm:$0xf]
  %v3600 = vld [vmem:[%s1019 + $0xa8] sm:$0xf]
  %v3601 = vld [vmem:[%s1019 + $0xac] sm:$0xf]
  %v3602 = vld [vmem:[%s1019 + $0xb4] sm:$0xf]
  %v3603 = vld [vmem:[%s1019 + $0xb8] sm:$0xf]
  %v3604 = vld [vmem:[%s1019 + $0xd8] sm:$0xf]
  %v3605 = vld [vmem:[%s1019 + $0xdc] sm:$0xf]
  %v3606 = vld [vmem:[%s1019 + $0xe4] sm:$0xf]
  %v3607 = vld [vmem:[%s1019 + $0xe8] sm:$0xf]
  %v3608 = vld [vmem:[%s1019 + $0xf0] sm:$0xf]
  %v3609 = vld [vmem:[%s1019 + $0xf4] sm:$0xf]
  %v3610 = vld [vmem:[%s1019 + $0xfc] sm:$0xf]
  %v3611 = vld [vmem:[%s1019 + $0x100] sm:$0xf]
  %v3612 = vld [vmem:[%s1019 + $0x108] sm:$0xf]
  %v3613 = vld [vmem:[%s1019 + $0x10c] sm:$0xf]
  %v3614 = vld [vmem:[%s1019 + $0x114] sm:$0xf]
  %v3615 = vld [vmem:[%s1019 + $0x118] sm:$0xf]
  %v3616 = vld [vmem:[%s1019 + $0x120] sm:$0xf]
  %v3617 = vld [vmem:[%s1019 + $0x124] sm:$0xf]
  %v3618 = vld [vmem:[%s1019 + $0x12c] sm:$0xf]
  %v3619 = vld [vmem:[%s1019 + $0x130] sm:$0xf]
  %v3620 = vld [vmem:[%s1019 + $0x138] sm:$0xf]
  %v3621 = vld [vmem:[%s1019 + $0x13c] sm:$0xf]
  %v3622 = vld [vmem:[%s1019 + $0x144] sm:$0xf]
  %v3623 = vld [vmem:[%s1019 + $0x148] sm:$0xf]
  %v3624 = vld [vmem:[%s1019 + $0x150] sm:$0xf]
  %v3625 = vld [vmem:[%s1019 + $0x154] sm:$0xf]
  %v3626 = vld [vmem:[%s1019 + $0x15c] sm:$0xf]
  %v3627 = vld [vmem:[%s1019 + $0x160] sm:$0xf]
  %v3628 = vld [vmem:[%s1019 + $0x168] sm:$0xf]
  %v3629 = vld [vmem:[%s1019 + $0x16c] sm:$0xf]
  %v3630 = vld [vmem:[%s1019 + $0x174] sm:$0xf]
  %v3631 = vld [vmem:[%s1019 + $0x178] sm:$0xf]
  %v3632 = vld [vmem:[%s1019 + $0x180] sm:$0xf]
  %v3633 = vld [vmem:[%s1019 + $0x184] sm:$0xf]
  %v3634 = vld [vmem:[%s1019 + $0x18c] sm:$0xf]
  %v3635 = vld [vmem:[%s1019 + $0x190] sm:$0xf]
  %v3636 = vunpack.c.l.bf16 %v3572
  %v3637 = vunpack.c.l.bf16 %v3573
  %v3638 = vunpack.c.l.bf16 %v3574
  %v3639 = vunpack.c.l.bf16 %v3575
  %v3640 = vunpack.c.l.bf16 %v3576
  %v3641 = vunpack.c.l.bf16 %v3577
  %v3642 = vunpack.c.l.bf16 %v3578
  %v3643 = vunpack.c.l.bf16 %v3579
  %v3644 = vunpack.c.l.bf16 %v3580
  %v3645 = vunpack.c.l.bf16 %v3581
  %v3646 = vunpack.c.l.bf16 %v3582
  %v3647 = vunpack.c.l.bf16 %v3583
  %v3648 = vunpack.c.l.bf16 %v3584
  %v3649 = vunpack.c.l.bf16 %v3585
  %v3650 = vunpack.c.l.bf16 %v3586
  %v3651 = vunpack.c.l.bf16 %v3587
  %v3652 = vunpack.c.l.bf16 %v3588
  %v3653 = vunpack.c.l.bf16 %v3589
  %v3654 = vunpack.c.l.bf16 %v3590
  %v3655 = vunpack.c.l.bf16 %v3591
  %v3656 = vunpack.c.l.bf16 %v3592
  %v3657 = vunpack.c.l.bf16 %v3593
  %v3658 = vunpack.c.l.bf16 %v3594
  %v3659 = vunpack.c.l.bf16 %v3595
  %v3660 = vunpack.c.l.bf16 %v3596
  %v3661 = vunpack.c.l.bf16 %v3597
  %v3662 = vunpack.c.l.bf16 %v3598
  %v3663 = vunpack.c.l.bf16 %v3599
  %v3664 = vunpack.c.l.bf16 %v3600
  %v3665 = vunpack.c.l.bf16 %v3601
  %v3666 = vunpack.c.l.bf16 %v3602
  %v3667 = vunpack.c.l.bf16 %v3603
  %v3668 = vunpack.c.l.bf16 %v3604
  %v3669 = vunpack.c.l.bf16 %v3605
  %v3670 = vunpack.c.l.bf16 %v3606
  %v3671 = vunpack.c.l.bf16 %v3607
  %v3672 = vunpack.c.l.bf16 %v3608
  %v3673 = vunpack.c.l.bf16 %v3609
  %v3674 = vunpack.c.l.bf16 %v3610
  %v3675 = vunpack.c.l.bf16 %v3611
  %v3676 = vunpack.c.l.bf16 %v3612
  %v3677 = vunpack.c.l.bf16 %v3613
  %v3678 = vunpack.c.l.bf16 %v3614
  %v3679 = vunpack.c.l.bf16 %v3615
  %v3680 = vunpack.c.l.bf16 %v3616
  %v3681 = vunpack.c.l.bf16 %v3617
  %v3682 = vunpack.c.l.bf16 %v3618
  %v3683 = vunpack.c.l.bf16 %v3619
  %v3684 = vunpack.c.l.bf16 %v3620
  %v3685 = vunpack.c.l.bf16 %v3621
  %v3686 = vunpack.c.l.bf16 %v3622
  %v3687 = vunpack.c.l.bf16 %v3623
  %v3688 = vunpack.c.l.bf16 %v3624
  %v3689 = vunpack.c.l.bf16 %v3625
  %v3690 = vunpack.c.l.bf16 %v3626
  %v3691 = vunpack.c.l.bf16 %v3627
  %v3692 = vunpack.c.l.bf16 %v3628
  %v3693 = vunpack.c.l.bf16 %v3629
  %v3694 = vunpack.c.l.bf16 %v3630
  %v3695 = vunpack.c.l.bf16 %v3631
  %v3696 = vunpack.c.l.bf16 %v3632
  %v3697 = vunpack.c.l.bf16 %v3633
  %v3698 = vunpack.c.l.bf16 %v3634
  %v3699 = vunpack.c.l.bf16 %v3635
  %v3700 = vlaneseq
  %v3701 = vshrl.u32 %v3700, 7
  %v3702 = vsub.s32 3, %v3701
  %v3703 = vrot.slane %v2276, %v3702
  %v3704 = vmul.f32 %v3636, %v3703
  %v3705 = vmul.f32 %v3637, %v3703
  %v3706 = vmul.f32 %v3638, %v3703
  %v3707 = vmul.f32 %v3639, %v3703
  %v3708 = vmul.f32 %v3640, %v3703
  %v3709 = vmul.f32 %v3641, %v3703
  %v3710 = vmul.f32 %v3642, %v3703
  %v3711 = vmul.f32 %v3643, %v3703
  %v3712 = vmul.f32 %v3644, %v3703
  %v3713 = vmul.f32 %v3645, %v3703
  %v3714 = vmul.f32 %v3646, %v3703
  %v3715 = vmul.f32 %v3647, %v3703
  %v3716 = vmul.f32 %v3648, %v3703
  %v3717 = vmul.f32 %v3649, %v3703
  %v3718 = vmul.f32 %v3650, %v3703
  %v3719 = vmul.f32 %v3651, %v3703
  %v3720 = vmul.f32 %v3652, %v3703
  %v3721 = vmul.f32 %v3653, %v3703
  %v3722 = vmul.f32 %v3654, %v3703
  %v3723 = vmul.f32 %v3655, %v3703
  %v3724 = vmul.f32 %v3656, %v3703
  %v3725 = vmul.f32 %v3657, %v3703
  %v3726 = vmul.f32 %v3658, %v3703
  %v3727 = vmul.f32 %v3659, %v3703
  %v3728 = vmul.f32 %v3660, %v3703
  %v3729 = vmul.f32 %v3661, %v3703
  %v3730 = vmul.f32 %v3662, %v3703
  %v3731 = vmul.f32 %v3663, %v3703
  %v3732 = vmul.f32 %v3664, %v3703
  %v3733 = vmul.f32 %v3665, %v3703
  %v3734 = vmul.f32 %v3666, %v3703
  %v3735 = vmul.f32 %v3667, %v3703
  %v3736 = vmul.f32 %v3668, %v3703
  %v3737 = vmul.f32 %v3669, %v3703
  %v3738 = vmul.f32 %v3670, %v3703
  %v3739 = vmul.f32 %v3671, %v3703
  %v3740 = vmul.f32 %v3672, %v3703
  %v3741 = vmul.f32 %v3673, %v3703
  %v3742 = vmul.f32 %v3674, %v3703
  %v3743 = vmul.f32 %v3675, %v3703
  %v3744 = vmul.f32 %v3676, %v3703
  %v3745 = vmul.f32 %v3677, %v3703
  %v3746 = vmul.f32 %v3678, %v3703
  %v3747 = vmul.f32 %v3679, %v3703
  %v3748 = vmul.f32 %v3680, %v3703
  %v3749 = vmul.f32 %v3681, %v3703
  %v3750 = vmul.f32 %v3682, %v3703
  %v3751 = vmul.f32 %v3683, %v3703
  %v3752 = vmul.f32 %v3684, %v3703
  %v3753 = vmul.f32 %v3685, %v3703
  %v3754 = vmul.f32 %v3686, %v3703
  %v3755 = vmul.f32 %v3687, %v3703
  %v3756 = vmul.f32 %v3688, %v3703
  %v3757 = vmul.f32 %v3689, %v3703
  %v3758 = vmul.f32 %v3690, %v3703
  %v3759 = vmul.f32 %v3691, %v3703
  %v3760 = vmul.f32 %v3692, %v3703
  %v3761 = vmul.f32 %v3693, %v3703
  %v3762 = vmul.f32 %v3694, %v3703
  %v3763 = vmul.f32 %v3695, %v3703
  %v3764 = vmul.f32 %v3696, %v3703
  %v3765 = vmul.f32 %v3697, %v3703
  %v3766 = vmul.f32 %v3698, %v3703
  %v3767 = vmul.f32 %v3699, %v3703
  %v3768 = vadd.f32 %v3508, %v3704
  %v3769 = vadd.f32 %v3509, %v3705
  %v3770 = vadd.f32 %v3510, %v3706
  %v3771 = vadd.f32 %v3511, %v3707
  %v3772 = vadd.f32 %v3512, %v3708
  %v3773 = vadd.f32 %v3513, %v3709
  %v3774 = vadd.f32 %v3514, %v3710
  %v3775 = vadd.f32 %v3515, %v3711
  %v3776 = vadd.f32 %v3516, %v3712
  %v3777 = vadd.f32 %v3517, %v3713
  %v3778 = vadd.f32 %v3518, %v3714
  %v3779 = vadd.f32 %v3519, %v3715
  %v3780 = vadd.f32 %v3520, %v3716
  %v3781 = vadd.f32 %v3521, %v3717
  %v3782 = vadd.f32 %v3522, %v3718
  %v3783 = vadd.f32 %v3523, %v3719
  %v3784 = vadd.f32 %v3524, %v3720
  %v3785 = vadd.f32 %v3525, %v3721
  %v3786 = vadd.f32 %v3526, %v3722
  %v3787 = vadd.f32 %v3527, %v3723
  %v3788 = vadd.f32 %v3528, %v3724
  %v3789 = vadd.f32 %v3529, %v3725
  %v3790 = vadd.f32 %v3530, %v3726
  %v3791 = vadd.f32 %v3531, %v3727
  %v3792 = vadd.f32 %v3532, %v3728
  %v3793 = vadd.f32 %v3533, %v3729
  %v3794 = vadd.f32 %v3534, %v3730
  %v3795 = vadd.f32 %v3535, %v3731
  %v3796 = vadd.f32 %v3536, %v3732
  %v3797 = vadd.f32 %v3537, %v3733
  %v3798 = vadd.f32 %v3538, %v3734
  %v3799 = vadd.f32 %v3539, %v3735
  %v3800 = vadd.f32 %v3540, %v3736
  %v3801 = vadd.f32 %v3541, %v3737
  %v3802 = vadd.f32 %v3542, %v3738
  %v3803 = vadd.f32 %v3543, %v3739
  %v3804 = vadd.f32 %v3544, %v3740
  %v3805 = vadd.f32 %v3545, %v3741
  %v3806 = vadd.f32 %v3546, %v3742
  %v3807 = vadd.f32 %v3547, %v3743
  %v3808 = vadd.f32 %v3548, %v3744
  %v3809 = vadd.f32 %v3549, %v3745
  %v3810 = vadd.f32 %v3550, %v3746
  %v3811 = vadd.f32 %v3551, %v3747
  %v3812 = vadd.f32 %v3552, %v3748
  %v3813 = vadd.f32 %v3553, %v3749
  %v3814 = vadd.f32 %v3554, %v3750
  %v3815 = vadd.f32 %v3555, %v3751
  %v3816 = vadd.f32 %v3556, %v3752
  %v3817 = vadd.f32 %v3557, %v3753
  %v3818 = vadd.f32 %v3558, %v3754
  %v3819 = vadd.f32 %v3559, %v3755
  %v3820 = vadd.f32 %v3560, %v3756
  %v3821 = vadd.f32 %v3561, %v3757
  %v3822 = vadd.f32 %v3562, %v3758
  %v3823 = vadd.f32 %v3563, %v3759
  %v3824 = vadd.f32 %v3564, %v3760
  %v3825 = vadd.f32 %v3565, %v3761
  %v3826 = vadd.f32 %v3566, %v3762
  %v3827 = vadd.f32 %v3567, %v3763
  %v3828 = vadd.f32 %v3568, %v3764
  %v3829 = vadd.f32 %v3569, %v3765
  %v3830 = vadd.f32 %v3570, %v3766
  %v3831 = vadd.f32 %v3571, %v3767
  %v3832 = vld [vmem:[%s1019 + $0x8] sm:$0x1]
  %v3833 = vld [vmem:[%s1019 + $0x14] sm:$0x1]
  %v3834 = vld [vmem:[%s1019 + $0x20] sm:$0x1]
  %v3835 = vld [vmem:[%s1019 + $0x2c] sm:$0x1]
  %v3836 = vld [vmem:[%s1019 + $0x38] sm:$0x1]
  %v3837 = vld [vmem:[%s1019 + $0x44] sm:$0x1]
  %v3838 = vld [vmem:[%s1019 + $0x50] sm:$0x1]
  %v3839 = vld [vmem:[%s1019 + $0x5c] sm:$0x1]
  %v3840 = vld [vmem:[%s1019 + $0x68] sm:$0x1]
  %v3841 = vld [vmem:[%s1019 + $0x74] sm:$0x1]
  %v3842 = vld [vmem:[%s1019 + $0x80] sm:$0x1]
  %v3843 = vld [vmem:[%s1019 + $0x8c] sm:$0x1]
  %v3844 = vld [vmem:[%s1019 + $0x98] sm:$0x1]
  %v3845 = vld [vmem:[%s1019 + $0xa4] sm:$0x1]
  %v3846 = vld [vmem:[%s1019 + $0xb0] sm:$0x1]
  %v3847 = vld [vmem:[%s1019 + $0xbc] sm:$0x1]
  %v3848 = vld [vmem:[%s1019 + $0xe0] sm:$0x1]
  %v3849 = vld [vmem:[%s1019 + $0xec] sm:$0x1]
  %v3850 = vld [vmem:[%s1019 + $0xf8] sm:$0x1]
  %v3851 = vld [vmem:[%s1019 + $0x104] sm:$0x1]
  %v3852 = vld [vmem:[%s1019 + $0x110] sm:$0x1]
  %v3853 = vld [vmem:[%s1019 + $0x11c] sm:$0x1]
  %v3854 = vld [vmem:[%s1019 + $0x128] sm:$0x1]
  %v3855 = vld [vmem:[%s1019 + $0x134] sm:$0x1]
  %v3856 = vld [vmem:[%s1019 + $0x140] sm:$0x1]
  %v3857 = vld [vmem:[%s1019 + $0x14c] sm:$0x1]
  %v3858 = vld [vmem:[%s1019 + $0x158] sm:$0x1]
  %v3859 = vld [vmem:[%s1019 + $0x164] sm:$0x1]
  %v3860 = vld [vmem:[%s1019 + $0x170] sm:$0x1]
  %v3861 = vld [vmem:[%s1019 + $0x17c] sm:$0x1]
  %v3862 = vld [vmem:[%s1019 + $0x188] sm:$0x1]
  %v3863 = vld [vmem:[%s1019 + $0x194] sm:$0x1]
  %v3864 = vunpack.c.l.bf16 %v3832
  %v3865 = vunpack.c.l.bf16 %v3833
  %v3866 = vunpack.c.l.bf16 %v3834
  %v3867 = vunpack.c.l.bf16 %v3835
  %v3868 = vunpack.c.l.bf16 %v3836
  %v3869 = vunpack.c.l.bf16 %v3837
  %v3870 = vunpack.c.l.bf16 %v3838
  %v3871 = vunpack.c.l.bf16 %v3839
  %v3872 = vunpack.c.l.bf16 %v3840
  %v3873 = vunpack.c.l.bf16 %v3841
  %v3874 = vunpack.c.l.bf16 %v3842
  %v3875 = vunpack.c.l.bf16 %v3843
  %v3876 = vunpack.c.l.bf16 %v3844
  %v3877 = vunpack.c.l.bf16 %v3845
  %v3878 = vunpack.c.l.bf16 %v3846
  %v3879 = vunpack.c.l.bf16 %v3847
  %v3880 = vunpack.c.l.bf16 %v3848
  %v3881 = vunpack.c.l.bf16 %v3849
  %v3882 = vunpack.c.l.bf16 %v3850
  %v3883 = vunpack.c.l.bf16 %v3851
  %v3884 = vunpack.c.l.bf16 %v3852
  %v3885 = vunpack.c.l.bf16 %v3853
  %v3886 = vunpack.c.l.bf16 %v3854
  %v3887 = vunpack.c.l.bf16 %v3855
  %v3888 = vunpack.c.l.bf16 %v3856
  %v3889 = vunpack.c.l.bf16 %v3857
  %v3890 = vunpack.c.l.bf16 %v3858
  %v3891 = vunpack.c.l.bf16 %v3859
  %v3892 = vunpack.c.l.bf16 %v3860
  %v3893 = vunpack.c.l.bf16 %v3861
  %v3894 = vunpack.c.l.bf16 %v3862
  %v3895 = vunpack.c.l.bf16 %v3863
  %v3896 = vlaneseq
  %v3897 = vshrl.u32 %v3896, 7
  %v3898 = vsub.s32 4, %v3897
  %v3899 = vrot.slane %v2276, %v3898
  %v3900 = vmul.f32 %v3636, %v3899
  %v3901 = vmul.f32 %v3637, %v3899
  %v3902 = vmul.f32 %v3864, %v3899
  %v3903 = vmul.f32 %v3638, %v3899
  %v3904 = vmul.f32 %v3639, %v3899
  %v3905 = vmul.f32 %v3865, %v3899
  %v3906 = vmul.f32 %v3640, %v3899
  %v3907 = vmul.f32 %v3641, %v3899
  %v3908 = vmul.f32 %v3866, %v3899
  %v3909 = vmul.f32 %v3642, %v3899
  %v3910 = vmul.f32 %v3643, %v3899
  %v3911 = vmul.f32 %v3867, %v3899
  %v3912 = vmul.f32 %v3644, %v3899
  %v3913 = vmul.f32 %v3645, %v3899
  %v3914 = vmul.f32 %v3868, %v3899
  %v3915 = vmul.f32 %v3646, %v3899
  %v3916 = vmul.f32 %v3647, %v3899
  %v3917 = vmul.f32 %v3869, %v3899
  %v3918 = vmul.f32 %v3648, %v3899
  %v3919 = vmul.f32 %v3649, %v3899
  %v3920 = vmul.f32 %v3870, %v3899
  %v3921 = vmul.f32 %v3650, %v3899
  %v3922 = vmul.f32 %v3651, %v3899
  %v3923 = vmul.f32 %v3871, %v3899
  %v3924 = vmul.f32 %v3652, %v3899
  %v3925 = vmul.f32 %v3653, %v3899
  %v3926 = vmul.f32 %v3872, %v3899
  %v3927 = vmul.f32 %v3654, %v3899
  %v3928 = vmul.f32 %v3655, %v3899
  %v3929 = vmul.f32 %v3873, %v3899
  %v3930 = vmul.f32 %v3656, %v3899
  %v3931 = vmul.f32 %v3657, %v3899
  %v3932 = vmul.f32 %v3874, %v3899
  %v3933 = vmul.f32 %v3658, %v3899
  %v3934 = vmul.f32 %v3659, %v3899
  %v3935 = vmul.f32 %v3875, %v3899
  %v3936 = vmul.f32 %v3660, %v3899
  %v3937 = vmul.f32 %v3661, %v3899
  %v3938 = vmul.f32 %v3876, %v3899
  %v3939 = vmul.f32 %v3662, %v3899
  %v3940 = vmul.f32 %v3663, %v3899
  %v3941 = vmul.f32 %v3877, %v3899
  %v3942 = vmul.f32 %v3664, %v3899
  %v3943 = vmul.f32 %v3665, %v3899
  %v3944 = vmul.f32 %v3878, %v3899
  %v3945 = vmul.f32 %v3666, %v3899
  %v3946 = vmul.f32 %v3667, %v3899
  %v3947 = vmul.f32 %v3879, %v3899
  %v3948 = vmul.f32 %v3668, %v3899
  %v3949 = vmul.f32 %v3669, %v3899
  %v3950 = vmul.f32 %v3880, %v3899
  %v3951 = vmul.f32 %v3670, %v3899
  %v3952 = vmul.f32 %v3671, %v3899
  %v3953 = vmul.f32 %v3881, %v3899
  %v3954 = vmul.f32 %v3672, %v3899
  %v3955 = vmul.f32 %v3673, %v3899
  %v3956 = vmul.f32 %v3882, %v3899
  %v3957 = vmul.f32 %v3674, %v3899
  %v3958 = vmul.f32 %v3675, %v3899
  %v3959 = vmul.f32 %v3883, %v3899
  %v3960 = vmul.f32 %v3676, %v3899
  %v3961 = vmul.f32 %v3677, %v3899
  %v3962 = vmul.f32 %v3884, %v3899
  %v3963 = vmul.f32 %v3678, %v3899
  %v3964 = vmul.f32 %v3679, %v3899
  %v3965 = vmul.f32 %v3885, %v3899
  %v3966 = vmul.f32 %v3680, %v3899
  %v3967 = vmul.f32 %v3681, %v3899
  %v3968 = vmul.f32 %v3886, %v3899
  %v3969 = vmul.f32 %v3682, %v3899
  %v3970 = vmul.f32 %v3683, %v3899
  %v3971 = vmul.f32 %v3887, %v3899
  %v3972 = vmul.f32 %v3684, %v3899
  %v3973 = vmul.f32 %v3685, %v3899
  %v3974 = vmul.f32 %v3888, %v3899
  %v3975 = vmul.f32 %v3686, %v3899
  %v3976 = vmul.f32 %v3687, %v3899
  %v3977 = vmul.f32 %v3889, %v3899
  %v3978 = vmul.f32 %v3688, %v3899
  %v3979 = vmul.f32 %v3689, %v3899
  %v3980 = vmul.f32 %v3890, %v3899
  %v3981 = vmul.f32 %v3690, %v3899
  %v3982 = vmul.f32 %v3691, %v3899
  %v3983 = vmul.f32 %v3891, %v3899
  %v3984 = vmul.f32 %v3692, %v3899
  %v3985 = vmul.f32 %v3693, %v3899
  %v3986 = vmul.f32 %v3892, %v3899
  %v3987 = vmul.f32 %v3694, %v3899
  %v3988 = vmul.f32 %v3695, %v3899
  %v3989 = vmul.f32 %v3893, %v3899
  %v3990 = vmul.f32 %v3696, %v3899
  %v3991 = vmul.f32 %v3697, %v3899
  %v3992 = vmul.f32 %v3894, %v3899
  %v3993 = vmul.f32 %v3698, %v3899
  %v3994 = vmul.f32 %v3699, %v3899
  %v3995 = vmul.f32 %v3895, %v3899
  %v4092 = vrot.slane %v3900, 1
  %v4093 = vrot.slane %v3901, 1
  %v4094 = vsel %vm2734, %v4092, %v4093
  %v4095 = vrot.slane %v3902, 1
  %v4096 = vsel %vm2734, %v4093, %v4095
  %v4097 = vrot.slane %v3903, 1
  %v4098 = vrot.slane %v3904, 1
  %v4099 = vsel %vm2734, %v4097, %v4098
  %v4100 = vrot.slane %v3905, 1
  %v4101 = vsel %vm2734, %v4098, %v4100
  %v4102 = vrot.slane %v3906, 1
  %v4103 = vrot.slane %v3907, 1
  %v4104 = vsel %vm2734, %v4102, %v4103
  %v4105 = vrot.slane %v3908, 1
  %v4106 = vsel %vm2734, %v4103, %v4105
  %v4107 = vrot.slane %v3909, 1
  %v4108 = vrot.slane %v3910, 1
  %v4109 = vsel %vm2734, %v4107, %v4108
  %v4110 = vrot.slane %v3911, 1
  %v4111 = vsel %vm2734, %v4108, %v4110
  %v4112 = vrot.slane %v3912, 1
  %v4113 = vrot.slane %v3913, 1
  %v4114 = vsel %vm2734, %v4112, %v4113
  %v4115 = vrot.slane %v3914, 1
  %v4116 = vsel %vm2734, %v4113, %v4115
  %v4117 = vrot.slane %v3915, 1
  %v4118 = vrot.slane %v3916, 1
  %v4119 = vsel %vm2734, %v4117, %v4118
  %v4120 = vrot.slane %v3917, 1
  %v4121 = vsel %vm2734, %v4118, %v4120
  %v4122 = vrot.slane %v3918, 1
  %v4123 = vrot.slane %v3919, 1
  %v4124 = vsel %vm2734, %v4122, %v4123
  %v4125 = vrot.slane %v3920, 1
  %v4126 = vsel %vm2734, %v4123, %v4125
  %v4127 = vrot.slane %v3921, 1
  %v4128 = vrot.slane %v3922, 1
  %v4129 = vsel %vm2734, %v4127, %v4128
  %v4130 = vrot.slane %v3923, 1
  %v4131 = vsel %vm2734, %v4128, %v4130
  %v4132 = vrot.slane %v3924, 1
  %v4133 = vrot.slane %v3925, 1
  %v4134 = vsel %vm2734, %v4132, %v4133
  %v4135 = vrot.slane %v3926, 1
  %v4136 = vsel %vm2734, %v4133, %v4135
  %v4137 = vrot.slane %v3927, 1
  %v4138 = vrot.slane %v3928, 1
  %v4139 = vsel %vm2734, %v4137, %v4138
  %v4140 = vrot.slane %v3929, 1
  %v4141 = vsel %vm2734, %v4138, %v4140
  %v4142 = vrot.slane %v3930, 1
  %v4143 = vrot.slane %v3931, 1
  %v4144 = vsel %vm2734, %v4142, %v4143
  %v4145 = vrot.slane %v3932, 1
  %v4146 = vsel %vm2734, %v4143, %v4145
  %v4147 = vrot.slane %v3933, 1
  %v4148 = vrot.slane %v3934, 1
  %v4149 = vsel %vm2734, %v4147, %v4148
  %v4150 = vrot.slane %v3935, 1
  %v4151 = vsel %vm2734, %v4148, %v4150
  %v4152 = vrot.slane %v3936, 1
  %v4153 = vrot.slane %v3937, 1
  %v4154 = vsel %vm2734, %v4152, %v4153
  %v4155 = vrot.slane %v3938, 1
  %v4156 = vsel %vm2734, %v4153, %v4155
  %v4157 = vrot.slane %v3939, 1
  %v4158 = vrot.slane %v3940, 1
  %v4159 = vsel %vm2734, %v4157, %v4158
  %v4160 = vrot.slane %v3941, 1
  %v4161 = vsel %vm2734, %v4158, %v4160
  %v4162 = vrot.slane %v3942, 1
  %v4163 = vrot.slane %v3943, 1
  %v4164 = vsel %vm2734, %v4162, %v4163
  %v4165 = vrot.slane %v3944, 1
  %v4166 = vsel %vm2734, %v4163, %v4165
  %v4167 = vrot.slane %v3945, 1
  %v4168 = vrot.slane %v3946, 1
  %v4169 = vsel %vm2734, %v4167, %v4168
  %v4170 = vrot.slane %v3947, 1
  %v4171 = vsel %vm2734, %v4168, %v4170
  %v4172 = vrot.slane %v3948, 1
  %v4173 = vrot.slane %v3949, 1
  %v4174 = vsel %vm2734, %v4172, %v4173
  %v4175 = vrot.slane %v3950, 1
  %v4176 = vsel %vm2734, %v4173, %v4175
  %v4177 = vrot.slane %v3951, 1
  %v4178 = vrot.slane %v3952, 1
  %v4179 = vsel %vm2734, %v4177, %v4178
  %v4180 = vrot.slane %v3953, 1
  %v4181 = vsel %vm2734, %v4178, %v4180
  %v4182 = vrot.slane %v3954, 1
  %v4183 = vrot.slane %v3955, 1
  %v4184 = vsel %vm2734, %v4182, %v4183
  %v4185 = vrot.slane %v3956, 1
  %v4186 = vsel %vm2734, %v4183, %v4185
  %v4187 = vrot.slane %v3957, 1
  %v4188 = vrot.slane %v3958, 1
  %v4189 = vsel %vm2734, %v4187, %v4188
  %v4190 = vrot.slane %v3959, 1
  %v4191 = vsel %vm2734, %v4188, %v4190
  %v4192 = vrot.slane %v3960, 1
  %v4193 = vrot.slane %v3961, 1
  %v4194 = vsel %vm2734, %v4192, %v4193
  %v4195 = vrot.slane %v3962, 1
  %v4196 = vsel %vm2734, %v4193, %v4195
  %v4197 = vrot.slane %v3963, 1
  %v4198 = vrot.slane %v3964, 1
  %v4199 = vsel %vm2734, %v4197, %v4198
  %v4200 = vrot.slane %v3965, 1
  %v4201 = vsel %vm2734, %v4198, %v4200
  %v4202 = vrot.slane %v3966, 1
  %v4203 = vrot.slane %v3967, 1
  %v4204 = vsel %vm2734, %v4202, %v4203
  %v4205 = vrot.slane %v3968, 1
  %v4206 = vsel %vm2734, %v4203, %v4205
  %v4207 = vrot.slane %v3969, 1
  %v4208 = vrot.slane %v3970, 1
  %v4209 = vsel %vm2734, %v4207, %v4208
  %v4210 = vrot.slane %v3971, 1
  %v4211 = vsel %vm2734, %v4208, %v4210
  %v4212 = vrot.slane %v3972, 1
  %v4213 = vrot.slane %v3973, 1
  %v4214 = vsel %vm2734, %v4212, %v4213
  %v4215 = vrot.slane %v3974, 1
  %v4216 = vsel %vm2734, %v4213, %v4215
  %v4217 = vrot.slane %v3975, 1
  %v4218 = vrot.slane %v3976, 1
  %v4219 = vsel %vm2734, %v4217, %v4218
  %v4220 = vrot.slane %v3977, 1
  %v4221 = vsel %vm2734, %v4218, %v4220
  %v4222 = vrot.slane %v3978, 1
  %v4223 = vrot.slane %v3979, 1
  %v4224 = vsel %vm2734, %v4222, %v4223
  %v4225 = vrot.slane %v3980, 1
  %v4226 = vsel %vm2734, %v4223, %v4225
  %v4227 = vrot.slane %v3981, 1
  %v4228 = vrot.slane %v3982, 1
  %v4229 = vsel %vm2734, %v4227, %v4228
  %v4230 = vrot.slane %v3983, 1
  %v4231 = vsel %vm2734, %v4228, %v4230
  %v4232 = vrot.slane %v3984, 1
  %v4233 = vrot.slane %v3985, 1
  %v4234 = vsel %vm2734, %v4232, %v4233
  %v4235 = vrot.slane %v3986, 1
  %v4236 = vsel %vm2734, %v4233, %v4235
  %v4237 = vrot.slane %v3987, 1
  %v4238 = vrot.slane %v3988, 1
  %v4239 = vsel %vm2734, %v4237, %v4238
  %v4240 = vrot.slane %v3989, 1
  %v4241 = vsel %vm2734, %v4238, %v4240
  %v4242 = vrot.slane %v3990, 1
  %v4243 = vrot.slane %v3991, 1
  %v4244 = vsel %vm2734, %v4242, %v4243
  %v4245 = vrot.slane %v3992, 1
  %v4246 = vsel %vm2734, %v4243, %v4245
  %v4247 = vrot.slane %v3993, 1
  %v4248 = vrot.slane %v3994, 1
  %v4249 = vsel %vm2734, %v4247, %v4248
  %v4250 = vrot.slane %v3995, 1
  %v4251 = vsel %vm2734, %v4248, %v4250
  %v4316 = vadd.f32 %v3768, %v4094
  %v4317 = vadd.f32 %v3769, %v4096
  %v4318 = vadd.f32 %v3770, %v4099
  %v4319 = vadd.f32 %v3771, %v4101
  %v4320 = vadd.f32 %v3772, %v4104
  %v4321 = vadd.f32 %v3773, %v4106
  %v4322 = vadd.f32 %v3774, %v4109
  %v4323 = vadd.f32 %v3775, %v4111
  %v4324 = vadd.f32 %v3776, %v4114
  %v4325 = vadd.f32 %v3777, %v4116
  %v4326 = vadd.f32 %v3778, %v4119
  %v4327 = vadd.f32 %v3779, %v4121
  %v4328 = vadd.f32 %v3780, %v4124
  %v4329 = vadd.f32 %v3781, %v4126
  %v4330 = vadd.f32 %v3782, %v4129
  %v4331 = vadd.f32 %v3783, %v4131
  %v4332 = vadd.f32 %v3784, %v4134
  %v4333 = vadd.f32 %v3785, %v4136
  %v4334 = vadd.f32 %v3786, %v4139
  %v4335 = vadd.f32 %v3787, %v4141
  %v4336 = vadd.f32 %v3788, %v4144
  %v4337 = vadd.f32 %v3789, %v4146
  %v4338 = vadd.f32 %v3790, %v4149
  %v4339 = vadd.f32 %v3791, %v4151
  %v4340 = vadd.f32 %v3792, %v4154
  %v4341 = vadd.f32 %v3793, %v4156
  %v4342 = vadd.f32 %v3794, %v4159
  %v4343 = vadd.f32 %v3795, %v4161
  %v4344 = vadd.f32 %v3796, %v4164
  %v4345 = vadd.f32 %v3797, %v4166
  %v4346 = vadd.f32 %v3798, %v4169
  %v4347 = vadd.f32 %v3799, %v4171
  %v4348 = vadd.f32 %v3800, %v4174
  %v4349 = vadd.f32 %v3801, %v4176
  %v4350 = vadd.f32 %v3802, %v4179
  %v4351 = vadd.f32 %v3803, %v4181
  %v4352 = vadd.f32 %v3804, %v4184
  %v4353 = vadd.f32 %v3805, %v4186
  %v4354 = vadd.f32 %v3806, %v4189
  %v4355 = vadd.f32 %v3807, %v4191
  %v4356 = vadd.f32 %v3808, %v4194
  %v4357 = vadd.f32 %v3809, %v4196
  %v4358 = vadd.f32 %v3810, %v4199
  %v4359 = vadd.f32 %v3811, %v4201
  %v4360 = vadd.f32 %v3812, %v4204
  %v4361 = vadd.f32 %v3813, %v4206
  %v4362 = vadd.f32 %v3814, %v4209
  %v4363 = vadd.f32 %v3815, %v4211
  %v4364 = vadd.f32 %v3816, %v4214
  %v4365 = vadd.f32 %v3817, %v4216
  %v4366 = vadd.f32 %v3818, %v4219
  %v4367 = vadd.f32 %v3819, %v4221
  %v4368 = vadd.f32 %v3820, %v4224
  %v4369 = vadd.f32 %v3821, %v4226
  %v4370 = vadd.f32 %v3822, %v4229
  %v4371 = vadd.f32 %v3823, %v4231
  %v4372 = vadd.f32 %v3824, %v4234
  %v4373 = vadd.f32 %v3825, %v4236
  %v4374 = vadd.f32 %v3826, %v4239
  %v4375 = vadd.f32 %v3827, %v4241
  %v4376 = vadd.f32 %v3828, %v4244
  %v4377 = vadd.f32 %v3829, %v4246
  %v4378 = vadd.f32 %v3830, %v4249
  %v4379 = vadd.f32 %v3831, %v4251
  %v4380 = vld [vmem:[%s1019] sm:$0xe]
  %v4381 = vld [vmem:[%s1019 + $0xc] sm:$0xe]
  %v4382 = vld [vmem:[%s1019 + $0x18] sm:$0xe]
  %v4383 = vld [vmem:[%s1019 + $0x24] sm:$0xe]
  %v4384 = vld [vmem:[%s1019 + $0x30] sm:$0xe]
  %v4385 = vld [vmem:[%s1019 + $0x3c] sm:$0xe]
  %v4386 = vld [vmem:[%s1019 + $0x48] sm:$0xe]
  %v4387 = vld [vmem:[%s1019 + $0x54] sm:$0xe]
  %v4388 = vld [vmem:[%s1019 + $0x60] sm:$0xe]
  %v4389 = vld [vmem:[%s1019 + $0x6c] sm:$0xe]
  %v4390 = vld [vmem:[%s1019 + $0x78] sm:$0xe]
  %v4391 = vld [vmem:[%s1019 + $0x84] sm:$0xe]
  %v4392 = vld [vmem:[%s1019 + $0x90] sm:$0xe]
  %v4393 = vld [vmem:[%s1019 + $0x9c] sm:$0xe]
  %v4394 = vld [vmem:[%s1019 + $0xa8] sm:$0xe]
  %v4395 = vld [vmem:[%s1019 + $0xb4] sm:$0xe]
  %v4396 = vld [vmem:[%s1019 + $0xd8] sm:$0xe]
  %v4397 = vld [vmem:[%s1019 + $0xe4] sm:$0xe]
  %v4398 = vld [vmem:[%s1019 + $0xf0] sm:$0xe]
  %v4399 = vld [vmem:[%s1019 + $0xfc] sm:$0xe]
  %v4400 = vld [vmem:[%s1019 + $0x108] sm:$0xe]
  %v4401 = vld [vmem:[%s1019 + $0x114] sm:$0xe]
  %v4402 = vld [vmem:[%s1019 + $0x120] sm:$0xe]
  %v4403 = vld [vmem:[%s1019 + $0x12c] sm:$0xe]
  %v4404 = vld [vmem:[%s1019 + $0x138] sm:$0xe]
  %v4405 = vld [vmem:[%s1019 + $0x144] sm:$0xe]
  %v4406 = vld [vmem:[%s1019 + $0x150] sm:$0xe]
  %v4407 = vld [vmem:[%s1019 + $0x15c] sm:$0xe]
  %v4408 = vld [vmem:[%s1019 + $0x168] sm:$0xe]
  %v4409 = vld [vmem:[%s1019 + $0x174] sm:$0xe]
  %v4410 = vld [vmem:[%s1019 + $0x180] sm:$0xe]
  %v4411 = vld [vmem:[%s1019 + $0x18c] sm:$0xe]
  %v4412 = vunpack.c.l.bf16 %v4380
  %v4413 = vunpack.c.l.bf16 %v4381
  %v4414 = vunpack.c.l.bf16 %v4382
  %v4415 = vunpack.c.l.bf16 %v4383
  %v4416 = vunpack.c.l.bf16 %v4384
  %v4417 = vunpack.c.l.bf16 %v4385
  %v4418 = vunpack.c.l.bf16 %v4386
  %v4419 = vunpack.c.l.bf16 %v4387
  %v4420 = vunpack.c.l.bf16 %v4388
  %v4421 = vunpack.c.l.bf16 %v4389
  %v4422 = vunpack.c.l.bf16 %v4390
  %v4423 = vunpack.c.l.bf16 %v4391
  %v4424 = vunpack.c.l.bf16 %v4392
  %v4425 = vunpack.c.l.bf16 %v4393
  %v4426 = vunpack.c.l.bf16 %v4394
  %v4427 = vunpack.c.l.bf16 %v4395
  %v4428 = vunpack.c.l.bf16 %v4396
  %v4429 = vunpack.c.l.bf16 %v4397
  %v4430 = vunpack.c.l.bf16 %v4398
  %v4431 = vunpack.c.l.bf16 %v4399
  %v4432 = vunpack.c.l.bf16 %v4400
  %v4433 = vunpack.c.l.bf16 %v4401
  %v4434 = vunpack.c.l.bf16 %v4402
  %v4435 = vunpack.c.l.bf16 %v4403
  %v4436 = vunpack.c.l.bf16 %v4404
  %v4437 = vunpack.c.l.bf16 %v4405
  %v4438 = vunpack.c.l.bf16 %v4406
  %v4439 = vunpack.c.l.bf16 %v4407
  %v4440 = vunpack.c.l.bf16 %v4408
  %v4441 = vunpack.c.l.bf16 %v4409
  %v4442 = vunpack.c.l.bf16 %v4410
  %v4443 = vunpack.c.l.bf16 %v4411
  %v4444 = vlaneseq
  %v4445 = vshrl.u32 %v4444, 7
  %v4446 = vsub.s32 5, %v4445
  %v4447 = vrot.slane %v2276, %v4446
  %v4448 = vmul.f32 %v4412, %v4447
  %v4449 = vmul.f32 %v3637, %v4447
  %v4450 = vmul.f32 %v3864, %v4447
  %v4451 = vmul.f32 %v4413, %v4447
  %v4452 = vmul.f32 %v3639, %v4447
  %v4453 = vmul.f32 %v3865, %v4447
  %v4454 = vmul.f32 %v4414, %v4447
  %v4455 = vmul.f32 %v3641, %v4447
  %v4456 = vmul.f32 %v3866, %v4447
  %v4457 = vmul.f32 %v4415, %v4447
  %v4458 = vmul.f32 %v3643, %v4447
  %v4459 = vmul.f32 %v3867, %v4447
  %v4460 = vmul.f32 %v4416, %v4447
  %v4461 = vmul.f32 %v3645, %v4447
  %v4462 = vmul.f32 %v3868, %v4447
  %v4463 = vmul.f32 %v4417, %v4447
  %v4464 = vmul.f32 %v3647, %v4447
  %v4465 = vmul.f32 %v3869, %v4447
  %v4466 = vmul.f32 %v4418, %v4447
  %v4467 = vmul.f32 %v3649, %v4447
  %v4468 = vmul.f32 %v3870, %v4447
  %v4469 = vmul.f32 %v4419, %v4447
  %v4470 = vmul.f32 %v3651, %v4447
  %v4471 = vmul.f32 %v3871, %v4447
  %v4472 = vmul.f32 %v4420, %v4447
  %v4473 = vmul.f32 %v3653, %v4447
  %v4474 = vmul.f32 %v3872, %v4447
  %v4475 = vmul.f32 %v4421, %v4447
  %v4476 = vmul.f32 %v3655, %v4447
  %v4477 = vmul.f32 %v3873, %v4447
  %v4478 = vmul.f32 %v4422, %v4447
  %v4479 = vmul.f32 %v3657, %v4447
  %v4480 = vmul.f32 %v3874, %v4447
  %v4481 = vmul.f32 %v4423, %v4447
  %v4482 = vmul.f32 %v3659, %v4447
  %v4483 = vmul.f32 %v3875, %v4447
  %v4484 = vmul.f32 %v4424, %v4447
  %v4485 = vmul.f32 %v3661, %v4447
  %v4486 = vmul.f32 %v3876, %v4447
  %v4487 = vmul.f32 %v4425, %v4447
  %v4488 = vmul.f32 %v3663, %v4447
  %v4489 = vmul.f32 %v3877, %v4447
  %v4490 = vmul.f32 %v4426, %v4447
  %v4491 = vmul.f32 %v3665, %v4447
  %v4492 = vmul.f32 %v3878, %v4447
  %v4493 = vmul.f32 %v4427, %v4447
  %v4494 = vmul.f32 %v3667, %v4447
  %v4495 = vmul.f32 %v3879, %v4447
  %v4496 = vmul.f32 %v4428, %v4447
  %v4497 = vmul.f32 %v3669, %v4447
  %v4498 = vmul.f32 %v3880, %v4447
  %v4499 = vmul.f32 %v4429, %v4447
  %v4500 = vmul.f32 %v3671, %v4447
  %v4501 = vmul.f32 %v3881, %v4447
  %v4502 = vmul.f32 %v4430, %v4447
  %v4503 = vmul.f32 %v3673, %v4447
  %v4504 = vmul.f32 %v3882, %v4447
  %v4505 = vmul.f32 %v4431, %v4447
  %v4506 = vmul.f32 %v3675, %v4447
  %v4507 = vmul.f32 %v3883, %v4447
  %v4508 = vmul.f32 %v4432, %v4447
  %v4509 = vmul.f32 %v3677, %v4447
  %v4510 = vmul.f32 %v3884, %v4447
  %v4511 = vmul.f32 %v4433, %v4447
  %v4512 = vmul.f32 %v3679, %v4447
  %v4513 = vmul.f32 %v3885, %v4447
  %v4514 = vmul.f32 %v4434, %v4447
  %v4515 = vmul.f32 %v3681, %v4447
  %v4516 = vmul.f32 %v3886, %v4447
  %v4517 = vmul.f32 %v4435, %v4447
  %v4518 = vmul.f32 %v3683, %v4447
  %v4519 = vmul.f32 %v3887, %v4447
  %v4520 = vmul.f32 %v4436, %v4447
  %v4521 = vmul.f32 %v3685, %v4447
  %v4522 = vmul.f32 %v3888, %v4447
  %v4523 = vmul.f32 %v4437, %v4447
  %v4524 = vmul.f32 %v3687, %v4447
  %v4525 = vmul.f32 %v3889, %v4447
  %v4526 = vmul.f32 %v4438, %v4447
  %v4527 = vmul.f32 %v3689, %v4447
  %v4528 = vmul.f32 %v3890, %v4447
  %v4529 = vmul.f32 %v4439, %v4447
  %v4530 = vmul.f32 %v3691, %v4447
  %v4531 = vmul.f32 %v3891, %v4447
  %v4532 = vmul.f32 %v4440, %v4447
  %v4533 = vmul.f32 %v3693, %v4447
  %v4534 = vmul.f32 %v3892, %v4447
  %v4535 = vmul.f32 %v4441, %v4447
  %v4536 = vmul.f32 %v3695, %v4447
  %v4537 = vmul.f32 %v3893, %v4447
  %v4538 = vmul.f32 %v4442, %v4447
  %v4539 = vmul.f32 %v3697, %v4447
  %v4540 = vmul.f32 %v3894, %v4447
  %v4541 = vmul.f32 %v4443, %v4447
  %v4542 = vmul.f32 %v3699, %v4447
  %v4543 = vmul.f32 %v3895, %v4447
  %v4640 = vrot.slane %v4448, 2
  %v4641 = vrot.slane %v4449, 2
  %v4642 = vsel %vm3283, %v4640, %v4641
  %v4643 = vrot.slane %v4450, 2
  %v4644 = vsel %vm3283, %v4641, %v4643
  %v4645 = vrot.slane %v4451, 2
  %v4646 = vrot.slane %v4452, 2
  %v4647 = vsel %vm3283, %v4645, %v4646
  %v4648 = vrot.slane %v4453, 2
  %v4649 = vsel %vm3283, %v4646, %v4648
  %v4650 = vrot.slane %v4454, 2
  %v4651 = vrot.slane %v4455, 2
  %v4652 = vsel %vm3283, %v4650, %v4651
  %v4653 = vrot.slane %v4456, 2
  %v4654 = vsel %vm3283, %v4651, %v4653
  %v4655 = vrot.slane %v4457, 2
  %v4656 = vrot.slane %v4458, 2
  %v4657 = vsel %vm3283, %v4655, %v4656
  %v4658 = vrot.slane %v4459, 2
  %v4659 = vsel %vm3283, %v4656, %v4658
  %v4660 = vrot.slane %v4460, 2
  %v4661 = vrot.slane %v4461, 2
  %v4662 = vsel %vm3283, %v4660, %v4661
  %v4663 = vrot.slane %v4462, 2
  %v4664 = vsel %vm3283, %v4661, %v4663
  %v4665 = vrot.slane %v4463, 2
  %v4666 = vrot.slane %v4464, 2
  %v4667 = vsel %vm3283, %v4665, %v4666
  %v4668 = vrot.slane %v4465, 2
  %v4669 = vsel %vm3283, %v4666, %v4668
  %v4670 = vrot.slane %v4466, 2
  %v4671 = vrot.slane %v4467, 2
  %v4672 = vsel %vm3283, %v4670, %v4671
  %v4673 = vrot.slane %v4468, 2
  %v4674 = vsel %vm3283, %v4671, %v4673
  %v4675 = vrot.slane %v4469, 2
  %v4676 = vrot.slane %v4470, 2
  %v4677 = vsel %vm3283, %v4675, %v4676
  %v4678 = vrot.slane %v4471, 2
  %v4679 = vsel %vm3283, %v4676, %v4678
  %v4680 = vrot.slane %v4472, 2
  %v4681 = vrot.slane %v4473, 2
  %v4682 = vsel %vm3283, %v4680, %v4681
  %v4683 = vrot.slane %v4474, 2
  %v4684 = vsel %vm3283, %v4681, %v4683
  %v4685 = vrot.slane %v4475, 2
  %v4686 = vrot.slane %v4476, 2
  %v4687 = vsel %vm3283, %v4685, %v4686
  %v4688 = vrot.slane %v4477, 2
  %v4689 = vsel %vm3283, %v4686, %v4688
  %v4690 = vrot.slane %v4478, 2
  %v4691 = vrot.slane %v4479, 2
  %v4692 = vsel %vm3283, %v4690, %v4691
  %v4693 = vrot.slane %v4480, 2
  %v4694 = vsel %vm3283, %v4691, %v4693
  %v4695 = vrot.slane %v4481, 2
  %v4696 = vrot.slane %v4482, 2
  %v4697 = vsel %vm3283, %v4695, %v4696
  %v4698 = vrot.slane %v4483, 2
  %v4699 = vsel %vm3283, %v4696, %v4698
  %v4700 = vrot.slane %v4484, 2
  %v4701 = vrot.slane %v4485, 2
  %v4702 = vsel %vm3283, %v4700, %v4701
  %v4703 = vrot.slane %v4486, 2
  %v4704 = vsel %vm3283, %v4701, %v4703
  %v4705 = vrot.slane %v4487, 2
  %v4706 = vrot.slane %v4488, 2
  %v4707 = vsel %vm3283, %v4705, %v4706
  %v4708 = vrot.slane %v4489, 2
  %v4709 = vsel %vm3283, %v4706, %v4708
  %v4710 = vrot.slane %v4490, 2
  %v4711 = vrot.slane %v4491, 2
  %v4712 = vsel %vm3283, %v4710, %v4711
  %v4713 = vrot.slane %v4492, 2
  %v4714 = vsel %vm3283, %v4711, %v4713
  %v4715 = vrot.slane %v4493, 2
  %v4716 = vrot.slane %v4494, 2
  %v4717 = vsel %vm3283, %v4715, %v4716
  %v4718 = vrot.slane %v4495, 2
  %v4719 = vsel %vm3283, %v4716, %v4718
  %v4720 = vrot.slane %v4496, 2
  %v4721 = vrot.slane %v4497, 2
  %v4722 = vsel %vm3283, %v4720, %v4721
  %v4723 = vrot.slane %v4498, 2
  %v4724 = vsel %vm3283, %v4721, %v4723
  %v4725 = vrot.slane %v4499, 2
  %v4726 = vrot.slane %v4500, 2
  %v4727 = vsel %vm3283, %v4725, %v4726
  %v4728 = vrot.slane %v4501, 2
  %v4729 = vsel %vm3283, %v4726, %v4728
  %v4730 = vrot.slane %v4502, 2
  %v4731 = vrot.slane %v4503, 2
  %v4732 = vsel %vm3283, %v4730, %v4731
  %v4733 = vrot.slane %v4504, 2
  %v4734 = vsel %vm3283, %v4731, %v4733
  %v4735 = vrot.slane %v4505, 2
  %v4736 = vrot.slane %v4506, 2
  %v4737 = vsel %vm3283, %v4735, %v4736
  %v4738 = vrot.slane %v4507, 2
  %v4739 = vsel %vm3283, %v4736, %v4738
  %v4740 = vrot.slane %v4508, 2
  %v4741 = vrot.slane %v4509, 2
  %v4742 = vsel %vm3283, %v4740, %v4741
  %v4743 = vrot.slane %v4510, 2
  %v4744 = vsel %vm3283, %v4741, %v4743
  %v4745 = vrot.slane %v4511, 2
  %v4746 = vrot.slane %v4512, 2
  %v4747 = vsel %vm3283, %v4745, %v4746
  %v4748 = vrot.slane %v4513, 2
  %v4749 = vsel %vm3283, %v4746, %v4748
  %v4750 = vrot.slane %v4514, 2
  %v4751 = vrot.slane %v4515, 2
  %v4752 = vsel %vm3283, %v4750, %v4751
  %v4753 = vrot.slane %v4516, 2
  %v4754 = vsel %vm3283, %v4751, %v4753
  %v4755 = vrot.slane %v4517, 2
  %v4756 = vrot.slane %v4518, 2
  %v4757 = vsel %vm3283, %v4755, %v4756
  %v4758 = vrot.slane %v4519, 2
  %v4759 = vsel %vm3283, %v4756, %v4758
  %v4760 = vrot.slane %v4520, 2
  %v4761 = vrot.slane %v4521, 2
  %v4762 = vsel %vm3283, %v4760, %v4761
  %v4763 = vrot.slane %v4522, 2
  %v4764 = vsel %vm3283, %v4761, %v4763
  %v4765 = vrot.slane %v4523, 2
  %v4766 = vrot.slane %v4524, 2
  %v4767 = vsel %vm3283, %v4765, %v4766
  %v4768 = vrot.slane %v4525, 2
  %v4769 = vsel %vm3283, %v4766, %v4768
  %v4770 = vrot.slane %v4526, 2
  %v4771 = vrot.slane %v4527, 2
  %v4772 = vsel %vm3283, %v4770, %v4771
  %v4773 = vrot.slane %v4528, 2
  %v4774 = vsel %vm3283, %v4771, %v4773
  %v4775 = vrot.slane %v4529, 2
  %v4776 = vrot.slane %v4530, 2
  %v4777 = vsel %vm3283, %v4775, %v4776
  %v4778 = vrot.slane %v4531, 2
  %v4779 = vsel %vm3283, %v4776, %v4778
  %v4780 = vrot.slane %v4532, 2
  %v4781 = vrot.slane %v4533, 2
  %v4782 = vsel %vm3283, %v4780, %v4781
  %v4783 = vrot.slane %v4534, 2
  %v4784 = vsel %vm3283, %v4781, %v4783
  %v4785 = vrot.slane %v4535, 2
  %v4786 = vrot.slane %v4536, 2
  %v4787 = vsel %vm3283, %v4785, %v4786
  %v4788 = vrot.slane %v4537, 2
  %v4789 = vsel %vm3283, %v4786, %v4788
  %v4790 = vrot.slane %v4538, 2
  %v4791 = vrot.slane %v4539, 2
  %v4792 = vsel %vm3283, %v4790, %v4791
  %v4793 = vrot.slane %v4540, 2
  %v4794 = vsel %vm3283, %v4791, %v4793
  %v4795 = vrot.slane %v4541, 2
  %v4796 = vrot.slane %v4542, 2
  %v4797 = vsel %vm3283, %v4795, %v4796
  %v4798 = vrot.slane %v4543, 2
  %v4799 = vsel %vm3283, %v4796, %v4798
  %v4864 = vadd.f32 %v4316, %v4642
  %v4865 = vadd.f32 %v4317, %v4644
  %v4866 = vadd.f32 %v4318, %v4647
  %v4867 = vadd.f32 %v4319, %v4649
  %v4868 = vadd.f32 %v4320, %v4652
  %v4869 = vadd.f32 %v4321, %v4654
  %v4870 = vadd.f32 %v4322, %v4657
  %v4871 = vadd.f32 %v4323, %v4659
  %v4872 = vadd.f32 %v4324, %v4662
  %v4873 = vadd.f32 %v4325, %v4664
  %v4874 = vadd.f32 %v4326, %v4667
  %v4875 = vadd.f32 %v4327, %v4669
  %v4876 = vadd.f32 %v4328, %v4672
  %v4877 = vadd.f32 %v4329, %v4674
  %v4878 = vadd.f32 %v4330, %v4677
  %v4879 = vadd.f32 %v4331, %v4679
  %v4880 = vadd.f32 %v4332, %v4682
  %v4881 = vadd.f32 %v4333, %v4684
  %v4882 = vadd.f32 %v4334, %v4687
  %v4883 = vadd.f32 %v4335, %v4689
  %v4884 = vadd.f32 %v4336, %v4692
  %v4885 = vadd.f32 %v4337, %v4694
  %v4886 = vadd.f32 %v4338, %v4697
  %v4887 = vadd.f32 %v4339, %v4699
  %v4888 = vadd.f32 %v4340, %v4702
  %v4889 = vadd.f32 %v4341, %v4704
  %v4890 = vadd.f32 %v4342, %v4707
  %v4891 = vadd.f32 %v4343, %v4709
  %v4892 = vadd.f32 %v4344, %v4712
  %v4893 = vadd.f32 %v4345, %v4714
  %v4894 = vadd.f32 %v4346, %v4717
  %v4895 = vadd.f32 %v4347, %v4719
  %v4896 = vadd.f32 %v4348, %v4722
  %v4897 = vadd.f32 %v4349, %v4724
  %v4898 = vadd.f32 %v4350, %v4727
  %v4899 = vadd.f32 %v4351, %v4729
  %v4900 = vadd.f32 %v4352, %v4732
  %v4901 = vadd.f32 %v4353, %v4734
  %v4902 = vadd.f32 %v4354, %v4737
  %v4903 = vadd.f32 %v4355, %v4739
  %v4904 = vadd.f32 %v4356, %v4742
  %v4905 = vadd.f32 %v4357, %v4744
  %v4906 = vadd.f32 %v4358, %v4747
  %v4907 = vadd.f32 %v4359, %v4749
  %v4908 = vadd.f32 %v4360, %v4752
  %v4909 = vadd.f32 %v4361, %v4754
  %v4910 = vadd.f32 %v4362, %v4757
  %v4911 = vadd.f32 %v4363, %v4759
  %v4912 = vadd.f32 %v4364, %v4762
  %v4913 = vadd.f32 %v4365, %v4764
  %v4914 = vadd.f32 %v4366, %v4767
  %v4915 = vadd.f32 %v4367, %v4769
  %v4916 = vadd.f32 %v4368, %v4772
  %v4917 = vadd.f32 %v4369, %v4774
  %v4918 = vadd.f32 %v4370, %v4777
  %v4919 = vadd.f32 %v4371, %v4779
  %v4920 = vadd.f32 %v4372, %v4782
  %v4921 = vadd.f32 %v4373, %v4784
  %v4922 = vadd.f32 %v4374, %v4787
  %v4923 = vadd.f32 %v4375, %v4789
  %v4924 = vadd.f32 %v4376, %v4792
  %v4925 = vadd.f32 %v4377, %v4794
  %v4926 = vadd.f32 %v4378, %v4797
  %v4927 = vadd.f32 %v4379, %v4799
  %s4928 = scalar_lea.vmem [#allocation2], 24
  %v4929 = vld [vmem:[%s4928] sm:$0xf]
  %v4930 = vld [vmem:[%s4928 + $0x4] sm:$0xf]
  %v4931 = vld [vmem:[%s4928 + $0xc] sm:$0xf]
  %v4932 = vld [vmem:[%s4928 + $0x10] sm:$0xf]
  %v4933 = vld [vmem:[%s4928 + $0x18] sm:$0xf]
  %v4934 = vld [vmem:[%s4928 + $0x1c] sm:$0xf]
  %v4935 = vld [vmem:[%s4928 + $0x24] sm:$0xf]
  %v4936 = vld [vmem:[%s4928 + $0x28] sm:$0xf]
  %v4937 = vld [vmem:[%s4928 + $0x30] sm:$0xf]
  %v4938 = vld [vmem:[%s4928 + $0x34] sm:$0xf]
  %v4939 = vld [vmem:[%s4928 + $0x3c] sm:$0xf]
  %v4940 = vld [vmem:[%s4928 + $0x40] sm:$0xf]
  %v4941 = vld [vmem:[%s4928 + $0x48] sm:$0xf]
  %v4942 = vld [vmem:[%s4928 + $0x4c] sm:$0xf]
  %v4943 = vld [vmem:[%s4928 + $0x54] sm:$0xf]
  %v4944 = vld [vmem:[%s4928 + $0x58] sm:$0xf]
  %v4945 = vld [vmem:[%s4928 + $0x60] sm:$0xf]
  %v4946 = vld [vmem:[%s4928 + $0x64] sm:$0xf]
  %v4947 = vld [vmem:[%s4928 + $0x6c] sm:$0xf]
  %v4948 = vld [vmem:[%s4928 + $0x70] sm:$0xf]
  %v4949 = vld [vmem:[%s4928 + $0x78] sm:$0xf]
  %v4950 = vld [vmem:[%s4928 + $0x7c] sm:$0xf]
  %v4951 = vld [vmem:[%s4928 + $0x84] sm:$0xf]
  %v4952 = vld [vmem:[%s4928 + $0x88] sm:$0xf]
  %v4953 = vld [vmem:[%s4928 + $0x90] sm:$0xf]
  %v4954 = vld [vmem:[%s4928 + $0x94] sm:$0xf]
  %v4955 = vld [vmem:[%s4928 + $0x9c] sm:$0xf]
  %v4956 = vld [vmem:[%s4928 + $0xa0] sm:$0xf]
  %v4957 = vld [vmem:[%s4928 + $0xa8] sm:$0xf]
  %v4958 = vld [vmem:[%s4928 + $0xac] sm:$0xf]
  %v4959 = vld [vmem:[%s4928 + $0xb4] sm:$0xf]
  %v4960 = vld [vmem:[%s4928 + $0xb8] sm:$0xf]
  %v4961 = vld [vmem:[%s4928 + $0xd8] sm:$0xf]
  %v4962 = vld [vmem:[%s4928 + $0xdc] sm:$0xf]
  %v4963 = vld [vmem:[%s4928 + $0xe4] sm:$0xf]
  %v4964 = vld [vmem:[%s4928 + $0xe8] sm:$0xf]
  %v4965 = vld [vmem:[%s4928 + $0xf0] sm:$0xf]
  %v4966 = vld [vmem:[%s4928 + $0xf4] sm:$0xf]
  %v4967 = vld [vmem:[%s4928 + $0xfc] sm:$0xf]
  %v4968 = vld [vmem:[%s4928 + $0x100] sm:$0xf]
  %v4969 = vld [vmem:[%s4928 + $0x108] sm:$0xf]
  %v4970 = vld [vmem:[%s4928 + $0x10c] sm:$0xf]
  %v4971 = vld [vmem:[%s4928 + $0x114] sm:$0xf]
  %v4972 = vld [vmem:[%s4928 + $0x118] sm:$0xf]
  %v4973 = vld [vmem:[%s4928 + $0x120] sm:$0xf]
  %v4974 = vld [vmem:[%s4928 + $0x124] sm:$0xf]
  %v4975 = vld [vmem:[%s4928 + $0x12c] sm:$0xf]
  %v4976 = vld [vmem:[%s4928 + $0x130] sm:$0xf]
  %v4977 = vld [vmem:[%s4928 + $0x138] sm:$0xf]
  %v4978 = vld [vmem:[%s4928 + $0x13c] sm:$0xf]
  %v4979 = vld [vmem:[%s4928 + $0x144] sm:$0xf]
  %v4980 = vld [vmem:[%s4928 + $0x148] sm:$0xf]
  %v4981 = vld [vmem:[%s4928 + $0x150] sm:$0xf]
  %v4982 = vld [vmem:[%s4928 + $0x154] sm:$0xf]
  %v4983 = vld [vmem:[%s4928 + $0x15c] sm:$0xf]
  %v4984 = vld [vmem:[%s4928 + $0x160] sm:$0xf]
  %v4985 = vld [vmem:[%s4928 + $0x168] sm:$0xf]
  %v4986 = vld [vmem:[%s4928 + $0x16c] sm:$0xf]
  %v4987 = vld [vmem:[%s4928 + $0x174] sm:$0xf]
  %v4988 = vld [vmem:[%s4928 + $0x178] sm:$0xf]
  %v4989 = vld [vmem:[%s4928 + $0x180] sm:$0xf]
  %v4990 = vld [vmem:[%s4928 + $0x184] sm:$0xf]
  %v4991 = vld [vmem:[%s4928 + $0x18c] sm:$0xf]
  %v4992 = vld [vmem:[%s4928 + $0x190] sm:$0xf]
  %v4993 = vunpack.c.l.bf16 %v4929
  %v4994 = vunpack.c.l.bf16 %v4930
  %v4995 = vunpack.c.l.bf16 %v4931
  %v4996 = vunpack.c.l.bf16 %v4932
  %v4997 = vunpack.c.l.bf16 %v4933
  %v4998 = vunpack.c.l.bf16 %v4934
  %v4999 = vunpack.c.l.bf16 %v4935
  %v5000 = vunpack.c.l.bf16 %v4936
  %v5001 = vunpack.c.l.bf16 %v4937
  %v5002 = vunpack.c.l.bf16 %v4938
  %v5003 = vunpack.c.l.bf16 %v4939
  %v5004 = vunpack.c.l.bf16 %v4940
  %v5005 = vunpack.c.l.bf16 %v4941
  %v5006 = vunpack.c.l.bf16 %v4942
  %v5007 = vunpack.c.l.bf16 %v4943
  %v5008 = vunpack.c.l.bf16 %v4944
  %v5009 = vunpack.c.l.bf16 %v4945
  %v5010 = vunpack.c.l.bf16 %v4946
  %v5011 = vunpack.c.l.bf16 %v4947
  %v5012 = vunpack.c.l.bf16 %v4948
  %v5013 = vunpack.c.l.bf16 %v4949
  %v5014 = vunpack.c.l.bf16 %v4950
  %v5015 = vunpack.c.l.bf16 %v4951
  %v5016 = vunpack.c.l.bf16 %v4952
  %v5017 = vunpack.c.l.bf16 %v4953
  %v5018 = vunpack.c.l.bf16 %v4954
  %v5019 = vunpack.c.l.bf16 %v4955
  %v5020 = vunpack.c.l.bf16 %v4956
  %v5021 = vunpack.c.l.bf16 %v4957
  %v5022 = vunpack.c.l.bf16 %v4958
  %v5023 = vunpack.c.l.bf16 %v4959
  %v5024 = vunpack.c.l.bf16 %v4960
  %v5025 = vunpack.c.l.bf16 %v4961
  %v5026 = vunpack.c.l.bf16 %v4962
  %v5027 = vunpack.c.l.bf16 %v4963
  %v5028 = vunpack.c.l.bf16 %v4964
  %v5029 = vunpack.c.l.bf16 %v4965
  %v5030 = vunpack.c.l.bf16 %v4966
  %v5031 = vunpack.c.l.bf16 %v4967
  %v5032 = vunpack.c.l.bf16 %v4968
  %v5033 = vunpack.c.l.bf16 %v4969
  %v5034 = vunpack.c.l.bf16 %v4970
  %v5035 = vunpack.c.l.bf16 %v4971
  %v5036 = vunpack.c.l.bf16 %v4972
  %v5037 = vunpack.c.l.bf16 %v4973
  %v5038 = vunpack.c.l.bf16 %v4974
  %v5039 = vunpack.c.l.bf16 %v4975
  %v5040 = vunpack.c.l.bf16 %v4976
  %v5041 = vunpack.c.l.bf16 %v4977
  %v5042 = vunpack.c.l.bf16 %v4978
  %v5043 = vunpack.c.l.bf16 %v4979
  %v5044 = vunpack.c.l.bf16 %v4980
  %v5045 = vunpack.c.l.bf16 %v4981
  %v5046 = vunpack.c.l.bf16 %v4982
  %v5047 = vunpack.c.l.bf16 %v4983
  %v5048 = vunpack.c.l.bf16 %v4984
  %v5049 = vunpack.c.l.bf16 %v4985
  %v5050 = vunpack.c.l.bf16 %v4986
  %v5051 = vunpack.c.l.bf16 %v4987
  %v5052 = vunpack.c.l.bf16 %v4988
  %v5053 = vunpack.c.l.bf16 %v4989
  %v5054 = vunpack.c.l.bf16 %v4990
  %v5055 = vunpack.c.l.bf16 %v4991
  %v5056 = vunpack.c.l.bf16 %v4992
  %v5057 = vlaneseq
  %v5058 = vshrl.u32 %v5057, 7
  %v5059 = vsub.s32 6, %v5058
  %v5060 = vrot.slane %v2276, %v5059
  %v5061 = vmul.f32 %v4993, %v5060
  %v5062 = vmul.f32 %v4994, %v5060
  %v5063 = vmul.f32 %v4995, %v5060
  %v5064 = vmul.f32 %v4996, %v5060
  %v5065 = vmul.f32 %v4997, %v5060
  %v5066 = vmul.f32 %v4998, %v5060
  %v5067 = vmul.f32 %v4999, %v5060
  %v5068 = vmul.f32 %v5000, %v5060
  %v5069 = vmul.f32 %v5001, %v5060
  %v5070 = vmul.f32 %v5002, %v5060
  %v5071 = vmul.f32 %v5003, %v5060
  %v5072 = vmul.f32 %v5004, %v5060
  %v5073 = vmul.f32 %v5005, %v5060
  %v5074 = vmul.f32 %v5006, %v5060
  %v5075 = vmul.f32 %v5007, %v5060
  %v5076 = vmul.f32 %v5008, %v5060
  %v5077 = vmul.f32 %v5009, %v5060
  %v5078 = vmul.f32 %v5010, %v5060
  %v5079 = vmul.f32 %v5011, %v5060
  %v5080 = vmul.f32 %v5012, %v5060
  %v5081 = vmul.f32 %v5013, %v5060
  %v5082 = vmul.f32 %v5014, %v5060
  %v5083 = vmul.f32 %v5015, %v5060
  %v5084 = vmul.f32 %v5016, %v5060
  %v5085 = vmul.f32 %v5017, %v5060
  %v5086 = vmul.f32 %v5018, %v5060
  %v5087 = vmul.f32 %v5019, %v5060
  %v5088 = vmul.f32 %v5020, %v5060
  %v5089 = vmul.f32 %v5021, %v5060
  %v5090 = vmul.f32 %v5022, %v5060
  %v5091 = vmul.f32 %v5023, %v5060
  %v5092 = vmul.f32 %v5024, %v5060
  %v5093 = vmul.f32 %v5025, %v5060
  %v5094 = vmul.f32 %v5026, %v5060
  %v5095 = vmul.f32 %v5027, %v5060
  %v5096 = vmul.f32 %v5028, %v5060
  %v5097 = vmul.f32 %v5029, %v5060
  %v5098 = vmul.f32 %v5030, %v5060
  %v5099 = vmul.f32 %v5031, %v5060
  %v5100 = vmul.f32 %v5032, %v5060
  %v5101 = vmul.f32 %v5033, %v5060
  %v5102 = vmul.f32 %v5034, %v5060
  %v5103 = vmul.f32 %v5035, %v5060
  %v5104 = vmul.f32 %v5036, %v5060
  %v5105 = vmul.f32 %v5037, %v5060
  %v5106 = vmul.f32 %v5038, %v5060
  %v5107 = vmul.f32 %v5039, %v5060
  %v5108 = vmul.f32 %v5040, %v5060
  %v5109 = vmul.f32 %v5041, %v5060
  %v5110 = vmul.f32 %v5042, %v5060
  %v5111 = vmul.f32 %v5043, %v5060
  %v5112 = vmul.f32 %v5044, %v5060
  %v5113 = vmul.f32 %v5045, %v5060
  %v5114 = vmul.f32 %v5046, %v5060
  %v5115 = vmul.f32 %v5047, %v5060
  %v5116 = vmul.f32 %v5048, %v5060
  %v5117 = vmul.f32 %v5049, %v5060
  %v5118 = vmul.f32 %v5050, %v5060
  %v5119 = vmul.f32 %v5051, %v5060
  %v5120 = vmul.f32 %v5052, %v5060
  %v5121 = vmul.f32 %v5053, %v5060
  %v5122 = vmul.f32 %v5054, %v5060
  %v5123 = vmul.f32 %v5055, %v5060
  %v5124 = vmul.f32 %v5056, %v5060
  %v5125 = vadd.f32 %v4864, %v5061
  %v5126 = vadd.f32 %v4865, %v5062
  %v5127 = vadd.f32 %v4866, %v5063
  %v5128 = vadd.f32 %v4867, %v5064
  %v5129 = vadd.f32 %v4868, %v5065
  %v5130 = vadd.f32 %v4869, %v5066
  %v5131 = vadd.f32 %v4870, %v5067
  %v5132 = vadd.f32 %v4871, %v5068
  %v5133 = vadd.f32 %v4872, %v5069
  %v5134 = vadd.f32 %v4873, %v5070
  %v5135 = vadd.f32 %v4874, %v5071
  %v5136 = vadd.f32 %v4875, %v5072
  %v5137 = vadd.f32 %v4876, %v5073
  %v5138 = vadd.f32 %v4877, %v5074
  %v5139 = vadd.f32 %v4878, %v5075
  %v5140 = vadd.f32 %v4879, %v5076
  %v5141 = vadd.f32 %v4880, %v5077
  %v5142 = vadd.f32 %v4881, %v5078
  %v5143 = vadd.f32 %v4882, %v5079
  %v5144 = vadd.f32 %v4883, %v5080
  %v5145 = vadd.f32 %v4884, %v5081
  %v5146 = vadd.f32 %v4885, %v5082
  %v5147 = vadd.f32 %v4886, %v5083
  %v5148 = vadd.f32 %v4887, %v5084
  %v5149 = vadd.f32 %v4888, %v5085
  %v5150 = vadd.f32 %v4889, %v5086
  %v5151 = vadd.f32 %v4890, %v5087
  %v5152 = vadd.f32 %v4891, %v5088
  %v5153 = vadd.f32 %v4892, %v5089
  %v5154 = vadd.f32 %v4893, %v5090
  %v5155 = vadd.f32 %v4894, %v5091
  %v5156 = vadd.f32 %v4895, %v5092
  %v5157 = vadd.f32 %v4896, %v5093
  %v5158 = vadd.f32 %v4897, %v5094
  %v5159 = vadd.f32 %v4898, %v5095
  %v5160 = vadd.f32 %v4899, %v5096
  %v5161 = vadd.f32 %v4900, %v5097
  %v5162 = vadd.f32 %v4901, %v5098
  %v5163 = vadd.f32 %v4902, %v5099
  %v5164 = vadd.f32 %v4903, %v5100
  %v5165 = vadd.f32 %v4904, %v5101
  %v5166 = vadd.f32 %v4905, %v5102
  %v5167 = vadd.f32 %v4906, %v5103
  %v5168 = vadd.f32 %v4907, %v5104
  %v5169 = vadd.f32 %v4908, %v5105
  %v5170 = vadd.f32 %v4909, %v5106
  %v5171 = vadd.f32 %v4910, %v5107
  %v5172 = vadd.f32 %v4911, %v5108
  %v5173 = vadd.f32 %v4912, %v5109
  %v5174 = vadd.f32 %v4913, %v5110
  %v5175 = vadd.f32 %v4914, %v5111
  %v5176 = vadd.f32 %v4915, %v5112
  %v5177 = vadd.f32 %v4916, %v5113
  %v5178 = vadd.f32 %v4917, %v5114
  %v5179 = vadd.f32 %v4918, %v5115
  %v5180 = vadd.f32 %v4919, %v5116
  %v5181 = vadd.f32 %v4920, %v5117
  %v5182 = vadd.f32 %v4921, %v5118
  %v5183 = vadd.f32 %v4922, %v5119
  %v5184 = vadd.f32 %v4923, %v5120
  %v5185 = vadd.f32 %v4924, %v5121
  %v5186 = vadd.f32 %v4925, %v5122
  %v5187 = vadd.f32 %v4926, %v5123
  %v5188 = vadd.f32 %v4927, %v5124
  %v5189 = vld [vmem:[%s4928 + $0x8] sm:$0x1]
  %v5190 = vld [vmem:[%s4928 + $0x14] sm:$0x1]
  %v5191 = vld [vmem:[%s4928 + $0x20] sm:$0x1]
  %v5192 = vld [vmem:[%s4928 + $0x2c] sm:$0x1]
  %v5193 = vld [vmem:[%s4928 + $0x38] sm:$0x1]
  %v5194 = vld [vmem:[%s4928 + $0x44] sm:$0x1]
  %v5195 = vld [vmem:[%s4928 + $0x50] sm:$0x1]
  %v5196 = vld [vmem:[%s4928 + $0x5c] sm:$0x1]
  %v5197 = vld [vmem:[%s4928 + $0x68] sm:$0x1]
  %v5198 = vld [vmem:[%s4928 + $0x74] sm:$0x1]
  %v5199 = vld [vmem:[%s4928 + $0x80] sm:$0x1]
  %v5200 = vld [vmem:[%s4928 + $0x8c] sm:$0x1]
  %v5201 = vld [vmem:[%s4928 + $0x98] sm:$0x1]
  %v5202 = vld [vmem:[%s4928 + $0xa4] sm:$0x1]
  %v5203 = vld [vmem:[%s4928 + $0xb0] sm:$0x1]
  %v5204 = vld [vmem:[%s4928 + $0xbc] sm:$0x1]
  %v5205 = vld [vmem:[%s4928 + $0xe0] sm:$0x1]
  %v5206 = vld [vmem:[%s4928 + $0xec] sm:$0x1]
  %v5207 = vld [vmem:[%s4928 + $0xf8] sm:$0x1]
  %v5208 = vld [vmem:[%s4928 + $0x104] sm:$0x1]
  %v5209 = vld [vmem:[%s4928 + $0x110] sm:$0x1]
  %v5210 = vld [vmem:[%s4928 + $0x11c] sm:$0x1]
  %v5211 = vld [vmem:[%s4928 + $0x128] sm:$0x1]
  %v5212 = vld [vmem:[%s4928 + $0x134] sm:$0x1]
  %v5213 = vld [vmem:[%s4928 + $0x140] sm:$0x1]
  %v5214 = vld [vmem:[%s4928 + $0x14c] sm:$0x1]
  %v5215 = vld [vmem:[%s4928 + $0x158] sm:$0x1]
  %v5216 = vld [vmem:[%s4928 + $0x164] sm:$0x1]
  %v5217 = vld [vmem:[%s4928 + $0x170] sm:$0x1]
  %v5218 = vld [vmem:[%s4928 + $0x17c] sm:$0x1]
  %v5219 = vld [vmem:[%s4928 + $0x188] sm:$0x1]
  %v5220 = vld [vmem:[%s4928 + $0x194] sm:$0x1]
  %v5221 = vunpack.c.l.bf16 %v5189
  %v5222 = vunpack.c.l.bf16 %v5190
  %v5223 = vunpack.c.l.bf16 %v5191
  %v5224 = vunpack.c.l.bf16 %v5192
  %v5225 = vunpack.c.l.bf16 %v5193
  %v5226 = vunpack.c.l.bf16 %v5194
  %v5227 = vunpack.c.l.bf16 %v5195
  %v5228 = vunpack.c.l.bf16 %v5196
  %v5229 = vunpack.c.l.bf16 %v5197
  %v5230 = vunpack.c.l.bf16 %v5198
  %v5231 = vunpack.c.l.bf16 %v5199
  %v5232 = vunpack.c.l.bf16 %v5200
  %v5233 = vunpack.c.l.bf16 %v5201
  %v5234 = vunpack.c.l.bf16 %v5202
  %v5235 = vunpack.c.l.bf16 %v5203
  %v5236 = vunpack.c.l.bf16 %v5204
  %v5237 = vunpack.c.l.bf16 %v5205
  %v5238 = vunpack.c.l.bf16 %v5206
  %v5239 = vunpack.c.l.bf16 %v5207
  %v5240 = vunpack.c.l.bf16 %v5208
  %v5241 = vunpack.c.l.bf16 %v5209
  %v5242 = vunpack.c.l.bf16 %v5210
  %v5243 = vunpack.c.l.bf16 %v5211
  %v5244 = vunpack.c.l.bf16 %v5212
  %v5245 = vunpack.c.l.bf16 %v5213
  %v5246 = vunpack.c.l.bf16 %v5214
  %v5247 = vunpack.c.l.bf16 %v5215
  %v5248 = vunpack.c.l.bf16 %v5216
  %v5249 = vunpack.c.l.bf16 %v5217
  %v5250 = vunpack.c.l.bf16 %v5218
  %v5251 = vunpack.c.l.bf16 %v5219
  %v5252 = vunpack.c.l.bf16 %v5220
  %v5253 = vlaneseq
  %v5254 = vshrl.u32 %v5253, 7
  %v5255 = vsub.s32 7, %v5254
  %v5256 = vrot.slane %v2276, %v5255
  %v5257 = vmul.f32 %v4993, %v5256
  %v5258 = vmul.f32 %v4994, %v5256
  %v5259 = vmul.f32 %v5221, %v5256
  %v5260 = vmul.f32 %v4995, %v5256
  %v5261 = vmul.f32 %v4996, %v5256
  %v5262 = vmul.f32 %v5222, %v5256
  %v5263 = vmul.f32 %v4997, %v5256
  %v5264 = vmul.f32 %v4998, %v5256
  %v5265 = vmul.f32 %v5223, %v5256
  %v5266 = vmul.f32 %v4999, %v5256
  %v5267 = vmul.f32 %v5000, %v5256
  %v5268 = vmul.f32 %v5224, %v5256
  %v5269 = vmul.f32 %v5001, %v5256
  %v5270 = vmul.f32 %v5002, %v5256
  %v5271 = vmul.f32 %v5225, %v5256
  %v5272 = vmul.f32 %v5003, %v5256
  %v5273 = vmul.f32 %v5004, %v5256
  %v5274 = vmul.f32 %v5226, %v5256
  %v5275 = vmul.f32 %v5005, %v5256
  %v5276 = vmul.f32 %v5006, %v5256
  %v5277 = vmul.f32 %v5227, %v5256
  %v5278 = vmul.f32 %v5007, %v5256
  %v5279 = vmul.f32 %v5008, %v5256
  %v5280 = vmul.f32 %v5228, %v5256
  %v5281 = vmul.f32 %v5009, %v5256
  %v5282 = vmul.f32 %v5010, %v5256
  %v5283 = vmul.f32 %v5229, %v5256
  %v5284 = vmul.f32 %v5011, %v5256
  %v5285 = vmul.f32 %v5012, %v5256
  %v5286 = vmul.f32 %v5230, %v5256
  %v5287 = vmul.f32 %v5013, %v5256
  %v5288 = vmul.f32 %v5014, %v5256
  %v5289 = vmul.f32 %v5231, %v5256
  %v5290 = vmul.f32 %v5015, %v5256
  %v5291 = vmul.f32 %v5016, %v5256
  %v5292 = vmul.f32 %v5232, %v5256
  %v5293 = vmul.f32 %v5017, %v5256
  %v5294 = vmul.f32 %v5018, %v5256
  %v5295 = vmul.f32 %v5233, %v5256
  %v5296 = vmul.f32 %v5019, %v5256
  %v5297 = vmul.f32 %v5020, %v5256
  %v5298 = vmul.f32 %v5234, %v5256
  %v5299 = vmul.f32 %v5021, %v5256
  %v5300 = vmul.f32 %v5022, %v5256
  %v5301 = vmul.f32 %v5235, %v5256
  %v5302 = vmul.f32 %v5023, %v5256
  %v5303 = vmul.f32 %v5024, %v5256
  %v5304 = vmul.f32 %v5236, %v5256
  %v5305 = vmul.f32 %v5025, %v5256
  %v5306 = vmul.f32 %v5026, %v5256
  %v5307 = vmul.f32 %v5237, %v5256
  %v5308 = vmul.f32 %v5027, %v5256
  %v5309 = vmul.f32 %v5028, %v5256
  %v5310 = vmul.f32 %v5238, %v5256
  %v5311 = vmul.f32 %v5029, %v5256
  %v5312 = vmul.f32 %v5030, %v5256
  %v5313 = vmul.f32 %v5239, %v5256
  %v5314 = vmul.f32 %v5031, %v5256
  %v5315 = vmul.f32 %v5032, %v5256
  %v5316 = vmul.f32 %v5240, %v5256
  %v5317 = vmul.f32 %v5033, %v5256
  %v5318 = vmul.f32 %v5034, %v5256
  %v5319 = vmul.f32 %v5241, %v5256
  %v5320 = vmul.f32 %v5035, %v5256
  %v5321 = vmul.f32 %v5036, %v5256
  %v5322 = vmul.f32 %v5242, %v5256
  %v5323 = vmul.f32 %v5037, %v5256
  %v5324 = vmul.f32 %v5038, %v5256
  %v5325 = vmul.f32 %v5243, %v5256
  %v5326 = vmul.f32 %v5039, %v5256
  %v5327 = vmul.f32 %v5040, %v5256
  %v5328 = vmul.f32 %v5244, %v5256
  %v5329 = vmul.f32 %v5041, %v5256
  %v5330 = vmul.f32 %v5042, %v5256
  %v5331 = vmul.f32 %v5245, %v5256
  %v5332 = vmul.f32 %v5043, %v5256
  %v5333 = vmul.f32 %v5044, %v5256
  %v5334 = vmul.f32 %v5246, %v5256
  %v5335 = vmul.f32 %v5045, %v5256
  %v5336 = vmul.f32 %v5046, %v5256
  %v5337 = vmul.f32 %v5247, %v5256
  %v5338 = vmul.f32 %v5047, %v5256
  %v5339 = vmul.f32 %v5048, %v5256
  %v5340 = vmul.f32 %v5248, %v5256
  %v5341 = vmul.f32 %v5049, %v5256
  %v5342 = vmul.f32 %v5050, %v5256
  %v5343 = vmul.f32 %v5249, %v5256
  %v5344 = vmul.f32 %v5051, %v5256
  %v5345 = vmul.f32 %v5052, %v5256
  %v5346 = vmul.f32 %v5250, %v5256
  %v5347 = vmul.f32 %v5053, %v5256
  %v5348 = vmul.f32 %v5054, %v5256
  %v5349 = vmul.f32 %v5251, %v5256
  %v5350 = vmul.f32 %v5055, %v5256
  %v5351 = vmul.f32 %v5056, %v5256
  %v5352 = vmul.f32 %v5252, %v5256
  %v5449 = vrot.slane %v5257, 1
  %v5450 = vrot.slane %v5258, 1
  %v5451 = vsel %vm2734, %v5449, %v5450
  %v5452 = vrot.slane %v5259, 1
  %v5453 = vsel %vm2734, %v5450, %v5452
  %v5454 = vrot.slane %v5260, 1
  %v5455 = vrot.slane %v5261, 1
  %v5456 = vsel %vm2734, %v5454, %v5455
  %v5457 = vrot.slane %v5262, 1
  %v5458 = vsel %vm2734, %v5455, %v5457
  %v5459 = vrot.slane %v5263, 1
  %v5460 = vrot.slane %v5264, 1
  %v5461 = vsel %vm2734, %v5459, %v5460
  %v5462 = vrot.slane %v5265, 1
  %v5463 = vsel %vm2734, %v5460, %v5462
  %v5464 = vrot.slane %v5266, 1
  %v5465 = vrot.slane %v5267, 1
  %v5466 = vsel %vm2734, %v5464, %v5465
  %v5467 = vrot.slane %v5268, 1
  %v5468 = vsel %vm2734, %v5465, %v5467
  %v5469 = vrot.slane %v5269, 1
  %v5470 = vrot.slane %v5270, 1
  %v5471 = vsel %vm2734, %v5469, %v5470
  %v5472 = vrot.slane %v5271, 1
  %v5473 = vsel %vm2734, %v5470, %v5472
  %v5474 = vrot.slane %v5272, 1
  %v5475 = vrot.slane %v5273, 1
  %v5476 = vsel %vm2734, %v5474, %v5475
  %v5477 = vrot.slane %v5274, 1
  %v5478 = vsel %vm2734, %v5475, %v5477
  %v5479 = vrot.slane %v5275, 1
  %v5480 = vrot.slane %v5276, 1
  %v5481 = vsel %vm2734, %v5479, %v5480
  %v5482 = vrot.slane %v5277, 1
  %v5483 = vsel %vm2734, %v5480, %v5482
  %v5484 = vrot.slane %v5278, 1
  %v5485 = vrot.slane %v5279, 1
  %v5486 = vsel %vm2734, %v5484, %v5485
  %v5487 = vrot.slane %v5280, 1
  %v5488 = vsel %vm2734, %v5485, %v5487
  %v5489 = vrot.slane %v5281, 1
  %v5490 = vrot.slane %v5282, 1
  %v5491 = vsel %vm2734, %v5489, %v5490
  %v5492 = vrot.slane %v5283, 1
  %v5493 = vsel %vm2734, %v5490, %v5492
  %v5494 = vrot.slane %v5284, 1
  %v5495 = vrot.slane %v5285, 1
  %v5496 = vsel %vm2734, %v5494, %v5495
  %v5497 = vrot.slane %v5286, 1
  %v5498 = vsel %vm2734, %v5495, %v5497
  %v5499 = vrot.slane %v5287, 1
  %v5500 = vrot.slane %v5288, 1
  %v5501 = vsel %vm2734, %v5499, %v5500
  %v5502 = vrot.slane %v5289, 1
  %v5503 = vsel %vm2734, %v5500, %v5502
  %v5504 = vrot.slane %v5290, 1
  %v5505 = vrot.slane %v5291, 1
  %v5506 = vsel %vm2734, %v5504, %v5505
  %v5507 = vrot.slane %v5292, 1
  %v5508 = vsel %vm2734, %v5505, %v5507
  %v5509 = vrot.slane %v5293, 1
  %v5510 = vrot.slane %v5294, 1
  %v5511 = vsel %vm2734, %v5509, %v5510
  %v5512 = vrot.slane %v5295, 1
  %v5513 = vsel %vm2734, %v5510, %v5512
  %v5514 = vrot.slane %v5296, 1
  %v5515 = vrot.slane %v5297, 1
  %v5516 = vsel %vm2734, %v5514, %v5515
  %v5517 = vrot.slane %v5298, 1
  %v5518 = vsel %vm2734, %v5515, %v5517
  %v5519 = vrot.slane %v5299, 1
  %v5520 = vrot.slane %v5300, 1
  %v5521 = vsel %vm2734, %v5519, %v5520
  %v5522 = vrot.slane %v5301, 1
  %v5523 = vsel %vm2734, %v5520, %v5522
  %v5524 = vrot.slane %v5302, 1
  %v5525 = vrot.slane %v5303, 1
  %v5526 = vsel %vm2734, %v5524, %v5525
  %v5527 = vrot.slane %v5304, 1
  %v5528 = vsel %vm2734, %v5525, %v5527
  %v5529 = vrot.slane %v5305, 1
  %v5530 = vrot.slane %v5306, 1
  %v5531 = vsel %vm2734, %v5529, %v5530
  %v5532 = vrot.slane %v5307, 1
  %v5533 = vsel %vm2734, %v5530, %v5532
  %v5534 = vrot.slane %v5308, 1
  %v5535 = vrot.slane %v5309, 1
  %v5536 = vsel %vm2734, %v5534, %v5535
  %v5537 = vrot.slane %v5310, 1
  %v5538 = vsel %vm2734, %v5535, %v5537
  %v5539 = vrot.slane %v5311, 1
  %v5540 = vrot.slane %v5312, 1
  %v5541 = vsel %vm2734, %v5539, %v5540
  %v5542 = vrot.slane %v5313, 1
  %v5543 = vsel %vm2734, %v5540, %v5542
  %v5544 = vrot.slane %v5314, 1
  %v5545 = vrot.slane %v5315, 1
  %v5546 = vsel %vm2734, %v5544, %v5545
  %v5547 = vrot.slane %v5316, 1
  %v5548 = vsel %vm2734, %v5545, %v5547
  %v5549 = vrot.slane %v5317, 1
  %v5550 = vrot.slane %v5318, 1
  %v5551 = vsel %vm2734, %v5549, %v5550
  %v5552 = vrot.slane %v5319, 1
  %v5553 = vsel %vm2734, %v5550, %v5552
  %v5554 = vrot.slane %v5320, 1
  %v5555 = vrot.slane %v5321, 1
  %v5556 = vsel %vm2734, %v5554, %v5555
  %v5557 = vrot.slane %v5322, 1
  %v5558 = vsel %vm2734, %v5555, %v5557
  %v5559 = vrot.slane %v5323, 1
  %v5560 = vrot.slane %v5324, 1
  %v5561 = vsel %vm2734, %v5559, %v5560
  %v5562 = vrot.slane %v5325, 1
  %v5563 = vsel %vm2734, %v5560, %v5562
  %v5564 = vrot.slane %v5326, 1
  %v5565 = vrot.slane %v5327, 1
  %v5566 = vsel %vm2734, %v5564, %v5565
  %v5567 = vrot.slane %v5328, 1
  %v5568 = vsel %vm2734, %v5565, %v5567
  %v5569 = vrot.slane %v5329, 1
  %v5570 = vrot.slane %v5330, 1
  %v5571 = vsel %vm2734, %v5569, %v5570
  %v5572 = vrot.slane %v5331, 1
  %v5573 = vsel %vm2734, %v5570, %v5572
  %v5574 = vrot.slane %v5332, 1
  %v5575 = vrot.slane %v5333, 1
  %v5576 = vsel %vm2734, %v5574, %v5575
  %v5577 = vrot.slane %v5334, 1
  %v5578 = vsel %vm2734, %v5575, %v5577
  %v5579 = vrot.slane %v5335, 1
  %v5580 = vrot.slane %v5336, 1
  %v5581 = vsel %vm2734, %v5579, %v5580
  %v5582 = vrot.slane %v5337, 1
  %v5583 = vsel %vm2734, %v5580, %v5582
  %v5584 = vrot.slane %v5338, 1
  %v5585 = vrot.slane %v5339, 1
  %v5586 = vsel %vm2734, %v5584, %v5585
  %v5587 = vrot.slane %v5340, 1
  %v5588 = vsel %vm2734, %v5585, %v5587
  %v5589 = vrot.slane %v5341, 1
  %v5590 = vrot.slane %v5342, 1
  %v5591 = vsel %vm2734, %v5589, %v5590
  %v5592 = vrot.slane %v5343, 1
  %v5593 = vsel %vm2734, %v5590, %v5592
  %v5594 = vrot.slane %v5344, 1
  %v5595 = vrot.slane %v5345, 1
  %v5596 = vsel %vm2734, %v5594, %v5595
  %v5597 = vrot.slane %v5346, 1
  %v5598 = vsel %vm2734, %v5595, %v5597
  %v5599 = vrot.slane %v5347, 1
  %v5600 = vrot.slane %v5348, 1
  %v5601 = vsel %vm2734, %v5599, %v5600
  %v5602 = vrot.slane %v5349, 1
  %v5603 = vsel %vm2734, %v5600, %v5602
  %v5604 = vrot.slane %v5350, 1
  %v5605 = vrot.slane %v5351, 1
  %v5606 = vsel %vm2734, %v5604, %v5605
  %v5607 = vrot.slane %v5352, 1
  %v5608 = vsel %vm2734, %v5605, %v5607
  %v5673 = vadd.f32 %v5125, %v5451
  %v5674 = vadd.f32 %v5126, %v5453
  %v5675 = vadd.f32 %v5127, %v5456
  %v5676 = vadd.f32 %v5128, %v5458
  %v5677 = vadd.f32 %v5129, %v5461
  %v5678 = vadd.f32 %v5130, %v5463
  %v5679 = vadd.f32 %v5131, %v5466
  %v5680 = vadd.f32 %v5132, %v5468
  %v5681 = vadd.f32 %v5133, %v5471
  %v5682 = vadd.f32 %v5134, %v5473
  %v5683 = vadd.f32 %v5135, %v5476
  %v5684 = vadd.f32 %v5136, %v5478
  %v5685 = vadd.f32 %v5137, %v5481
  %v5686 = vadd.f32 %v5138, %v5483
  %v5687 = vadd.f32 %v5139, %v5486
  %v5688 = vadd.f32 %v5140, %v5488
  %v5689 = vadd.f32 %v5141, %v5491
  %v5690 = vadd.f32 %v5142, %v5493
  %v5691 = vadd.f32 %v5143, %v5496
  %v5692 = vadd.f32 %v5144, %v5498
  %v5693 = vadd.f32 %v5145, %v5501
  %v5694 = vadd.f32 %v5146, %v5503
  %v5695 = vadd.f32 %v5147, %v5506
  %v5696 = vadd.f32 %v5148, %v5508
  %v5697 = vadd.f32 %v5149, %v5511
  %v5698 = vadd.f32 %v5150, %v5513
  %v5699 = vadd.f32 %v5151, %v5516
  %v5700 = vadd.f32 %v5152, %v5518
  %v5701 = vadd.f32 %v5153, %v5521
  %v5702 = vadd.f32 %v5154, %v5523
  %v5703 = vadd.f32 %v5155, %v5526
  %v5704 = vadd.f32 %v5156, %v5528
  %v5705 = vadd.f32 %v5157, %v5531
  %v5706 = vadd.f32 %v5158, %v5533
  %v5707 = vadd.f32 %v5159, %v5536
  %v5708 = vadd.f32 %v5160, %v5538
  %v5709 = vadd.f32 %v5161, %v5541
  %v5710 = vadd.f32 %v5162, %v5543
  %v5711 = vadd.f32 %v5163, %v5546
  %v5712 = vadd.f32 %v5164, %v5548
  %v5713 = vadd.f32 %v5165, %v5551
  %v5714 = vadd.f32 %v5166, %v5553
  %v5715 = vadd.f32 %v5167, %v5556
  %v5716 = vadd.f32 %v5168, %v5558
  %v5717 = vadd.f32 %v5169, %v5561
  %v5718 = vadd.f32 %v5170, %v5563
  %v5719 = vadd.f32 %v5171, %v5566
  %v5720 = vadd.f32 %v5172, %v5568
  %v5721 = vadd.f32 %v5173, %v5571
  %v5722 = vadd.f32 %v5174, %v5573
  %v5723 = vadd.f32 %v5175, %v5576
  %v5724 = vadd.f32 %v5176, %v5578
  %v5725 = vadd.f32 %v5177, %v5581
  %v5726 = vadd.f32 %v5178, %v5583
  %v5727 = vadd.f32 %v5179, %v5586
  %v5728 = vadd.f32 %v5180, %v5588
  %v5729 = vadd.f32 %v5181, %v5591
  %v5730 = vadd.f32 %v5182, %v5593
  %v5731 = vadd.f32 %v5183, %v5596
  %v5732 = vadd.f32 %v5184, %v5598
  %v5733 = vadd.f32 %v5185, %v5601
  %v5734 = vadd.f32 %v5186, %v5603
  %v5735 = vadd.f32 %v5187, %v5606
  %v5736 = vadd.f32 %v5188, %v5608
  %v5737 = vld [vmem:[%s4928] sm:$0xe]
  %v5738 = vld [vmem:[%s4928 + $0xc] sm:$0xe]
  %v5739 = vld [vmem:[%s4928 + $0x18] sm:$0xe]
  %v5740 = vld [vmem:[%s4928 + $0x24] sm:$0xe]
  %v5741 = vld [vmem:[%s4928 + $0x30] sm:$0xe]
  %v5742 = vld [vmem:[%s4928 + $0x3c] sm:$0xe]
  %v5743 = vld [vmem:[%s4928 + $0x48] sm:$0xe]
  %v5744 = vld [vmem:[%s4928 + $0x54] sm:$0xe]
  %v5745 = vld [vmem:[%s4928 + $0x60] sm:$0xe]
  %v5746 = vld [vmem:[%s4928 + $0x6c] sm:$0xe]
  %v5747 = vld [vmem:[%s4928 + $0x78] sm:$0xe]
  %v5748 = vld [vmem:[%s4928 + $0x84] sm:$0xe]
  %v5749 = vld [vmem:[%s4928 + $0x90] sm:$0xe]
  %v5750 = vld [vmem:[%s4928 + $0x9c] sm:$0xe]
  %v5751 = vld [vmem:[%s4928 + $0xa8] sm:$0xe]
  %v5752 = vld [vmem:[%s4928 + $0xb4] sm:$0xe]
  %v5753 = vld [vmem:[%s4928 + $0xd8] sm:$0xe]
  %v5754 = vld [vmem:[%s4928 + $0xe4] sm:$0xe]
  %v5755 = vld [vmem:[%s4928 + $0xf0] sm:$0xe]
  %v5756 = vld [vmem:[%s4928 + $0xfc] sm:$0xe]
  %v5757 = vld [vmem:[%s4928 + $0x108] sm:$0xe]
  %v5758 = vld [vmem:[%s4928 + $0x114] sm:$0xe]
  %v5759 = vld [vmem:[%s4928 + $0x120] sm:$0xe]
  %v5760 = vld [vmem:[%s4928 + $0x12c] sm:$0xe]
  %v5761 = vld [vmem:[%s4928 + $0x138] sm:$0xe]
  %v5762 = vld [vmem:[%s4928 + $0x144] sm:$0xe]
  %v5763 = vld [vmem:[%s4928 + $0x150] sm:$0xe]
  %v5764 = vld [vmem:[%s4928 + $0x15c] sm:$0xe]
  %v5765 = vld [vmem:[%s4928 + $0x168] sm:$0xe]
  %v5766 = vld [vmem:[%s4928 + $0x174] sm:$0xe]
  %v5767 = vld [vmem:[%s4928 + $0x180] sm:$0xe]
  %v5768 = vld [vmem:[%s4928 + $0x18c] sm:$0xe]
  %v5769 = vunpack.c.l.bf16 %v5737
  %v5770 = vunpack.c.l.bf16 %v5738
  %v5771 = vunpack.c.l.bf16 %v5739
  %v5772 = vunpack.c.l.bf16 %v5740
  %v5773 = vunpack.c.l.bf16 %v5741
  %v5774 = vunpack.c.l.bf16 %v5742
  %v5775 = vunpack.c.l.bf16 %v5743
  %v5776 = vunpack.c.l.bf16 %v5744
  %v5777 = vunpack.c.l.bf16 %v5745
  %v5778 = vunpack.c.l.bf16 %v5746
  %v5779 = vunpack.c.l.bf16 %v5747
  %v5780 = vunpack.c.l.bf16 %v5748
  %v5781 = vunpack.c.l.bf16 %v5749
  %v5782 = vunpack.c.l.bf16 %v5750
  %v5783 = vunpack.c.l.bf16 %v5751
  %v5784 = vunpack.c.l.bf16 %v5752
  %v5785 = vunpack.c.l.bf16 %v5753
  %v5786 = vunpack.c.l.bf16 %v5754
  %v5787 = vunpack.c.l.bf16 %v5755
  %v5788 = vunpack.c.l.bf16 %v5756
  %v5789 = vunpack.c.l.bf16 %v5757
  %v5790 = vunpack.c.l.bf16 %v5758
  %v5791 = vunpack.c.l.bf16 %v5759
  %v5792 = vunpack.c.l.bf16 %v5760
  %v5793 = vunpack.c.l.bf16 %v5761
  %v5794 = vunpack.c.l.bf16 %v5762
  %v5795 = vunpack.c.l.bf16 %v5763
  %v5796 = vunpack.c.l.bf16 %v5764
  %v5797 = vunpack.c.l.bf16 %v5765
  %v5798 = vunpack.c.l.bf16 %v5766
  %v5799 = vunpack.c.l.bf16 %v5767
  %v5800 = vunpack.c.l.bf16 %v5768
  %v5801 = vlaneseq
  %v5802 = vshrl.u32 %v5801, 7
  %v5803 = vsub.s32 0, %v5802
  %v5804 = vrot.slane %v2277, %v5803
  %v5805 = vmul.f32 %v5769, %v5804
  %v5806 = vmul.f32 %v4994, %v5804
  %v5807 = vmul.f32 %v5221, %v5804
  %v5808 = vmul.f32 %v5770, %v5804
  %v5809 = vmul.f32 %v4996, %v5804
  %v5810 = vmul.f32 %v5222, %v5804
  %v5811 = vmul.f32 %v5771, %v5804
  %v5812 = vmul.f32 %v4998, %v5804
  %v5813 = vmul.f32 %v5223, %v5804
  %v5814 = vmul.f32 %v5772, %v5804
  %v5815 = vmul.f32 %v5000, %v5804
  %v5816 = vmul.f32 %v5224, %v5804
  %v5817 = vmul.f32 %v5773, %v5804
  %v5818 = vmul.f32 %v5002, %v5804
  %v5819 = vmul.f32 %v5225, %v5804
  %v5820 = vmul.f32 %v5774, %v5804
  %v5821 = vmul.f32 %v5004, %v5804
  %v5822 = vmul.f32 %v5226, %v5804
  %v5823 = vmul.f32 %v5775, %v5804
  %v5824 = vmul.f32 %v5006, %v5804
  %v5825 = vmul.f32 %v5227, %v5804
  %v5826 = vmul.f32 %v5776, %v5804
  %v5827 = vmul.f32 %v5008, %v5804
  %v5828 = vmul.f32 %v5228, %v5804
  %v5829 = vmul.f32 %v5777, %v5804
  %v5830 = vmul.f32 %v5010, %v5804
  %v5831 = vmul.f32 %v5229, %v5804
  %v5832 = vmul.f32 %v5778, %v5804
  %v5833 = vmul.f32 %v5012, %v5804
  %v5834 = vmul.f32 %v5230, %v5804
  %v5835 = vmul.f32 %v5779, %v5804
  %v5836 = vmul.f32 %v5014, %v5804
  %v5837 = vmul.f32 %v5231, %v5804
  %v5838 = vmul.f32 %v5780, %v5804
  %v5839 = vmul.f32 %v5016, %v5804
  %v5840 = vmul.f32 %v5232, %v5804
  %v5841 = vmul.f32 %v5781, %v5804
  %v5842 = vmul.f32 %v5018, %v5804
  %v5843 = vmul.f32 %v5233, %v5804
  %v5844 = vmul.f32 %v5782, %v5804
  %v5845 = vmul.f32 %v5020, %v5804
  %v5846 = vmul.f32 %v5234, %v5804
  %v5847 = vmul.f32 %v5783, %v5804
  %v5848 = vmul.f32 %v5022, %v5804
  %v5849 = vmul.f32 %v5235, %v5804
  %v5850 = vmul.f32 %v5784, %v5804
  %v5851 = vmul.f32 %v5024, %v5804
  %v5852 = vmul.f32 %v5236, %v5804
  %v5853 = vmul.f32 %v5785, %v5804
  %v5854 = vmul.f32 %v5026, %v5804
  %v5855 = vmul.f32 %v5237, %v5804
  %v5856 = vmul.f32 %v5786, %v5804
  %v5857 = vmul.f32 %v5028, %v5804
  %v5858 = vmul.f32 %v5238, %v5804
  %v5859 = vmul.f32 %v5787, %v5804
  %v5860 = vmul.f32 %v5030, %v5804
  %v5861 = vmul.f32 %v5239, %v5804
  %v5862 = vmul.f32 %v5788, %v5804
  %v5863 = vmul.f32 %v5032, %v5804
  %v5864 = vmul.f32 %v5240, %v5804
  %v5865 = vmul.f32 %v5789, %v5804
  %v5866 = vmul.f32 %v5034, %v5804
  %v5867 = vmul.f32 %v5241, %v5804
  %v5868 = vmul.f32 %v5790, %v5804
  %v5869 = vmul.f32 %v5036, %v5804
  %v5870 = vmul.f32 %v5242, %v5804
  %v5871 = vmul.f32 %v5791, %v5804
  %v5872 = vmul.f32 %v5038, %v5804
  %v5873 = vmul.f32 %v5243, %v5804
  %v5874 = vmul.f32 %v5792, %v5804
  %v5875 = vmul.f32 %v5040, %v5804
  %v5876 = vmul.f32 %v5244, %v5804
  %v5877 = vmul.f32 %v5793, %v5804
  %v5878 = vmul.f32 %v5042, %v5804
  %v5879 = vmul.f32 %v5245, %v5804
  %v5880 = vmul.f32 %v5794, %v5804
  %v5881 = vmul.f32 %v5044, %v5804
  %v5882 = vmul.f32 %v5246, %v5804
  %v5883 = vmul.f32 %v5795, %v5804
  %v5884 = vmul.f32 %v5046, %v5804
  %v5885 = vmul.f32 %v5247, %v5804
  %v5886 = vmul.f32 %v5796, %v5804
  %v5887 = vmul.f32 %v5048, %v5804
  %v5888 = vmul.f32 %v5248, %v5804
  %v5889 = vmul.f32 %v5797, %v5804
  %v5890 = vmul.f32 %v5050, %v5804
  %v5891 = vmul.f32 %v5249, %v5804
  %v5892 = vmul.f32 %v5798, %v5804
  %v5893 = vmul.f32 %v5052, %v5804
  %v5894 = vmul.f32 %v5250, %v5804
  %v5895 = vmul.f32 %v5799, %v5804
  %v5896 = vmul.f32 %v5054, %v5804
  %v5897 = vmul.f32 %v5251, %v5804
  %v5898 = vmul.f32 %v5800, %v5804
  %v5899 = vmul.f32 %v5056, %v5804
  %v5900 = vmul.f32 %v5252, %v5804
  %v5997 = vrot.slane %v5805, 2
  %v5998 = vrot.slane %v5806, 2
  %v5999 = vsel %vm3283, %v5997, %v5998
  %v6000 = vrot.slane %v5807, 2
  %v6001 = vsel %vm3283, %v5998, %v6000
  %v6002 = vrot.slane %v5808, 2
  %v6003 = vrot.slane %v5809, 2
  %v6004 = vsel %vm3283, %v6002, %v6003
  %v6005 = vrot.slane %v5810, 2
  %v6006 = vsel %vm3283, %v6003, %v6005
  %v6007 = vrot.slane %v5811, 2
  %v6008 = vrot.slane %v5812, 2
  %v6009 = vsel %vm3283, %v6007, %v6008
  %v6010 = vrot.slane %v5813, 2
  %v6011 = vsel %vm3283, %v6008, %v6010
  %v6012 = vrot.slane %v5814, 2
  %v6013 = vrot.slane %v5815, 2
  %v6014 = vsel %vm3283, %v6012, %v6013
  %v6015 = vrot.slane %v5816, 2
  %v6016 = vsel %vm3283, %v6013, %v6015
  %v6017 = vrot.slane %v5817, 2
  %v6018 = vrot.slane %v5818, 2
  %v6019 = vsel %vm3283, %v6017, %v6018
  %v6020 = vrot.slane %v5819, 2
  %v6021 = vsel %vm3283, %v6018, %v6020
  %v6022 = vrot.slane %v5820, 2
  %v6023 = vrot.slane %v5821, 2
  %v6024 = vsel %vm3283, %v6022, %v6023
  %v6025 = vrot.slane %v5822, 2
  %v6026 = vsel %vm3283, %v6023, %v6025
  %v6027 = vrot.slane %v5823, 2
  %v6028 = vrot.slane %v5824, 2
  %v6029 = vsel %vm3283, %v6027, %v6028
  %v6030 = vrot.slane %v5825, 2
  %v6031 = vsel %vm3283, %v6028, %v6030
  %v6032 = vrot.slane %v5826, 2
  %v6033 = vrot.slane %v5827, 2
  %v6034 = vsel %vm3283, %v6032, %v6033
  %v6035 = vrot.slane %v5828, 2
  %v6036 = vsel %vm3283, %v6033, %v6035
  %v6037 = vrot.slane %v5829, 2
  %v6038 = vrot.slane %v5830, 2
  %v6039 = vsel %vm3283, %v6037, %v6038
  %v6040 = vrot.slane %v5831, 2
  %v6041 = vsel %vm3283, %v6038, %v6040
  %v6042 = vrot.slane %v5832, 2
  %v6043 = vrot.slane %v5833, 2
  %v6044 = vsel %vm3283, %v6042, %v6043
  %v6045 = vrot.slane %v5834, 2
  %v6046 = vsel %vm3283, %v6043, %v6045
  %v6047 = vrot.slane %v5835, 2
  %v6048 = vrot.slane %v5836, 2
  %v6049 = vsel %vm3283, %v6047, %v6048
  %v6050 = vrot.slane %v5837, 2
  %v6051 = vsel %vm3283, %v6048, %v6050
  %v6052 = vrot.slane %v5838, 2
  %v6053 = vrot.slane %v5839, 2
  %v6054 = vsel %vm3283, %v6052, %v6053
  %v6055 = vrot.slane %v5840, 2
  %v6056 = vsel %vm3283, %v6053, %v6055
  %v6057 = vrot.slane %v5841, 2
  %v6058 = vrot.slane %v5842, 2
  %v6059 = vsel %vm3283, %v6057, %v6058
  %v6060 = vrot.slane %v5843, 2
  %v6061 = vsel %vm3283, %v6058, %v6060
  %v6062 = vrot.slane %v5844, 2
  %v6063 = vrot.slane %v5845, 2
  %v6064 = vsel %vm3283, %v6062, %v6063
  %v6065 = vrot.slane %v5846, 2
  %v6066 = vsel %vm3283, %v6063, %v6065
  %v6067 = vrot.slane %v5847, 2
  %v6068 = vrot.slane %v5848, 2
  %v6069 = vsel %vm3283, %v6067, %v6068
  %v6070 = vrot.slane %v5849, 2
  %v6071 = vsel %vm3283, %v6068, %v6070
  %v6072 = vrot.slane %v5850, 2
  %v6073 = vrot.slane %v5851, 2
  %v6074 = vsel %vm3283, %v6072, %v6073
  %v6075 = vrot.slane %v5852, 2
  %v6076 = vsel %vm3283, %v6073, %v6075
  %v6077 = vrot.slane %v5853, 2
  %v6078 = vrot.slane %v5854, 2
  %v6079 = vsel %vm3283, %v6077, %v6078
  %v6080 = vrot.slane %v5855, 2
  %v6081 = vsel %vm3283, %v6078, %v6080
  %v6082 = vrot.slane %v5856, 2
  %v6083 = vrot.slane %v5857, 2
  %v6084 = vsel %vm3283, %v6082, %v6083
  %v6085 = vrot.slane %v5858, 2
  %v6086 = vsel %vm3283, %v6083, %v6085
  %v6087 = vrot.slane %v5859, 2
  %v6088 = vrot.slane %v5860, 2
  %v6089 = vsel %vm3283, %v6087, %v6088
  %v6090 = vrot.slane %v5861, 2
  %v6091 = vsel %vm3283, %v6088, %v6090
  %v6092 = vrot.slane %v5862, 2
  %v6093 = vrot.slane %v5863, 2
  %v6094 = vsel %vm3283, %v6092, %v6093
  %v6095 = vrot.slane %v5864, 2
  %v6096 = vsel %vm3283, %v6093, %v6095
  %v6097 = vrot.slane %v5865, 2
  %v6098 = vrot.slane %v5866, 2
  %v6099 = vsel %vm3283, %v6097, %v6098
  %v6100 = vrot.slane %v5867, 2
  %v6101 = vsel %vm3283, %v6098, %v6100
  %v6102 = vrot.slane %v5868, 2
  %v6103 = vrot.slane %v5869, 2
  %v6104 = vsel %vm3283, %v6102, %v6103
  %v6105 = vrot.slane %v5870, 2
  %v6106 = vsel %vm3283, %v6103, %v6105
  %v6107 = vrot.slane %v5871, 2
  %v6108 = vrot.slane %v5872, 2
  %v6109 = vsel %vm3283, %v6107, %v6108
  %v6110 = vrot.slane %v5873, 2
  %v6111 = vsel %vm3283, %v6108, %v6110
  %v6112 = vrot.slane %v5874, 2
  %v6113 = vrot.slane %v5875, 2
  %v6114 = vsel %vm3283, %v6112, %v6113
  %v6115 = vrot.slane %v5876, 2
  %v6116 = vsel %vm3283, %v6113, %v6115
  %v6117 = vrot.slane %v5877, 2
  %v6118 = vrot.slane %v5878, 2
  %v6119 = vsel %vm3283, %v6117, %v6118
  %v6120 = vrot.slane %v5879, 2
  %v6121 = vsel %vm3283, %v6118, %v6120
  %v6122 = vrot.slane %v5880, 2
  %v6123 = vrot.slane %v5881, 2
  %v6124 = vsel %vm3283, %v6122, %v6123
  %v6125 = vrot.slane %v5882, 2
  %v6126 = vsel %vm3283, %v6123, %v6125
  %v6127 = vrot.slane %v5883, 2
  %v6128 = vrot.slane %v5884, 2
  %v6129 = vsel %vm3283, %v6127, %v6128
  %v6130 = vrot.slane %v5885, 2
  %v6131 = vsel %vm3283, %v6128, %v6130
  %v6132 = vrot.slane %v5886, 2
  %v6133 = vrot.slane %v5887, 2
  %v6134 = vsel %vm3283, %v6132, %v6133
  %v6135 = vrot.slane %v5888, 2
  %v6136 = vsel %vm3283, %v6133, %v6135
  %v6137 = vrot.slane %v5889, 2
  %v6138 = vrot.slane %v5890, 2
  %v6139 = vsel %vm3283, %v6137, %v6138
  %v6140 = vrot.slane %v5891, 2
  %v6141 = vsel %vm3283, %v6138, %v6140
  %v6142 = vrot.slane %v5892, 2
  %v6143 = vrot.slane %v5893, 2
  %v6144 = vsel %vm3283, %v6142, %v6143
  %v6145 = vrot.slane %v5894, 2
  %v6146 = vsel %vm3283, %v6143, %v6145
  %v6147 = vrot.slane %v5895, 2
  %v6148 = vrot.slane %v5896, 2
  %v6149 = vsel %vm3283, %v6147, %v6148
  %v6150 = vrot.slane %v5897, 2
  %v6151 = vsel %vm3283, %v6148, %v6150
  %v6152 = vrot.slane %v5898, 2
  %v6153 = vrot.slane %v5899, 2
  %v6154 = vsel %vm3283, %v6152, %v6153
  %v6155 = vrot.slane %v5900, 2
  %v6156 = vsel %vm3283, %v6153, %v6155
  %v6221 = vadd.f32 %v5673, %v5999
  %v6222 = vadd.f32 %v5674, %v6001
  %v6223 = vadd.f32 %v5675, %v6004
  %v6224 = vadd.f32 %v5676, %v6006
  %v6225 = vadd.f32 %v5677, %v6009
  %v6226 = vadd.f32 %v5678, %v6011
  %v6227 = vadd.f32 %v5679, %v6014
  %v6228 = vadd.f32 %v5680, %v6016
  %v6229 = vadd.f32 %v5681, %v6019
  %v6230 = vadd.f32 %v5682, %v6021
  %v6231 = vadd.f32 %v5683, %v6024
  %v6232 = vadd.f32 %v5684, %v6026
  %v6233 = vadd.f32 %v5685, %v6029
  %v6234 = vadd.f32 %v5686, %v6031
  %v6235 = vadd.f32 %v5687, %v6034
  %v6236 = vadd.f32 %v5688, %v6036
  %v6237 = vadd.f32 %v5689, %v6039
  %v6238 = vadd.f32 %v5690, %v6041
  %v6239 = vadd.f32 %v5691, %v6044
  %v6240 = vadd.f32 %v5692, %v6046
  %v6241 = vadd.f32 %v5693, %v6049
  %v6242 = vadd.f32 %v5694, %v6051
  %v6243 = vadd.f32 %v5695, %v6054
  %v6244 = vadd.f32 %v5696, %v6056
  %v6245 = vadd.f32 %v5697, %v6059
  %v6246 = vadd.f32 %v5698, %v6061
  %v6247 = vadd.f32 %v5699, %v6064
  %v6248 = vadd.f32 %v5700, %v6066
  %v6249 = vadd.f32 %v5701, %v6069
  %v6250 = vadd.f32 %v5702, %v6071
  %v6251 = vadd.f32 %v5703, %v6074
  %v6252 = vadd.f32 %v5704, %v6076
  %v6253 = vadd.f32 %v5705, %v6079
  %v6254 = vadd.f32 %v5706, %v6081
  %v6255 = vadd.f32 %v5707, %v6084
  %v6256 = vadd.f32 %v5708, %v6086
  %v6257 = vadd.f32 %v5709, %v6089
  %v6258 = vadd.f32 %v5710, %v6091
  %v6259 = vadd.f32 %v5711, %v6094
  %v6260 = vadd.f32 %v5712, %v6096
  %v6261 = vadd.f32 %v5713, %v6099
  %v6262 = vadd.f32 %v5714, %v6101
  %v6263 = vadd.f32 %v5715, %v6104
  %v6264 = vadd.f32 %v5716, %v6106
  %v6265 = vadd.f32 %v5717, %v6109
  %v6266 = vadd.f32 %v5718, %v6111
  %v6267 = vadd.f32 %v5719, %v6114
  %v6268 = vadd.f32 %v5720, %v6116
  %v6269 = vadd.f32 %v5721, %v6119
  %v6270 = vadd.f32 %v5722, %v6121
  %v6271 = vadd.f32 %v5723, %v6124
  %v6272 = vadd.f32 %v5724, %v6126
  %v6273 = vadd.f32 %v5725, %v6129
  %v6274 = vadd.f32 %v5726, %v6131
  %v6275 = vadd.f32 %v5727, %v6134
  %v6276 = vadd.f32 %v5728, %v6136
  %v6277 = vadd.f32 %v5729, %v6139
  %v6278 = vadd.f32 %v5730, %v6141
  %v6279 = vadd.f32 %v5731, %v6144
  %v6280 = vadd.f32 %v5732, %v6146
  %v6281 = vadd.f32 %v5733, %v6149
  %v6282 = vadd.f32 %v5734, %v6151
  %v6283 = vadd.f32 %v5735, %v6154
  %v6284 = vadd.f32 %v5736, %v6156
  %v6285 = vld [vmem:[%s5] sm:$0x1]
  %v6286 = vld [vmem:[%s6] sm:$0x1]
  %v6287 = vadd.f32 %v6221, %v6222
  %v6288 = vadd.f32 %v6287, %v6223
  %v6289 = vadd.f32 %v6288, %v6224
  %v6290 = vadd.f32 %v6289, %v6225
  %v6291 = vadd.f32 %v6290, %v6226
  %v6292 = vadd.f32 %v6291, %v6227
  %v6293 = vadd.f32 %v6292, %v6228
  %v6294 = vadd.f32 %v6293, %v6229
  %v6295 = vadd.f32 %v6294, %v6230
  %v6296 = vadd.f32 %v6295, %v6231
  %v6297 = vadd.f32 %v6296, %v6232
  %v6298 = vadd.f32 %v6297, %v6233
  %v6299 = vadd.f32 %v6298, %v6234
  %v6300 = vadd.f32 %v6299, %v6235
  %v6301 = vadd.f32 %v6300, %v6236
  %v6302 = vadd.f32 %v6301, %v6237
  %v6303 = vadd.f32 %v6302, %v6238
  %v6304 = vadd.f32 %v6303, %v6239
  %v6305 = vadd.f32 %v6304, %v6240
  %v6306 = vadd.f32 %v6305, %v6241
  %v6307 = vadd.f32 %v6306, %v6242
  %v6308 = vadd.f32 %v6307, %v6243
  %v6309 = vadd.f32 %v6308, %v6244
  %v6310 = vadd.f32 %v6309, %v6245
  %v6311 = vadd.f32 %v6310, %v6246
  %v6312 = vadd.f32 %v6311, %v6247
  %v6313 = vadd.f32 %v6312, %v6248
  %v6314 = vadd.f32 %v6313, %v6249
  %v6315 = vadd.f32 %v6314, %v6250
  %v6316 = vadd.f32 %v6315, %v6251
  %v6317 = vadd.f32 %v6316, %v6252
  %v6318 = vadd.f32 %v6317, %v6253
  %v6319 = vadd.f32 %v6318, %v6254
  %v6320 = vadd.f32 %v6319, %v6255
  %v6321 = vadd.f32 %v6320, %v6256
  %v6322 = vadd.f32 %v6321, %v6257
  %v6323 = vadd.f32 %v6322, %v6258
  %v6324 = vadd.f32 %v6323, %v6259
  %v6325 = vadd.f32 %v6324, %v6260
  %v6326 = vadd.f32 %v6325, %v6261
  %v6327 = vadd.f32 %v6326, %v6262
  %v6328 = vadd.f32 %v6327, %v6263
  %v6329 = vadd.f32 %v6328, %v6264
  %v6330 = vadd.f32 %v6329, %v6265
  %v6331 = vadd.f32 %v6330, %v6266
  %v6332 = vadd.f32 %v6331, %v6267
  %v6333 = vadd.f32 %v6332, %v6268
  %v6334 = vadd.f32 %v6333, %v6269
  %v6335 = vadd.f32 %v6334, %v6270
  %v6336 = vadd.f32 %v6335, %v6271
  %v6337 = vadd.f32 %v6336, %v6272
  %v6338 = vadd.f32 %v6337, %v6273
  %v6339 = vadd.f32 %v6338, %v6274
  %v6340 = vadd.f32 %v6339, %v6275
  %v6341 = vadd.f32 %v6340, %v6276
  %v6342 = vadd.f32 %v6341, %v6277
  %v6343 = vadd.f32 %v6342, %v6278
  %v6344 = vadd.f32 %v6343, %v6279
  %v6345 = vadd.f32 %v6344, %v6280
  %v6346 = vadd.f32 %v6345, %v6281
  %v6347 = vadd.f32 %v6346, %v6282
  %v6348 = vadd.f32 %v6347, %v6283
  %v6349 = vadd.f32 %v6348, %v6284
  %v6350 = vrot.slane %v6349, 4
  %v6351 = vadd.f32 %v6349, %v6350
  %v6352 = vrot.slane %v6351, 2
  %v6353 = vadd.f32 %v6351, %v6352
  %v6354 = vrot.slane %v6353, 1
  %v6355 = vadd.f32 %v6353, %v6354
  %v6356 = vmul.f32 %v6355, %v594
  %v6357 = vmul.f32 %v6221, %v6221
  %v6358 = vmul.f32 %v6222, %v6222
  %v6359 = vmul.f32 %v6223, %v6223
  %v6360 = vmul.f32 %v6224, %v6224
  %v6361 = vmul.f32 %v6225, %v6225
  %v6362 = vmul.f32 %v6226, %v6226
  %v6363 = vmul.f32 %v6227, %v6227
  %v6364 = vmul.f32 %v6228, %v6228
  %v6365 = vmul.f32 %v6229, %v6229
  %v6366 = vmul.f32 %v6230, %v6230
  %v6367 = vmul.f32 %v6231, %v6231
  %v6368 = vmul.f32 %v6232, %v6232
  %v6369 = vmul.f32 %v6233, %v6233
  %v6370 = vmul.f32 %v6234, %v6234
  %v6371 = vmul.f32 %v6235, %v6235
  %v6372 = vmul.f32 %v6236, %v6236
  %v6373 = vmul.f32 %v6237, %v6237
  %v6374 = vmul.f32 %v6238, %v6238
  %v6375 = vmul.f32 %v6239, %v6239
  %v6376 = vmul.f32 %v6240, %v6240
  %v6377 = vmul.f32 %v6241, %v6241
  %v6378 = vmul.f32 %v6242, %v6242
  %v6379 = vmul.f32 %v6243, %v6243
  %v6380 = vmul.f32 %v6244, %v6244
  %v6381 = vmul.f32 %v6245, %v6245
  %v6382 = vmul.f32 %v6246, %v6246
  %v6383 = vmul.f32 %v6247, %v6247
  %v6384 = vmul.f32 %v6248, %v6248
  %v6385 = vmul.f32 %v6249, %v6249
  %v6386 = vmul.f32 %v6250, %v6250
  %v6387 = vmul.f32 %v6251, %v6251
  %v6388 = vmul.f32 %v6252, %v6252
  %v6389 = vmul.f32 %v6253, %v6253
  %v6390 = vmul.f32 %v6254, %v6254
  %v6391 = vmul.f32 %v6255, %v6255
  %v6392 = vmul.f32 %v6256, %v6256
  %v6393 = vmul.f32 %v6257, %v6257
  %v6394 = vmul.f32 %v6258, %v6258
  %v6395 = vmul.f32 %v6259, %v6259
  %v6396 = vmul.f32 %v6260, %v6260
  %v6397 = vmul.f32 %v6261, %v6261
  %v6398 = vmul.f32 %v6262, %v6262
  %v6399 = vmul.f32 %v6263, %v6263
  %v6400 = vmul.f32 %v6264, %v6264
  %v6401 = vmul.f32 %v6265, %v6265
  %v6402 = vmul.f32 %v6266, %v6266
  %v6403 = vmul.f32 %v6267, %v6267
  %v6404 = vmul.f32 %v6268, %v6268
  %v6405 = vmul.f32 %v6269, %v6269
  %v6406 = vmul.f32 %v6270, %v6270
  %v6407 = vmul.f32 %v6271, %v6271
  %v6408 = vmul.f32 %v6272, %v6272
  %v6409 = vmul.f32 %v6273, %v6273
  %v6410 = vmul.f32 %v6274, %v6274
  %v6411 = vmul.f32 %v6275, %v6275
  %v6412 = vmul.f32 %v6276, %v6276
  %v6413 = vmul.f32 %v6277, %v6277
  %v6414 = vmul.f32 %v6278, %v6278
  %v6415 = vmul.f32 %v6279, %v6279
  %v6416 = vmul.f32 %v6280, %v6280
  %v6417 = vmul.f32 %v6281, %v6281
  %v6418 = vmul.f32 %v6282, %v6282
  %v6419 = vmul.f32 %v6283, %v6283
  %v6420 = vmul.f32 %v6284, %v6284
  %v6421 = vadd.f32 %v6357, %v6358
  %v6422 = vadd.f32 %v6421, %v6359
  %v6423 = vadd.f32 %v6422, %v6360
  %v6424 = vadd.f32 %v6423, %v6361
  %v6425 = vadd.f32 %v6424, %v6362
  %v6426 = vadd.f32 %v6425, %v6363
  %v6427 = vadd.f32 %v6426, %v6364
  %v6428 = vadd.f32 %v6427, %v6365
  %v6429 = vadd.f32 %v6428, %v6366
  %v6430 = vadd.f32 %v6429, %v6367
  %v6431 = vadd.f32 %v6430, %v6368
  %v6432 = vadd.f32 %v6431, %v6369
  %v6433 = vadd.f32 %v6432, %v6370
  %v6434 = vadd.f32 %v6433, %v6371
  %v6435 = vadd.f32 %v6434, %v6372
  %v6436 = vadd.f32 %v6435, %v6373
  %v6437 = vadd.f32 %v6436, %v6374
  %v6438 = vadd.f32 %v6437, %v6375
  %v6439 = vadd.f32 %v6438, %v6376
  %v6440 = vadd.f32 %v6439, %v6377
  %v6441 = vadd.f32 %v6440, %v6378
  %v6442 = vadd.f32 %v6441, %v6379
  %v6443 = vadd.f32 %v6442, %v6380
  %v6444 = vadd.f32 %v6443, %v6381
  %v6445 = vadd.f32 %v6444, %v6382
  %v6446 = vadd.f32 %v6445, %v6383
  %v6447 = vadd.f32 %v6446, %v6384
  %v6448 = vadd.f32 %v6447, %v6385
  %v6449 = vadd.f32 %v6448, %v6386
  %v6450 = vadd.f32 %v6449, %v6387
  %v6451 = vadd.f32 %v6450, %v6388
  %v6452 = vadd.f32 %v6451, %v6389
  %v6453 = vadd.f32 %v6452, %v6390
  %v6454 = vadd.f32 %v6453, %v6391
  %v6455 = vadd.f32 %v6454, %v6392
  %v6456 = vadd.f32 %v6455, %v6393
  %v6457 = vadd.f32 %v6456, %v6394
  %v6458 = vadd.f32 %v6457, %v6395
  %v6459 = vadd.f32 %v6458, %v6396
  %v6460 = vadd.f32 %v6459, %v6397
  %v6461 = vadd.f32 %v6460, %v6398
  %v6462 = vadd.f32 %v6461, %v6399
  %v6463 = vadd.f32 %v6462, %v6400
  %v6464 = vadd.f32 %v6463, %v6401
  %v6465 = vadd.f32 %v6464, %v6402
  %v6466 = vadd.f32 %v6465, %v6403
  %v6467 = vadd.f32 %v6466, %v6404
  %v6468 = vadd.f32 %v6467, %v6405
  %v6469 = vadd.f32 %v6468, %v6406
  %v6470 = vadd.f32 %v6469, %v6407
  %v6471 = vadd.f32 %v6470, %v6408
  %v6472 = vadd.f32 %v6471, %v6409
  %v6473 = vadd.f32 %v6472, %v6410
  %v6474 = vadd.f32 %v6473, %v6411
  %v6475 = vadd.f32 %v6474, %v6412
  %v6476 = vadd.f32 %v6475, %v6413
  %v6477 = vadd.f32 %v6476, %v6414
  %v6478 = vadd.f32 %v6477, %v6415
  %v6479 = vadd.f32 %v6478, %v6416
  %v6480 = vadd.f32 %v6479, %v6417
  %v6481 = vadd.f32 %v6480, %v6418
  %v6482 = vadd.f32 %v6481, %v6419
  %v6483 = vadd.f32 %v6482, %v6420
  %v6484 = vrot.slane %v6483, 4
  %v6485 = vadd.f32 %v6483, %v6484
  %v6486 = vrot.slane %v6485, 2
  %v6487 = vadd.f32 %v6485, %v6486
  %v6488 = vrot.slane %v6487, 1
  %v6489 = vadd.f32 %v6487, %v6488
  %v6490 = vmul.f32 %v6489, %v594
  %v6491 = vmul.f32 %v6356, %v6356
  %v6492 = vsub.f32 %v6490, %v6491
  %v6493 = vmax.f32 %v6492, 0.0
  %v6494 = vadd.f32 %v6493, 1e-05
  %v6495 = vrsqrt.pop %v6494
  %v6496 = vmul.f32 %v6285, %v6495
  %v6497 = vmul.f32 %v6356, %v6496
  %v6498 = vsub.f32 %v6286, %v6497
  %v6500 = vlaneseq
  %v6501 = vshrl.u32 %v6500, 7
  %v6502 = vsub.s32 0, %v6501
  %v6503 = vrot.slane %v6496, %v6502
  %v6505 = vmul.f32 %v6221, %v6503
  %v6506 = vmul.f32 %v6222, %v6503
  %v6507 = vmul.f32 %v6223, %v6503
  %v6508 = vmul.f32 %v6224, %v6503
  %v6509 = vmul.f32 %v6225, %v6503
  %v6510 = vmul.f32 %v6226, %v6503
  %v6511 = vmul.f32 %v6227, %v6503
  %v6512 = vmul.f32 %v6228, %v6503
  %v6513 = vmul.f32 %v6229, %v6503
  %v6514 = vmul.f32 %v6230, %v6503
  %v6515 = vmul.f32 %v6231, %v6503
  %v6516 = vmul.f32 %v6232, %v6503
  %v6517 = vmul.f32 %v6233, %v6503
  %v6518 = vmul.f32 %v6234, %v6503
  %v6519 = vmul.f32 %v6235, %v6503
  %v6520 = vmul.f32 %v6236, %v6503
  %v6521 = vmul.f32 %v6237, %v6503
  %v6522 = vmul.f32 %v6238, %v6503
  %v6523 = vmul.f32 %v6239, %v6503
  %v6524 = vmul.f32 %v6240, %v6503
  %v6525 = vmul.f32 %v6241, %v6503
  %v6526 = vmul.f32 %v6242, %v6503
  %v6527 = vmul.f32 %v6243, %v6503
  %v6528 = vmul.f32 %v6244, %v6503
  %v6529 = vmul.f32 %v6245, %v6503
  %v6530 = vmul.f32 %v6246, %v6503
  %v6531 = vmul.f32 %v6247, %v6503
  %v6532 = vmul.f32 %v6248, %v6503
  %v6533 = vmul.f32 %v6249, %v6503
  %v6534 = vmul.f32 %v6250, %v6503
  %v6535 = vmul.f32 %v6251, %v6503
  %v6536 = vmul.f32 %v6252, %v6503
  %v6537 = vmul.f32 %v6253, %v6503
  %v6538 = vmul.f32 %v6254, %v6503
  %v6539 = vmul.f32 %v6255, %v6503
  %v6540 = vmul.f32 %v6256, %v6503
  %v6541 = vmul.f32 %v6257, %v6503
  %v6542 = vmul.f32 %v6258, %v6503
  %v6543 = vmul.f32 %v6259, %v6503
  %v6544 = vmul.f32 %v6260, %v6503
  %v6545 = vmul.f32 %v6261, %v6503
  %v6546 = vmul.f32 %v6262, %v6503
  %v6547 = vmul.f32 %v6263, %v6503
  %v6548 = vmul.f32 %v6264, %v6503
  %v6549 = vmul.f32 %v6265, %v6503
  %v6550 = vmul.f32 %v6266, %v6503
  %v6551 = vmul.f32 %v6267, %v6503
  %v6552 = vmul.f32 %v6268, %v6503
  %v6553 = vmul.f32 %v6269, %v6503
  %v6554 = vmul.f32 %v6270, %v6503
  %v6555 = vmul.f32 %v6271, %v6503
  %v6556 = vmul.f32 %v6272, %v6503
  %v6557 = vmul.f32 %v6273, %v6503
  %v6558 = vmul.f32 %v6274, %v6503
  %v6559 = vmul.f32 %v6275, %v6503
  %v6560 = vmul.f32 %v6276, %v6503
  %v6561 = vmul.f32 %v6277, %v6503
  %v6562 = vmul.f32 %v6278, %v6503
  %v6563 = vmul.f32 %v6279, %v6503
  %v6564 = vmul.f32 %v6280, %v6503
  %v6565 = vmul.f32 %v6281, %v6503
  %v6566 = vmul.f32 %v6282, %v6503
  %v6567 = vmul.f32 %v6283, %v6503
  %v6568 = vmul.f32 %v6284, %v6503
  %v6570 = vlaneseq
  %v6571 = vshrl.u32 %v6570, 7
  %v6572 = vsub.s32 0, %v6571
  %v6573 = vrot.slane %v6498, %v6572
  %v6575 = vadd.f32 %v6505, %v6573
  %v6576 = vadd.f32 %v6506, %v6573
  %v6577 = vadd.f32 %v6507, %v6573
  %v6578 = vadd.f32 %v6508, %v6573
  %v6579 = vadd.f32 %v6509, %v6573
  %v6580 = vadd.f32 %v6510, %v6573
  %v6581 = vadd.f32 %v6511, %v6573
  %v6582 = vadd.f32 %v6512, %v6573
  %v6583 = vadd.f32 %v6513, %v6573
  %v6584 = vadd.f32 %v6514, %v6573
  %v6585 = vadd.f32 %v6515, %v6573
  %v6586 = vadd.f32 %v6516, %v6573
  %v6587 = vadd.f32 %v6517, %v6573
  %v6588 = vadd.f32 %v6518, %v6573
  %v6589 = vadd.f32 %v6519, %v6573
  %v6590 = vadd.f32 %v6520, %v6573
  %v6591 = vadd.f32 %v6521, %v6573
  %v6592 = vadd.f32 %v6522, %v6573
  %v6593 = vadd.f32 %v6523, %v6573
  %v6594 = vadd.f32 %v6524, %v6573
  %v6595 = vadd.f32 %v6525, %v6573
  %v6596 = vadd.f32 %v6526, %v6573
  %v6597 = vadd.f32 %v6527, %v6573
  %v6598 = vadd.f32 %v6528, %v6573
  %v6599 = vadd.f32 %v6529, %v6573
  %v6600 = vadd.f32 %v6530, %v6573
  %v6601 = vadd.f32 %v6531, %v6573
  %v6602 = vadd.f32 %v6532, %v6573
  %v6603 = vadd.f32 %v6533, %v6573
  %v6604 = vadd.f32 %v6534, %v6573
  %v6605 = vadd.f32 %v6535, %v6573
  %v6606 = vadd.f32 %v6536, %v6573
  %v6607 = vadd.f32 %v6537, %v6573
  %v6608 = vadd.f32 %v6538, %v6573
  %v6609 = vadd.f32 %v6539, %v6573
  %v6610 = vadd.f32 %v6540, %v6573
  %v6611 = vadd.f32 %v6541, %v6573
  %v6612 = vadd.f32 %v6542, %v6573
  %v6613 = vadd.f32 %v6543, %v6573
  %v6614 = vadd.f32 %v6544, %v6573
  %v6615 = vadd.f32 %v6545, %v6573
  %v6616 = vadd.f32 %v6546, %v6573
  %v6617 = vadd.f32 %v6547, %v6573
  %v6618 = vadd.f32 %v6548, %v6573
  %v6619 = vadd.f32 %v6549, %v6573
  %v6620 = vadd.f32 %v6550, %v6573
  %v6621 = vadd.f32 %v6551, %v6573
  %v6622 = vadd.f32 %v6552, %v6573
  %v6623 = vadd.f32 %v6553, %v6573
  %v6624 = vadd.f32 %v6554, %v6573
  %v6625 = vadd.f32 %v6555, %v6573
  %v6626 = vadd.f32 %v6556, %v6573
  %v6627 = vadd.f32 %v6557, %v6573
  %v6628 = vadd.f32 %v6558, %v6573
  %v6629 = vadd.f32 %v6559, %v6573
  %v6630 = vadd.f32 %v6560, %v6573
  %v6631 = vadd.f32 %v6561, %v6573
  %v6632 = vadd.f32 %v6562, %v6573
  %v6633 = vadd.f32 %v6563, %v6573
  %v6634 = vadd.f32 %v6564, %v6573
  %v6635 = vadd.f32 %v6565, %v6573
  %v6636 = vadd.f32 %v6566, %v6573
  %v6637 = vadd.f32 %v6567, %v6573
  %v6638 = vadd.f32 %v6568, %v6573
  %v6639 = vmax.f32 %v6575, 0.0
  %v6640 = vmax.f32 %v6576, 0.0
  %v6641 = vmax.f32 %v6577, 0.0
  %v6642 = vmax.f32 %v6578, 0.0
  %v6643 = vmax.f32 %v6579, 0.0
  %v6644 = vmax.f32 %v6580, 0.0
  %v6645 = vmax.f32 %v6581, 0.0
  %v6646 = vmax.f32 %v6582, 0.0
  %v6647 = vmax.f32 %v6583, 0.0
  %v6648 = vmax.f32 %v6584, 0.0
  %v6649 = vmax.f32 %v6585, 0.0
  %v6650 = vmax.f32 %v6586, 0.0
  %v6651 = vmax.f32 %v6587, 0.0
  %v6652 = vmax.f32 %v6588, 0.0
  %v6653 = vmax.f32 %v6589, 0.0
  %v6654 = vmax.f32 %v6590, 0.0
  %v6655 = vmax.f32 %v6591, 0.0
  %v6656 = vmax.f32 %v6592, 0.0
  %v6657 = vmax.f32 %v6593, 0.0
  %v6658 = vmax.f32 %v6594, 0.0
  %v6659 = vmax.f32 %v6595, 0.0
  %v6660 = vmax.f32 %v6596, 0.0
  %v6661 = vmax.f32 %v6597, 0.0
  %v6662 = vmax.f32 %v6598, 0.0
  %v6663 = vmax.f32 %v6599, 0.0
  %v6664 = vmax.f32 %v6600, 0.0
  %v6665 = vmax.f32 %v6601, 0.0
  %v6666 = vmax.f32 %v6602, 0.0
  %v6667 = vmax.f32 %v6603, 0.0
  %v6668 = vmax.f32 %v6604, 0.0
  %v6669 = vmax.f32 %v6605, 0.0
  %v6670 = vmax.f32 %v6606, 0.0
  %v6671 = vmax.f32 %v6607, 0.0
  %v6672 = vmax.f32 %v6608, 0.0
  %v6673 = vmax.f32 %v6609, 0.0
  %v6674 = vmax.f32 %v6610, 0.0
  %v6675 = vmax.f32 %v6611, 0.0
  %v6676 = vmax.f32 %v6612, 0.0
  %v6677 = vmax.f32 %v6613, 0.0
  %v6678 = vmax.f32 %v6614, 0.0
  %v6679 = vmax.f32 %v6615, 0.0
  %v6680 = vmax.f32 %v6616, 0.0
  %v6681 = vmax.f32 %v6617, 0.0
  %v6682 = vmax.f32 %v6618, 0.0
  %v6683 = vmax.f32 %v6619, 0.0
  %v6684 = vmax.f32 %v6620, 0.0
  %v6685 = vmax.f32 %v6621, 0.0
  %v6686 = vmax.f32 %v6622, 0.0
  %v6687 = vmax.f32 %v6623, 0.0
  %v6688 = vmax.f32 %v6624, 0.0
  %v6689 = vmax.f32 %v6625, 0.0
  %v6690 = vmax.f32 %v6626, 0.0
  %v6691 = vmax.f32 %v6627, 0.0
  %v6692 = vmax.f32 %v6628, 0.0
  %v6693 = vmax.f32 %v6629, 0.0
  %v6694 = vmax.f32 %v6630, 0.0
  %v6695 = vmax.f32 %v6631, 0.0
  %v6696 = vmax.f32 %v6632, 0.0
  %v6697 = vmax.f32 %v6633, 0.0
  %v6698 = vmax.f32 %v6634, 0.0
  %v6699 = vmax.f32 %v6635, 0.0
  %v6700 = vmax.f32 %v6636, 0.0
  %v6701 = vmax.f32 %v6637, 0.0
  %v6702 = vmax.f32 %v6638, 0.0
  %v6703 = vmin.f32 %v6639, 6.0
  %v6704 = vmin.f32 %v6640, 6.0
  %v6705 = vmin.f32 %v6641, 6.0
  %v6706 = vmin.f32 %v6642, 6.0
  %v6707 = vmin.f32 %v6643, 6.0
  %v6708 = vmin.f32 %v6644, 6.0
  %v6709 = vmin.f32 %v6645, 6.0
  %v6710 = vmin.f32 %v6646, 6.0
  %v6711 = vmin.f32 %v6647, 6.0
  %v6712 = vmin.f32 %v6648, 6.0
  %v6713 = vmin.f32 %v6649, 6.0
  %v6714 = vmin.f32 %v6650, 6.0
  %v6715 = vmin.f32 %v6651, 6.0
  %v6716 = vmin.f32 %v6652, 6.0
  %v6717 = vmin.f32 %v6653, 6.0
  %v6718 = vmin.f32 %v6654, 6.0
  %v6719 = vmin.f32 %v6655, 6.0
  %v6720 = vmin.f32 %v6656, 6.0
  %v6721 = vmin.f32 %v6657, 6.0
  %v6722 = vmin.f32 %v6658, 6.0
  %v6723 = vmin.f32 %v6659, 6.0
  %v6724 = vmin.f32 %v6660, 6.0
  %v6725 = vmin.f32 %v6661, 6.0
  %v6726 = vmin.f32 %v6662, 6.0
  %v6727 = vmin.f32 %v6663, 6.0
  %v6728 = vmin.f32 %v6664, 6.0
  %v6729 = vmin.f32 %v6665, 6.0
  %v6730 = vmin.f32 %v6666, 6.0
  %v6731 = vmin.f32 %v6667, 6.0
  %v6732 = vmin.f32 %v6668, 6.0
  %v6733 = vmin.f32 %v6669, 6.0
  %v6734 = vmin.f32 %v6670, 6.0
  %v6735 = vmin.f32 %v6671, 6.0
  %v6736 = vmin.f32 %v6672, 6.0
  %v6737 = vmin.f32 %v6673, 6.0
  %v6738 = vmin.f32 %v6674, 6.0
  %v6739 = vmin.f32 %v6675, 6.0
  %v6740 = vmin.f32 %v6676, 6.0
  %v6741 = vmin.f32 %v6677, 6.0
  %v6742 = vmin.f32 %v6678, 6.0
  %v6743 = vmin.f32 %v6679, 6.0
  %v6744 = vmin.f32 %v6680, 6.0
  %v6745 = vmin.f32 %v6681, 6.0
  %v6746 = vmin.f32 %v6682, 6.0
  %v6747 = vmin.f32 %v6683, 6.0
  %v6748 = vmin.f32 %v6684, 6.0
  %v6749 = vmin.f32 %v6685, 6.0
  %v6750 = vmin.f32 %v6686, 6.0
  %v6751 = vmin.f32 %v6687, 6.0
  %v6752 = vmin.f32 %v6688, 6.0
  %v6753 = vmin.f32 %v6689, 6.0
  %v6754 = vmin.f32 %v6690, 6.0
  %v6755 = vmin.f32 %v6691, 6.0
  %v6756 = vmin.f32 %v6692, 6.0
  %v6757 = vmin.f32 %v6693, 6.0
  %v6758 = vmin.f32 %v6694, 6.0
  %v6759 = vmin.f32 %v6695, 6.0
  %v6760 = vmin.f32 %v6696, 6.0
  %v6761 = vmin.f32 %v6697, 6.0
  %v6762 = vmin.f32 %v6698, 6.0
  %v6763 = vmin.f32 %v6699, 6.0
  %v6764 = vmin.f32 %v6700, 6.0
  %v6765 = vmin.f32 %v6701, 6.0
  %v6766 = vmin.f32 %v6702, 6.0
  %v6767 = vpack.c.bf16 %v6704, %v6703
  %v6768 = vpack.c.bf16 %v6706, %v6705
  %v6769 = vpack.c.bf16 %v6708, %v6707
  %v6770 = vpack.c.bf16 %v6710, %v6709
  %v6771 = vpack.c.bf16 %v6712, %v6711
  %v6772 = vpack.c.bf16 %v6714, %v6713
  %v6773 = vpack.c.bf16 %v6716, %v6715
  %v6774 = vpack.c.bf16 %v6718, %v6717
  %v6775 = vpack.c.bf16 %v6720, %v6719
  %v6776 = vpack.c.bf16 %v6722, %v6721
  %v6777 = vpack.c.bf16 %v6724, %v6723
  %v6778 = vpack.c.bf16 %v6726, %v6725
  %v6779 = vpack.c.bf16 %v6728, %v6727
  %v6780 = vpack.c.bf16 %v6730, %v6729
  %v6781 = vpack.c.bf16 %v6732, %v6731
  %v6782 = vpack.c.bf16 %v6734, %v6733
  %v6783 = vpack.c.bf16 %v6736, %v6735
  %v6784 = vpack.c.bf16 %v6738, %v6737
  %v6785 = vpack.c.bf16 %v6740, %v6739
  %v6786 = vpack.c.bf16 %v6742, %v6741
  %v6787 = vpack.c.bf16 %v6744, %v6743
  %v6788 = vpack.c.bf16 %v6746, %v6745
  %v6789 = vpack.c.bf16 %v6748, %v6747
  %v6790 = vpack.c.bf16 %v6750, %v6749
  %v6791 = vpack.c.bf16 %v6752, %v6751
  %v6792 = vpack.c.bf16 %v6754, %v6753
  %v6793 = vpack.c.bf16 %v6756, %v6755
  %v6794 = vpack.c.bf16 %v6758, %v6757
  %v6795 = vpack.c.bf16 %v6760, %v6759
  %v6796 = vpack.c.bf16 %v6762, %v6761
  %v6797 = vpack.c.bf16 %v6764, %v6763
  %v6798 = vpack.c.bf16 %v6766, %v6765
  %v6799 = vld [vmem:[%s7] sm:$0xf]
  %v6800 = vld [vmem:[%s7 + $0x4] sm:$0xf]
  %v6801 = vld [vmem:[%s7 + $0x8] sm:$0xf]
  %v6802 = vld [vmem:[%s7 + $0xc] sm:$0xf]
  %v6803 = vld [vmem:[%s7 + $0x10] sm:$0xf]
  %v6804 = vld [vmem:[%s7 + $0x14] sm:$0xf]
  %v6805 = vld [vmem:[%s7 + $0x18] sm:$0xf]
  %v6806 = vld [vmem:[%s7 + $0x1c] sm:$0xf]
  %v6807 = vld [vmem:[%s7 + $0x20] sm:$0xf]
  %v6808 = vld [vmem:[%s7 + $0x24] sm:$0xf]
  %v6809 = vld [vmem:[%s7 + $0x28] sm:$0xf]
  %v6810 = vld [vmem:[%s7 + $0x2c] sm:$0xf]
  %v6811 = vld [vmem:[%s7 + $0x30] sm:$0xf]
  %v6812 = vld [vmem:[%s7 + $0x34] sm:$0xf]
  %v6813 = vld [vmem:[%s7 + $0x38] sm:$0xf]
  %v6814 = vld [vmem:[%s7 + $0x3c] sm:$0xf]
  %v6831 = vunpack.c.l.b16 %v6799
  %v6832 = vunpack.c.l.b16 %v6800
  %v6833 = vunpack.c.l.b16 %v6801
  %v6834 = vunpack.c.l.b16 %v6802
  %v6835 = vunpack.c.l.b16 %v6803
  %v6836 = vunpack.c.l.b16 %v6804
  %v6837 = vunpack.c.l.b16 %v6805
  %v6838 = vunpack.c.l.b16 %v6806
  %v6839 = vunpack.c.l.b16 %v6807
  %v6840 = vunpack.c.l.b16 %v6808
  %v6841 = vunpack.c.l.b16 %v6809
  %v6842 = vunpack.c.l.b16 %v6810
  %v6843 = vunpack.c.l.b16 %v6811
  %v6844 = vunpack.c.l.b16 %v6812
  %v6845 = vunpack.c.l.b16 %v6813
  %v6846 = vunpack.c.l.b16 %v6814
  %v6847 = vpack.c.b16 %v6832, %v6831
  %v6848 = vpack.c.b16 %v6834, %v6833
  %v6849 = vpack.c.b16 %v6836, %v6835
  %v6850 = vpack.c.b16 %v6838, %v6837
  %v6851 = vpack.c.b16 %v6840, %v6839
  %v6852 = vpack.c.b16 %v6842, %v6841
  %v6853 = vpack.c.b16 %v6844, %v6843
  %v6854 = vpack.c.b16 %v6846, %v6845
  %6863 = vmatprep.subr.bf16.mxu0 0
  %6864 = vmatpush1.bf16.msra.mxu0 %v6847
  %6865 = vmatprep.subr.bf16.mxu0 0
  %6866 = vmatpush1.bf16.msra.mxu0 %v6848
  %6867 = vmatprep.subr.bf16.mxu0 0
  %6868 = vmatpush1.bf16.msra.mxu0 %v6849
  %6869 = vmatprep.subr.bf16.mxu0 0
  %6870 = vmatpush1.bf16.msra.mxu0 %v6850
  %6871 = vmatprep.subr.bf16.mxu0 0
  %6872 = vmatpush1.bf16.msra.mxu0 %v6851
  %6873 = vmatprep.subr.bf16.mxu0 0
  %6874 = vmatpush1.bf16.msra.mxu0 %v6852
  %6875 = vmatprep.subr.bf16.mxu0 0
  %6876 = vmatpush1.bf16.msra.mxu0 %v6853
  %6877 = vmatprep.subr.bf16.mxu0 0
  %6878 = vmatpush1.bf16.msra.mxu0 %v6854
  %6879 = vmatprep.subr.bf16.mxu0 0
  %6880 = vmatpush1.bf16.msra.mxu0 0
  %6881 = vmatprep.subr.bf16.mxu0 0
  %6882 = vmatpush1.bf16.msra.mxu0 0
  %6883 = vmatprep.subr.bf16.mxu0 0
  %6884 = vmatpush1.bf16.msra.mxu0 0
  %6885 = vmatprep.subr.bf16.mxu0 0
  %6886 = vmatpush1.bf16.msra.mxu0 0
  %6887 = vmatprep.subr.bf16.mxu0 0
  %6888 = vmatpush1.bf16.msra.mxu0 0
  %6889 = vmatprep.subr.bf16.mxu0 0
  %6890 = vmatpush1.bf16.msra.mxu0 0
  %6891 = vmatprep.subr.bf16.mxu0 0
  %6892 = vmatpush1.bf16.msra.mxu0 0
  %6893 = vmatprep.subr.bf16.mxu0 0
  %6894 = vmatpush1.bf16.msra.mxu0 0
  %6895 = vmatprep.mubr.bf16.mxu0 0
  %6896 = vmatmul.mubr.bf16.gmra.mrb[0].mxu0 %v6767
  %v6897 = vpop.f32.mrb[0].mxu0
  %v6898 = vadd.f32 0.0, %v6897
  %v6899 = vpop.f32.mrb[0].mxu0
  %v6900 = vpop.f32.mrb[0].mxu0
  %v6901 = vadd.f32 0.0, %v6900
  %v6902 = vpop.f32.mrb[0].mxu0
  %6903 = vmatprep.mubr.bf16.mxu0 0
  %6904 = vmatmul.mubr.bf16.gmra.mrb[0].mxu0 %v6768
  %v6905 = vpop.f32.mrb[0].mxu0
  %v6906 = vadd.f32 0.0, %v6905
  %v6907 = vpop.f32.mrb[0].mxu0
  %v6908 = vpop.f32.mrb[0].mxu0
  %v6909 = vadd.f32 0.0, %v6908
  %v6910 = vpop.f32.mrb[0].mxu0
  %6911 = vmatprep.mubr.bf16.mxu0 0
  %6912 = vmatmul.mubr.bf16.gmra.mrb[0].mxu0 %v6769
  %v6913 = vpop.f32.mrb[0].mxu0
  %v6914 = vadd.f32 0.0, %v6913
  %v6915 = vpop.f32.mrb[0].mxu0
  %v6916 = vpop.f32.mrb[0].mxu0
  %v6917 = vadd.f32 0.0, %v6916
  %v6918 = vpop.f32.mrb[0].mxu0
  %6919 = vmatprep.mubr.bf16.mxu0 0
  %6920 = vmatmul.mubr.bf16.gmra.mrb[0].mxu0 %v6770
  %v6921 = vpop.f32.mrb[0].mxu0
  %v6922 = vadd.f32 0.0, %v6921
  %v6923 = vpop.f32.mrb[0].mxu0
  %v6924 = vpop.f32.mrb[0].mxu0
  %v6925 = vadd.f32 0.0, %v6924
  %v6926 = vpop.f32.mrb[0].mxu0
  %6927 = vmatprep.mubr.bf16.mxu0 0
  %6928 = vmatmul.mubr.bf16.gmra.mrb[0].mxu0 %v6771
  %v6929 = vpop.f32.mrb[0].mxu0
  %v6930 = vadd.f32 0.0, %v6929
  %v6931 = vpop.f32.mrb[0].mxu0
  %v6932 = vpop.f32.mrb[0].mxu0
  %v6933 = vadd.f32 0.0, %v6932
  %v6934 = vpop.f32.mrb[0].mxu0
  %6935 = vmatprep.mubr.bf16.mxu0 0
  %6936 = vmatmul.mubr.bf16.gmra.mrb[0].mxu0 %v6772
  %v6937 = vpop.f32.mrb[0].mxu0
  %v6938 = vadd.f32 0.0, %v6937
  %v6939 = vpop.f32.mrb[0].mxu0
  %v6940 = vpop.f32.mrb[0].mxu0
  %v6941 = vadd.f32 0.0, %v6940
  %v6942 = vpop.f32.mrb[0].mxu0
  %6943 = vmatprep.mubr.bf16.mxu0 0
  %6944 = vmatmul.mubr.bf16.gmra.mrb[0].mxu0 %v6773
  %v6945 = vpop.f32.mrb[0].mxu0
  %v6946 = vadd.f32 0.0, %v6945
  %v6947 = vpop.f32.mrb[0].mxu0
  %v6948 = vpop.f32.mrb[0].mxu0
  %v6949 = vadd.f32 0.0, %v6948
  %v6950 = vpop.f32.mrb[0].mxu0
  %6951 = vmatprep.mubr.bf16.mxu0 0
  %6952 = vmatmul.mubr.bf16.gmra.mrb[0].mxu0 %v6774
  %v6953 = vpop.f32.mrb[0].mxu0
  %v6954 = vadd.f32 0.0, %v6953
  %v6955 = vpop.f32.mrb[0].mxu0
  %v6956 = vpop.f32.mrb[0].mxu0
  %v6957 = vadd.f32 0.0, %v6956
  %v6958 = vpop.f32.mrb[0].mxu0
  %6959 = vmatprep.mubr.bf16.mxu0 0
  %6960 = vmatmul.mubr.bf16.gmra.mrb[0].mxu0 %v6775
  %v6961 = vpop.f32.mrb[0].mxu0
  %v6962 = vadd.f32 0.0, %v6961
  %v6963 = vpop.f32.mrb[0].mxu0
  %v6964 = vpop.f32.mrb[0].mxu0
  %v6965 = vadd.f32 0.0, %v6964
  %v6966 = vpop.f32.mrb[0].mxu0
  %6967 = vmatprep.mubr.bf16.mxu0 0
  %6968 = vmatmul.mubr.bf16.gmra.mrb[0].mxu0 %v6776
  %v6969 = vpop.f32.mrb[0].mxu0
  %v6970 = vadd.f32 0.0, %v6969
  %v6971 = vpop.f32.mrb[0].mxu0
  %v6972 = vpop.f32.mrb[0].mxu0
  %v6973 = vadd.f32 0.0, %v6972
  %v6974 = vpop.f32.mrb[0].mxu0
  %6975 = vmatprep.mubr.bf16.mxu0 0
  %6976 = vmatmul.mubr.bf16.gmra.mrb[0].mxu0 %v6777
  %v6977 = vpop.f32.mrb[0].mxu0
  %v6978 = vadd.f32 0.0, %v6977
  %v6979 = vpop.f32.mrb[0].mxu0
  %v6980 = vpop.f32.mrb[0].mxu0
  %v6981 = vadd.f32 0.0, %v6980
  %v6982 = vpop.f32.mrb[0].mxu0
  %6983 = vmatprep.mubr.bf16.mxu0 0
  %6984 = vmatmul.mubr.bf16.gmra.mrb[0].mxu0 %v6778
  %v6985 = vpop.f32.mrb[0].mxu0
  %v6986 = vadd.f32 0.0, %v6985
  %v6987 = vpop.f32.mrb[0].mxu0
  %v6988 = vpop.f32.mrb[0].mxu0
  %v6989 = vadd.f32 0.0, %v6988
  %v6990 = vpop.f32.mrb[0].mxu0
  %6991 = vmatprep.mubr.bf16.mxu0 0
  %6992 = vmatmul.mubr.bf16.gmra.mrb[0].mxu0 %v6779
  %v6993 = vpop.f32.mrb[0].mxu0
  %v6994 = vadd.f32 0.0, %v6993
  %v6995 = vpop.f32.mrb[0].mxu0
  %v6996 = vpop.f32.mrb[0].mxu0
  %v6997 = vadd.f32 0.0, %v6996
  %v6998 = vpop.f32.mrb[0].mxu0
  %6999 = vmatprep.mubr.bf16.mxu0 0
  %7000 = vmatmul.mubr.bf16.gmra.mrb[0].mxu0 %v6780
  %v7001 = vpop.f32.mrb[0].mxu0
  %v7002 = vadd.f32 0.0, %v7001
  %v7003 = vpop.f32.mrb[0].mxu0
  %v7004 = vpop.f32.mrb[0].mxu0
  %v7005 = vadd.f32 0.0, %v7004
  %v7006 = vpop.f32.mrb[0].mxu0
  %7007 = vmatprep.mubr.bf16.mxu0 0
  %7008 = vmatmul.mubr.bf16.gmra.mrb[0].mxu0 %v6781
  %v7009 = vpop.f32.mrb[0].mxu0
  %v7010 = vadd.f32 0.0, %v7009
  %v7011 = vpop.f32.mrb[0].mxu0
  %v7012 = vpop.f32.mrb[0].mxu0
  %v7013 = vadd.f32 0.0, %v7012
  %v7014 = vpop.f32.mrb[0].mxu0
  %7015 = vmatprep.mubr.bf16.mxu0 0
  %7016 = vmatmul.mubr.bf16.gmra.mrb[0].mxu0 %v6782
  %v7017 = vpop.f32.mrb[0].mxu0
  %v7018 = vadd.f32 0.0, %v7017
  %v7019 = vpop.f32.mrb[0].mxu0
  %v7020 = vpop.f32.mrb[0].mxu0
  %v7021 = vadd.f32 0.0, %v7020
  %v7022 = vpop.f32.mrb[0].mxu0
  %7023 = vmatprep.mubr.bf16.mxu0 0
  %7024 = vmatmul.mubr.bf16.gmra.mrb[0].mxu0 %v6783
  %v7025 = vpop.f32.mrb[0].mxu0
  %v7026 = vadd.f32 0.0, %v7025
  %v7027 = vpop.f32.mrb[0].mxu0
  %v7028 = vpop.f32.mrb[0].mxu0
  %v7029 = vadd.f32 0.0, %v7028
  %v7030 = vpop.f32.mrb[0].mxu0
  %7031 = vmatprep.mubr.bf16.mxu0 0
  %7032 = vmatmul.mubr.bf16.gmra.mrb[0].mxu0 %v6784
  %v7033 = vpop.f32.mrb[0].mxu0
  %v7034 = vadd.f32 0.0, %v7033
  %v7035 = vpop.f32.mrb[0].mxu0
  %v7036 = vpop.f32.mrb[0].mxu0
  %v7037 = vadd.f32 0.0, %v7036
  %v7038 = vpop.f32.mrb[0].mxu0
  %7039 = vmatprep.mubr.bf16.mxu0 0
  %7040 = vmatmul.mubr.bf16.gmra.mrb[0].mxu0 %v6785
  %v7041 = vpop.f32.mrb[0].mxu0
  %v7042 = vadd.f32 0.0, %v7041
  %v7043 = vpop.f32.mrb[0].mxu0
  %v7044 = vpop.f32.mrb[0].mxu0
  %v7045 = vadd.f32 0.0, %v7044
  %v7046 = vpop.f32.mrb[0].mxu0
  %7047 = vmatprep.mubr.bf16.mxu0 0
  %7048 = vmatmul.mubr.bf16.gmra.mrb[0].mxu0 %v6786
  %v7049 = vpop.f32.mrb[0].mxu0
  %v7050 = vadd.f32 0.0, %v7049
  %v7051 = vpop.f32.mrb[0].mxu0
  %v7052 = vpop.f32.mrb[0].mxu0
  %v7053 = vadd.f32 0.0, %v7052
  %v7054 = vpop.f32.mrb[0].mxu0
  %7055 = vmatprep.mubr.bf16.mxu0 0
  %7056 = vmatmul.mubr.bf16.gmra.mrb[0].mxu0 %v6787
  %v7057 = vpop.f32.mrb[0].mxu0
  %v7058 = vadd.f32 0.0, %v7057
  %v7059 = vpop.f32.mrb[0].mxu0
  %v7060 = vpop.f32.mrb[0].mxu0
  %v7061 = vadd.f32 0.0, %v7060
  %v7062 = vpop.f32.mrb[0].mxu0
  %7063 = vmatprep.mubr.bf16.mxu0 0
  %7064 = vmatmul.mubr.bf16.gmra.mrb[0].mxu0 %v6788
  %v7065 = vpop.f32.mrb[0].mxu0
  %v7066 = vadd.f32 0.0, %v7065
  %v7067 = vpop.f32.mrb[0].mxu0
  %v7068 = vpop.f32.mrb[0].mxu0
  %v7069 = vadd.f32 0.0, %v7068
  %v7070 = vpop.f32.mrb[0].mxu0
  %7071 = vmatprep.mubr.bf16.mxu0 0
  %7072 = vmatmul.mubr.bf16.gmra.mrb[0].mxu0 %v6789
  %v7073 = vpop.f32.mrb[0].mxu0
  %v7074 = vadd.f32 0.0, %v7073
  %v7075 = vpop.f32.mrb[0].mxu0
  %v7076 = vpop.f32.mrb[0].mxu0
  %v7077 = vadd.f32 0.0, %v7076
  %v7078 = vpop.f32.mrb[0].mxu0
  %7079 = vmatprep.mubr.bf16.mxu0 0
  %7080 = vmatmul.mubr.bf16.gmra.mrb[0].mxu0 %v6790
  %v7081 = vpop.f32.mrb[0].mxu0
  %v7082 = vadd.f32 0.0, %v7081
  %v7083 = vpop.f32.mrb[0].mxu0
  %v7084 = vpop.f32.mrb[0].mxu0
  %v7085 = vadd.f32 0.0, %v7084
  %v7086 = vpop.f32.mrb[0].mxu0
  %7087 = vmatprep.mubr.bf16.mxu0 0
  %7088 = vmatmul.mubr.bf16.gmra.mrb[0].mxu0 %v6791
  %v7089 = vpop.f32.mrb[0].mxu0
  %v7090 = vadd.f32 0.0, %v7089
  %v7091 = vpop.f32.mrb[0].mxu0
  %v7092 = vpop.f32.mrb[0].mxu0
  %v7093 = vadd.f32 0.0, %v7092
  %v7094 = vpop.f32.mrb[0].mxu0
  %7095 = vmatprep.mubr.bf16.mxu0 0
  %7096 = vmatmul.mubr.bf16.gmra.mrb[0].mxu0 %v6792
  %v7097 = vpop.f32.mrb[0].mxu0
  %v7098 = vadd.f32 0.0, %v7097
  %v7099 = vpop.f32.mrb[0].mxu0
  %v7100 = vpop.f32.mrb[0].mxu0
  %v7101 = vadd.f32 0.0, %v7100
  %v7102 = vpop.f32.mrb[0].mxu0
  %7103 = vmatprep.mubr.bf16.mxu0 0
  %7104 = vmatmul.mubr.bf16.gmra.mrb[0].mxu0 %v6793
  %v7105 = vpop.f32.mrb[0].mxu0
  %v7106 = vadd.f32 0.0, %v7105
  %v7107 = vpop.f32.mrb[0].mxu0
  %v7108 = vpop.f32.mrb[0].mxu0
  %v7109 = vadd.f32 0.0, %v7108
  %v7110 = vpop.f32.mrb[0].mxu0
  %7111 = vmatprep.mubr.bf16.mxu0 0
  %7112 = vmatmul.mubr.bf16.gmra.mrb[0].mxu0 %v6794
  %v7113 = vpop.f32.mrb[0].mxu0
  %v7114 = vadd.f32 0.0, %v7113
  %v7115 = vpop.f32.mrb[0].mxu0
  %v7116 = vpop.f32.mrb[0].mxu0
  %v7117 = vadd.f32 0.0, %v7116
  %v7118 = vpop.f32.mrb[0].mxu0
  %7119 = vmatprep.mubr.bf16.mxu0 0
  %7120 = vmatmul.mubr.bf16.gmra.mrb[0].mxu0 %v6795
  %v7121 = vpop.f32.mrb[0].mxu0
  %v7122 = vadd.f32 0.0, %v7121
  %v7123 = vpop.f32.mrb[0].mxu0
  %v7124 = vpop.f32.mrb[0].mxu0
  %v7125 = vadd.f32 0.0, %v7124
  %v7126 = vpop.f32.mrb[0].mxu0
  %7127 = vmatprep.mubr.bf16.mxu0 0
  %7128 = vmatmul.mubr.bf16.gmra.mrb[0].mxu0 %v6796
  %v7129 = vpop.f32.mrb[0].mxu0
  %v7130 = vadd.f32 0.0, %v7129
  %v7131 = vpop.f32.mrb[0].mxu0
  %v7132 = vpop.f32.mrb[0].mxu0
  %v7133 = vadd.f32 0.0, %v7132
  %v7134 = vpop.f32.mrb[0].mxu0
  %7135 = vmatprep.mubr.bf16.mxu0 0
  %7136 = vmatmul.mubr.bf16.gmra.mrb[0].mxu0 %v6797
  %v7137 = vpop.f32.mrb[0].mxu0
  %v7138 = vadd.f32 0.0, %v7137
  %v7139 = vpop.f32.mrb[0].mxu0
  %v7140 = vpop.f32.mrb[0].mxu0
  %v7141 = vadd.f32 0.0, %v7140
  %v7142 = vpop.f32.mrb[0].mxu0
  %7143 = vmatprep.mubr.bf16.mxu0 0
  %7144 = vmatmul.mubr.bf16.gmra.mrb[0].mxu0 %v6798
  %v7145 = vpop.f32.mrb[0].mxu0
  %v7146 = vadd.f32 0.0, %v7145
  %v7147 = vpop.f32.mrb[0].mxu0
  %v7148 = vpop.f32.mrb[0].mxu0
  %v7149 = vadd.f32 0.0, %v7148
  %v7150 = vpop.f32.mrb[0].mxu0
  %7151 = vdwg.mxu0
  %v7152 = vld [vmem:[%s8] sm:$0x1]
  %v7153 = vld [vmem:[%s9] sm:$0x1]
  %v7154 = vsel %vm133, %v6898, 0.0
  %v7155 = vsel %vm133, %v6901, 0.0
  %v7156 = vadd.f32 %v7154, %v7155
  %v7157 = vsel %vm133, %v6906, 0.0
  %v7158 = vadd.f32 %v7156, %v7157
  %v7159 = vsel %vm133, %v6909, 0.0
  %v7160 = vadd.f32 %v7158, %v7159
  %v7161 = vsel %vm133, %v6914, 0.0
  %v7162 = vadd.f32 %v7160, %v7161
  %v7163 = vsel %vm133, %v6917, 0.0
  %v7164 = vadd.f32 %v7162, %v7163
  %v7165 = vsel %vm133, %v6922, 0.0
  %v7166 = vadd.f32 %v7164, %v7165
  %v7167 = vsel %vm133, %v6925, 0.0
  %v7168 = vadd.f32 %v7166, %v7167
  %v7169 = vsel %vm133, %v6930, 0.0
  %v7170 = vadd.f32 %v7168, %v7169
  %v7171 = vsel %vm133, %v6933, 0.0
  %v7172 = vadd.f32 %v7170, %v7171
  %v7173 = vsel %vm133, %v6938, 0.0
  %v7174 = vadd.f32 %v7172, %v7173
  %v7175 = vsel %vm133, %v6941, 0.0
  %v7176 = vadd.f32 %v7174, %v7175
  %v7177 = vsel %vm133, %v6946, 0.0
  %v7178 = vadd.f32 %v7176, %v7177
  %v7179 = vsel %vm133, %v6949, 0.0
  %v7180 = vadd.f32 %v7178, %v7179
  %v7181 = vsel %vm133, %v6954, 0.0
  %v7182 = vadd.f32 %v7180, %v7181
  %v7183 = vsel %vm133, %v6957, 0.0
  %v7184 = vadd.f32 %v7182, %v7183
  %v7185 = vsel %vm133, %v6962, 0.0
  %v7186 = vadd.f32 %v7184, %v7185
  %v7187 = vsel %vm133, %v6965, 0.0
  %v7188 = vadd.f32 %v7186, %v7187
  %v7189 = vsel %vm133, %v6970, 0.0
  %v7190 = vadd.f32 %v7188, %v7189
  %v7191 = vsel %vm133, %v6973, 0.0
  %v7192 = vadd.f32 %v7190, %v7191
  %v7193 = vsel %vm133, %v6978, 0.0
  %v7194 = vadd.f32 %v7192, %v7193
  %v7195 = vsel %vm133, %v6981, 0.0
  %v7196 = vadd.f32 %v7194, %v7195
  %v7197 = vsel %vm133, %v6986, 0.0
  %v7198 = vadd.f32 %v7196, %v7197
  %v7199 = vsel %vm133, %v6989, 0.0
  %v7200 = vadd.f32 %v7198, %v7199
  %v7201 = vsel %vm133, %v6994, 0.0
  %v7202 = vadd.f32 %v7200, %v7201
  %v7203 = vsel %vm133, %v6997, 0.0
  %v7204 = vadd.f32 %v7202, %v7203
  %v7205 = vsel %vm133, %v7002, 0.0
  %v7206 = vadd.f32 %v7204, %v7205
  %v7207 = vsel %vm133, %v7005, 0.0
  %v7208 = vadd.f32 %v7206, %v7207
  %v7209 = vsel %vm133, %v7010, 0.0
  %v7210 = vadd.f32 %v7208, %v7209
  %v7211 = vsel %vm133, %v7013, 0.0
  %v7212 = vadd.f32 %v7210, %v7211
  %v7213 = vsel %vm133, %v7018, 0.0
  %v7214 = vadd.f32 %v7212, %v7213
  %v7215 = vsel %vm133, %v7021, 0.0
  %v7216 = vadd.f32 %v7214, %v7215
  %v7217 = vsel %vm133, %v7026, 0.0
  %v7218 = vadd.f32 %v7216, %v7217
  %v7219 = vsel %vm133, %v7029, 0.0
  %v7220 = vadd.f32 %v7218, %v7219
  %v7221 = vsel %vm133, %v7034, 0.0
  %v7222 = vadd.f32 %v7220, %v7221
  %v7223 = vsel %vm133, %v7037, 0.0
  %v7224 = vadd.f32 %v7222, %v7223
  %v7225 = vsel %vm133, %v7042, 0.0
  %v7226 = vadd.f32 %v7224, %v7225
  %v7227 = vsel %vm133, %v7045, 0.0
  %v7228 = vadd.f32 %v7226, %v7227
  %v7229 = vsel %vm133, %v7050, 0.0
  %v7230 = vadd.f32 %v7228, %v7229
  %v7231 = vsel %vm133, %v7053, 0.0
  %v7232 = vadd.f32 %v7230, %v7231
  %v7233 = vsel %vm133, %v7058, 0.0
  %v7234 = vadd.f32 %v7232, %v7233
  %v7235 = vsel %vm133, %v7061, 0.0
  %v7236 = vadd.f32 %v7234, %v7235
  %v7237 = vsel %vm133, %v7066, 0.0
  %v7238 = vadd.f32 %v7236, %v7237
  %v7239 = vsel %vm133, %v7069, 0.0
  %v7240 = vadd.f32 %v7238, %v7239
  %v7241 = vsel %vm133, %v7074, 0.0
  %v7242 = vadd.f32 %v7240, %v7241
  %v7243 = vsel %vm133, %v7077, 0.0
  %v7244 = vadd.f32 %v7242, %v7243
  %v7245 = vsel %vm133, %v7082, 0.0
  %v7246 = vadd.f32 %v7244, %v7245
  %v7247 = vsel %vm133, %v7085, 0.0
  %v7248 = vadd.f32 %v7246, %v7247
  %v7249 = vsel %vm133, %v7090, 0.0
  %v7250 = vadd.f32 %v7248, %v7249
  %v7251 = vsel %vm133, %v7093, 0.0
  %v7252 = vadd.f32 %v7250, %v7251
  %v7253 = vsel %vm133, %v7098, 0.0
  %v7254 = vadd.f32 %v7252, %v7253
  %v7255 = vsel %vm133, %v7101, 0.0
  %v7256 = vadd.f32 %v7254, %v7255
  %v7257 = vsel %vm133, %v7106, 0.0
  %v7258 = vadd.f32 %v7256, %v7257
  %v7259 = vsel %vm133, %v7109, 0.0
  %v7260 = vadd.f32 %v7258, %v7259
  %v7261 = vsel %vm133, %v7114, 0.0
  %v7262 = vadd.f32 %v7260, %v7261
  %v7263 = vsel %vm133, %v7117, 0.0
  %v7264 = vadd.f32 %v7262, %v7263
  %v7265 = vsel %vm133, %v7122, 0.0
  %v7266 = vadd.f32 %v7264, %v7265
  %v7267 = vsel %vm133, %v7125, 0.0
  %v7268 = vadd.f32 %v7266, %v7267
  %v7269 = vsel %vm133, %v7130, 0.0
  %v7270 = vadd.f32 %v7268, %v7269
  %v7271 = vsel %vm133, %v7133, 0.0
  %v7272 = vadd.f32 %v7270, %v7271
  %v7273 = vsel %vm133, %v7138, 0.0
  %v7274 = vadd.f32 %v7272, %v7273
  %v7275 = vsel %vm133, %v7141, 0.0
  %v7276 = vadd.f32 %v7274, %v7275
  %v7277 = vsel %vm133, %v7146, 0.0
  %v7278 = vadd.f32 %v7276, %v7277
  %v7279 = vsel %vm133, %v7149, 0.0
  %v7280 = vadd.f32 %v7278, %v7279
  %v7281 = vrot.slane %v7280, 4
  %v7282 = vadd.f32 %v7280, %v7281
  %v7283 = vrot.slane %v7282, 2
  %v7284 = vadd.f32 %v7282, %v7283
  %v7285 = vrot.slane %v7284, 1
  %v7286 = vadd.f32 %v7284, %v7285
  %v7287 = vmul.f32 %v7286, %v594
  %v7288 = vmul.f32 %v6898, %v6898
  %v7289 = vmul.f32 %v6901, %v6901
  %v7290 = vmul.f32 %v6906, %v6906
  %v7291 = vmul.f32 %v6909, %v6909
  %v7292 = vmul.f32 %v6914, %v6914
  %v7293 = vmul.f32 %v6917, %v6917
  %v7294 = vmul.f32 %v6922, %v6922
  %v7295 = vmul.f32 %v6925, %v6925
  %v7296 = vmul.f32 %v6930, %v6930
  %v7297 = vmul.f32 %v6933, %v6933
  %v7298 = vmul.f32 %v6938, %v6938
  %v7299 = vmul.f32 %v6941, %v6941
  %v7300 = vmul.f32 %v6946, %v6946
  %v7301 = vmul.f32 %v6949, %v6949
  %v7302 = vmul.f32 %v6954, %v6954
  %v7303 = vmul.f32 %v6957, %v6957
  %v7304 = vmul.f32 %v6962, %v6962
  %v7305 = vmul.f32 %v6965, %v6965
  %v7306 = vmul.f32 %v6970, %v6970
  %v7307 = vmul.f32 %v6973, %v6973
  %v7308 = vmul.f32 %v6978, %v6978
  %v7309 = vmul.f32 %v6981, %v6981
  %v7310 = vmul.f32 %v6986, %v6986
  %v7311 = vmul.f32 %v6989, %v6989
  %v7312 = vmul.f32 %v6994, %v6994
  %v7313 = vmul.f32 %v6997, %v6997
  %v7314 = vmul.f32 %v7002, %v7002
  %v7315 = vmul.f32 %v7005, %v7005
  %v7316 = vmul.f32 %v7010, %v7010
  %v7317 = vmul.f32 %v7013, %v7013
  %v7318 = vmul.f32 %v7018, %v7018
  %v7319 = vmul.f32 %v7021, %v7021
  %v7320 = vmul.f32 %v7026, %v7026
  %v7321 = vmul.f32 %v7029, %v7029
  %v7322 = vmul.f32 %v7034, %v7034
  %v7323 = vmul.f32 %v7037, %v7037
  %v7324 = vmul.f32 %v7042, %v7042
  %v7325 = vmul.f32 %v7045, %v7045
  %v7326 = vmul.f32 %v7050, %v7050
  %v7327 = vmul.f32 %v7053, %v7053
  %v7328 = vmul.f32 %v7058, %v7058
  %v7329 = vmul.f32 %v7061, %v7061
  %v7330 = vmul.f32 %v7066, %v7066
  %v7331 = vmul.f32 %v7069, %v7069
  %v7332 = vmul.f32 %v7074, %v7074
  %v7333 = vmul.f32 %v7077, %v7077
  %v7334 = vmul.f32 %v7082, %v7082
  %v7335 = vmul.f32 %v7085, %v7085
  %v7336 = vmul.f32 %v7090, %v7090
  %v7337 = vmul.f32 %v7093, %v7093
  %v7338 = vmul.f32 %v7098, %v7098
  %v7339 = vmul.f32 %v7101, %v7101
  %v7340 = vmul.f32 %v7106, %v7106
  %v7341 = vmul.f32 %v7109, %v7109
  %v7342 = vmul.f32 %v7114, %v7114
  %v7343 = vmul.f32 %v7117, %v7117
  %v7344 = vmul.f32 %v7122, %v7122
  %v7345 = vmul.f32 %v7125, %v7125
  %v7346 = vmul.f32 %v7130, %v7130
  %v7347 = vmul.f32 %v7133, %v7133
  %v7348 = vmul.f32 %v7138, %v7138
  %v7349 = vmul.f32 %v7141, %v7141
  %v7350 = vmul.f32 %v7146, %v7146
  %v7351 = vmul.f32 %v7149, %v7149
  %v7352 = vsel %vm133, %v7288, 0.0
  %v7353 = vsel %vm133, %v7289, 0.0
  %v7354 = vadd.f32 %v7352, %v7353
  %v7355 = vsel %vm133, %v7290, 0.0
  %v7356 = vadd.f32 %v7354, %v7355
  %v7357 = vsel %vm133, %v7291, 0.0
  %v7358 = vadd.f32 %v7356, %v7357
  %v7359 = vsel %vm133, %v7292, 0.0
  %v7360 = vadd.f32 %v7358, %v7359
  %v7361 = vsel %vm133, %v7293, 0.0
  %v7362 = vadd.f32 %v7360, %v7361
  %v7363 = vsel %vm133, %v7294, 0.0
  %v7364 = vadd.f32 %v7362, %v7363
  %v7365 = vsel %vm133, %v7295, 0.0
  %v7366 = vadd.f32 %v7364, %v7365
  %v7367 = vsel %vm133, %v7296, 0.0
  %v7368 = vadd.f32 %v7366, %v7367
  %v7369 = vsel %vm133, %v7297, 0.0
  %v7370 = vadd.f32 %v7368, %v7369
  %v7371 = vsel %vm133, %v7298, 0.0
  %v7372 = vadd.f32 %v7370, %v7371
  %v7373 = vsel %vm133, %v7299, 0.0
  %v7374 = vadd.f32 %v7372, %v7373
  %v7375 = vsel %vm133, %v7300, 0.0
  %v7376 = vadd.f32 %v7374, %v7375
  %v7377 = vsel %vm133, %v7301, 0.0
  %v7378 = vadd.f32 %v7376, %v7377
  %v7379 = vsel %vm133, %v7302, 0.0
  %v7380 = vadd.f32 %v7378, %v7379
  %v7381 = vsel %vm133, %v7303, 0.0
  %v7382 = vadd.f32 %v7380, %v7381
  %v7383 = vsel %vm133, %v7304, 0.0
  %v7384 = vadd.f32 %v7382, %v7383
  %v7385 = vsel %vm133, %v7305, 0.0
  %v7386 = vadd.f32 %v7384, %v7385
  %v7387 = vsel %vm133, %v7306, 0.0
  %v7388 = vadd.f32 %v7386, %v7387
  %v7389 = vsel %vm133, %v7307, 0.0
  %v7390 = vadd.f32 %v7388, %v7389
  %v7391 = vsel %vm133, %v7308, 0.0
  %v7392 = vadd.f32 %v7390, %v7391
  %v7393 = vsel %vm133, %v7309, 0.0
  %v7394 = vadd.f32 %v7392, %v7393
  %v7395 = vsel %vm133, %v7310, 0.0
  %v7396 = vadd.f32 %v7394, %v7395
  %v7397 = vsel %vm133, %v7311, 0.0
  %v7398 = vadd.f32 %v7396, %v7397
  %v7399 = vsel %vm133, %v7312, 0.0
  %v7400 = vadd.f32 %v7398, %v7399
  %v7401 = vsel %vm133, %v7313, 0.0
  %v7402 = vadd.f32 %v7400, %v7401
  %v7403 = vsel %vm133, %v7314, 0.0
  %v7404 = vadd.f32 %v7402, %v7403
  %v7405 = vsel %vm133, %v7315, 0.0
  %v7406 = vadd.f32 %v7404, %v7405
  %v7407 = vsel %vm133, %v7316, 0.0
  %v7408 = vadd.f32 %v7406, %v7407
  %v7409 = vsel %vm133, %v7317, 0.0
  %v7410 = vadd.f32 %v7408, %v7409
  %v7411 = vsel %vm133, %v7318, 0.0
  %v7412 = vadd.f32 %v7410, %v7411
  %v7413 = vsel %vm133, %v7319, 0.0
  %v7414 = vadd.f32 %v7412, %v7413
  %v7415 = vsel %vm133, %v7320, 0.0
  %v7416 = vadd.f32 %v7414, %v7415
  %v7417 = vsel %vm133, %v7321, 0.0
  %v7418 = vadd.f32 %v7416, %v7417
  %v7419 = vsel %vm133, %v7322, 0.0
  %v7420 = vadd.f32 %v7418, %v7419
  %v7421 = vsel %vm133, %v7323, 0.0
  %v7422 = vadd.f32 %v7420, %v7421
  %v7423 = vsel %vm133, %v7324, 0.0
  %v7424 = vadd.f32 %v7422, %v7423
  %v7425 = vsel %vm133, %v7325, 0.0
  %v7426 = vadd.f32 %v7424, %v7425
  %v7427 = vsel %vm133, %v7326, 0.0
  %v7428 = vadd.f32 %v7426, %v7427
  %v7429 = vsel %vm133, %v7327, 0.0
  %v7430 = vadd.f32 %v7428, %v7429
  %v7431 = vsel %vm133, %v7328, 0.0
  %v7432 = vadd.f32 %v7430, %v7431
  %v7433 = vsel %vm133, %v7329, 0.0
  %v7434 = vadd.f32 %v7432, %v7433
  %v7435 = vsel %vm133, %v7330, 0.0
  %v7436 = vadd.f32 %v7434, %v7435
  %v7437 = vsel %vm133, %v7331, 0.0
  %v7438 = vadd.f32 %v7436, %v7437
  %v7439 = vsel %vm133, %v7332, 0.0
  %v7440 = vadd.f32 %v7438, %v7439
  %v7441 = vsel %vm133, %v7333, 0.0
  %v7442 = vadd.f32 %v7440, %v7441
  %v7443 = vsel %vm133, %v7334, 0.0
  %v7444 = vadd.f32 %v7442, %v7443
  %v7445 = vsel %vm133, %v7335, 0.0
  %v7446 = vadd.f32 %v7444, %v7445
  %v7447 = vsel %vm133, %v7336, 0.0
  %v7448 = vadd.f32 %v7446, %v7447
  %v7449 = vsel %vm133, %v7337, 0.0
  %v7450 = vadd.f32 %v7448, %v7449
  %v7451 = vsel %vm133, %v7338, 0.0
  %v7452 = vadd.f32 %v7450, %v7451
  %v7453 = vsel %vm133, %v7339, 0.0
  %v7454 = vadd.f32 %v7452, %v7453
  %v7455 = vsel %vm133, %v7340, 0.0
  %v7456 = vadd.f32 %v7454, %v7455
  %v7457 = vsel %vm133, %v7341, 0.0
  %v7458 = vadd.f32 %v7456, %v7457
  %v7459 = vsel %vm133, %v7342, 0.0
  %v7460 = vadd.f32 %v7458, %v7459
  %v7461 = vsel %vm133, %v7343, 0.0
  %v7462 = vadd.f32 %v7460, %v7461
  %v7463 = vsel %vm133, %v7344, 0.0
  %v7464 = vadd.f32 %v7462, %v7463
  %v7465 = vsel %vm133, %v7345, 0.0
  %v7466 = vadd.f32 %v7464, %v7465
  %v7467 = vsel %vm133, %v7346, 0.0
  %v7468 = vadd.f32 %v7466, %v7467
  %v7469 = vsel %vm133, %v7347, 0.0
  %v7470 = vadd.f32 %v7468, %v7469
  %v7471 = vsel %vm133, %v7348, 0.0
  %v7472 = vadd.f32 %v7470, %v7471
  %v7473 = vsel %vm133, %v7349, 0.0
  %v7474 = vadd.f32 %v7472, %v7473
  %v7475 = vsel %vm133, %v7350, 0.0
  %v7476 = vadd.f32 %v7474, %v7475
  %v7477 = vsel %vm133, %v7351, 0.0
  %v7478 = vadd.f32 %v7476, %v7477
  %v7479 = vrot.slane %v7478, 4
  %v7480 = vadd.f32 %v7478, %v7479
  %v7481 = vrot.slane %v7480, 2
  %v7482 = vadd.f32 %v7480, %v7481
  %v7483 = vrot.slane %v7482, 1
  %v7484 = vadd.f32 %v7482, %v7483
  %v7485 = vmul.f32 %v7484, %v594
  %v7486 = vmul.f32 %v7287, %v7287
  %v7487 = vsub.f32 %v7485, %v7486
  %v7488 = vmax.f32 %v7487, 0.0
  %v7489 = vadd.f32 %v7488, 1e-05
  %v7490 = vrsqrt.pop %v7489
  %v7491 = vmul.f32 %v7152, %v7490
  %v7492 = vmul.f32 %v7287, %v7491
  %v7493 = vsub.f32 %v7153, %v7492
  %v7495 = vlaneseq
  %v7496 = vshrl.u32 %v7495, 7
  %v7497 = vsub.s32 0, %v7496
  %v7498 = vrot.slane %v7491, %v7497
  %v7500 = vmul.f32 %v6898, %v7498
  %v7501 = vmul.f32 %v6901, %v7498
  %v7502 = vmul.f32 %v6906, %v7498
  %v7503 = vmul.f32 %v6909, %v7498
  %v7504 = vmul.f32 %v6914, %v7498
  %v7505 = vmul.f32 %v6917, %v7498
  %v7506 = vmul.f32 %v6922, %v7498
  %v7507 = vmul.f32 %v6925, %v7498
  %v7508 = vmul.f32 %v6930, %v7498
  %v7509 = vmul.f32 %v6933, %v7498
  %v7510 = vmul.f32 %v6938, %v7498
  %v7511 = vmul.f32 %v6941, %v7498
  %v7512 = vmul.f32 %v6946, %v7498
  %v7513 = vmul.f32 %v6949, %v7498
  %v7514 = vmul.f32 %v6954, %v7498
  %v7515 = vmul.f32 %v6957, %v7498
  %v7516 = vmul.f32 %v6962, %v7498
  %v7517 = vmul.f32 %v6965, %v7498
  %v7518 = vmul.f32 %v6970, %v7498
  %v7519 = vmul.f32 %v6973, %v7498
  %v7520 = vmul.f32 %v6978, %v7498
  %v7521 = vmul.f32 %v6981, %v7498
  %v7522 = vmul.f32 %v6986, %v7498
  %v7523 = vmul.f32 %v6989, %v7498
  %v7524 = vmul.f32 %v6994, %v7498
  %v7525 = vmul.f32 %v6997, %v7498
  %v7526 = vmul.f32 %v7002, %v7498
  %v7527 = vmul.f32 %v7005, %v7498
  %v7528 = vmul.f32 %v7010, %v7498
  %v7529 = vmul.f32 %v7013, %v7498
  %v7530 = vmul.f32 %v7018, %v7498
  %v7531 = vmul.f32 %v7021, %v7498
  %v7532 = vmul.f32 %v7026, %v7498
  %v7533 = vmul.f32 %v7029, %v7498
  %v7534 = vmul.f32 %v7034, %v7498
  %v7535 = vmul.f32 %v7037, %v7498
  %v7536 = vmul.f32 %v7042, %v7498
  %v7537 = vmul.f32 %v7045, %v7498
  %v7538 = vmul.f32 %v7050, %v7498
  %v7539 = vmul.f32 %v7053, %v7498
  %v7540 = vmul.f32 %v7058, %v7498
  %v7541 = vmul.f32 %v7061, %v7498
  %v7542 = vmul.f32 %v7066, %v7498
  %v7543 = vmul.f32 %v7069, %v7498
  %v7544 = vmul.f32 %v7074, %v7498
  %v7545 = vmul.f32 %v7077, %v7498
  %v7546 = vmul.f32 %v7082, %v7498
  %v7547 = vmul.f32 %v7085, %v7498
  %v7548 = vmul.f32 %v7090, %v7498
  %v7549 = vmul.f32 %v7093, %v7498
  %v7550 = vmul.f32 %v7098, %v7498
  %v7551 = vmul.f32 %v7101, %v7498
  %v7552 = vmul.f32 %v7106, %v7498
  %v7553 = vmul.f32 %v7109, %v7498
  %v7554 = vmul.f32 %v7114, %v7498
  %v7555 = vmul.f32 %v7117, %v7498
  %v7556 = vmul.f32 %v7122, %v7498
  %v7557 = vmul.f32 %v7125, %v7498
  %v7558 = vmul.f32 %v7130, %v7498
  %v7559 = vmul.f32 %v7133, %v7498
  %v7560 = vmul.f32 %v7138, %v7498
  %v7561 = vmul.f32 %v7141, %v7498
  %v7562 = vmul.f32 %v7146, %v7498
  %v7563 = vmul.f32 %v7149, %v7498
  %v7565 = vlaneseq
  %v7566 = vshrl.u32 %v7565, 7
  %v7567 = vsub.s32 0, %v7566
  %v7568 = vrot.slane %v7493, %v7567
  %v7570 = vadd.f32 %v7500, %v7568
  %v7571 = vadd.f32 %v7501, %v7568
  %v7572 = vadd.f32 %v7502, %v7568
  %v7573 = vadd.f32 %v7503, %v7568
  %v7574 = vadd.f32 %v7504, %v7568
  %v7575 = vadd.f32 %v7505, %v7568
  %v7576 = vadd.f32 %v7506, %v7568
  %v7577 = vadd.f32 %v7507, %v7568
  %v7578 = vadd.f32 %v7508, %v7568
  %v7579 = vadd.f32 %v7509, %v7568
  %v7580 = vadd.f32 %v7510, %v7568
  %v7581 = vadd.f32 %v7511, %v7568
  %v7582 = vadd.f32 %v7512, %v7568
  %v7583 = vadd.f32 %v7513, %v7568
  %v7584 = vadd.f32 %v7514, %v7568
  %v7585 = vadd.f32 %v7515, %v7568
  %v7586 = vadd.f32 %v7516, %v7568
  %v7587 = vadd.f32 %v7517, %v7568
  %v7588 = vadd.f32 %v7518, %v7568
  %v7589 = vadd.f32 %v7519, %v7568
  %v7590 = vadd.f32 %v7520, %v7568
  %v7591 = vadd.f32 %v7521, %v7568
  %v7592 = vadd.f32 %v7522, %v7568
  %v7593 = vadd.f32 %v7523, %v7568
  %v7594 = vadd.f32 %v7524, %v7568
  %v7595 = vadd.f32 %v7525, %v7568
  %v7596 = vadd.f32 %v7526, %v7568
  %v7597 = vadd.f32 %v7527, %v7568
  %v7598 = vadd.f32 %v7528, %v7568
  %v7599 = vadd.f32 %v7529, %v7568
  %v7600 = vadd.f32 %v7530, %v7568
  %v7601 = vadd.f32 %v7531, %v7568
  %v7602 = vadd.f32 %v7532, %v7568
  %v7603 = vadd.f32 %v7533, %v7568
  %v7604 = vadd.f32 %v7534, %v7568
  %v7605 = vadd.f32 %v7535, %v7568
  %v7606 = vadd.f32 %v7536, %v7568
  %v7607 = vadd.f32 %v7537, %v7568
  %v7608 = vadd.f32 %v7538, %v7568
  %v7609 = vadd.f32 %v7539, %v7568
  %v7610 = vadd.f32 %v7540, %v7568
  %v7611 = vadd.f32 %v7541, %v7568
  %v7612 = vadd.f32 %v7542, %v7568
  %v7613 = vadd.f32 %v7543, %v7568
  %v7614 = vadd.f32 %v7544, %v7568
  %v7615 = vadd.f32 %v7545, %v7568
  %v7616 = vadd.f32 %v7546, %v7568
  %v7617 = vadd.f32 %v7547, %v7568
  %v7618 = vadd.f32 %v7548, %v7568
  %v7619 = vadd.f32 %v7549, %v7568
  %v7620 = vadd.f32 %v7550, %v7568
  %v7621 = vadd.f32 %v7551, %v7568
  %v7622 = vadd.f32 %v7552, %v7568
  %v7623 = vadd.f32 %v7553, %v7568
  %v7624 = vadd.f32 %v7554, %v7568
  %v7625 = vadd.f32 %v7555, %v7568
  %v7626 = vadd.f32 %v7556, %v7568
  %v7627 = vadd.f32 %v7557, %v7568
  %v7628 = vadd.f32 %v7558, %v7568
  %v7629 = vadd.f32 %v7559, %v7568
  %v7630 = vadd.f32 %v7560, %v7568
  %v7631 = vadd.f32 %v7561, %v7568
  %v7632 = vadd.f32 %v7562, %v7568
  %v7633 = vadd.f32 %v7563, %v7568
  %v7634 = vadd.f32 %v7570, %v36
  %v7635 = vadd.f32 %v7571, %v37
  %v7636 = vadd.f32 %v7572, %v38
  %v7637 = vadd.f32 %v7573, %v39
  %v7638 = vadd.f32 %v7574, %v40
  %v7639 = vadd.f32 %v7575, %v41
  %v7640 = vadd.f32 %v7576, %v42
  %v7641 = vadd.f32 %v7577, %v43
  %v7642 = vadd.f32 %v7578, %v44
  %v7643 = vadd.f32 %v7579, %v45
  %v7644 = vadd.f32 %v7580, %v46
  %v7645 = vadd.f32 %v7581, %v47
  %v7646 = vadd.f32 %v7582, %v48
  %v7647 = vadd.f32 %v7583, %v49
  %v7648 = vadd.f32 %v7584, %v50
  %v7649 = vadd.f32 %v7585, %v51
  %v7650 = vadd.f32 %v7586, %v52
  %v7651 = vadd.f32 %v7587, %v53
  %v7652 = vadd.f32 %v7588, %v54
  %v7653 = vadd.f32 %v7589, %v55
  %v7654 = vadd.f32 %v7590, %v56
  %v7655 = vadd.f32 %v7591, %v57
  %v7656 = vadd.f32 %v7592, %v58
  %v7657 = vadd.f32 %v7593, %v59
  %v7658 = vadd.f32 %v7594, %v60
  %v7659 = vadd.f32 %v7595, %v61
  %v7660 = vadd.f32 %v7596, %v62
  %v7661 = vadd.f32 %v7597, %v63
  %v7662 = vadd.f32 %v7598, %v64
  %v7663 = vadd.f32 %v7599, %v65
  %v7664 = vadd.f32 %v7600, %v66
  %v7665 = vadd.f32 %v7601, %v67
  %v7666 = vadd.f32 %v7602, %v68
  %v7667 = vadd.f32 %v7603, %v69
  %v7668 = vadd.f32 %v7604, %v70
  %v7669 = vadd.f32 %v7605, %v71
  %v7670 = vadd.f32 %v7606, %v72
  %v7671 = vadd.f32 %v7607, %v73
  %v7672 = vadd.f32 %v7608, %v74
  %v7673 = vadd.f32 %v7609, %v75
  %v7674 = vadd.f32 %v7610, %v76
  %v7675 = vadd.f32 %v7611, %v77
  %v7676 = vadd.f32 %v7612, %v78
  %v7677 = vadd.f32 %v7613, %v79
  %v7678 = vadd.f32 %v7614, %v80
  %v7679 = vadd.f32 %v7615, %v81
  %v7680 = vadd.f32 %v7616, %v82
  %v7681 = vadd.f32 %v7617, %v83
  %v7682 = vadd.f32 %v7618, %v84
  %v7683 = vadd.f32 %v7619, %v85
  %v7684 = vadd.f32 %v7620, %v86
  %v7685 = vadd.f32 %v7621, %v87
  %v7686 = vadd.f32 %v7622, %v88
  %v7687 = vadd.f32 %v7623, %v89
  %v7688 = vadd.f32 %v7624, %v90
  %v7689 = vadd.f32 %v7625, %v91
  %v7690 = vadd.f32 %v7626, %v92
  %v7691 = vadd.f32 %v7627, %v93
  %v7692 = vadd.f32 %v7628, %v94
  %v7693 = vadd.f32 %v7629, %v95
  %v7694 = vadd.f32 %v7630, %v96
  %v7695 = vadd.f32 %v7631, %v97
  %v7696 = vadd.f32 %v7632, %v98
  %v7697 = vadd.f32 %v7633, %v99
  %7698 = vst.msk [vmem:[%s10] sm:$0xff] %vm133, %v7634
  %7699 = vst.msk [vmem:[%s10 + $0x8] sm:$0xff] %vm133, %v7635
  %7700 = vst.msk [vmem:[%s10 + $0x10] sm:$0xff] %vm133, %v7636
  %7701 = vst.msk [vmem:[%s10 + $0x18] sm:$0xff] %vm133, %v7637
  %7702 = vst.msk [vmem:[%s10 + $0x20] sm:$0xff] %vm133, %v7638
  %7703 = vst.msk [vmem:[%s10 + $0x28] sm:$0xff] %vm133, %v7639
  %7704 = vst.msk [vmem:[%s10 + $0x30] sm:$0xff] %vm133, %v7640
  %7705 = vst.msk [vmem:[%s10 + $0x38] sm:$0xff] %vm133, %v7641
  %7706 = vst.msk [vmem:[%s10 + $0x40] sm:$0xff] %vm133, %v7642
  %7707 = vst.msk [vmem:[%s10 + $0x48] sm:$0xff] %vm133, %v7643
  %7708 = vst.msk [vmem:[%s10 + $0x50] sm:$0xff] %vm133, %v7644
  %7709 = vst.msk [vmem:[%s10 + $0x58] sm:$0xff] %vm133, %v7645
  %7710 = vst.msk [vmem:[%s10 + $0x60] sm:$0xff] %vm133, %v7646
  %7711 = vst.msk [vmem:[%s10 + $0x68] sm:$0xff] %vm133, %v7647
  %7712 = vst.msk [vmem:[%s10 + $0x70] sm:$0xff] %vm133, %v7648
  %7713 = vst.msk [vmem:[%s10 + $0x78] sm:$0xff] %vm133, %v7649
  %7714 = vst.msk [vmem:[%s10 + $0x80] sm:$0xff] %vm133, %v7650
  %7715 = vst.msk [vmem:[%s10 + $0x88] sm:$0xff] %vm133, %v7651
  %7716 = vst.msk [vmem:[%s10 + $0x90] sm:$0xff] %vm133, %v7652
  %7717 = vst.msk [vmem:[%s10 + $0x98] sm:$0xff] %vm133, %v7653
  %7718 = vst.msk [vmem:[%s10 + $0xa0] sm:$0xff] %vm133, %v7654
  %7719 = vst.msk [vmem:[%s10 + $0xa8] sm:$0xff] %vm133, %v7655
  %7720 = vst.msk [vmem:[%s10 + $0xb0] sm:$0xff] %vm133, %v7656
  %7721 = vst.msk [vmem:[%s10 + $0xb8] sm:$0xff] %vm133, %v7657
  %7722 = vst.msk [vmem:[%s10 + $0xc0] sm:$0xff] %vm133, %v7658
  %7723 = vst.msk [vmem:[%s10 + $0xc8] sm:$0xff] %vm133, %v7659
  %7724 = vst.msk [vmem:[%s10 + $0xd0] sm:$0xff] %vm133, %v7660
  %7725 = vst.msk [vmem:[%s10 + $0xd8] sm:$0xff] %vm133, %v7661
  %7726 = vst.msk [vmem:[%s10 + $0xe0] sm:$0xff] %vm133, %v7662
  %7727 = vst.msk [vmem:[%s10 + $0xe8] sm:$0xff] %vm133, %v7663
  %7728 = vst.msk [vmem:[%s10 + $0xf0] sm:$0xff] %vm133, %v7664
  %7729 = vst.msk [vmem:[%s10 + $0xf8] sm:$0xff] %vm133, %v7665
  %7730 = vst.msk [vmem:[%s10 + $0x100] sm:$0xff] %vm133, %v7666
  %7731 = vst.msk [vmem:[%s10 + $0x108] sm:$0xff] %vm133, %v7667
  %7732 = vst.msk [vmem:[%s10 + $0x110] sm:$0xff] %vm133, %v7668
  %7733 = vst.msk [vmem:[%s10 + $0x118] sm:$0xff] %vm133, %v7669
  %7734 = vst.msk [vmem:[%s10 + $0x120] sm:$0xff] %vm133, %v7670
  %7735 = vst.msk [vmem:[%s10 + $0x128] sm:$0xff] %vm133, %v7671
  %7736 = vst.msk [vmem:[%s10 + $0x130] sm:$0xff] %vm133, %v7672
  %7737 = vst.msk [vmem:[%s10 + $0x138] sm:$0xff] %vm133, %v7673
  %7738 = vst.msk [vmem:[%s10 + $0x140] sm:$0xff] %vm133, %v7674
  %7739 = vst.msk [vmem:[%s10 + $0x148] sm:$0xff] %vm133, %v7675
  %7740 = vst.msk [vmem:[%s10 + $0x150] sm:$0xff] %vm133, %v7676
  %7741 = vst.msk [vmem:[%s10 + $0x158] sm:$0xff] %vm133, %v7677
  %7742 = vst.msk [vmem:[%s10 + $0x160] sm:$0xff] %vm133, %v7678
  %7743 = vst.msk [vmem:[%s10 + $0x168] sm:$0xff] %vm133, %v7679
  %7744 = vst.msk [vmem:[%s10 + $0x170] sm:$0xff] %vm133, %v7680
  %7745 = vst.msk [vmem:[%s10 + $0x178] sm:$0xff] %vm133, %v7681
  %7746 = vst.msk [vmem:[%s10 + $0x180] sm:$0xff] %vm133, %v7682
  %7747 = vst.msk [vmem:[%s10 + $0x188] sm:$0xff] %vm133, %v7683
  %7748 = vst.msk [vmem:[%s10 + $0x190] sm:$0xff] %vm133, %v7684
  %7749 = vst.msk [vmem:[%s10 + $0x198] sm:$0xff] %vm133, %v7685
  %7750 = vst.msk [vmem:[%s10 + $0x1a0] sm:$0xff] %vm133, %v7686
  %7751 = vst.msk [vmem:[%s10 + $0x1a8] sm:$0xff] %vm133, %v7687
  %7752 = vst.msk [vmem:[%s10 + $0x1b0] sm:$0xff] %vm133, %v7688
  %7753 = vst.msk [vmem:[%s10 + $0x1b8] sm:$0xff] %vm133, %v7689
  %7754 = vst.msk [vmem:[%s10 + $0x1c0] sm:$0xff] %vm133, %v7690
  %7755 = vst.msk [vmem:[%s10 + $0x1c8] sm:$0xff] %vm133, %v7691
  %7756 = vst.msk [vmem:[%s10 + $0x1d0] sm:$0xff] %vm133, %v7692
  %7757 = vst.msk [vmem:[%s10 + $0x1d8] sm:$0xff] %vm133, %v7693
  %7758 = vst.msk [vmem:[%s10 + $0x1e0] sm:$0xff] %vm133, %v7694
  %7759 = vst.msk [vmem:[%s10 + $0x1e8] sm:$0xff] %vm133, %v7695
  %7760 = vst.msk [vmem:[%s10 + $0x1f0] sm:$0xff] %vm133, %v7696
  %7761 = vst.msk [vmem:[%s10 + $0x1f8] sm:$0xff] %vm133, %v7697
  // Predicated region
  $region42: #{tpu_custom_call.1} parent=0 // pred_check
    _
  $region43: #{tpu_custom_call.1} parent=0 // pred_check_branch
    %7763 = sbr.rel (0) target = $region45
  $region44: #{tpu_custom_call.1} parent=0 // pred_region
    _
  $region45: #{tpu_custom_call.1} parent=0 // pred_fallthru
    _
  // Predicated region
  $region46: #{tpu_custom_call.1} parent=0 // pred_check
    _
  $region47: #{tpu_custom_call.1} parent=0 // pred_check_branch
    %7765 = sbr.rel (0) target = $region49
  $region48: #{tpu_custom_call.1} parent=0 // pred_region
    _
  $region49: #{tpu_custom_call.1} parent=0 // pred_fallthru
    _

</llo_original>
